<compile_context>
chip_gen: v7x
topology: tpu7x:2x2x1
jax: 0.10.0
libtpu: 0.0.40
codegen_flags: <defaults>
</compile_context>

<pallas_src>
import functools

import numpy as np
import jax
import jax.numpy as jnp
from jax import lax
from jax.experimental import pallas as pl
from jax.experimental.pallas import tpu as pltpu


_ALPHA = 1.0   # molgradBlock hard-codes alpha = torch.tensor(1.0)


# ----------------------------------------------------------------------------
# fused kernel:  z = dw(x);  ata = A^T A x;  out = z - lam*(ata - Atb)
# ----------------------------------------------------------------------------
def _molgrad_kernel(n_layers, chans, h, w, nc,
                    lam_ref, x_ref, csr_ref, csi_ref, mask_ref, atb_ref,
                    frh_ref, fih_ref, frw_ref, fiw_ref, tmask_ref, *rest):
    # rest = (w0, b0, w1, b1, ..., o_ref)
    o_ref = rest[-1]
    w_refs = [rest[2 * l] for l in range(n_layers)]
    b_refs = [rest[2 * l + 1] for l in range(n_layers)]
    hw = h * w

    x = x_ref[...]                                      # (2, H, W), VMEM

    # ---------------- z = dw(x): fused 3x3 conv stack, channels-first flat -------------
    act = x.reshape(chans[0], hw)                       # (Cin, H*W): lane dim = H*W
    taps = [(kh - 1, kw - 1) for kh in range(3) for kw in range(3)]
    for l in range(n_layers):
        acc = None
        for t, (dh, dw_) in enumerate(taps):
            shift = (-(dh * w + dw_)) % hw              # static, non-negative
            tap = act if shift == 0 else pltpu.roll(act, shift, axis=1)
            if dh != 0 or dw_ != 0:
                tap = tap * tmask_ref[t]                # zero the wrapped border pixels
            part = jnp.dot(w_refs[l][t], tap,           # (Cout,Cin) @ (Cin,HW) on the MXU
                           preferred_element_type=jnp.float32)
            acc = part if acc is None else acc + part
        acc = acc + b_refs[l][...]                      # (Cout,1) bias, broadcast on lanes
        if l < n_layers - 1:
            acc = jnp.maximum(acc, 0.0)                 # ReLU between layers only
        act = acc
    z = act.reshape(chans[-1], h, w)                    # (2, H, W)

    # ---------------- A^T A: SENSE normal operator, coils handled in-kernel ------------
    xr, xi = x[0], x[1]                                 # (H, W)
    cr, ci = csr_ref[...], csi_ref[...]                 # (NC, H, W)
    m = mask_ref[...]                                   # (H, W)
    frh, fih = frh_ref[...], fih_ref[...]               # (H, H) ortho DFT (re, im)
    frw, fiw = frw_ref[...], fiw_ref[...]               # (W, W)

    def mm_right(a, b):
        # (NC, H, W) @ (W, W): coils merged into the matmul M dimension (free reshape)
        out = jnp.dot(a.reshape(nc * h, w), b, preferred_element_type=jnp.float32)
        return out.reshape(nc, h, w)

    def mm_left(a, b):
        # (H, H) @ (NC, H, W): coil-batched dot_general
        a3 = jnp.broadcast_to(a, (nc, h, h))
        return lax.dot_general(
            a3, b,
            dimension_numbers=(((2,), (1,)), ((0,), (0,))),
            preferred_element_type=jnp.float32)

    def cmul_mm(mm, ar, ai, br, bi):
        # Gauss / Karatsuba complex matmul: 3 real matmuls + cheap VPU adds
        k1 = mm(ar + ai, br)
        k2 = mm(ar, bi - br)
        k3 = mm(ai, br + bi)
        return k1 - k3, k1 + k2

    # coil images  Y_c = csm_c * x
    yr = cr * xr[None] - ci * xi[None]
    yi = cr * xi[None] + ci * xr[None]
    # forward orthonormal 2-D DFT:  K = F_H (Y F_W)
    rr, ri = cmul_mm(mm_right, yr, yi, frw, fiw)
    kr, ki = cmul_mm(mm_left, frh, fih, rr, ri)
    # k-space undersampling mask
    kr = kr * m[None]
    ki = ki * m[None]
    # inverse 2-D DFT:  B = conj(F_H) (K conj(F_W))
    sr, si = cmul_mm(mm_right, kr, ki, frw, -fiw)
    br_, bi_ = cmul_mm(mm_left, frh, -fih, sr, si)
    # ATA(x) = sum_c conj(csm_c) * B_c   (coil reduction in VMEM)
    ata_r = jnp.sum(cr * br_ + ci * bi_, axis=0)
    ata_i = jnp.sum(cr * bi_ - ci * br_, axis=0)

    # ---------------- fused combine: out = (1-alpha)*x + alpha*(z - lam*(ATA - Atb)) ---
    lam = lam_ref[0, 0]
    out_r = z[0] - lam * (ata_r - atb_ref[0])
    out_i = z[1] - lam * (ata_i - atb_ref[1])
    if _ALPHA != 1.0:     # static python branch; the x term is exactly zero when alpha==1
        out_r = (1.0 - _ALPHA) * xr + _ALPHA * out_r
        out_i = (1.0 - _ALPHA) * xi + _ALPHA * out_i
    o_ref[0] = out_r
    o_ref[1] = out_i


# ----------------------------------------------------------------------------
# wrapper
# ----------------------------------------------------------------------------
def dft_matrix(n):
    k = jnp.arange(n, dtype=jnp.float32)
    ang = -2.0 * jnp.pi * jnp.outer(k, k) / n
    s = 1.0 / jnp.sqrt(jnp.float32(n))
    return (jnp.cos(ang) * s).astype(jnp.float32), (jnp.sin(ang) * s).astype(jnp.float32)


def _tap_masks(h, w):
    # mask[t, 0, p] = 1 iff pixel p=(i,j) has its (i+dh, j+dw) neighbour inside the image
    ii, jj = np.meshgrid(np.arange(h), np.arange(w), indexing="ij")
    masks = np.zeros((9, 1, h * w), np.float32)
    t = 0
    for kh in range(3):
        for kw in range(3):
            dh, dw = kh - 1, kw - 1
            valid = ((ii + dh >= 0) & (ii + dh < h) & (jj + dw >= 0) & (jj + dw < w))
            masks[t, 0] = valid.reshape(-1).astype(np.float32)
            t += 1
    return jnp.asarray(masks)


def molgrad_block_forward(x, atb, csm_r, csm_i, mask, weights, biases, lam):
    n, c, h, w = x.shape
    nc = csm_r.shape[1]
    n_layers = len(weights)
    chans = [c] + [wt.shape[-1] for wt in weights]
    assert chans[0] == 2 and chans[-1] == 2, "dw must map 2 -> 2 channels (re, im)"

    # HWIO (3,3,Cin,Cout) -> per-tap (9, Cout, Cin); bias (Cout,) -> (Cout, 1)
    w_taps = [jnp.transpose(wt.reshape(9, wt.shape[2], wt.shape[3]), (0, 2, 1))
              for wt in weights]
    b_cols = [bs.reshape(-1, 1) for bs in biases]

    frh, fih = dft_matrix(h)
    frw, fiw = dft_matrix(w)
    tmask = _tap_masks(h, w)                                  # (9, 1, H*W)
    lam_arr = jnp.full((1, 1), lam, jnp.float32)

    img_spec = pl.BlockSpec((None, 2, h, w), lambda b: (b, 0, 0, 0))
    csm_spec = pl.BlockSpec((None, nc, h, w), lambda b: (b, 0, 0, 0))

    in_specs = [
        pl.BlockSpec(memory_space=pltpu.MemorySpace.SMEM),    # lam scalar
        img_spec,                                             # x
        csm_spec,                                             # csm_r
        csm_spec,                                             # csm_i
        pl.BlockSpec((None, h, w), lambda b: (b, 0, 0)),      # mask
        img_spec,                                             # Atb
        pl.BlockSpec((h, h), lambda b: (0, 0)),               # F_H real
        pl.BlockSpec((h, h), lambda b: (0, 0)),               # F_H imag
        pl.BlockSpec((w, w), lambda b: (0, 0)),               # F_W real
        pl.BlockSpec((w, w), lambda b: (0, 0)),               # F_W imag
        pl.BlockSpec((9, 1, h * w), lambda b: (0, 0, 0)),     # 3x3 tap border masks
    ]
    args = [lam_arr, x, csm_r, csm_i, mask, atb, frh, fih, frw, fiw, tmask]
    for wt, bs in zip(w_taps, b_cols):
        in_specs.append(pl.BlockSpec(wt.shape, lambda b: (0, 0, 0)))
        in_specs.append(pl.BlockSpec(bs.shape, lambda b: (0, 0)))
        args.append(wt)
        args.append(bs)

    return pl.pallas_call(
        functools.partial(_molgrad_kernel, n_layers, tuple(chans), h, w, nc),
        out_shape=jax.ShapeDtypeStruct((n, 2, h, w), jnp.float32),
        grid=(n,),
        in_specs=in_specs,
        out_specs=img_spec,
        compiler_params=pltpu.CompilerParams(dimension_semantics=("parallel",)),
    )(*args)


# ----------------------------------------------------------------------------
# pure-JAX reference (for correctness check only)
# ----------------------------------------------------------------------------
def reference_forward(x, atb, csm_r, csm_i, mask, weights, biases, lam):
    hid = jnp.transpose(x, (0, 2, 3, 1))
    for i, (wt, bs) in enumerate(zip(weights, biases)):
        hid = lax.conv_general_dilated(
            hid, wt, (1, 1), "SAME",
            dimension_numbers=("NHWC", "HWIO", "NHWC")) + bs
        if i < len(weights) - 1:
            hid = jnp.maximum(hid, 0.0)
    z = jnp.transpose(hid, (0, 3, 1, 2))

    xc = x[:, 0] + 1j * x[:, 1]                                # [N, H, W]
    csm_c = csm_r + 1j * csm_i                                 # [N, NC, H, W]
    y = csm_c * xc[:, None]
    k = jnp.fft.fft2(y, norm="ortho") * mask[:, None]
    img = jnp.fft.ifft2(k, norm="ortho")
    ata_c = jnp.sum(jnp.conj(csm_c) * img, axis=1)
    ata = jnp.stack([jnp.real(ata_c), jnp.imag(ata_c)], axis=1).astype(jnp.float32)

    dcg = lam * (ata - atb)
    alpha = 1.0
    return (1.0 - alpha) * x + alpha * (z - dcg)


if __name__ == "__main__":
    key = jax.random.PRNGKey(0)
    N, H, W, NC = 2, 16, 16, 4
    in_ch, feats, out_ch, n_layers = 2, 8, 2, 3
    lam = 0.05

    ks = jax.random.split(key, 6)
    x = jax.random.normal(ks[0], (N, 2, H, W), jnp.float32)
    atb = jax.random.normal(ks[1], (N, 2, H, W), jnp.float32)
    csm_r = 0.5 * jax.random.normal(ks[2], (N, NC, H, W), jnp.float32)
    csm_i = 0.5 * jax.random.normal(ks[3], (N, NC, H, W), jnp.float32)
    mask = (jax.random.uniform(ks[4], (N, H, W)) > 0.5).astype(jnp.float32)

    # deterministic synthetic dwblock params: Conv2d(cin->cout, 3x3, pad=1) stack (HWIO)
    chans = [in_ch] + [feats] * (n_layers - 1) + [out_ch]
    weights, biases = [], []
    for i in range(n_layers):
        wk, bk = jax.random.split(jax.random.fold_in(ks[5], i))
        weights.append(0.1 * jax.random.normal(wk, (3, 3, chans[i], chans[i + 1]), jnp.float32))
        biases.append(0.01 * jax.random.normal(bk, (chans[i + 1],), jnp.float32))

    out = molgrad_block_forward(x, atb, csm_r, csm_i, mask, weights, biases, lam)
    out = jax.block_until_ready(out)

    ref = reference_forward(x, atb, csm_r, csm_i, mask, weights, biases, lam)
    np.testing.assert_allclose(np.asarray(out), np.asarray(ref), rtol=2e-2, atol=2e-2)

    print("KERNEL_OK")
</pallas_src>

<mosaic_0001>
module attributes {stable_mosaic.version = 11 : i64} {
  func.func @_molgrad_kernel(%arg0: i32, %arg1: memref<1x1xf32, #tpu.memory_space<smem>>, %arg2: memref<1x2x16x16xf32, #tpu.memory_space<vmem>>, %arg3: memref<1x4x16x16xf32, #tpu.memory_space<vmem>>, %arg4: memref<1x4x16x16xf32, #tpu.memory_space<vmem>>, %arg5: memref<1x16x16xf32, #tpu.memory_space<vmem>>, %arg6: memref<1x2x16x16xf32, #tpu.memory_space<vmem>>, %arg7: memref<16x16xf32, #tpu.memory_space<vmem>>, %arg8: memref<16x16xf32, #tpu.memory_space<vmem>>, %arg9: memref<16x16xf32, #tpu.memory_space<vmem>>, %arg10: memref<16x16xf32, #tpu.memory_space<vmem>>, %arg11: memref<9x1x256xf32, #tpu.memory_space<vmem>>, %arg12: memref<9x8x2xf32, #tpu.memory_space<vmem>>, %arg13: memref<8x1xf32, #tpu.memory_space<vmem>>, %arg14: memref<9x8x8xf32, #tpu.memory_space<vmem>>, %arg15: memref<8x1xf32, #tpu.memory_space<vmem>>, %arg16: memref<9x2x8xf32, #tpu.memory_space<vmem>>, %arg17: memref<2x1xf32, #tpu.memory_space<vmem>>, %arg18: memref<1x2x16x16xf32, #tpu.memory_space<vmem>>) attributes {dimension_semantics = [#tpu.dimension_semantics<parallel>], iteration_bounds = array<i64: 2>, scalar_prefetch = 0 : i64, scratch_operands = 0 : i64, tpu.core_type = #tpu.core_type<tc>, window_params = [{transform_indices = @transform_0, window_bounds = array<i64: 1, 1>}, {transform_indices = @transform_1, window_bounds = array<i64: 1, 2, 16, 16>}, {transform_indices = @transform_2, window_bounds = array<i64: 1, 4, 16, 16>}, {transform_indices = @transform_3, window_bounds = array<i64: 1, 4, 16, 16>}, {transform_indices = @transform_4, window_bounds = array<i64: 1, 16, 16>}, {transform_indices = @transform_5, window_bounds = array<i64: 1, 2, 16, 16>}, {pipeline_mode = #tpu.pipeline_mode<synchronous>, transform_indices = @transform_6, window_bounds = array<i64: 16, 16>}, {pipeline_mode = #tpu.pipeline_mode<synchronous>, transform_indices = @transform_7, window_bounds = array<i64: 16, 16>}, {pipeline_mode = #tpu.pipeline_mode<synchronous>, transform_indices = @transform_8, window_bounds = array<i64: 16, 16>}, {pipeline_mode = #tpu.pipeline_mode<synchronous>, transform_indices = @transform_9, window_bounds = array<i64: 16, 16>}, {pipeline_mode = #tpu.pipeline_mode<synchronous>, transform_indices = @transform_10, window_bounds = array<i64: 9, 1, 256>}, {pipeline_mode = #tpu.pipeline_mode<synchronous>, transform_indices = @transform_11, window_bounds = array<i64: 9, 8, 2>}, {pipeline_mode = #tpu.pipeline_mode<synchronous>, transform_indices = @transform_12, window_bounds = array<i64: 8, 1>}, {pipeline_mode = #tpu.pipeline_mode<synchronous>, transform_indices = @transform_13, window_bounds = array<i64: 9, 8, 8>}, {pipeline_mode = #tpu.pipeline_mode<synchronous>, transform_indices = @transform_14, window_bounds = array<i64: 8, 1>}, {pipeline_mode = #tpu.pipeline_mode<synchronous>, transform_indices = @transform_15, window_bounds = array<i64: 9, 2, 8>}, {pipeline_mode = #tpu.pipeline_mode<synchronous>, transform_indices = @transform_16, window_bounds = array<i64: 2, 1>}, {transform_indices = @transform_17, window_bounds = array<i64: 1, 2, 16, 16>}]} {
    %c0 = arith.constant 0 : index
    %c0_0 = arith.constant 0 : index
    %c0_1 = arith.constant 0 : index
    %c0_2 = arith.constant 0 : index
    %0 = vector.load %arg2[%c0, %c0_0, %c0_1, %c0_2] : memref<1x2x16x16xf32, #tpu.memory_space<vmem>>, vector<1x2x16x16xf32>
    %1 = vector.shape_cast %0 : vector<1x2x16x16xf32> to vector<2x16x16xf32>
    %2 = vector.shape_cast %1 : vector<2x16x16xf32> to vector<2x256xf32>
    %c17_i32 = arith.constant 17 : i32
    %3 = tpu.dynamic_rotate %2 by %c17_i32 dim 1 : vector<2x256xf32>, i32 -> vector<2x256xf32>
    %c0_3 = arith.constant 0 : index
    %c0_4 = arith.constant 0 : index
    %c0_5 = arith.constant 0 : index
    %4 = vector.load %arg11[%c0_3, %c0_4, %c0_5] : memref<9x1x256xf32, #tpu.memory_space<vmem>>, vector<1x1x256xf32>
    %5 = vector.shape_cast %4 : vector<1x1x256xf32> to vector<1x256xf32>
    %6 = vector.broadcast %5 : vector<1x256xf32> to vector<2x256xf32>
    %7 = arith.mulf %3, %6 : vector<2x256xf32>
    %c0_6 = arith.constant 0 : index
    %c0_7 = arith.constant 0 : index
    %c0_8 = arith.constant 0 : index
    %8 = vector.load %arg12[%c0_6, %c0_7, %c0_8] : memref<9x8x2xf32, #tpu.memory_space<vmem>>, vector<1x8x2xf32>
    %9 = vector.shape_cast %8 : vector<1x8x2xf32> to vector<8x2xf32>
    %cst = arith.constant dense<0.000000e+00> : vector<8x256xf32>
    %10 = tpu.matmul %9, %7, %cst {dimension_numbers = #tpu.dot_dimension_numbers<[1], [0], [0], [1], [0, 0, 1, 1], [], []>} : vector<8x2xf32>, vector<2x256xf32>, vector<8x256xf32> -> vector<8x256xf32>
    %c16_i32 = arith.constant 16 : i32
    %11 = tpu.dynamic_rotate %2 by %c16_i32 dim 1 : vector<2x256xf32>, i32 -> vector<2x256xf32>
    %c1 = arith.constant 1 : index
    %c0_9 = arith.constant 0 : index
    %c0_10 = arith.constant 0 : index
    %12 = vector.load %arg11[%c1, %c0_9, %c0_10] : memref<9x1x256xf32, #tpu.memory_space<vmem>>, vector<1x1x256xf32>
    %13 = vector.shape_cast %12 : vector<1x1x256xf32> to vector<1x256xf32>
    %14 = vector.broadcast %13 : vector<1x256xf32> to vector<2x256xf32>
    %15 = arith.mulf %11, %14 : vector<2x256xf32>
    %c1_11 = arith.constant 1 : index
    %c0_12 = arith.constant 0 : index
    %c0_13 = arith.constant 0 : index
    %16 = vector.load %arg12[%c1_11, %c0_12, %c0_13] : memref<9x8x2xf32, #tpu.memory_space<vmem>>, vector<1x8x2xf32>
    %17 = vector.shape_cast %16 : vector<1x8x2xf32> to vector<8x2xf32>
    %cst_14 = arith.constant dense<0.000000e+00> : vector<8x256xf32>
    %18 = tpu.matmul %17, %15, %cst_14 {dimension_numbers = #tpu.dot_dimension_numbers<[1], [0], [0], [1], [0, 0, 1, 1], [], []>} : vector<8x2xf32>, vector<2x256xf32>, vector<8x256xf32> -> vector<8x256xf32>
    %19 = arith.addf %10, %18 : vector<8x256xf32>
    %c15_i32 = arith.constant 15 : i32
    %20 = tpu.dynamic_rotate %2 by %c15_i32 dim 1 : vector<2x256xf32>, i32 -> vector<2x256xf32>
    %c2 = arith.constant 2 : index
    %c0_15 = arith.constant 0 : index
    %c0_16 = arith.constant 0 : index
    %21 = vector.load %arg11[%c2, %c0_15, %c0_16] : memref<9x1x256xf32, #tpu.memory_space<vmem>>, vector<1x1x256xf32>
    %22 = vector.shape_cast %21 : vector<1x1x256xf32> to vector<1x256xf32>
    %23 = vector.broadcast %22 : vector<1x256xf32> to vector<2x256xf32>
    %24 = arith.mulf %20, %23 : vector<2x256xf32>
    %c2_17 = arith.constant 2 : index
    %c0_18 = arith.constant 0 : index
    %c0_19 = arith.constant 0 : index
    %25 = vector.load %arg12[%c2_17, %c0_18, %c0_19] : memref<9x8x2xf32, #tpu.memory_space<vmem>>, vector<1x8x2xf32>
    %26 = vector.shape_cast %25 : vector<1x8x2xf32> to vector<8x2xf32>
    %cst_20 = arith.constant dense<0.000000e+00> : vector<8x256xf32>
    %27 = tpu.matmul %26, %24, %cst_20 {dimension_numbers = #tpu.dot_dimension_numbers<[1], [0], [0], [1], [0, 0, 1, 1], [], []>} : vector<8x2xf32>, vector<2x256xf32>, vector<8x256xf32> -> vector<8x256xf32>
    %28 = arith.addf %19, %27 : vector<8x256xf32>
    %c1_i32 = arith.constant 1 : i32
    %29 = tpu.dynamic_rotate %2 by %c1_i32 dim 1 : vector<2x256xf32>, i32 -> vector<2x256xf32>
    %c3 = arith.constant 3 : index
    %c0_21 = arith.constant 0 : index
    %c0_22 = arith.constant 0 : index
    %30 = vector.load %arg11[%c3, %c0_21, %c0_22] : memref<9x1x256xf32, #tpu.memory_space<vmem>>, vector<1x1x256xf32>
    %31 = vector.shape_cast %30 : vector<1x1x256xf32> to vector<1x256xf32>
    %32 = vector.broadcast %31 : vector<1x256xf32> to vector<2x256xf32>
    %33 = arith.mulf %29, %32 : vector<2x256xf32>
    %c3_23 = arith.constant 3 : index
    %c0_24 = arith.constant 0 : index
    %c0_25 = arith.constant 0 : index
    %34 = vector.load %arg12[%c3_23, %c0_24, %c0_25] : memref<9x8x2xf32, #tpu.memory_space<vmem>>, vector<1x8x2xf32>
    %35 = vector.shape_cast %34 : vector<1x8x2xf32> to vector<8x2xf32>
    %cst_26 = arith.constant dense<0.000000e+00> : vector<8x256xf32>
    %36 = tpu.matmul %35, %33, %cst_26 {dimension_numbers = #tpu.dot_dimension_numbers<[1], [0], [0], [1], [0, 0, 1, 1], [], []>} : vector<8x2xf32>, vector<2x256xf32>, vector<8x256xf32> -> vector<8x256xf32>
    %37 = arith.addf %28, %36 : vector<8x256xf32>
    %c4 = arith.constant 4 : index
    %c0_27 = arith.constant 0 : index
    %c0_28 = arith.constant 0 : index
    %38 = vector.load %arg12[%c4, %c0_27, %c0_28] : memref<9x8x2xf32, #tpu.memory_space<vmem>>, vector<1x8x2xf32>
    %39 = vector.shape_cast %38 : vector<1x8x2xf32> to vector<8x2xf32>
    %cst_29 = arith.constant dense<0.000000e+00> : vector<8x256xf32>
    %40 = tpu.matmul %39, %2, %cst_29 {dimension_numbers = #tpu.dot_dimension_numbers<[1], [0], [0], [1], [0, 0, 1, 1], [], []>} : vector<8x2xf32>, vector<2x256xf32>, vector<8x256xf32> -> vector<8x256xf32>
    %41 = arith.addf %37, %40 : vector<8x256xf32>
    %c255_i32 = arith.constant 255 : i32
    %42 = tpu.dynamic_rotate %2 by %c255_i32 dim 1 : vector<2x256xf32>, i32 -> vector<2x256xf32>
    %c5 = arith.constant 5 : index
    %c0_30 = arith.constant 0 : index
    %c0_31 = arith.constant 0 : index
    %43 = vector.load %arg11[%c5, %c0_30, %c0_31] : memref<9x1x256xf32, #tpu.memory_space<vmem>>, vector<1x1x256xf32>
    %44 = vector.shape_cast %43 : vector<1x1x256xf32> to vector<1x256xf32>
    %45 = vector.broadcast %44 : vector<1x256xf32> to vector<2x256xf32>
    %46 = arith.mulf %42, %45 : vector<2x256xf32>
    %c5_32 = arith.constant 5 : index
    %c0_33 = arith.constant 0 : index
    %c0_34 = arith.constant 0 : index
    %47 = vector.load %arg12[%c5_32, %c0_33, %c0_34] : memref<9x8x2xf32, #tpu.memory_space<vmem>>, vector<1x8x2xf32>
    %48 = vector.shape_cast %47 : vector<1x8x2xf32> to vector<8x2xf32>
    %cst_35 = arith.constant dense<0.000000e+00> : vector<8x256xf32>
    %49 = tpu.matmul %48, %46, %cst_35 {dimension_numbers = #tpu.dot_dimension_numbers<[1], [0], [0], [1], [0, 0, 1, 1], [], []>} : vector<8x2xf32>, vector<2x256xf32>, vector<8x256xf32> -> vector<8x256xf32>
    %50 = arith.addf %41, %49 : vector<8x256xf32>
    %c241_i32 = arith.constant 241 : i32
    %51 = tpu.dynamic_rotate %2 by %c241_i32 dim 1 : vector<2x256xf32>, i32 -> vector<2x256xf32>
    %c6 = arith.constant 6 : index
    %c0_36 = arith.constant 0 : index
    %c0_37 = arith.constant 0 : index
    %52 = vector.load %arg11[%c6, %c0_36, %c0_37] : memref<9x1x256xf32, #tpu.memory_space<vmem>>, vector<1x1x256xf32>
    %53 = vector.shape_cast %52 : vector<1x1x256xf32> to vector<1x256xf32>
    %54 = vector.broadcast %53 : vector<1x256xf32> to vector<2x256xf32>
    %55 = arith.mulf %51, %54 : vector<2x256xf32>
    %c6_38 = arith.constant 6 : index
    %c0_39 = arith.constant 0 : index
    %c0_40 = arith.constant 0 : index
    %56 = vector.load %arg12[%c6_38, %c0_39, %c0_40] : memref<9x8x2xf32, #tpu.memory_space<vmem>>, vector<1x8x2xf32>
    %57 = vector.shape_cast %56 : vector<1x8x2xf32> to vector<8x2xf32>
    %cst_41 = arith.constant dense<0.000000e+00> : vector<8x256xf32>
    %58 = tpu.matmul %57, %55, %cst_41 {dimension_numbers = #tpu.dot_dimension_numbers<[1], [0], [0], [1], [0, 0, 1, 1], [], []>} : vector<8x2xf32>, vector<2x256xf32>, vector<8x256xf32> -> vector<8x256xf32>
    %59 = arith.addf %50, %58 : vector<8x256xf32>
    %c240_i32 = arith.constant 240 : i32
    %60 = tpu.dynamic_rotate %2 by %c240_i32 dim 1 : vector<2x256xf32>, i32 -> vector<2x256xf32>
    %c7 = arith.constant 7 : index
    %c0_42 = arith.constant 0 : index
    %c0_43 = arith.constant 0 : index
    %61 = vector.load %arg11[%c7, %c0_42, %c0_43] : memref<9x1x256xf32, #tpu.memory_space<vmem>>, vector<1x1x256xf32>
    %62 = vector.shape_cast %61 : vector<1x1x256xf32> to vector<1x256xf32>
    %63 = vector.broadcast %62 : vector<1x256xf32> to vector<2x256xf32>
    %64 = arith.mulf %60, %63 : vector<2x256xf32>
    %c7_44 = arith.constant 7 : index
    %c0_45 = arith.constant 0 : index
    %c0_46 = arith.constant 0 : index
    %65 = vector.load %arg12[%c7_44, %c0_45, %c0_46] : memref<9x8x2xf32, #tpu.memory_space<vmem>>, vector<1x8x2xf32>
    %66 = vector.shape_cast %65 : vector<1x8x2xf32> to vector<8x2xf32>
    %cst_47 = arith.constant dense<0.000000e+00> : vector<8x256xf32>
    %67 = tpu.matmul %66, %64, %cst_47 {dimension_numbers = #tpu.dot_dimension_numbers<[1], [0], [0], [1], [0, 0, 1, 1], [], []>} : vector<8x2xf32>, vector<2x256xf32>, vector<8x256xf32> -> vector<8x256xf32>
    %68 = arith.addf %59, %67 : vector<8x256xf32>
    %c239_i32 = arith.constant 239 : i32
    %69 = tpu.dynamic_rotate %2 by %c239_i32 dim 1 : vector<2x256xf32>, i32 -> vector<2x256xf32>
    %c8 = arith.constant 8 : index
    %c0_48 = arith.constant 0 : index
    %c0_49 = arith.constant 0 : index
    %70 = vector.load %arg11[%c8, %c0_48, %c0_49] : memref<9x1x256xf32, #tpu.memory_space<vmem>>, vector<1x1x256xf32>
    %71 = vector.shape_cast %70 : vector<1x1x256xf32> to vector<1x256xf32>
    %72 = vector.broadcast %71 : vector<1x256xf32> to vector<2x256xf32>
    %73 = arith.mulf %69, %72 : vector<2x256xf32>
    %c8_50 = arith.constant 8 : index
    %c0_51 = arith.constant 0 : index
    %c0_52 = arith.constant 0 : index
    %74 = vector.load %arg12[%c8_50, %c0_51, %c0_52] : memref<9x8x2xf32, #tpu.memory_space<vmem>>, vector<1x8x2xf32>
    %75 = vector.shape_cast %74 : vector<1x8x2xf32> to vector<8x2xf32>
    %cst_53 = arith.constant dense<0.000000e+00> : vector<8x256xf32>
    %76 = tpu.matmul %75, %73, %cst_53 {dimension_numbers = #tpu.dot_dimension_numbers<[1], [0], [0], [1], [0, 0, 1, 1], [], []>} : vector<8x2xf32>, vector<2x256xf32>, vector<8x256xf32> -> vector<8x256xf32>
    %77 = arith.addf %68, %76 : vector<8x256xf32>
    %c0_54 = arith.constant 0 : index
    %c0_55 = arith.constant 0 : index
    %78 = vector.load %arg13[%c0_54, %c0_55] : memref<8x1xf32, #tpu.memory_space<vmem>>, vector<8x1xf32>
    %79 = vector.broadcast %78 : vector<8x1xf32> to vector<8x256xf32>
    %80 = arith.addf %77, %79 : vector<8x256xf32>
    %cst_56 = arith.constant 0.000000e+00 : f32
    %81 = vector.broadcast %cst_56 : f32 to vector<8x256xf32>
    %82 = arith.maximumf %80, %81 : vector<8x256xf32>
    %c17_i32_57 = arith.constant 17 : i32
    %83 = tpu.dynamic_rotate %82 by %c17_i32_57 dim 1 : vector<8x256xf32>, i32 -> vector<8x256xf32>
    %c0_58 = arith.constant 0 : index
    %c0_59 = arith.constant 0 : index
    %c0_60 = arith.constant 0 : index
    %84 = vector.load %arg11[%c0_58, %c0_59, %c0_60] : memref<9x1x256xf32, #tpu.memory_space<vmem>>, vector<1x1x256xf32>
    %85 = vector.shape_cast %84 : vector<1x1x256xf32> to vector<1x256xf32>
    %86 = vector.broadcast %85 : vector<1x256xf32> to vector<8x256xf32>
    %87 = arith.mulf %83, %86 : vector<8x256xf32>
    %c0_61 = arith.constant 0 : index
    %c0_62 = arith.constant 0 : index
    %c0_63 = arith.constant 0 : index
    %88 = vector.load %arg14[%c0_61, %c0_62, %c0_63] : memref<9x8x8xf32, #tpu.memory_space<vmem>>, vector<1x8x8xf32>
    %89 = vector.shape_cast %88 : vector<1x8x8xf32> to vector<8x8xf32>
    %cst_64 = arith.constant dense<0.000000e+00> : vector<8x256xf32>
    %90 = tpu.matmul %89, %87, %cst_64 {dimension_numbers = #tpu.dot_dimension_numbers<[1], [0], [0], [1], [0, 0, 1, 1], [], []>} : vector<8x8xf32>, vector<8x256xf32>, vector<8x256xf32> -> vector<8x256xf32>
    %c16_i32_65 = arith.constant 16 : i32
    %91 = tpu.dynamic_rotate %82 by %c16_i32_65 dim 1 : vector<8x256xf32>, i32 -> vector<8x256xf32>
    %c1_66 = arith.constant 1 : index
    %c0_67 = arith.constant 0 : index
    %c0_68 = arith.constant 0 : index
    %92 = vector.load %arg11[%c1_66, %c0_67, %c0_68] : memref<9x1x256xf32, #tpu.memory_space<vmem>>, vector<1x1x256xf32>
    %93 = vector.shape_cast %92 : vector<1x1x256xf32> to vector<1x256xf32>
    %94 = vector.broadcast %93 : vector<1x256xf32> to vector<8x256xf32>
    %95 = arith.mulf %91, %94 : vector<8x256xf32>
    %c1_69 = arith.constant 1 : index
    %c0_70 = arith.constant 0 : index
    %c0_71 = arith.constant 0 : index
    %96 = vector.load %arg14[%c1_69, %c0_70, %c0_71] : memref<9x8x8xf32, #tpu.memory_space<vmem>>, vector<1x8x8xf32>
    %97 = vector.shape_cast %96 : vector<1x8x8xf32> to vector<8x8xf32>
    %cst_72 = arith.constant dense<0.000000e+00> : vector<8x256xf32>
    %98 = tpu.matmul %97, %95, %cst_72 {dimension_numbers = #tpu.dot_dimension_numbers<[1], [0], [0], [1], [0, 0, 1, 1], [], []>} : vector<8x8xf32>, vector<8x256xf32>, vector<8x256xf32> -> vector<8x256xf32>
    %99 = arith.addf %90, %98 : vector<8x256xf32>
    %c15_i32_73 = arith.constant 15 : i32
    %100 = tpu.dynamic_rotate %82 by %c15_i32_73 dim 1 : vector<8x256xf32>, i32 -> vector<8x256xf32>
    %c2_74 = arith.constant 2 : index
    %c0_75 = arith.constant 0 : index
    %c0_76 = arith.constant 0 : index
    %101 = vector.load %arg11[%c2_74, %c0_75, %c0_76] : memref<9x1x256xf32, #tpu.memory_space<vmem>>, vector<1x1x256xf32>
    %102 = vector.shape_cast %101 : vector<1x1x256xf32> to vector<1x256xf32>
    %103 = vector.broadcast %102 : vector<1x256xf32> to vector<8x256xf32>
    %104 = arith.mulf %100, %103 : vector<8x256xf32>
    %c2_77 = arith.constant 2 : index
    %c0_78 = arith.constant 0 : index
    %c0_79 = arith.constant 0 : index
    %105 = vector.load %arg14[%c2_77, %c0_78, %c0_79] : memref<9x8x8xf32, #tpu.memory_space<vmem>>, vector<1x8x8xf32>
    %106 = vector.shape_cast %105 : vector<1x8x8xf32> to vector<8x8xf32>
    %cst_80 = arith.constant dense<0.000000e+00> : vector<8x256xf32>
    %107 = tpu.matmul %106, %104, %cst_80 {dimension_numbers = #tpu.dot_dimension_numbers<[1], [0], [0], [1], [0, 0, 1, 1], [], []>} : vector<8x8xf32>, vector<8x256xf32>, vector<8x256xf32> -> vector<8x256xf32>
    %108 = arith.addf %99, %107 : vector<8x256xf32>
    %c1_i32_81 = arith.constant 1 : i32
    %109 = tpu.dynamic_rotate %82 by %c1_i32_81 dim 1 : vector<8x256xf32>, i32 -> vector<8x256xf32>
    %c3_82 = arith.constant 3 : index
    %c0_83 = arith.constant 0 : index
    %c0_84 = arith.constant 0 : index
    %110 = vector.load %arg11[%c3_82, %c0_83, %c0_84] : memref<9x1x256xf32, #tpu.memory_space<vmem>>, vector<1x1x256xf32>
    %111 = vector.shape_cast %110 : vector<1x1x256xf32> to vector<1x256xf32>
    %112 = vector.broadcast %111 : vector<1x256xf32> to vector<8x256xf32>
    %113 = arith.mulf %109, %112 : vector<8x256xf32>
    %c3_85 = arith.constant 3 : index
    %c0_86 = arith.constant 0 : index
    %c0_87 = arith.constant 0 : index
    %114 = vector.load %arg14[%c3_85, %c0_86, %c0_87] : memref<9x8x8xf32, #tpu.memory_space<vmem>>, vector<1x8x8xf32>
    %115 = vector.shape_cast %114 : vector<1x8x8xf32> to vector<8x8xf32>
    %cst_88 = arith.constant dense<0.000000e+00> : vector<8x256xf32>
    %116 = tpu.matmul %115, %113, %cst_88 {dimension_numbers = #tpu.dot_dimension_numbers<[1], [0], [0], [1], [0, 0, 1, 1], [], []>} : vector<8x8xf32>, vector<8x256xf32>, vector<8x256xf32> -> vector<8x256xf32>
    %117 = arith.addf %108, %116 : vector<8x256xf32>
    %c4_89 = arith.constant 4 : index
    %c0_90 = arith.constant 0 : index
    %c0_91 = arith.constant 0 : index
    %118 = vector.load %arg14[%c4_89, %c0_90, %c0_91] : memref<9x8x8xf32, #tpu.memory_space<vmem>>, vector<1x8x8xf32>
    %119 = vector.shape_cast %118 : vector<1x8x8xf32> to vector<8x8xf32>
    %cst_92 = arith.constant dense<0.000000e+00> : vector<8x256xf32>
    %120 = tpu.matmul %119, %82, %cst_92 {dimension_numbers = #tpu.dot_dimension_numbers<[1], [0], [0], [1], [0, 0, 1, 1], [], []>} : vector<8x8xf32>, vector<8x256xf32>, vector<8x256xf32> -> vector<8x256xf32>
    %121 = arith.addf %117, %120 : vector<8x256xf32>
    %c255_i32_93 = arith.constant 255 : i32
    %122 = tpu.dynamic_rotate %82 by %c255_i32_93 dim 1 : vector<8x256xf32>, i32 -> vector<8x256xf32>
    %c5_94 = arith.constant 5 : index
    %c0_95 = arith.constant 0 : index
    %c0_96 = arith.constant 0 : index
    %123 = vector.load %arg11[%c5_94, %c0_95, %c0_96] : memref<9x1x256xf32, #tpu.memory_space<vmem>>, vector<1x1x256xf32>
    %124 = vector.shape_cast %123 : vector<1x1x256xf32> to vector<1x256xf32>
    %125 = vector.broadcast %124 : vector<1x256xf32> to vector<8x256xf32>
    %126 = arith.mulf %122, %125 : vector<8x256xf32>
    %c5_97 = arith.constant 5 : index
    %c0_98 = arith.constant 0 : index
    %c0_99 = arith.constant 0 : index
    %127 = vector.load %arg14[%c5_97, %c0_98, %c0_99] : memref<9x8x8xf32, #tpu.memory_space<vmem>>, vector<1x8x8xf32>
    %128 = vector.shape_cast %127 : vector<1x8x8xf32> to vector<8x8xf32>
    %cst_100 = arith.constant dense<0.000000e+00> : vector<8x256xf32>
    %129 = tpu.matmul %128, %126, %cst_100 {dimension_numbers = #tpu.dot_dimension_numbers<[1], [0], [0], [1], [0, 0, 1, 1], [], []>} : vector<8x8xf32>, vector<8x256xf32>, vector<8x256xf32> -> vector<8x256xf32>
    %130 = arith.addf %121, %129 : vector<8x256xf32>
    %c241_i32_101 = arith.constant 241 : i32
    %131 = tpu.dynamic_rotate %82 by %c241_i32_101 dim 1 : vector<8x256xf32>, i32 -> vector<8x256xf32>
    %c6_102 = arith.constant 6 : index
    %c0_103 = arith.constant 0 : index
    %c0_104 = arith.constant 0 : index
    %132 = vector.load %arg11[%c6_102, %c0_103, %c0_104] : memref<9x1x256xf32, #tpu.memory_space<vmem>>, vector<1x1x256xf32>
    %133 = vector.shape_cast %132 : vector<1x1x256xf32> to vector<1x256xf32>
    %134 = vector.broadcast %133 : vector<1x256xf32> to vector<8x256xf32>
    %135 = arith.mulf %131, %134 : vector<8x256xf32>
    %c6_105 = arith.constant 6 : index
    %c0_106 = arith.constant 0 : index
    %c0_107 = arith.constant 0 : index
    %136 = vector.load %arg14[%c6_105, %c0_106, %c0_107] : memref<9x8x8xf32, #tpu.memory_space<vmem>>, vector<1x8x8xf32>
    %137 = vector.shape_cast %136 : vector<1x8x8xf32> to vector<8x8xf32>
    %cst_108 = arith.constant dense<0.000000e+00> : vector<8x256xf32>
    %138 = tpu.matmul %137, %135, %cst_108 {dimension_numbers = #tpu.dot_dimension_numbers<[1], [0], [0], [1], [0, 0, 1, 1], [], []>} : vector<8x8xf32>, vector<8x256xf32>, vector<8x256xf32> -> vector<8x256xf32>
    %139 = arith.addf %130, %138 : vector<8x256xf32>
    %c240_i32_109 = arith.constant 240 : i32
    %140 = tpu.dynamic_rotate %82 by %c240_i32_109 dim 1 : vector<8x256xf32>, i32 -> vector<8x256xf32>
    %c7_110 = arith.constant 7 : index
    %c0_111 = arith.constant 0 : index
    %c0_112 = arith.constant 0 : index
    %141 = vector.load %arg11[%c7_110, %c0_111, %c0_112] : memref<9x1x256xf32, #tpu.memory_space<vmem>>, vector<1x1x256xf32>
    %142 = vector.shape_cast %141 : vector<1x1x256xf32> to vector<1x256xf32>
    %143 = vector.broadcast %142 : vector<1x256xf32> to vector<8x256xf32>
    %144 = arith.mulf %140, %143 : vector<8x256xf32>
    %c7_113 = arith.constant 7 : index
    %c0_114 = arith.constant 0 : index
    %c0_115 = arith.constant 0 : index
    %145 = vector.load %arg14[%c7_113, %c0_114, %c0_115] : memref<9x8x8xf32, #tpu.memory_space<vmem>>, vector<1x8x8xf32>
    %146 = vector.shape_cast %145 : vector<1x8x8xf32> to vector<8x8xf32>
    %cst_116 = arith.constant dense<0.000000e+00> : vector<8x256xf32>
    %147 = tpu.matmul %146, %144, %cst_116 {dimension_numbers = #tpu.dot_dimension_numbers<[1], [0], [0], [1], [0, 0, 1, 1], [], []>} : vector<8x8xf32>, vector<8x256xf32>, vector<8x256xf32> -> vector<8x256xf32>
    %148 = arith.addf %139, %147 : vector<8x256xf32>
    %c239_i32_117 = arith.constant 239 : i32
    %149 = tpu.dynamic_rotate %82 by %c239_i32_117 dim 1 : vector<8x256xf32>, i32 -> vector<8x256xf32>
    %c8_118 = arith.constant 8 : index
    %c0_119 = arith.constant 0 : index
    %c0_120 = arith.constant 0 : index
    %150 = vector.load %arg11[%c8_118, %c0_119, %c0_120] : memref<9x1x256xf32, #tpu.memory_space<vmem>>, vector<1x1x256xf32>
    %151 = vector.shape_cast %150 : vector<1x1x256xf32> to vector<1x256xf32>
    %152 = vector.broadcast %151 : vector<1x256xf32> to vector<8x256xf32>
    %153 = arith.mulf %149, %152 : vector<8x256xf32>
    %c8_121 = arith.constant 8 : index
    %c0_122 = arith.constant 0 : index
    %c0_123 = arith.constant 0 : index
    %154 = vector.load %arg14[%c8_121, %c0_122, %c0_123] : memref<9x8x8xf32, #tpu.memory_space<vmem>>, vector<1x8x8xf32>
    %155 = vector.shape_cast %154 : vector<1x8x8xf32> to vector<8x8xf32>
    %cst_124 = arith.constant dense<0.000000e+00> : vector<8x256xf32>
    %156 = tpu.matmul %155, %153, %cst_124 {dimension_numbers = #tpu.dot_dimension_numbers<[1], [0], [0], [1], [0, 0, 1, 1], [], []>} : vector<8x8xf32>, vector<8x256xf32>, vector<8x256xf32> -> vector<8x256xf32>
    %157 = arith.addf %148, %156 : vector<8x256xf32>
    %c0_125 = arith.constant 0 : index
    %c0_126 = arith.constant 0 : index
    %158 = vector.load %arg15[%c0_125, %c0_126] : memref<8x1xf32, #tpu.memory_space<vmem>>, vector<8x1xf32>
    %159 = vector.broadcast %158 : vector<8x1xf32> to vector<8x256xf32>
    %160 = arith.addf %157, %159 : vector<8x256xf32>
    %cst_127 = arith.constant 0.000000e+00 : f32
    %161 = vector.broadcast %cst_127 : f32 to vector<8x256xf32>
    %162 = arith.maximumf %160, %161 : vector<8x256xf32>
    %c17_i32_128 = arith.constant 17 : i32
    %163 = tpu.dynamic_rotate %162 by %c17_i32_128 dim 1 : vector<8x256xf32>, i32 -> vector<8x256xf32>
    %c0_129 = arith.constant 0 : index
    %c0_130 = arith.constant 0 : index
    %c0_131 = arith.constant 0 : index
    %164 = vector.load %arg11[%c0_129, %c0_130, %c0_131] : memref<9x1x256xf32, #tpu.memory_space<vmem>>, vector<1x1x256xf32>
    %165 = vector.shape_cast %164 : vector<1x1x256xf32> to vector<1x256xf32>
    %166 = vector.broadcast %165 : vector<1x256xf32> to vector<8x256xf32>
    %167 = arith.mulf %163, %166 : vector<8x256xf32>
    %c0_132 = arith.constant 0 : index
    %c0_133 = arith.constant 0 : index
    %c0_134 = arith.constant 0 : index
    %168 = vector.load %arg16[%c0_132, %c0_133, %c0_134] : memref<9x2x8xf32, #tpu.memory_space<vmem>>, vector<1x2x8xf32>
    %169 = vector.shape_cast %168 : vector<1x2x8xf32> to vector<2x8xf32>
    %cst_135 = arith.constant dense<0.000000e+00> : vector<2x256xf32>
    %170 = tpu.matmul %169, %167, %cst_135 {dimension_numbers = #tpu.dot_dimension_numbers<[1], [0], [0], [1], [0, 0, 1, 1], [], []>} : vector<2x8xf32>, vector<8x256xf32>, vector<2x256xf32> -> vector<2x256xf32>
    %c16_i32_136 = arith.constant 16 : i32
    %171 = tpu.dynamic_rotate %162 by %c16_i32_136 dim 1 : vector<8x256xf32>, i32 -> vector<8x256xf32>
    %c1_137 = arith.constant 1 : index
    %c0_138 = arith.constant 0 : index
    %c0_139 = arith.constant 0 : index
    %172 = vector.load %arg11[%c1_137, %c0_138, %c0_139] : memref<9x1x256xf32, #tpu.memory_space<vmem>>, vector<1x1x256xf32>
    %173 = vector.shape_cast %172 : vector<1x1x256xf32> to vector<1x256xf32>
    %174 = vector.broadcast %173 : vector<1x256xf32> to vector<8x256xf32>
    %175 = arith.mulf %171, %174 : vector<8x256xf32>
    %c1_140 = arith.constant 1 : index
    %c0_141 = arith.constant 0 : index
    %c0_142 = arith.constant 0 : index
    %176 = vector.load %arg16[%c1_140, %c0_141, %c0_142] : memref<9x2x8xf32, #tpu.memory_space<vmem>>, vector<1x2x8xf32>
    %177 = vector.shape_cast %176 : vector<1x2x8xf32> to vector<2x8xf32>
    %cst_143 = arith.constant dense<0.000000e+00> : vector<2x256xf32>
    %178 = tpu.matmul %177, %175, %cst_143 {dimension_numbers = #tpu.dot_dimension_numbers<[1], [0], [0], [1], [0, 0, 1, 1], [], []>} : vector<2x8xf32>, vector<8x256xf32>, vector<2x256xf32> -> vector<2x256xf32>
    %179 = arith.addf %170, %178 : vector<2x256xf32>
    %c15_i32_144 = arith.constant 15 : i32
    %180 = tpu.dynamic_rotate %162 by %c15_i32_144 dim 1 : vector<8x256xf32>, i32 -> vector<8x256xf32>
    %c2_145 = arith.constant 2 : index
    %c0_146 = arith.constant 0 : index
    %c0_147 = arith.constant 0 : index
    %181 = vector.load %arg11[%c2_145, %c0_146, %c0_147] : memref<9x1x256xf32, #tpu.memory_space<vmem>>, vector<1x1x256xf32>
    %182 = vector.shape_cast %181 : vector<1x1x256xf32> to vector<1x256xf32>
    %183 = vector.broadcast %182 : vector<1x256xf32> to vector<8x256xf32>
    %184 = arith.mulf %180, %183 : vector<8x256xf32>
    %c2_148 = arith.constant 2 : index
    %c0_149 = arith.constant 0 : index
    %c0_150 = arith.constant 0 : index
    %185 = vector.load %arg16[%c2_148, %c0_149, %c0_150] : memref<9x2x8xf32, #tpu.memory_space<vmem>>, vector<1x2x8xf32>
    %186 = vector.shape_cast %185 : vector<1x2x8xf32> to vector<2x8xf32>
    %cst_151 = arith.constant dense<0.000000e+00> : vector<2x256xf32>
    %187 = tpu.matmul %186, %184, %cst_151 {dimension_numbers = #tpu.dot_dimension_numbers<[1], [0], [0], [1], [0, 0, 1, 1], [], []>} : vector<2x8xf32>, vector<8x256xf32>, vector<2x256xf32> -> vector<2x256xf32>
    %188 = arith.addf %179, %187 : vector<2x256xf32>
    %c1_i32_152 = arith.constant 1 : i32
    %189 = tpu.dynamic_rotate %162 by %c1_i32_152 dim 1 : vector<8x256xf32>, i32 -> vector<8x256xf32>
    %c3_153 = arith.constant 3 : index
    %c0_154 = arith.constant 0 : index
    %c0_155 = arith.constant 0 : index
    %190 = vector.load %arg11[%c3_153, %c0_154, %c0_155] : memref<9x1x256xf32, #tpu.memory_space<vmem>>, vector<1x1x256xf32>
    %191 = vector.shape_cast %190 : vector<1x1x256xf32> to vector<1x256xf32>
    %192 = vector.broadcast %191 : vector<1x256xf32> to vector<8x256xf32>
    %193 = arith.mulf %189, %192 : vector<8x256xf32>
    %c3_156 = arith.constant 3 : index
    %c0_157 = arith.constant 0 : index
    %c0_158 = arith.constant 0 : index
    %194 = vector.load %arg16[%c3_156, %c0_157, %c0_158] : memref<9x2x8xf32, #tpu.memory_space<vmem>>, vector<1x2x8xf32>
    %195 = vector.shape_cast %194 : vector<1x2x8xf32> to vector<2x8xf32>
    %cst_159 = arith.constant dense<0.000000e+00> : vector<2x256xf32>
    %196 = tpu.matmul %195, %193, %cst_159 {dimension_numbers = #tpu.dot_dimension_numbers<[1], [0], [0], [1], [0, 0, 1, 1], [], []>} : vector<2x8xf32>, vector<8x256xf32>, vector<2x256xf32> -> vector<2x256xf32>
    %197 = arith.addf %188, %196 : vector<2x256xf32>
    %c4_160 = arith.constant 4 : index
    %c0_161 = arith.constant 0 : index
    %c0_162 = arith.constant 0 : index
    %198 = vector.load %arg16[%c4_160, %c0_161, %c0_162] : memref<9x2x8xf32, #tpu.memory_space<vmem>>, vector<1x2x8xf32>
    %199 = vector.shape_cast %198 : vector<1x2x8xf32> to vector<2x8xf32>
    %cst_163 = arith.constant dense<0.000000e+00> : vector<2x256xf32>
    %200 = tpu.matmul %199, %162, %cst_163 {dimension_numbers = #tpu.dot_dimension_numbers<[1], [0], [0], [1], [0, 0, 1, 1], [], []>} : vector<2x8xf32>, vector<8x256xf32>, vector<2x256xf32> -> vector<2x256xf32>
    %201 = arith.addf %197, %200 : vector<2x256xf32>
    %c255_i32_164 = arith.constant 255 : i32
    %202 = tpu.dynamic_rotate %162 by %c255_i32_164 dim 1 : vector<8x256xf32>, i32 -> vector<8x256xf32>
    %c5_165 = arith.constant 5 : index
    %c0_166 = arith.constant 0 : index
    %c0_167 = arith.constant 0 : index
    %203 = vector.load %arg11[%c5_165, %c0_166, %c0_167] : memref<9x1x256xf32, #tpu.memory_space<vmem>>, vector<1x1x256xf32>
    %204 = vector.shape_cast %203 : vector<1x1x256xf32> to vector<1x256xf32>
    %205 = vector.broadcast %204 : vector<1x256xf32> to vector<8x256xf32>
    %206 = arith.mulf %202, %205 : vector<8x256xf32>
    %c5_168 = arith.constant 5 : index
    %c0_169 = arith.constant 0 : index
    %c0_170 = arith.constant 0 : index
    %207 = vector.load %arg16[%c5_168, %c0_169, %c0_170] : memref<9x2x8xf32, #tpu.memory_space<vmem>>, vector<1x2x8xf32>
    %208 = vector.shape_cast %207 : vector<1x2x8xf32> to vector<2x8xf32>
    %cst_171 = arith.constant dense<0.000000e+00> : vector<2x256xf32>
    %209 = tpu.matmul %208, %206, %cst_171 {dimension_numbers = #tpu.dot_dimension_numbers<[1], [0], [0], [1], [0, 0, 1, 1], [], []>} : vector<2x8xf32>, vector<8x256xf32>, vector<2x256xf32> -> vector<2x256xf32>
    %210 = arith.addf %201, %209 : vector<2x256xf32>
    %c241_i32_172 = arith.constant 241 : i32
    %211 = tpu.dynamic_rotate %162 by %c241_i32_172 dim 1 : vector<8x256xf32>, i32 -> vector<8x256xf32>
    %c6_173 = arith.constant 6 : index
    %c0_174 = arith.constant 0 : index
    %c0_175 = arith.constant 0 : index
    %212 = vector.load %arg11[%c6_173, %c0_174, %c0_175] : memref<9x1x256xf32, #tpu.memory_space<vmem>>, vector<1x1x256xf32>
    %213 = vector.shape_cast %212 : vector<1x1x256xf32> to vector<1x256xf32>
    %214 = vector.broadcast %213 : vector<1x256xf32> to vector<8x256xf32>
    %215 = arith.mulf %211, %214 : vector<8x256xf32>
    %c6_176 = arith.constant 6 : index
    %c0_177 = arith.constant 0 : index
    %c0_178 = arith.constant 0 : index
    %216 = vector.load %arg16[%c6_176, %c0_177, %c0_178] : memref<9x2x8xf32, #tpu.memory_space<vmem>>, vector<1x2x8xf32>
    %217 = vector.shape_cast %216 : vector<1x2x8xf32> to vector<2x8xf32>
    %cst_179 = arith.constant dense<0.000000e+00> : vector<2x256xf32>
    %218 = tpu.matmul %217, %215, %cst_179 {dimension_numbers = #tpu.dot_dimension_numbers<[1], [0], [0], [1], [0, 0, 1, 1], [], []>} : vector<2x8xf32>, vector<8x256xf32>, vector<2x256xf32> -> vector<2x256xf32>
    %219 = arith.addf %210, %218 : vector<2x256xf32>
    %c240_i32_180 = arith.constant 240 : i32
    %220 = tpu.dynamic_rotate %162 by %c240_i32_180 dim 1 : vector<8x256xf32>, i32 -> vector<8x256xf32>
    %c7_181 = arith.constant 7 : index
    %c0_182 = arith.constant 0 : index
    %c0_183 = arith.constant 0 : index
    %221 = vector.load %arg11[%c7_181, %c0_182, %c0_183] : memref<9x1x256xf32, #tpu.memory_space<vmem>>, vector<1x1x256xf32>
    %222 = vector.shape_cast %221 : vector<1x1x256xf32> to vector<1x256xf32>
    %223 = vector.broadcast %222 : vector<1x256xf32> to vector<8x256xf32>
    %224 = arith.mulf %220, %223 : vector<8x256xf32>
    %c7_184 = arith.constant 7 : index
    %c0_185 = arith.constant 0 : index
    %c0_186 = arith.constant 0 : index
    %225 = vector.load %arg16[%c7_184, %c0_185, %c0_186] : memref<9x2x8xf32, #tpu.memory_space<vmem>>, vector<1x2x8xf32>
    %226 = vector.shape_cast %225 : vector<1x2x8xf32> to vector<2x8xf32>
    %cst_187 = arith.constant dense<0.000000e+00> : vector<2x256xf32>
    %227 = tpu.matmul %226, %224, %cst_187 {dimension_numbers = #tpu.dot_dimension_numbers<[1], [0], [0], [1], [0, 0, 1, 1], [], []>} : vector<2x8xf32>, vector<8x256xf32>, vector<2x256xf32> -> vector<2x256xf32>
    %228 = arith.addf %219, %227 : vector<2x256xf32>
    %c239_i32_188 = arith.constant 239 : i32
    %229 = tpu.dynamic_rotate %162 by %c239_i32_188 dim 1 : vector<8x256xf32>, i32 -> vector<8x256xf32>
    %c8_189 = arith.constant 8 : index
    %c0_190 = arith.constant 0 : index
    %c0_191 = arith.constant 0 : index
    %230 = vector.load %arg11[%c8_189, %c0_190, %c0_191] : memref<9x1x256xf32, #tpu.memory_space<vmem>>, vector<1x1x256xf32>
    %231 = vector.shape_cast %230 : vector<1x1x256xf32> to vector<1x256xf32>
    %232 = vector.broadcast %231 : vector<1x256xf32> to vector<8x256xf32>
    %233 = arith.mulf %229, %232 : vector<8x256xf32>
    %c8_192 = arith.constant 8 : index
    %c0_193 = arith.constant 0 : index
    %c0_194 = arith.constant 0 : index
    %234 = vector.load %arg16[%c8_192, %c0_193, %c0_194] : memref<9x2x8xf32, #tpu.memory_space<vmem>>, vector<1x2x8xf32>
    %235 = vector.shape_cast %234 : vector<1x2x8xf32> to vector<2x8xf32>
    %cst_195 = arith.constant dense<0.000000e+00> : vector<2x256xf32>
    %236 = tpu.matmul %235, %233, %cst_195 {dimension_numbers = #tpu.dot_dimension_numbers<[1], [0], [0], [1], [0, 0, 1, 1], [], []>} : vector<2x8xf32>, vector<8x256xf32>, vector<2x256xf32> -> vector<2x256xf32>
    %237 = arith.addf %228, %236 : vector<2x256xf32>
    %c0_196 = arith.constant 0 : index
    %c0_197 = arith.constant 0 : index
    %238 = vector.load %arg17[%c0_196, %c0_197] : memref<2x1xf32, #tpu.memory_space<vmem>>, vector<2x1xf32>
    %239 = vector.broadcast %238 : vector<2x1xf32> to vector<2x256xf32>
    %240 = arith.addf %237, %239 : vector<2x256xf32>
    %241 = vector.shape_cast %240 : vector<2x256xf32> to vector<2x16x16xf32>
    %242 = vector.extract_strided_slice %1 {offsets = [0, 0, 0], sizes = [1, 16, 16], strides = [1, 1, 1]} : vector<2x16x16xf32> to vector<1x16x16xf32>
    %243 = vector.shape_cast %242 : vector<1x16x16xf32> to vector<16x16xf32>
    %244 = vector.extract_strided_slice %1 {offsets = [1, 0, 0], sizes = [1, 16, 16], strides = [1, 1, 1]} : vector<2x16x16xf32> to vector<1x16x16xf32>
    %245 = vector.shape_cast %244 : vector<1x16x16xf32> to vector<16x16xf32>
    %c0_198 = arith.constant 0 : index
    %c0_199 = arith.constant 0 : index
    %c0_200 = arith.constant 0 : index
    %c0_201 = arith.constant 0 : index
    %246 = vector.load %arg3[%c0_198, %c0_199, %c0_200, %c0_201] : memref<1x4x16x16xf32, #tpu.memory_space<vmem>>, vector<1x4x16x16xf32>
    %247 = vector.shape_cast %246 : vector<1x4x16x16xf32> to vector<4x16x16xf32>
    %c0_202 = arith.constant 0 : index
    %c0_203 = arith.constant 0 : index
    %c0_204 = arith.constant 0 : index
    %c0_205 = arith.constant 0 : index
    %248 = vector.load %arg4[%c0_202, %c0_203, %c0_204, %c0_205] : memref<1x4x16x16xf32, #tpu.memory_space<vmem>>, vector<1x4x16x16xf32>
    %249 = vector.shape_cast %248 : vector<1x4x16x16xf32> to vector<4x16x16xf32>
    %c0_206 = arith.constant 0 : index
    %c0_207 = arith.constant 0 : index
    %c0_208 = arith.constant 0 : index
    %250 = vector.load %arg5[%c0_206, %c0_207, %c0_208] : memref<1x16x16xf32, #tpu.memory_space<vmem>>, vector<1x16x16xf32>
    %251 = vector.shape_cast %250 : vector<1x16x16xf32> to vector<16x16xf32>
    %c0_209 = arith.constant 0 : index
    %c0_210 = arith.constant 0 : index
    %252 = vector.load %arg7[%c0_209, %c0_210] : memref<16x16xf32, #tpu.memory_space<vmem>>, vector<16x16xf32>
    %c0_211 = arith.constant 0 : index
    %c0_212 = arith.constant 0 : index
    %253 = vector.load %arg8[%c0_211, %c0_212] : memref<16x16xf32, #tpu.memory_space<vmem>>, vector<16x16xf32>
    %c0_213 = arith.constant 0 : index
    %c0_214 = arith.constant 0 : index
    %254 = vector.load %arg9[%c0_213, %c0_214] : memref<16x16xf32, #tpu.memory_space<vmem>>, vector<16x16xf32>
    %c0_215 = arith.constant 0 : index
    %c0_216 = arith.constant 0 : index
    %255 = vector.load %arg10[%c0_215, %c0_216] : memref<16x16xf32, #tpu.memory_space<vmem>>, vector<16x16xf32>
    %256 = vector.shape_cast %243 : vector<16x16xf32> to vector<1x16x16xf32>
    %257 = vector.broadcast %256 : vector<1x16x16xf32> to vector<4x16x16xf32>
    %258 = arith.mulf %247, %257 : vector<4x16x16xf32>
    %259 = vector.shape_cast %245 : vector<16x16xf32> to vector<1x16x16xf32>
    %260 = vector.broadcast %259 : vector<1x16x16xf32> to vector<4x16x16xf32>
    %261 = arith.mulf %249, %260 : vector<4x16x16xf32>
    %262 = arith.subf %258, %261 : vector<4x16x16xf32>
    %263 = vector.shape_cast %245 : vector<16x16xf32> to vector<1x16x16xf32>
    %264 = vector.broadcast %263 : vector<1x16x16xf32> to vector<4x16x16xf32>
    %265 = arith.mulf %247, %264 : vector<4x16x16xf32>
    %266 = vector.shape_cast %243 : vector<16x16xf32> to vector<1x16x16xf32>
    %267 = vector.broadcast %266 : vector<1x16x16xf32> to vector<4x16x16xf32>
    %268 = arith.mulf %249, %267 : vector<4x16x16xf32>
    %269 = arith.addf %265, %268 : vector<4x16x16xf32>
    %270 = arith.addf %262, %269 : vector<4x16x16xf32>
    %271 = vector.shape_cast %270 : vector<4x16x16xf32> to vector<64x16xf32>
    %cst_217 = arith.constant dense<0.000000e+00> : vector<64x16xf32>
    %272 = tpu.matmul %271, %254, %cst_217 {dimension_numbers = #tpu.dot_dimension_numbers<[1], [0], [0], [1], [0, 0, 1, 1], [], []>} : vector<64x16xf32>, vector<16x16xf32>, vector<64x16xf32> -> vector<64x16xf32>
    %273 = vector.shape_cast %272 : vector<64x16xf32> to vector<4x16x16xf32>
    %274 = arith.subf %255, %254 : vector<16x16xf32>
    %275 = vector.shape_cast %262 : vector<4x16x16xf32> to vector<64x16xf32>
    %cst_218 = arith.constant dense<0.000000e+00> : vector<64x16xf32>
    %276 = tpu.matmul %275, %274, %cst_218 {dimension_numbers = #tpu.dot_dimension_numbers<[1], [0], [0], [1], [0, 0, 1, 1], [], []>} : vector<64x16xf32>, vector<16x16xf32>, vector<64x16xf32> -> vector<64x16xf32>
    %277 = vector.shape_cast %276 : vector<64x16xf32> to vector<4x16x16xf32>
    %278 = arith.addf %254, %255 : vector<16x16xf32>
    %279 = vector.shape_cast %269 : vector<4x16x16xf32> to vector<64x16xf32>
    %cst_219 = arith.constant dense<0.000000e+00> : vector<64x16xf32>
    %280 = tpu.matmul %279, %278, %cst_219 {dimension_numbers = #tpu.dot_dimension_numbers<[1], [0], [0], [1], [0, 0, 1, 1], [], []>} : vector<64x16xf32>, vector<16x16xf32>, vector<64x16xf32> -> vector<64x16xf32>
    %281 = vector.shape_cast %280 : vector<64x16xf32> to vector<4x16x16xf32>
    %282 = arith.subf %273, %281 : vector<4x16x16xf32>
    %283 = arith.addf %273, %277 : vector<4x16x16xf32>
    %284 = arith.addf %252, %253 : vector<16x16xf32>
    %285 = vector.shape_cast %284 : vector<16x16xf32> to vector<1x16x16xf32>
    %286 = vector.broadcast %285 : vector<1x16x16xf32> to vector<4x16x16xf32>
    %cst_220 = arith.constant dense<0.000000e+00> : vector<4x16x16xf32>
    %287 = tpu.matmul %286, %282, %cst_220 {dimension_numbers = #tpu.dot_dimension_numbers<[2], [1], [1], [2], [0, 0, 0, 1, 1, 2], [0], [0]>} : vector<4x16x16xf32>, vector<4x16x16xf32>, vector<4x16x16xf32> -> vector<4x16x16xf32>
    %288 = arith.subf %283, %282 : vector<4x16x16xf32>
    %289 = vector.shape_cast %252 : vector<16x16xf32> to vector<1x16x16xf32>
    %290 = vector.broadcast %289 : vector<1x16x16xf32> to vector<4x16x16xf32>
    %cst_221 = arith.constant dense<0.000000e+00> : vector<4x16x16xf32>
    %291 = tpu.matmul %290, %288, %cst_221 {dimension_numbers = #tpu.dot_dimension_numbers<[2], [1], [1], [2], [0, 0, 0, 1, 1, 2], [0], [0]>} : vector<4x16x16xf32>, vector<4x16x16xf32>, vector<4x16x16xf32> -> vector<4x16x16xf32>
    %292 = arith.addf %282, %283 : vector<4x16x16xf32>
    %293 = vector.shape_cast %253 : vector<16x16xf32> to vector<1x16x16xf32>
    %294 = vector.broadcast %293 : vector<1x16x16xf32> to vector<4x16x16xf32>
    %cst_222 = arith.constant dense<0.000000e+00> : vector<4x16x16xf32>
    %295 = tpu.matmul %294, %292, %cst_222 {dimension_numbers = #tpu.dot_dimension_numbers<[2], [1], [1], [2], [0, 0, 0, 1, 1, 2], [0], [0]>} : vector<4x16x16xf32>, vector<4x16x16xf32>, vector<4x16x16xf32> -> vector<4x16x16xf32>
    %296 = arith.subf %287, %295 : vector<4x16x16xf32>
    %297 = arith.addf %287, %291 : vector<4x16x16xf32>
    %298 = vector.shape_cast %251 : vector<16x16xf32> to vector<1x16x16xf32>
    %299 = vector.broadcast %298 : vector<1x16x16xf32> to vector<4x16x16xf32>
    %300 = arith.mulf %296, %299 : vector<4x16x16xf32>
    %301 = vector.shape_cast %251 : vector<16x16xf32> to vector<1x16x16xf32>
    %302 = vector.broadcast %301 : vector<1x16x16xf32> to vector<4x16x16xf32>
    %303 = arith.mulf %297, %302 : vector<4x16x16xf32>
    %cst_223 = arith.constant 0.000000e+00 : f32
    %304 = vector.broadcast %cst_223 : f32 to vector<16x16xf32>
    %305 = arith.subf %304, %255 : vector<16x16xf32>
    %306 = arith.addf %300, %303 : vector<4x16x16xf32>
    %307 = vector.shape_cast %306 : vector<4x16x16xf32> to vector<64x16xf32>
    %cst_224 = arith.constant dense<0.000000e+00> : vector<64x16xf32>
    %308 = tpu.matmul %307, %254, %cst_224 {dimension_numbers = #tpu.dot_dimension_numbers<[1], [0], [0], [1], [0, 0, 1, 1], [], []>} : vector<64x16xf32>, vector<16x16xf32>, vector<64x16xf32> -> vector<64x16xf32>
    %309 = vector.shape_cast %308 : vector<64x16xf32> to vector<4x16x16xf32>
    %310 = arith.subf %305, %254 : vector<16x16xf32>
    %311 = vector.shape_cast %300 : vector<4x16x16xf32> to vector<64x16xf32>
    %cst_225 = arith.constant dense<0.000000e+00> : vector<64x16xf32>
    %312 = tpu.matmul %311, %310, %cst_225 {dimension_numbers = #tpu.dot_dimension_numbers<[1], [0], [0], [1], [0, 0, 1, 1], [], []>} : vector<64x16xf32>, vector<16x16xf32>, vector<64x16xf32> -> vector<64x16xf32>
    %313 = vector.shape_cast %312 : vector<64x16xf32> to vector<4x16x16xf32>
    %314 = arith.addf %254, %305 : vector<16x16xf32>
    %315 = vector.shape_cast %303 : vector<4x16x16xf32> to vector<64x16xf32>
    %cst_226 = arith.constant dense<0.000000e+00> : vector<64x16xf32>
    %316 = tpu.matmul %315, %314, %cst_226 {dimension_numbers = #tpu.dot_dimension_numbers<[1], [0], [0], [1], [0, 0, 1, 1], [], []>} : vector<64x16xf32>, vector<16x16xf32>, vector<64x16xf32> -> vector<64x16xf32>
    %317 = vector.shape_cast %316 : vector<64x16xf32> to vector<4x16x16xf32>
    %318 = arith.subf %309, %317 : vector<4x16x16xf32>
    %319 = arith.addf %309, %313 : vector<4x16x16xf32>
    %cst_227 = arith.constant 0.000000e+00 : f32
    %320 = vector.broadcast %cst_227 : f32 to vector<16x16xf32>
    %321 = arith.subf %320, %253 : vector<16x16xf32>
    %322 = arith.addf %252, %321 : vector<16x16xf32>
    %323 = vector.shape_cast %322 : vector<16x16xf32> to vector<1x16x16xf32>
    %324 = vector.broadcast %323 : vector<1x16x16xf32> to vector<4x16x16xf32>
    %cst_228 = arith.constant dense<0.000000e+00> : vector<4x16x16xf32>
    %325 = tpu.matmul %324, %318, %cst_228 {dimension_numbers = #tpu.dot_dimension_numbers<[2], [1], [1], [2], [0, 0, 0, 1, 1, 2], [0], [0]>} : vector<4x16x16xf32>, vector<4x16x16xf32>, vector<4x16x16xf32> -> vector<4x16x16xf32>
    %326 = arith.subf %319, %318 : vector<4x16x16xf32>
    %327 = vector.shape_cast %252 : vector<16x16xf32> to vector<1x16x16xf32>
    %328 = vector.broadcast %327 : vector<1x16x16xf32> to vector<4x16x16xf32>
    %cst_229 = arith.constant dense<0.000000e+00> : vector<4x16x16xf32>
    %329 = tpu.matmul %328, %326, %cst_229 {dimension_numbers = #tpu.dot_dimension_numbers<[2], [1], [1], [2], [0, 0, 0, 1, 1, 2], [0], [0]>} : vector<4x16x16xf32>, vector<4x16x16xf32>, vector<4x16x16xf32> -> vector<4x16x16xf32>
    %330 = arith.addf %318, %319 : vector<4x16x16xf32>
    %331 = vector.shape_cast %321 : vector<16x16xf32> to vector<1x16x16xf32>
    %332 = vector.broadcast %331 : vector<1x16x16xf32> to vector<4x16x16xf32>
    %cst_230 = arith.constant dense<0.000000e+00> : vector<4x16x16xf32>
    %333 = tpu.matmul %332, %330, %cst_230 {dimension_numbers = #tpu.dot_dimension_numbers<[2], [1], [1], [2], [0, 0, 0, 1, 1, 2], [0], [0]>} : vector<4x16x16xf32>, vector<4x16x16xf32>, vector<4x16x16xf32> -> vector<4x16x16xf32>
    %334 = arith.subf %325, %333 : vector<4x16x16xf32>
    %335 = arith.addf %325, %329 : vector<4x16x16xf32>
    %336 = arith.mulf %247, %334 : vector<4x16x16xf32>
    %337 = arith.mulf %249, %335 : vector<4x16x16xf32>
    %338 = arith.addf %336, %337 : vector<4x16x16xf32>
    %cst_231 = arith.constant dense<0.000000e+00> : vector<16x16xf32>
    %339 = vector.multi_reduction <add>, %338, %cst_231 [0] : vector<4x16x16xf32> to vector<16x16xf32>
    %340 = arith.mulf %247, %335 : vector<4x16x16xf32>
    %341 = arith.mulf %249, %334 : vector<4x16x16xf32>
    %342 = arith.subf %340, %341 : vector<4x16x16xf32>
    %cst_232 = arith.constant dense<0.000000e+00> : vector<16x16xf32>
    %343 = vector.multi_reduction <add>, %342, %cst_232 [0] : vector<4x16x16xf32> to vector<16x16xf32>
    %c0_233 = arith.constant 0 : index
    %c0_234 = arith.constant 0 : index
    %344 = memref.load %arg1[%c0_233, %c0_234] : memref<1x1xf32, #tpu.memory_space<smem>>
    %345 = vector.extract_strided_slice %241 {offsets = [0, 0, 0], sizes = [1, 16, 16], strides = [1, 1, 1]} : vector<2x16x16xf32> to vector<1x16x16xf32>
    %346 = vector.shape_cast %345 : vector<1x16x16xf32> to vector<16x16xf32>
    %c0_235 = arith.constant 0 : index
    %c0_236 = arith.constant 0 : index
    %c0_237 = arith.constant 0 : index
    %c0_238 = arith.constant 0 : index
    %347 = vector.load %arg6[%c0_235, %c0_236, %c0_237, %c0_238] : memref<1x2x16x16xf32, #tpu.memory_space<vmem>>, vector<1x1x16x16xf32>
    %348 = vector.shape_cast %347 : vector<1x1x16x16xf32> to vector<16x16xf32>
    %349 = arith.subf %339, %348 : vector<16x16xf32>
    %350 = vector.broadcast %344 : f32 to vector<16x16xf32>
    %351 = arith.mulf %350, %349 : vector<16x16xf32>
    %352 = arith.subf %346, %351 : vector<16x16xf32>
    %353 = vector.extract_strided_slice %241 {offsets = [1, 0, 0], sizes = [1, 16, 16], strides = [1, 1, 1]} : vector<2x16x16xf32> to vector<1x16x16xf32>
    %354 = vector.shape_cast %353 : vector<1x16x16xf32> to vector<16x16xf32>
    %c0_239 = arith.constant 0 : index
    %c1_240 = arith.constant 1 : index
    %c0_241 = arith.constant 0 : index
    %c0_242 = arith.constant 0 : index
    %355 = vector.load %arg6[%c0_239, %c1_240, %c0_241, %c0_242] : memref<1x2x16x16xf32, #tpu.memory_space<vmem>>, vector<1x1x16x16xf32>
    %356 = vector.shape_cast %355 : vector<1x1x16x16xf32> to vector<16x16xf32>
    %357 = arith.subf %343, %356 : vector<16x16xf32>
    %358 = vector.broadcast %344 : f32 to vector<16x16xf32>
    %359 = arith.mulf %358, %357 : vector<16x16xf32>
    %360 = arith.subf %354, %359 : vector<16x16xf32>
    %c0_243 = arith.constant 0 : index
    %c0_244 = arith.constant 0 : index
    %c0_245 = arith.constant 0 : index
    %c0_246 = arith.constant 0 : index
    %361 = vector.load %arg18[%c0_243, %c0_244, %c0_245, %c0_246] : memref<1x2x16x16xf32, #tpu.memory_space<vmem>>, vector<1x1x16x16xf32>
    %362 = vector.shape_cast %361 : vector<1x1x16x16xf32> to vector<16x16xf32>
    %363 = vector.shape_cast %352 : vector<16x16xf32> to vector<1x1x16x16xf32>
    tpu.vector_store %arg18[%c0_243, %c0_244, %c0_245, %c0_246], %363 {strides = array<i32>} : memref<1x2x16x16xf32, #tpu.memory_space<vmem>>, vector<1x1x16x16xf32>,
    %c0_247 = arith.constant 0 : index
    %c1_248 = arith.constant 1 : index
    %c0_249 = arith.constant 0 : index
    %c0_250 = arith.constant 0 : index
    %364 = vector.load %arg18[%c0_247, %c1_248, %c0_249, %c0_250] : memref<1x2x16x16xf32, #tpu.memory_space<vmem>>, vector<1x1x16x16xf32>
    %365 = vector.shape_cast %364 : vector<1x1x16x16xf32> to vector<16x16xf32>
    %366 = vector.shape_cast %360 : vector<16x16xf32> to vector<1x1x16x16xf32>
    tpu.vector_store %arg18[%c0_247, %c1_248, %c0_249, %c0_250], %366 {strides = array<i32>} : memref<1x2x16x16xf32, #tpu.memory_space<vmem>>, vector<1x1x16x16xf32>,
    return
  }
  func.func @transform_0(%arg0: i32) -> (i32, i32) {
    %c0_i32 = arith.constant 0 : i32
    %c0_i32_0 = arith.constant 0 : i32
    %c0_i32_1 = arith.constant 0 : i32
    return %c0_i32, %c0_i32_0 : i32, i32
  }
  func.func @transform_1(%arg0: i32) -> (i32, i32, i32, i32) {
    %c0_i32 = arith.constant 0 : i32
    %c0_i32_0 = arith.constant 0 : i32
    %c0_i32_1 = arith.constant 0 : i32
    %c0_i32_2 = arith.constant 0 : i32
    return %arg0, %c0_i32, %c0_i32_0, %c0_i32_1 : i32, i32, i32, i32
  }
  func.func @transform_2(%arg0: i32) -> (i32, i32, i32, i32) {
    %c0_i32 = arith.constant 0 : i32
    %c0_i32_0 = arith.constant 0 : i32
    %c0_i32_1 = arith.constant 0 : i32
    %c0_i32_2 = arith.constant 0 : i32
    return %arg0, %c0_i32, %c0_i32_0, %c0_i32_1 : i32, i32, i32, i32
  }
  func.func @transform_3(%arg0: i32) -> (i32, i32, i32, i32) {
    %c0_i32 = arith.constant 0 : i32
    %c0_i32_0 = arith.constant 0 : i32
    %c0_i32_1 = arith.constant 0 : i32
    %c0_i32_2 = arith.constant 0 : i32
    return %arg0, %c0_i32, %c0_i32_0, %c0_i32_1 : i32, i32, i32, i32
  }
  func.func @transform_4(%arg0: i32) -> (i32, i32, i32) {
    %c0_i32 = arith.constant 0 : i32
    %c0_i32_0 = arith.constant 0 : i32
    %c0_i32_1 = arith.constant 0 : i32
    return %arg0, %c0_i32, %c0_i32_0 : i32, i32, i32
  }
  func.func @transform_5(%arg0: i32) -> (i32, i32, i32, i32) {
    %c0_i32 = arith.constant 0 : i32
    %c0_i32_0 = arith.constant 0 : i32
    %c0_i32_1 = arith.constant 0 : i32
    %c0_i32_2 = arith.constant 0 : i32
    return %arg0, %c0_i32, %c0_i32_0, %c0_i32_1 : i32, i32, i32, i32
  }
  func.func @transform_6(%arg0: i32) -> (i32, i32) {
    %c0_i32 = arith.constant 0 : i32
    %c0_i32_0 = arith.constant 0 : i32
    %c0_i32_1 = arith.constant 0 : i32
    return %c0_i32, %c0_i32_0 : i32, i32
  }
  func.func @transform_7(%arg0: i32) -> (i32, i32) {
    %c0_i32 = arith.constant 0 : i32
    %c0_i32_0 = arith.constant 0 : i32
    %c0_i32_1 = arith.constant 0 : i32
    return %c0_i32, %c0_i32_0 : i32, i32
  }
  func.func @transform_8(%arg0: i32) -> (i32, i32) {
    %c0_i32 = arith.constant 0 : i32
    %c0_i32_0 = arith.constant 0 : i32
    %c0_i32_1 = arith.constant 0 : i32
    return %c0_i32, %c0_i32_0 : i32, i32
  }
  func.func @transform_9(%arg0: i32) -> (i32, i32) {
    %c0_i32 = arith.constant 0 : i32
    %c0_i32_0 = arith.constant 0 : i32
    %c0_i32_1 = arith.constant 0 : i32
    return %c0_i32, %c0_i32_0 : i32, i32
  }
  func.func @transform_10(%arg0: i32) -> (i32, i32, i32) {
    %c0_i32 = arith.constant 0 : i32
    %c0_i32_0 = arith.constant 0 : i32
    %c0_i32_1 = arith.constant 0 : i32
    %c0_i32_2 = arith.constant 0 : i32
    return %c0_i32, %c0_i32_0, %c0_i32_1 : i32, i32, i32
  }
  func.func @transform_11(%arg0: i32) -> (i32, i32, i32) {
    %c0_i32 = arith.constant 0 : i32
    %c0_i32_0 = arith.constant 0 : i32
    %c0_i32_1 = arith.constant 0 : i32
    %c0_i32_2 = arith.constant 0 : i32
    return %c0_i32, %c0_i32_0, %c0_i32_1 : i32, i32, i32
  }
  func.func @transform_12(%arg0: i32) -> (i32, i32) {
    %c0_i32 = arith.constant 0 : i32
    %c0_i32_0 = arith.constant 0 : i32
    %c0_i32_1 = arith.constant 0 : i32
    return %c0_i32, %c0_i32_0 : i32, i32
  }
  func.func @transform_13(%arg0: i32) -> (i32, i32, i32) {
    %c0_i32 = arith.constant 0 : i32
    %c0_i32_0 = arith.constant 0 : i32
    %c0_i32_1 = arith.constant 0 : i32
    %c0_i32_2 = arith.constant 0 : i32
    return %c0_i32, %c0_i32_0, %c0_i32_1 : i32, i32, i32
  }
  func.func @transform_14(%arg0: i32) -> (i32, i32) {
    %c0_i32 = arith.constant 0 : i32
    %c0_i32_0 = arith.constant 0 : i32
    %c0_i32_1 = arith.constant 0 : i32
    return %c0_i32, %c0_i32_0 : i32, i32
  }
  func.func @transform_15(%arg0: i32) -> (i32, i32, i32) {
    %c0_i32 = arith.constant 0 : i32
    %c0_i32_0 = arith.constant 0 : i32
    %c0_i32_1 = arith.constant 0 : i32
    %c0_i32_2 = arith.constant 0 : i32
    return %c0_i32, %c0_i32_0, %c0_i32_1 : i32, i32, i32
  }
  func.func @transform_16(%arg0: i32) -> (i32, i32) {
    %c0_i32 = arith.constant 0 : i32
    %c0_i32_0 = arith.constant 0 : i32
    %c0_i32_1 = arith.constant 0 : i32
    return %c0_i32, %c0_i32_0 : i32, i32
  }
  func.func @transform_17(%arg0: i32) -> (i32, i32, i32, i32) {
    %c0_i32 = arith.constant 0 : i32
    %c0_i32_0 = arith.constant 0 : i32
    %c0_i32_1 = arith.constant 0 : i32
    %c0_i32_2 = arith.constant 0 : i32
    return %arg0, %c0_i32, %c0_i32_0, %c0_i32_1 : i32, i32, i32, i32
  }
}

</mosaic_0001>

<llo_original>
// kernel: tpu_custom_call.1
$region0: #{tpu_custom_call.1}
  #allocation0 [shape = 'u32[]', space=smem, size = 0x4, offset = 0x4, fixed_abs, tag = 'smem constant byte address 0x4 - core index']
  #allocation1 [shape = 'u32[144,128]{1,0:T(1,128)}', space=vmem, size = 0x12000, scoped, tag = 'internal scratch']
  #allocation2 [shape = 'f32[1,1]{1,0:T(1,128)S(6)}', space=smem, size = 0x200, scoped, tag = 'scoped memory for tpu_custom_call.1']
  %s0 = inlined_call_operand.<no memory space> [shape: f32[1,1], index: 0, kind: input, shape index: {}]
  %s1 = inlined_call_operand.hbm [shape: f32[2,2,16,16], index: 1, kind: input, shape index: {}]
  %s2 = inlined_call_operand.vmem [shape: f32[2,4,16,16], index: 2, kind: input, shape index: {}]
  %s3 = inlined_call_operand.vmem [shape: f32[2,4,16,16], index: 3, kind: input, shape index: {}]
  %s4 = inlined_call_operand.hbm [shape: f32[2,16,16], index: 4, kind: input, shape index: {}]
  %s5 = inlined_call_operand.hbm [shape: f32[2,2,16,16], index: 5, kind: input, shape index: {}]
  %s6 = inlined_call_operand.hbm [shape: f32[16,16], index: 6, kind: input, shape index: {}]
  %s7 = inlined_call_operand.hbm [shape: f32[16,16], index: 7, kind: input, shape index: {}]
  %s8 = inlined_call_operand.hbm [shape: f32[16,16], index: 8, kind: input, shape index: {}]
  %s9 = inlined_call_operand.hbm [shape: f32[16,16], index: 9, kind: input, shape index: {}]
  %s10 = inlined_call_operand.hbm [shape: f32[9,1,256], index: 10, kind: input, shape index: {}]
  %s11 = inlined_call_operand.vmem [shape: f32[9,8,2], index: 11, kind: input, shape index: {}]
  %s12 = inlined_call_operand.vmem [shape: f32[8,1], index: 12, kind: input, shape index: {}]
  %s13 = inlined_call_operand.vmem [shape: f32[9,8,8], index: 13, kind: input, shape index: {}]
  %s14 = inlined_call_operand.vmem [shape: f32[8,1], index: 14, kind: input, shape index: {}]
  %s15 = inlined_call_operand.vmem [shape: f32[9,2,8], index: 15, kind: input, shape index: {}]
  %s16 = inlined_call_operand.vmem [shape: f32[2,1], index: 16, kind: input, shape index: {}]
  %s17 = inlined_call_operand.hbm [shape: f32[2,2,16,16], index: 17, kind: output, shape index: {}]
  %s18 = sld [smem:[#allocation0]]
  $region133: #{tpu_custom_call.1} parent=0
    _
  %s20 = ssub.s32 1, %s18
  %s21 = scalar_select 0, %s20, %s18
  %22 = sst [smem:[#allocation2]] %s0
  $region1: #{tpu_custom_call.1} parent=0
    #allocation3 [shape = 'u8[32768]{0}', space=vmem, size = 0x8000, scoped, tag = 'input window, operand 1']
    #allocation4 [shape = 's32[2]{0}', space=sflag, size = 0x8, scoped, tag = 'scoped memory for tpu_custom_call.1']
    #allocation5 [shape = 's32[2]{0}', space=sflag, size = 0x8, scoped, tag = 'scoped memory for tpu_custom_call.1']
    #allocation6 [shape = 'u8[16384]{0}', space=vmem, size = 0x4000, scoped, tag = 'input window, operand 4']
    #allocation7 [shape = 's32[2]{0}', space=sflag, size = 0x8, scoped, tag = 'scoped memory for tpu_custom_call.1']
    #allocation8 [shape = 'u8[32768]{0}', space=vmem, size = 0x8000, scoped, tag = 'input window, operand 5']
    #allocation9 [shape = 'u8[8192]{0}', space=vmem, size = 0x2000, scoped, tag = 'input window, operand 6, single buffered']
    #allocation10 [shape = 's32[1]{0}', space=sflag, size = 0x4, scoped, tag = 'scoped memory for tpu_custom_call.1']
    #allocation11 [shape = 'u8[8192]{0}', space=vmem, size = 0x2000, scoped, tag = 'input window, operand 7, single buffered']
    #allocation12 [shape = 'u8[8192]{0}', space=vmem, size = 0x2000, scoped, tag = 'input window, operand 8, single buffered']
    #allocation13 [shape = 's32[1]{0}', space=sflag, size = 0x4, scoped, tag = 'scoped memory for tpu_custom_call.1']
    #allocation14 [shape = 'u8[8192]{0}', space=vmem, size = 0x2000, scoped, tag = 'input window, operand 9, single buffered']
    #allocation15 [shape = 'u8[9216]{0}', space=vmem, size = 0x2400, scoped, tag = 'input window, operand 10, single buffered']
    #allocation16 [shape = 's32[1]{0}', space=sflag, size = 0x4, scoped, tag = 'scoped memory for tpu_custom_call.1']
    #allocation17 [shape = 'u8[32768]{0}', space=vmem, size = 0x8000, scoped, tag = 'output window, operand 0']
    %23 = vsyncpa [#allocation4], 0
    %s24 = scalar_lea.sflag [#allocation4], 1
    %25 = vsyncpa %s24, 0
    %26 = vsyncpa [#allocation7], 0
    %s27 = scalar_lea.sflag [#allocation7], 1
    %28 = vsyncpa %s27, 0
    %29 = vsyncpa [#allocation10], 0
    %30 = vsyncpa [#allocation13], 0
    %31 = vsyncpa [#allocation16], 0
    %32 = vsyncpa [#allocation5], 0
    %s33 = scalar_lea.sflag [#allocation5], 1
    %34 = vsyncpa %s33, 0
    loop: start=0, step=1, limit=4
    $region2: #{tpu_custom_call.1} parent=1 // loop_pre_header
      _
    $region3: #{tpu_custom_call.1} parent=1 // loop_header
      %s36 = sphi 0, %s40
      %p37 = scmp.ge.s32.totalorder %s36, 4
      %s44 = sphi 0, %s44
      %s46 = sphi 0, %s44
      %s47 = sphi 0, %s46
      %s61 = sphi 0, %s47
      %s67 = sphi 0, %s69
      %s70 = sphi 0, %s67
      %s71 = sphi 0, %s70
      %s87 = sphi 0, %s71
      %s93 = sphi 0, %s95
      %s96 = sphi 0, %s93
      %s97 = sphi 0, %s96
      %s113 = sphi 0, %s97
      %s119 = sphi 0, %s121
      %s122 = sphi 0, %s119
      %s123 = sphi 0, %s122
      %s139 = sphi 0, %s123
      %s145 = sphi 0, %s147
      %s148 = sphi 0, %s145
      %s149 = sphi 0, %s148
      %s165 = sphi 0, %s149
      %s171 = sphi 0, %s173
      %s174 = sphi 0, %s171
      %s175 = sphi 0, %s174
      %s191 = sphi 0, %s175
      %s195 = sphi 0, %s195
      %s197 = sphi 0, %s195
      %s198 = sphi 0, %s197
      %s212 = sphi 0, %s198
      %s216 = sphi 0, %s216
      %s218 = sphi 0, %s216
      %s219 = sphi 0, %s218
      %s233 = sphi 0, %s219
      %s237 = sphi 0, %s237
      %s239 = sphi 0, %s237
      %s240 = sphi 0, %s239
      %s254 = sphi 0, %s240
      %s258 = sphi 0, %s258
      %s260 = sphi 0, %s258
      %s261 = sphi 0, %s260
      %s275 = sphi 0, %s261
      %s279 = sphi 0, %s279
      %s281 = sphi 0, %s279
      %s282 = sphi 0, %s281
      %s296 = sphi 0, %s282
      %s300 = sphi 0, %s300
      %s302 = sphi 0, %s300
      %s303 = sphi 0, %s302
      %s317 = sphi 0, %s303
      %s321 = sphi 0, %s321
      %s323 = sphi 0, %s321
      %s324 = sphi 0, %s323
      %s338 = sphi 0, %s324
      %s342 = sphi 0, %s342
      %s344 = sphi 0, %s342
      %s345 = sphi 0, %s344
      %s359 = sphi 0, %s345
      %s363 = sphi 0, %s363
      %s365 = sphi 0, %s363
      %s366 = sphi 0, %s365
      %s380 = sphi 0, %s366
      %s384 = sphi 0, %s384
      %s386 = sphi 0, %s384
      %s387 = sphi 0, %s386
      %s401 = sphi 0, %s387
      %s405 = sphi 0, %s405
      %s407 = sphi 0, %s405
      %s408 = sphi 0, %s407
      %s422 = sphi 0, %s408
      %s428 = sphi 0, %s430
      %s431 = sphi 0, %s428
      %s432 = sphi 0, %s431
      %s448 = sphi 0, %s432
    $region4: #{tpu_custom_call.1} parent=1 // loop_header_branch
      %39 = sbr.rel (%p37) target = $region8
    $region5: #{tpu_custom_call.1} parent=1 // loop_body
      %s41 = ssub.s32 %s36, 1
      %s42 = ssub.s32 %s36, 2
      %s43 = sadd.s32 %s36, 1
      %s45 = sadd.s32 %s44, 1
      %p48 = scmp.eq.s32.totalorder %s36, 1
      %p49 = scmp.ne.s32.totalorder %s44, %s46
      %p50 = scmp.eq.s32.totalorder %s36, 0
      %p51 = por %p49, %p50
      %p52 = scmp.ne.s32.totalorder %s44, %s46
      %p53 = scmp.eq.s32.totalorder %s41, 1
      %p54 = por %p52, %p53
      %p55 = scmp.ne.s32.totalorder %s46, %s47
      %p56 = scmp.eq.s32.totalorder %s41, 0
      %p57 = por %p55, %p56
      %p58 = scmp.ne.s32.totalorder %s46, %s47
      %p59 = scmp.eq.s32.totalorder %s42, 1
      %p60 = por %p58, %p59
      %p62 = scmp.ne.s32.totalorder %s47, %s61
      %p63 = scmp.eq.s32.totalorder %s42, 0
      %p64 = por %p62, %p63
      %s65 = ssub.s32 %s36, %s43
      %p66 = scmp.eq.s32.totalorder %s65, 0
      %s68 = sadd.s32 %s67, 1
      %s69 = scalar_select %p66, %s67, %s68
      %p72 = pneg %p66
      %p73 = scmp.eq.s32.totalorder %s36, 1
      %p74 = por %p72, %p73
      %p75 = scmp.ne.s32.totalorder %s67, %s70
      %p76 = scmp.eq.s32.totalorder %s36, 0
      %p77 = por %p75, %p76
      %p78 = scmp.ne.s32.totalorder %s67, %s70
      %p79 = scmp.eq.s32.totalorder %s41, 1
      %p80 = por %p78, %p79
      %p81 = scmp.ne.s32.totalorder %s70, %s71
      %p82 = scmp.eq.s32.totalorder %s41, 0
      %p83 = por %p81, %p82
      %p84 = scmp.ne.s32.totalorder %s70, %s71
      %p85 = scmp.eq.s32.totalorder %s42, 1
      %p86 = por %p84, %p85
      %p88 = scmp.ne.s32.totalorder %s71, %s87
      %p89 = scmp.eq.s32.totalorder %s42, 0
      %p90 = por %p88, %p89
      %s91 = ssub.s32 %s36, %s43
      %p92 = scmp.eq.s32.totalorder %s91, 0
      %s94 = sadd.s32 %s93, 1
      %s95 = scalar_select %p92, %s93, %s94
      %p98 = pneg %p92
      %p99 = scmp.eq.s32.totalorder %s36, 1
      %p100 = por %p98, %p99
      %p101 = scmp.ne.s32.totalorder %s93, %s96
      %p102 = scmp.eq.s32.totalorder %s36, 0
      %p103 = por %p101, %p102
      %p104 = scmp.ne.s32.totalorder %s93, %s96
      %p105 = scmp.eq.s32.totalorder %s41, 1
      %p106 = por %p104, %p105
      %p107 = scmp.ne.s32.totalorder %s96, %s97
      %p108 = scmp.eq.s32.totalorder %s41, 0
      %p109 = por %p107, %p108
      %p110 = scmp.ne.s32.totalorder %s96, %s97
      %p111 = scmp.eq.s32.totalorder %s42, 1
      %p112 = por %p110, %p111
      %p114 = scmp.ne.s32.totalorder %s97, %s113
      %p115 = scmp.eq.s32.totalorder %s42, 0
      %p116 = por %p114, %p115
      %s117 = ssub.s32 %s36, %s43
      %p118 = scmp.eq.s32.totalorder %s117, 0
      %s120 = sadd.s32 %s119, 1
      %s121 = scalar_select %p118, %s119, %s120
      %p124 = pneg %p118
      %p125 = scmp.eq.s32.totalorder %s36, 1
      %p126 = por %p124, %p125
      %p127 = scmp.ne.s32.totalorder %s119, %s122
      %p128 = scmp.eq.s32.totalorder %s36, 0
      %p129 = por %p127, %p128
      %p130 = scmp.ne.s32.totalorder %s119, %s122
      %p131 = scmp.eq.s32.totalorder %s41, 1
      %p132 = por %p130, %p131
      %p133 = scmp.ne.s32.totalorder %s122, %s123
      %p134 = scmp.eq.s32.totalorder %s41, 0
      %p135 = por %p133, %p134
      %p136 = scmp.ne.s32.totalorder %s122, %s123
      %p137 = scmp.eq.s32.totalorder %s42, 1
      %p138 = por %p136, %p137
      %p140 = scmp.ne.s32.totalorder %s123, %s139
      %p141 = scmp.eq.s32.totalorder %s42, 0
      %p142 = por %p140, %p141
      %s143 = ssub.s32 %s36, %s43
      %p144 = scmp.eq.s32.totalorder %s143, 0
      %s146 = sadd.s32 %s145, 1
      %s147 = scalar_select %p144, %s145, %s146
      %p150 = pneg %p144
      %p151 = scmp.eq.s32.totalorder %s36, 1
      %p152 = por %p150, %p151
      %p153 = scmp.ne.s32.totalorder %s145, %s148
      %p154 = scmp.eq.s32.totalorder %s36, 0
      %p155 = por %p153, %p154
      %p156 = scmp.ne.s32.totalorder %s145, %s148
      %p157 = scmp.eq.s32.totalorder %s41, 1
      %p158 = por %p156, %p157
      %p159 = scmp.ne.s32.totalorder %s148, %s149
      %p160 = scmp.eq.s32.totalorder %s41, 0
      %p161 = por %p159, %p160
      %p162 = scmp.ne.s32.totalorder %s148, %s149
      %p163 = scmp.eq.s32.totalorder %s42, 1
      %p164 = por %p162, %p163
      %p166 = scmp.ne.s32.totalorder %s149, %s165
      %p167 = scmp.eq.s32.totalorder %s42, 0
      %p168 = por %p166, %p167
      %s169 = ssub.s32 %s36, %s43
      %p170 = scmp.eq.s32.totalorder %s169, 0
      %s172 = sadd.s32 %s171, 1
      %s173 = scalar_select %p170, %s171, %s172
      %p176 = pneg %p170
      %p177 = scmp.eq.s32.totalorder %s36, 1
      %p178 = por %p176, %p177
      %p179 = scmp.ne.s32.totalorder %s171, %s174
      %p180 = scmp.eq.s32.totalorder %s36, 0
      %p181 = por %p179, %p180
      %p182 = scmp.ne.s32.totalorder %s171, %s174
      %p183 = scmp.eq.s32.totalorder %s41, 1
      %p184 = por %p182, %p183
      %p185 = scmp.ne.s32.totalorder %s174, %s175
      %p186 = scmp.eq.s32.totalorder %s41, 0
      %p187 = por %p185, %p186
      %p188 = scmp.ne.s32.totalorder %s174, %s175
      %p189 = scmp.eq.s32.totalorder %s42, 1
      %p190 = por %p188, %p189
      %p192 = scmp.ne.s32.totalorder %s175, %s191
      %p193 = scmp.eq.s32.totalorder %s42, 0
      %p194 = por %p192, %p193
      %s196 = sadd.s32 %s195, 1
      %p199 = scmp.eq.s32.totalorder %s36, 1
      %p200 = scmp.ne.s32.totalorder %s195, %s197
      %p201 = scmp.eq.s32.totalorder %s36, 0
      %p202 = por %p200, %p201
      %p203 = scmp.ne.s32.totalorder %s195, %s197
      %p204 = scmp.eq.s32.totalorder %s41, 1
      %p205 = por %p203, %p204
      %p206 = scmp.ne.s32.totalorder %s197, %s198
      %p207 = scmp.eq.s32.totalorder %s41, 0
      %p208 = por %p206, %p207
      %p209 = scmp.ne.s32.totalorder %s197, %s198
      %p210 = scmp.eq.s32.totalorder %s42, 1
      %p211 = por %p209, %p210
      %p213 = scmp.ne.s32.totalorder %s198, %s212
      %p214 = scmp.eq.s32.totalorder %s42, 0
      %p215 = por %p213, %p214
      %s217 = sadd.s32 %s216, 1
      %p220 = scmp.eq.s32.totalorder %s36, 1
      %p221 = scmp.ne.s32.totalorder %s216, %s218
      %p222 = scmp.eq.s32.totalorder %s36, 0
      %p223 = por %p221, %p222
      %p224 = scmp.ne.s32.totalorder %s216, %s218
      %p225 = scmp.eq.s32.totalorder %s41, 1
      %p226 = por %p224, %p225
      %p227 = scmp.ne.s32.totalorder %s218, %s219
      %p228 = scmp.eq.s32.totalorder %s41, 0
      %p229 = por %p227, %p228
      %p230 = scmp.ne.s32.totalorder %s218, %s219
      %p231 = scmp.eq.s32.totalorder %s42, 1
      %p232 = por %p230, %p231
      %p234 = scmp.ne.s32.totalorder %s219, %s233
      %p235 = scmp.eq.s32.totalorder %s42, 0
      %p236 = por %p234, %p235
      %s238 = sadd.s32 %s237, 1
      %p241 = scmp.eq.s32.totalorder %s36, 1
      %p242 = scmp.ne.s32.totalorder %s237, %s239
      %p243 = scmp.eq.s32.totalorder %s36, 0
      %p244 = por %p242, %p243
      %p245 = scmp.ne.s32.totalorder %s237, %s239
      %p246 = scmp.eq.s32.totalorder %s41, 1
      %p247 = por %p245, %p246
      %p248 = scmp.ne.s32.totalorder %s239, %s240
      %p249 = scmp.eq.s32.totalorder %s41, 0
      %p250 = por %p248, %p249
      %p251 = scmp.ne.s32.totalorder %s239, %s240
      %p252 = scmp.eq.s32.totalorder %s42, 1
      %p253 = por %p251, %p252
      %p255 = scmp.ne.s32.totalorder %s240, %s254
      %p256 = scmp.eq.s32.totalorder %s42, 0
      %p257 = por %p255, %p256
      %s259 = sadd.s32 %s258, 1
      %p262 = scmp.eq.s32.totalorder %s36, 1
      %p263 = scmp.ne.s32.totalorder %s258, %s260
      %p264 = scmp.eq.s32.totalorder %s36, 0
      %p265 = por %p263, %p264
      %p266 = scmp.ne.s32.totalorder %s258, %s260
      %p267 = scmp.eq.s32.totalorder %s41, 1
      %p268 = por %p266, %p267
      %p269 = scmp.ne.s32.totalorder %s260, %s261
      %p270 = scmp.eq.s32.totalorder %s41, 0
      %p271 = por %p269, %p270
      %p272 = scmp.ne.s32.totalorder %s260, %s261
      %p273 = scmp.eq.s32.totalorder %s42, 1
      %p274 = por %p272, %p273
      %p276 = scmp.ne.s32.totalorder %s261, %s275
      %p277 = scmp.eq.s32.totalorder %s42, 0
      %p278 = por %p276, %p277
      %s280 = sadd.s32 %s279, 1
      %p283 = scmp.eq.s32.totalorder %s36, 1
      %p284 = scmp.ne.s32.totalorder %s279, %s281
      %p285 = scmp.eq.s32.totalorder %s36, 0
      %p286 = por %p284, %p285
      %p287 = scmp.ne.s32.totalorder %s279, %s281
      %p288 = scmp.eq.s32.totalorder %s41, 1
      %p289 = por %p287, %p288
      %p290 = scmp.ne.s32.totalorder %s281, %s282
      %p291 = scmp.eq.s32.totalorder %s41, 0
      %p292 = por %p290, %p291
      %p293 = scmp.ne.s32.totalorder %s281, %s282
      %p294 = scmp.eq.s32.totalorder %s42, 1
      %p295 = por %p293, %p294
      %p297 = scmp.ne.s32.totalorder %s282, %s296
      %p298 = scmp.eq.s32.totalorder %s42, 0
      %p299 = por %p297, %p298
      %s301 = sadd.s32 %s300, 1
      %p304 = scmp.eq.s32.totalorder %s36, 1
      %p305 = scmp.ne.s32.totalorder %s300, %s302
      %p306 = scmp.eq.s32.totalorder %s36, 0
      %p307 = por %p305, %p306
      %p308 = scmp.ne.s32.totalorder %s300, %s302
      %p309 = scmp.eq.s32.totalorder %s41, 1
      %p310 = por %p308, %p309
      %p311 = scmp.ne.s32.totalorder %s302, %s303
      %p312 = scmp.eq.s32.totalorder %s41, 0
      %p313 = por %p311, %p312
      %p314 = scmp.ne.s32.totalorder %s302, %s303
      %p315 = scmp.eq.s32.totalorder %s42, 1
      %p316 = por %p314, %p315
      %p318 = scmp.ne.s32.totalorder %s303, %s317
      %p319 = scmp.eq.s32.totalorder %s42, 0
      %p320 = por %p318, %p319
      %s322 = sadd.s32 %s321, 1
      %p325 = scmp.eq.s32.totalorder %s36, 1
      %p326 = scmp.ne.s32.totalorder %s321, %s323
      %p327 = scmp.eq.s32.totalorder %s36, 0
      %p328 = por %p326, %p327
      %p329 = scmp.ne.s32.totalorder %s321, %s323
      %p330 = scmp.eq.s32.totalorder %s41, 1
      %p331 = por %p329, %p330
      %p332 = scmp.ne.s32.totalorder %s323, %s324
      %p333 = scmp.eq.s32.totalorder %s41, 0
      %p334 = por %p332, %p333
      %p335 = scmp.ne.s32.totalorder %s323, %s324
      %p336 = scmp.eq.s32.totalorder %s42, 1
      %p337 = por %p335, %p336
      %p339 = scmp.ne.s32.totalorder %s324, %s338
      %p340 = scmp.eq.s32.totalorder %s42, 0
      %p341 = por %p339, %p340
      %s343 = sadd.s32 %s342, 1
      %p346 = scmp.eq.s32.totalorder %s36, 1
      %p347 = scmp.ne.s32.totalorder %s342, %s344
      %p348 = scmp.eq.s32.totalorder %s36, 0
      %p349 = por %p347, %p348
      %p350 = scmp.ne.s32.totalorder %s342, %s344
      %p351 = scmp.eq.s32.totalorder %s41, 1
      %p352 = por %p350, %p351
      %p353 = scmp.ne.s32.totalorder %s344, %s345
      %p354 = scmp.eq.s32.totalorder %s41, 0
      %p355 = por %p353, %p354
      %p356 = scmp.ne.s32.totalorder %s344, %s345
      %p357 = scmp.eq.s32.totalorder %s42, 1
      %p358 = por %p356, %p357
      %p360 = scmp.ne.s32.totalorder %s345, %s359
      %p361 = scmp.eq.s32.totalorder %s42, 0
      %p362 = por %p360, %p361
      %s364 = sadd.s32 %s363, 1
      %p367 = scmp.eq.s32.totalorder %s36, 1
      %p368 = scmp.ne.s32.totalorder %s363, %s365
      %p369 = scmp.eq.s32.totalorder %s36, 0
      %p370 = por %p368, %p369
      %p371 = scmp.ne.s32.totalorder %s363, %s365
      %p372 = scmp.eq.s32.totalorder %s41, 1
      %p373 = por %p371, %p372
      %p374 = scmp.ne.s32.totalorder %s365, %s366
      %p375 = scmp.eq.s32.totalorder %s41, 0
      %p376 = por %p374, %p375
      %p377 = scmp.ne.s32.totalorder %s365, %s366
      %p378 = scmp.eq.s32.totalorder %s42, 1
      %p379 = por %p377, %p378
      %p381 = scmp.ne.s32.totalorder %s366, %s380
      %p382 = scmp.eq.s32.totalorder %s42, 0
      %p383 = por %p381, %p382
      %s385 = sadd.s32 %s384, 1
      %p388 = scmp.eq.s32.totalorder %s36, 1
      %p389 = scmp.ne.s32.totalorder %s384, %s386
      %p390 = scmp.eq.s32.totalorder %s36, 0
      %p391 = por %p389, %p390
      %p392 = scmp.ne.s32.totalorder %s384, %s386
      %p393 = scmp.eq.s32.totalorder %s41, 1
      %p394 = por %p392, %p393
      %p395 = scmp.ne.s32.totalorder %s386, %s387
      %p396 = scmp.eq.s32.totalorder %s41, 0
      %p397 = por %p395, %p396
      %p398 = scmp.ne.s32.totalorder %s386, %s387
      %p399 = scmp.eq.s32.totalorder %s42, 1
      %p400 = por %p398, %p399
      %p402 = scmp.ne.s32.totalorder %s387, %s401
      %p403 = scmp.eq.s32.totalorder %s42, 0
      %p404 = por %p402, %p403
      %s406 = sadd.s32 %s405, 1
      %p409 = scmp.eq.s32.totalorder %s36, 1
      %p410 = scmp.ne.s32.totalorder %s405, %s407
      %p411 = scmp.eq.s32.totalorder %s36, 0
      %p412 = por %p410, %p411
      %p413 = scmp.ne.s32.totalorder %s405, %s407
      %p414 = scmp.eq.s32.totalorder %s41, 1
      %p415 = por %p413, %p414
      %p416 = scmp.ne.s32.totalorder %s407, %s408
      %p417 = scmp.eq.s32.totalorder %s41, 0
      %p418 = por %p416, %p417
      %p419 = scmp.ne.s32.totalorder %s407, %s408
      %p420 = scmp.eq.s32.totalorder %s42, 1
      %p421 = por %p419, %p420
      %p423 = scmp.ne.s32.totalorder %s408, %s422
      %p424 = scmp.eq.s32.totalorder %s42, 0
      %p425 = por %p423, %p424
      %s426 = ssub.s32 %s36, %s43
      %p427 = scmp.eq.s32.totalorder %s426, 0
      %s429 = sadd.s32 %s428, 1
      %s430 = scalar_select %p427, %s428, %s429
      %p433 = pneg %p427
      %p434 = scmp.eq.s32.totalorder %s36, 1
      %p435 = por %p433, %p434
      %p436 = scmp.ne.s32.totalorder %s428, %s431
      %p437 = scmp.eq.s32.totalorder %s36, 0
      %p438 = por %p436, %p437
      %p439 = scmp.ne.s32.totalorder %s428, %s431
      %p440 = scmp.eq.s32.totalorder %s41, 1
      %p441 = por %p439, %p440
      %p442 = scmp.ne.s32.totalorder %s431, %s432
      %p443 = scmp.eq.s32.totalorder %s41, 0
      %p444 = por %p442, %p443
      %p445 = scmp.ne.s32.totalorder %s431, %s432
      %p446 = scmp.eq.s32.totalorder %s42, 1
      %p447 = por %p445, %p446
      %p449 = scmp.ne.s32.totalorder %s432, %s448
      %p450 = scmp.eq.s32.totalorder %s42, 0
      %p451 = por %p449, %p450
      %p452 = scmp.le.s32.totalorder 1, %s36
      %p453 = scmp.lt.s32.totalorder %s36, 3
      %p454 = pnand %p452, %p453
      %p455 = pneg %p454
      // Predicated region
      $region9: #{tpu_custom_call.1} parent=5 // pred_check
        _
      $region10: #{tpu_custom_call.1} parent=5 // pred_check_branch
        %457 = sbr.rel (%p454) target = $region12
      $region11: #{tpu_custom_call.1} parent=5 // pred_region
        %s458 = ssub.s32 %s36, 1
        // Predicated region
        $region13: #{tpu_custom_call.1} parent=11 // pred_check
          %p459 = pneg %p57
        $region14: #{tpu_custom_call.1} parent=11 // pred_check_branch
          %461 = sbr.rel (%p459) target = $region16
        $region15: #{tpu_custom_call.1} parent=11 // pred_region
          _
        $region16: #{tpu_custom_call.1} parent=11 // pred_fallthru
          _
        // Predicated region
        $region17: #{tpu_custom_call.1} parent=11 // pred_check
          %p462 = pneg %p208
        $region18: #{tpu_custom_call.1} parent=11 // pred_check_branch
          %464 = sbr.rel (%p462) target = $region20
        $region19: #{tpu_custom_call.1} parent=11 // pred_region
          %s466 = ssub.s32 256, 256
          %467 = vsyncadd [#allocation10], %s466
          %s468 = sshll.u32 [#allocation9], 4
          %s469 = int_to_ptr.vmem [resolvable:$true] %s468
          %474 = dma.hbm_to_vmem [thread:$0]  %s6, 256, %s469, [#allocation10], 128, 128, 8
        $region20: #{tpu_custom_call.1} parent=11 // pred_fallthru
          _
        // Predicated region
        $region21: #{tpu_custom_call.1} parent=11 // pred_check
          %p475 = pneg %p229
        $region22: #{tpu_custom_call.1} parent=11 // pred_check_branch
          %477 = sbr.rel (%p475) target = $region24
        $region23: #{tpu_custom_call.1} parent=11 // pred_region
          %s479 = ssub.s32 256, 256
          %480 = vsyncadd [#allocation10], %s479
          %s481 = sshll.u32 [#allocation11], 4
          %s482 = int_to_ptr.vmem [resolvable:$true] %s481
          %487 = dma.hbm_to_vmem [thread:$0]  %s7, 256, %s482, [#allocation10], 128, 128, 8
        $region24: #{tpu_custom_call.1} parent=11 // pred_fallthru
          _
        // Predicated region
        $region25: #{tpu_custom_call.1} parent=11 // pred_check
          %p488 = pneg %p250
        $region26: #{tpu_custom_call.1} parent=11 // pred_check_branch
          %490 = sbr.rel (%p488) target = $region28
        $region27: #{tpu_custom_call.1} parent=11 // pred_region
          %s492 = ssub.s32 256, 256
          %493 = vsyncadd [#allocation13], %s492
          %s494 = sshll.u32 [#allocation12], 4
          %s495 = int_to_ptr.vmem [resolvable:$true] %s494
          %500 = dma.hbm_to_vmem [thread:$0]  %s8, 256, %s495, [#allocation13], 128, 128, 8
        $region28: #{tpu_custom_call.1} parent=11 // pred_fallthru
          _
        // Predicated region
        $region29: #{tpu_custom_call.1} parent=11 // pred_check
          %p501 = pneg %p271
        $region30: #{tpu_custom_call.1} parent=11 // pred_check_branch
          %503 = sbr.rel (%p501) target = $region32
        $region31: #{tpu_custom_call.1} parent=11 // pred_region
          %s505 = ssub.s32 256, 256
          %506 = vsyncadd [#allocation13], %s505
          %s507 = sshll.u32 [#allocation14], 4
          %s508 = int_to_ptr.vmem [resolvable:$true] %s507
          %513 = dma.hbm_to_vmem [thread:$0]  %s9, 256, %s508, [#allocation13], 128, 128, 8
        $region32: #{tpu_custom_call.1} parent=11 // pred_fallthru
          _
        // Predicated region
        $region33: #{tpu_custom_call.1} parent=11 // pred_check
          %p514 = pneg %p292
        $region34: #{tpu_custom_call.1} parent=11 // pred_check_branch
          %516 = sbr.rel (%p514) target = $region36
        $region35: #{tpu_custom_call.1} parent=11 // pred_region
          %s518 = ssub.s32 288, 288
          %519 = vsyncadd [#allocation16], %s518
          %s520 = sshll.u32 [#allocation15], 4
          %s521 = int_to_ptr.vmem [resolvable:$true] %s520
          %526 = dma.hbm_to_vmem [thread:$0]  %s10, 288, %s521, [#allocation16], 32, 32, 2
        $region36: #{tpu_custom_call.1} parent=11 // pred_fallthru
          _
        // Predicated region
        $region37: #{tpu_custom_call.1} parent=11 // pred_check
          %p527 = pneg %p313
        $region38: #{tpu_custom_call.1} parent=11 // pred_check_branch
          %529 = sbr.rel (%p527) target = $region40
        $region39: #{tpu_custom_call.1} parent=11 // pred_region
          _
        $region40: #{tpu_custom_call.1} parent=11 // pred_fallthru
          _
        // Predicated region
        $region41: #{tpu_custom_call.1} parent=11 // pred_check
          %p530 = pneg %p334
        $region42: #{tpu_custom_call.1} parent=11 // pred_check_branch
          %532 = sbr.rel (%p530) target = $region44
        $region43: #{tpu_custom_call.1} parent=11 // pred_region
          _
        $region44: #{tpu_custom_call.1} parent=11 // pred_fallthru
          _
        // Predicated region
        $region45: #{tpu_custom_call.1} parent=11 // pred_check
          %p533 = pneg %p355
        $region46: #{tpu_custom_call.1} parent=11 // pred_check_branch
          %535 = sbr.rel (%p533) target = $region48
        $region47: #{tpu_custom_call.1} parent=11 // pred_region
          _
        $region48: #{tpu_custom_call.1} parent=11 // pred_fallthru
          _
        // Predicated region
        $region49: #{tpu_custom_call.1} parent=11 // pred_check
          %p536 = pneg %p376
        $region50: #{tpu_custom_call.1} parent=11 // pred_check_branch
          %538 = sbr.rel (%p536) target = $region52
        $region51: #{tpu_custom_call.1} parent=11 // pred_region
          _
        $region52: #{tpu_custom_call.1} parent=11 // pred_fallthru
          _
        // Predicated region
        $region53: #{tpu_custom_call.1} parent=11 // pred_check
          %p539 = pneg %p397
        $region54: #{tpu_custom_call.1} parent=11 // pred_check_branch
          %541 = sbr.rel (%p539) target = $region56
        $region55: #{tpu_custom_call.1} parent=11 // pred_region
          _
        $region56: #{tpu_custom_call.1} parent=11 // pred_fallthru
          _
        // Predicated region
        $region57: #{tpu_custom_call.1} parent=11 // pred_check
          %p542 = pneg %p418
        $region58: #{tpu_custom_call.1} parent=11 // pred_check_branch
          %544 = sbr.rel (%p542) target = $region60
        $region59: #{tpu_custom_call.1} parent=11 // pred_region
          _
        $region60: #{tpu_custom_call.1} parent=11 // pred_fallthru
          _
      $region12: #{tpu_custom_call.1} parent=5 // pred_fallthru
        _
      %p545 = scmp.lt.s32.totalorder %s36, 2
      // Predicated region
      $region61: #{tpu_custom_call.1} parent=5 // pred_check
        %p546 = pneg %p545
      $region62: #{tpu_custom_call.1} parent=5 // pred_check_branch
        %548 = sbr.rel (%p546) target = $region64
      $region63: #{tpu_custom_call.1} parent=5 // pred_region
        // Predicated region
        $region65: #{tpu_custom_call.1} parent=63 // pred_check
          %p549 = pneg %p77
        $region66: #{tpu_custom_call.1} parent=63 // pred_check_branch
          %551 = sbr.rel (%p549) target = $region68
        $region67: #{tpu_custom_call.1} parent=63 // pred_region
          %s552 = sand.u32 %s67, 1
          %s553 = scalar_lea.sflag [#allocation4], %s552
          %s554 = sand.u32 %s67, 1
          %s555 = smul.addr %s554, 32
          %s556 = scalar_lea.vmem [#allocation3], %s555
          %s558 = ssub.s32 512, 512
          %559 = vsyncadd %s553, %s558
          %s560 = smul.addr %s36, 4
          %s561 = smul.addr %s560, 128
          %s562 = scalar_lea.hbm %s1, %s561
          %s563 = sshll.u32 %s556, 4
          %s564 = int_to_ptr.vmem [resolvable:$true] %s563
          %569 = dma.hbm_to_vmem [thread:$0]  %s562, 512, %s564, %s553, 128, 128, 8
        $region68: #{tpu_custom_call.1} parent=63 // pred_fallthru
          _
        // Predicated region
        $region69: #{tpu_custom_call.1} parent=63 // pred_check
          %p570 = pneg %p103
        $region70: #{tpu_custom_call.1} parent=63 // pred_check_branch
          %572 = sbr.rel (%p570) target = $region72
        $region71: #{tpu_custom_call.1} parent=63 // pred_region
          %p573 = scmp.lt.s32.totalorder %s36, 1
          %s574 = scalar_select %p573, %s36, 1
          %s575 = smul.addr %s574, 8
          %s576 = smul.addr %s575, 8
          %s577 = scalar_lea.vmem %s2, %s576
        $region72: #{tpu_custom_call.1} parent=63 // pred_fallthru
          _
        // Predicated region
        $region73: #{tpu_custom_call.1} parent=63 // pred_check
          %p578 = pneg %p129
        $region74: #{tpu_custom_call.1} parent=63 // pred_check_branch
          %580 = sbr.rel (%p578) target = $region76
        $region75: #{tpu_custom_call.1} parent=63 // pred_region
          %p581 = scmp.lt.s32.totalorder %s36, 1
          %s582 = scalar_select %p581, %s36, 1
          %s583 = smul.addr %s582, 8
          %s584 = smul.addr %s583, 8
          %s585 = scalar_lea.vmem %s3, %s584
        $region76: #{tpu_custom_call.1} parent=63 // pred_fallthru
          _
        // Predicated region
        $region77: #{tpu_custom_call.1} parent=63 // pred_check
          %p586 = pneg %p155
        $region78: #{tpu_custom_call.1} parent=63 // pred_check_branch
          %588 = sbr.rel (%p586) target = $region80
        $region79: #{tpu_custom_call.1} parent=63 // pred_region
          %s589 = sand.u32 %s36, 1
          %s590 = scalar_lea.sflag [#allocation7], %s589
          %s591 = sand.u32 %s145, 1
          %s592 = smul.addr %s591, 16
          %s593 = scalar_lea.vmem [#allocation6], %s592
          %s595 = ssub.s32 256, 256
          %596 = vsyncadd %s590, %s595
          %s597 = smul.addr %s36, 2
          %s598 = smul.addr %s597, 128
          %s599 = scalar_lea.hbm %s4, %s598
          %s600 = sshll.u32 %s593, 4
          %s601 = int_to_ptr.vmem [resolvable:$true] %s600
          %606 = dma.hbm_to_vmem [thread:$0]  %s599, 256, %s601, %s590, 128, 128, 8
        $region80: #{tpu_custom_call.1} parent=63 // pred_fallthru
          _
        // Predicated region
        $region81: #{tpu_custom_call.1} parent=63 // pred_check
          %p607 = pneg %p181
        $region82: #{tpu_custom_call.1} parent=63 // pred_check_branch
          %609 = sbr.rel (%p607) target = $region84
        $region83: #{tpu_custom_call.1} parent=63 // pred_region
          %s610 = sand.u32 %s36, 1
          %s611 = scalar_lea.sflag [#allocation7], %s610
          %s612 = sand.u32 %s171, 1
          %s613 = smul.addr %s612, 32
          %s614 = scalar_lea.vmem [#allocation8], %s613
          %s616 = ssub.s32 512, 512
          %617 = vsyncadd %s611, %s616
          %s618 = smul.addr %s36, 4
          %s619 = smul.addr %s618, 128
          %s620 = scalar_lea.hbm %s5, %s619
          %s621 = sshll.u32 %s614, 4
          %s622 = int_to_ptr.vmem [resolvable:$true] %s621
          %627 = dma.hbm_to_vmem [thread:$0]  %s620, 512, %s622, %s611, 128, 128, 8
        $region84: #{tpu_custom_call.1} parent=63 // pred_fallthru
          _
      $region64: #{tpu_custom_call.1} parent=5 // pred_fallthru
        _
      %p628 = scmp.le.s32.totalorder 1, %s36
      %p629 = scmp.lt.s32.totalorder %s36, 3
      %p630 = pnand %p628, %p629
      %p631 = pneg %p630
      // Predicated region
      $region85: #{tpu_custom_call.1} parent=5 // pred_check
        _
      $region86: #{tpu_custom_call.1} parent=5 // pred_check_branch
        %633 = sbr.rel (%p630) target = $region88
      $region87: #{tpu_custom_call.1} parent=5 // pred_region
        %s634 = ssub.s32 %s36, 1
        %s635 = sand.u32 %s70, 1
        %s636 = scalar_lea.sflag [#allocation4], %s635
        %s637 = sand.u32 %s70, 1
        %s638 = smul.addr %s637, 32
        %s639 = scalar_lea.vmem [#allocation3], %s638
        // Predicated region
        $region89: #{tpu_custom_call.1} parent=87 // pred_check
          %p640 = pneg %p83
        $region90: #{tpu_custom_call.1} parent=87 // pred_check_branch
          %642 = sbr.rel (%p640) target = $region92
        $region91: #{tpu_custom_call.1} parent=87 // pred_region
          %643 = dma.done %s636, 512
        $region92: #{tpu_custom_call.1} parent=87 // pred_fallthru
          _
        %s644 = sand.u32 %s41, 1
        %s645 = scalar_lea.sflag [#allocation7], %s644
        %s646 = sand.u32 %s148, 1
        %s647 = smul.addr %s646, 16
        %s648 = scalar_lea.vmem [#allocation6], %s647
        // Predicated region
        $region93: #{tpu_custom_call.1} parent=87 // pred_check
          %p649 = pneg %p161
        $region94: #{tpu_custom_call.1} parent=87 // pred_check_branch
          %651 = sbr.rel (%p649) target = $region96
        $region95: #{tpu_custom_call.1} parent=87 // pred_region
          %652 = dma.done %s645, 256
        $region96: #{tpu_custom_call.1} parent=87 // pred_fallthru
          _
        %s653 = sand.u32 %s41, 1
        %s654 = scalar_lea.sflag [#allocation7], %s653
        %s655 = sand.u32 %s174, 1
        %s656 = smul.addr %s655, 32
        %s657 = scalar_lea.vmem [#allocation8], %s656
        // Predicated region
        $region97: #{tpu_custom_call.1} parent=87 // pred_check
          %p658 = pneg %p187
        $region98: #{tpu_custom_call.1} parent=87 // pred_check_branch
          %660 = sbr.rel (%p658) target = $region100
        $region99: #{tpu_custom_call.1} parent=87 // pred_region
          %661 = dma.done %s654, 512
        $region100: #{tpu_custom_call.1} parent=87 // pred_fallthru
          _
        // Predicated region
        $region101: #{tpu_custom_call.1} parent=87 // pred_check
          %p662 = pneg %p208
        $region102: #{tpu_custom_call.1} parent=87 // pred_check_branch
          %664 = sbr.rel (%p662) target = $region104
        $region103: #{tpu_custom_call.1} parent=87 // pred_region
          %665 = dma.done [#allocation10], 256
        $region104: #{tpu_custom_call.1} parent=87 // pred_fallthru
          _
        // Predicated region
        $region105: #{tpu_custom_call.1} parent=87 // pred_check
          %p666 = pneg %p229
        $region106: #{tpu_custom_call.1} parent=87 // pred_check_branch
          %668 = sbr.rel (%p666) target = $region108
        $region107: #{tpu_custom_call.1} parent=87 // pred_region
          %669 = dma.done [#allocation10], 256
        $region108: #{tpu_custom_call.1} parent=87 // pred_fallthru
          _
        // Predicated region
        $region109: #{tpu_custom_call.1} parent=87 // pred_check
          %p670 = pneg %p250
        $region110: #{tpu_custom_call.1} parent=87 // pred_check_branch
          %672 = sbr.rel (%p670) target = $region112
        $region111: #{tpu_custom_call.1} parent=87 // pred_region
          %673 = dma.done [#allocation13], 256
        $region112: #{tpu_custom_call.1} parent=87 // pred_fallthru
          _
        // Predicated region
        $region113: #{tpu_custom_call.1} parent=87 // pred_check
          %p674 = pneg %p271
        $region114: #{tpu_custom_call.1} parent=87 // pred_check_branch
          %676 = sbr.rel (%p674) target = $region116
        $region115: #{tpu_custom_call.1} parent=87 // pred_region
          %677 = dma.done [#allocation13], 256
        $region116: #{tpu_custom_call.1} parent=87 // pred_fallthru
          _
        // Predicated region
        $region117: #{tpu_custom_call.1} parent=87 // pred_check
          %p678 = pneg %p292
        $region118: #{tpu_custom_call.1} parent=87 // pred_check_branch
          %680 = sbr.rel (%p678) target = $region120
        $region119: #{tpu_custom_call.1} parent=87 // pred_region
          %681 = dma.done [#allocation16], 288
        $region120: #{tpu_custom_call.1} parent=87 // pred_fallthru
          _
        %p682 = pneg %p57
        %p683 = pneg %p54
        %s684 = sand.u32 %s70, 1
        %s685 = scalar_lea.sflag [#allocation4], %s684
        %s686 = sand.u32 %s70, 1
        %s687 = smul.addr %s686, 32
        %s688 = scalar_lea.vmem [#allocation3], %s687
        %p689 = pneg %p83
        %p690 = pneg %p80
        %p691 = scmp.lt.s32.totalorder %s41, 1
        %s692 = scalar_select %p691, %s41, 1
        %s693 = smul.addr %s692, 8
        %s694 = smul.addr %s693, 8
        %s695 = scalar_lea.vmem %s2, %s694
        %p696 = pneg %p109
        %p697 = pneg %p106
        %p698 = scmp.lt.s32.totalorder %s41, 1
        %s699 = scalar_select %p698, %s41, 1
        %s700 = smul.addr %s699, 8
        %s701 = smul.addr %s700, 8
        %s702 = scalar_lea.vmem %s3, %s701
        %p703 = pneg %p135
        %p704 = pneg %p132
        %s705 = sand.u32 %s41, 1
        %s706 = scalar_lea.sflag [#allocation7], %s705
        %s707 = sand.u32 %s148, 1
        %s708 = smul.addr %s707, 16
        %s709 = scalar_lea.vmem [#allocation6], %s708
        %p710 = pneg %p161
        %p711 = pneg %p158
        %s712 = sand.u32 %s41, 1
        %s713 = scalar_lea.sflag [#allocation7], %s712
        %s714 = sand.u32 %s174, 1
        %s715 = smul.addr %s714, 32
        %s716 = scalar_lea.vmem [#allocation8], %s715
        %p717 = pneg %p187
        %p718 = pneg %p184
        %p719 = pneg %p208
        %p720 = pneg %p205
        %p721 = pneg %p229
        %p722 = pneg %p226
        %p723 = pneg %p250
        %p724 = pneg %p247
        %p725 = pneg %p271
        %p726 = pneg %p268
        %p727 = pneg %p292
        %p728 = pneg %p289
        %p729 = pneg %p313
        %p730 = pneg %p310
        %p731 = pneg %p334
        %p732 = pneg %p331
        %p733 = pneg %p355
        %p734 = pneg %p352
        %p735 = pneg %p376
        %p736 = pneg %p373
        %p737 = pneg %p397
        %p738 = pneg %p394
        %p739 = pneg %p418
        %p740 = pneg %p415
        %p741 = pneg %p444
        %p742 = pneg %p441
        %s743 = sand.u32 %s431, 1
        %s744 = scalar_lea.sflag [#allocation5], %s743
        %s745 = sand.u32 %s431, 1
        %s746 = smul.addr %s745, 32
        %s747 = scalar_lea.vmem [#allocation17], %s746
        %p748 = scmp.lt.s32.totalorder %s41, 1
        %s749 = scalar_select %p748, %s41, 1
        %s750 = smul.addr %s749, 8
        %s751 = smul.addr %s750, 8
        %s752 = scalar_lea.vmem %s2, %s751
        %p753 = scmp.lt.s32.totalorder %s41, 1
        %s754 = scalar_select %p753, %s41, 1
        %s755 = smul.addr %s754, 8
        %s756 = smul.addr %s755, 8
        %s757 = scalar_lea.vmem %s3, %s756
        %v758 = vld [vmem:[%s639] sm:$0xff]
        %v759 = vld [vmem:[%s639 + $0x8] sm:$0xff]
        %v760 = vld [vmem:[%s639 + $0x10] sm:$0xff]
        %v761 = vld [vmem:[%s639 + $0x18] sm:$0xff]
        %v762 = vcombine.high %v758, 0.0
        %v764 = vunpack.c.l.s4 1983009808
        %v765 = vunpack.c.0.s8 %v764
        %v766 = vlaneseq
        %v767 = vshrl.u32 %v766, 7
        %v768 = vsub.s32 %v765, %v767
        %v769 = vrot.slane %v758, %v768
        %v771 = vunpack.c.l.s4 1983009808
        %v772 = vunpack.c.0.s8 %v771
        %v773 = vlaneseq
        %v774 = vshrl.u32 %v773, 7
        %v775 = vsub.s32 %v772, %v774
        %v776 = vrot.slane %v762, %v775
        %v777 = vcombine.high %v760, 0.0
        %v779 = vunpack.c.l.s4 1983009808
        %v780 = vunpack.c.0.s8 %v779
        %v781 = vlaneseq
        %v782 = vshrl.u32 %v781, 7
        %v783 = vsub.s32 %v780, %v782
        %v784 = vrot.slane %v760, %v783
        %v786 = vunpack.c.l.s4 1983009808
        %v787 = vunpack.c.0.s8 %v786
        %v788 = vlaneseq
        %v789 = vshrl.u32 %v788, 7
        %v790 = vsub.s32 %v787, %v789
        %v791 = vrot.slane %v777, %v790
        %v792 = vcombine.low %v769, %v784
        %v793 = vcombine.high %v769, %v784
        %v795 = vunpack.c.l.s4 1934713408
        %v796 = vunpack.c.0.s8 %v795
        %v797 = vlaneseq
        %v798 = vshrl.u32 %v797, 7
        %v799 = vsub.s32 %v796, %v798
        %v800 = vrot.slane %v792, %v799
        %v802 = vunpack.c.l.s4 1934713408
        %v803 = vunpack.c.0.s8 %v802
        %v804 = vlaneseq
        %v805 = vshrl.u32 %v804, 7
        %v806 = vsub.s32 %v803, %v805
        %v807 = vrot.slane %v793, %v806
        %v808 = vcombine.low %v776, %v791
        %v809 = vcombine.high %v776, %v791
        %v811 = vunpack.c.l.s4 1934713408
        %v812 = vunpack.c.0.s8 %v811
        %v813 = vlaneseq
        %v814 = vshrl.u32 %v813, 7
        %v815 = vsub.s32 %v812, %v814
        %v816 = vrot.slane %v808, %v815
        %v818 = vunpack.c.l.s4 1934713408
        %v819 = vunpack.c.0.s8 %v818
        %v820 = vlaneseq
        %v821 = vshrl.u32 %v820, 7
        %v822 = vsub.s32 %v819, %v821
        %v823 = vrot.slane %v809, %v822
        %v824 = vcombine.high %v800, 0.0
        %v825 = vcombine.high %v807, 0.0
        %v826 = vcombine.high %v816, 0.0
        %v827 = vcombine.high %v823, 0.0
        %v828 = vcombine.high %v759, 0.0
        %v830 = vunpack.c.l.s4 1983009808
        %v831 = vunpack.c.0.s8 %v830
        %v832 = vlaneseq
        %v833 = vshrl.u32 %v832, 7
        %v834 = vsub.s32 %v831, %v833
        %v835 = vrot.slane %v759, %v834
        %v837 = vunpack.c.l.s4 1983009808
        %v838 = vunpack.c.0.s8 %v837
        %v839 = vlaneseq
        %v840 = vshrl.u32 %v839, 7
        %v841 = vsub.s32 %v838, %v840
        %v842 = vrot.slane %v828, %v841
        %v843 = vcombine.high %v761, 0.0
        %v845 = vunpack.c.l.s4 1983009808
        %v846 = vunpack.c.0.s8 %v845
        %v847 = vlaneseq
        %v848 = vshrl.u32 %v847, 7
        %v849 = vsub.s32 %v846, %v848
        %v850 = vrot.slane %v761, %v849
        %v852 = vunpack.c.l.s4 1983009808
        %v853 = vunpack.c.0.s8 %v852
        %v854 = vlaneseq
        %v855 = vshrl.u32 %v854, 7
        %v856 = vsub.s32 %v853, %v855
        %v857 = vrot.slane %v843, %v856
        %v858 = vcombine.low %v835, %v850
        %v859 = vcombine.high %v835, %v850
        %v861 = vunpack.c.l.s4 1934713408
        %v862 = vunpack.c.0.s8 %v861
        %v863 = vlaneseq
        %v864 = vshrl.u32 %v863, 7
        %v865 = vsub.s32 %v862, %v864
        %v866 = vrot.slane %v858, %v865
        %v868 = vunpack.c.l.s4 1934713408
        %v869 = vunpack.c.0.s8 %v868
        %v870 = vlaneseq
        %v871 = vshrl.u32 %v870, 7
        %v872 = vsub.s32 %v869, %v871
        %v873 = vrot.slane %v859, %v872
        %v874 = vcombine.low %v842, %v857
        %v875 = vcombine.high %v842, %v857
        %v877 = vunpack.c.l.s4 1934713408
        %v878 = vunpack.c.0.s8 %v877
        %v879 = vlaneseq
        %v880 = vshrl.u32 %v879, 7
        %v881 = vsub.s32 %v878, %v880
        %v882 = vrot.slane %v874, %v881
        %v884 = vunpack.c.l.s4 1934713408
        %v885 = vunpack.c.0.s8 %v884
        %v886 = vlaneseq
        %v887 = vshrl.u32 %v886, 7
        %v888 = vsub.s32 %v885, %v887
        %v889 = vrot.slane %v875, %v888
        %v890 = vcombine.high %v866, 0.0
        %v891 = vcombine.high %v873, 0.0
        %v892 = vcombine.high %v882, 0.0
        %v893 = vcombine.high %v889, 0.0
        %895 = vrot.lane.b32.xlu0 %v824, 16
        %v896 = vpop.permute.xlu0 %895
        %899 = vrot.lane.b32.xlu0 %v807, 32
        %v900 = vpop.permute.xlu0 %899
        %903 = vrot.lane.b32.xlu0 %v825, 48
        %v904 = vpop.permute.xlu0 %903
        %907 = vrot.lane.b32.xlu0 %v816, 64
        %v908 = vpop.permute.xlu0 %907
        %911 = vrot.lane.b32.xlu0 %v826, 80
        %v912 = vpop.permute.xlu0 %911
        %915 = vrot.lane.b32.xlu0 %v823, 96
        %v916 = vpop.permute.xlu0 %915
        %919 = vrot.lane.b32.xlu0 %v827, 112
        %v920 = vpop.permute.xlu0 %919
        %923 = vrot.lane.b32.xlu0 %v890, 16
        %v924 = vpop.permute.xlu0 %923
        %927 = vrot.lane.b32.xlu0 %v873, 32
        %v928 = vpop.permute.xlu0 %927
        %931 = vrot.lane.b32.xlu0 %v891, 48
        %v932 = vpop.permute.xlu0 %931
        %935 = vrot.lane.b32.xlu0 %v882, 64
        %v936 = vpop.permute.xlu0 %935
        %939 = vrot.lane.b32.xlu0 %v892, 80
        %v940 = vpop.permute.xlu0 %939
        %943 = vrot.lane.b32.xlu0 %v889, 96
        %v944 = vpop.permute.xlu0 %943
        %947 = vrot.lane.b32.xlu0 %v893, 112
        %v948 = vpop.permute.xlu0 %947
        %vm950 = vcmask 130048
        %v951 = vsel %vm950, %v800, %v896
        %vm952 = vcmask 261120
        %v953 = vsel %vm952, %v951, %v900
        %vm954 = vcmask 392192
        %v955 = vsel %vm954, %v953, %v904
        %vm956 = vcmask 523264
        %v957 = vsel %vm956, %v955, %v908
        %vm958 = vcmask 654336
        %v959 = vsel %vm958, %v957, %v912
        %vm960 = vcmask 785408
        %v961 = vsel %vm960, %v959, %v916
        %vm962 = vcmask 916480
        %v963 = vsel %vm962, %v961, %v920
        %v964 = vsel %vm950, %v866, %v924
        %v965 = vsel %vm952, %v964, %v928
        %v966 = vsel %vm954, %v965, %v932
        %v967 = vsel %vm956, %v966, %v936
        %v968 = vsel %vm958, %v967, %v940
        %v969 = vsel %vm960, %v968, %v944
        %v970 = vsel %vm962, %v969, %v948
        %971 = vrot.lane.b32.xlu0 %v963, 17
        %v972 = vpop.permute.xlu0 %971
        %973 = vrot.lane.b32.xlu0 %v970, 17
        %v974 = vpop.permute.xlu0 %973
        %v975 = vlaneseq
        %v976 = vand.u32 %v975, 127
        %vm977 = vcmp.lt.s32.totalorder %v976, 17
        %v978 = vsel %vm977, %v972, %v974
        %v979 = vsel %vm977, %v974, %v972
        %v980 = vld [vmem:[#allocation15] sm:$0x3]
        %v982 = vlaneseq
        %v983 = vshrl.u32 %v982, 7
        %v984 = vsub.s32 0, %v983
        %v985 = vrot.slane %v980, %v984
        %v986 = vlaneseq
        %v987 = vshrl.u32 %v986, 7
        %v988 = vsub.s32 1, %v987
        %v989 = vrot.slane %v980, %v988
        %v992 = vmul.f32 %v979, %v985
        %v993 = vmul.f32 %v978, %v989
        %v994 = vld [vmem:[%s11] sm:$0xff]
        %995 = vrot.lane.b32.xlu0 %v963, 16
        %v996 = vpop.permute.xlu0 %995
        %997 = vrot.lane.b32.xlu0 %v970, 16
        %v998 = vpop.permute.xlu0 %997
        %vm999 = vcmp.lt.s32.totalorder %v976, 16
        %v1000 = vsel %vm999, %v996, %v998
        %v1001 = vsel %vm999, %v998, %v996
        %s1002 = scalar_lea.vmem [#allocation15], 2
        %v1003 = vld [vmem:[%s1002] sm:$0x3]
        %v1005 = vlaneseq
        %v1006 = vshrl.u32 %v1005, 7
        %v1007 = vsub.s32 0, %v1006
        %v1008 = vrot.slane %v1003, %v1007
        %v1009 = vlaneseq
        %v1010 = vshrl.u32 %v1009, 7
        %v1011 = vsub.s32 1, %v1010
        %v1012 = vrot.slane %v1003, %v1011
        %v1015 = vmul.f32 %v1001, %v1008
        %v1016 = vmul.f32 %v1000, %v1012
        %s1017 = scalar_lea.vmem %s11, 8
        %v1018 = vld [vmem:[%s1017] sm:$0xff]
        %vm1019 = vcmask 15360
        %v1021 = vsel %vm1019, %v1018, 0
        %vm1023 = vcmask 1041408
        %v1025 = vsel %vm1023, %v1015, 0
        %v1028 = vsel %vm1023, %v1016, 0
        %1030 = vmatprep.subr.mxu0 %v1028
        %1031 = vmatpush1.msra.mxu0 %v1025
        %1032 = vmatprep.subr.mxu0 0.0
        %1033 = vmatpush1.msra.mxu0 0.0
        %1034 = vmatprep.subr.mxu0 0.0
        %1035 = vmatpush1.msra.mxu0 0.0
        %1036 = vmatprep.subr.mxu0 0.0
        %1037 = vmatpush1.msra.mxu0 0.0
        %1038 = vmatprep.subr.mxu0 0.0
        %1039 = vmatpush1.msra.mxu0 0.0
        %1040 = vmatprep.subr.mxu0 0.0
        %1041 = vmatpush1.msra.mxu0 0.0
        %1042 = vmatprep.subr.mxu0 0.0
        %1043 = vmatpush1.msra.mxu0 0.0
        %1044 = vmatprep.subr.mxu0 0.0
        %1045 = vmatpush1.msra.mxu0 0.0
        %1046 = vmatprep.subr.mxu0 0.0
        %1047 = vmatpush1.msra.mxu0 0.0
        %1048 = vmatprep.subr.mxu0 0.0
        %1049 = vmatpush1.msra.mxu0 0.0
        %1050 = vmatprep.subr.mxu0 0.0
        %1051 = vmatpush1.msra.mxu0 0.0
        %1052 = vmatprep.subr.mxu0 0.0
        %1053 = vmatpush1.msra.mxu0 0.0
        %1054 = vmatprep.subr.mxu0 0.0
        %1055 = vmatpush1.msra.mxu0 0.0
        %1056 = vmatprep.subr.mxu0 0.0
        %1057 = vmatpush1.msra.mxu0 0.0
        %1058 = vmatprep.subr.mxu0 0.0
        %1059 = vmatpush1.msra.mxu0 0.0
        %1060 = vmatprep.subr.mxu0 0.0
        %1061 = vmatpush1.msra.mxu0 0.0
        %1062 = vmatprep.subr.mxu0 0.0
        %1063 = vmatpush1.msra.mxu0 0.0
        %1064 = vmatprep.subr.mxu0 0.0
        %1065 = vmatpush1.msra.mxu0 0.0
        %1066 = vmatprep.subr.mxu0 0.0
        %1067 = vmatpush1.msra.mxu0 0.0
        %1068 = vmatprep.subr.mxu0 0.0
        %1069 = vmatpush1.msra.mxu0 0.0
        %1070 = vmatprep.subr.mxu0 0.0
        %1071 = vmatpush1.msra.mxu0 0.0
        %1072 = vmatprep.subr.mxu0 0.0
        %1073 = vmatpush1.msra.mxu0 0.0
        %1074 = vmatprep.subr.mxu0 0.0
        %1075 = vmatpush1.msra.mxu0 0.0
        %1076 = vmatprep.subr.mxu0 0.0
        %1077 = vmatpush1.msra.mxu0 0.0
        %1078 = vmatprep.subr.mxu0 0.0
        %1079 = vmatpush1.msra.mxu0 0.0
        %1080 = vmatprep.subr.mxu0 0.0
        %1081 = vmatpush1.msra.mxu0 0.0
        %1082 = vmatprep.subr.mxu0 0.0
        %1083 = vmatpush1.msra.mxu0 0.0
        %1084 = vmatprep.subr.mxu0 0.0
        %1085 = vmatpush1.msra.mxu0 0.0
        %1086 = vmatprep.subr.mxu0 0.0
        %1087 = vmatpush1.msra.mxu0 0.0
        %1088 = vmatprep.subr.mxu0 0.0
        %1089 = vmatpush1.msra.mxu0 0.0
        %1090 = vmatprep.subr.mxu0 0.0
        %1091 = vmatpush1.msra.mxu0 0.0
        %1092 = vmatprep.subr.mxu0 0.0
        %1093 = vmatpush1.msra.mxu0 0.0
        %1094 = vmatprep.mubr.f32.mxu0 0.0
        %1095 = vmatmul.mubr.f32.gmra.mrb[0].mxu0 %v1021
        %v1096 = vpop.f32.mrb[0].mxu0
        %v1097 = vadd.f32 0.0, %v1096
        %v1098 = vpop.f32.mrb[0].mxu0
        %v1099 = vadd.f32 0.0, %v1098
        %1100 = vdwg.mxu0
        %v1102 = vsel %vm1019, %v994, 0
        %v1105 = vsel %vm1023, %v992, 0
        %v1108 = vsel %vm1023, %v993, 0
        %1110 = vmatprep.subr.mxu0 %v1108
        %1111 = vmatpush1.msra.mxu0 %v1105
        %1112 = vmatprep.subr.mxu0 0.0
        %1113 = vmatpush1.msra.mxu0 0.0
        %1114 = vmatprep.subr.mxu0 0.0
        %1115 = vmatpush1.msra.mxu0 0.0
        %1116 = vmatprep.subr.mxu0 0.0
        %1117 = vmatpush1.msra.mxu0 0.0
        %1118 = vmatprep.subr.mxu0 0.0
        %1119 = vmatpush1.msra.mxu0 0.0
        %1120 = vmatprep.subr.mxu0 0.0
        %1121 = vmatpush1.msra.mxu0 0.0
        %1122 = vmatprep.subr.mxu0 0.0
        %1123 = vmatpush1.msra.mxu0 0.0
        %1124 = vmatprep.subr.mxu0 0.0
        %1125 = vmatpush1.msra.mxu0 0.0
        %1126 = vmatprep.subr.mxu0 0.0
        %1127 = vmatpush1.msra.mxu0 0.0
        %1128 = vmatprep.subr.mxu0 0.0
        %1129 = vmatpush1.msra.mxu0 0.0
        %1130 = vmatprep.subr.mxu0 0.0
        %1131 = vmatpush1.msra.mxu0 0.0
        %1132 = vmatprep.subr.mxu0 0.0
        %1133 = vmatpush1.msra.mxu0 0.0
        %1134 = vmatprep.subr.mxu0 0.0
        %1135 = vmatpush1.msra.mxu0 0.0
        %1136 = vmatprep.subr.mxu0 0.0
        %1137 = vmatpush1.msra.mxu0 0.0
        %1138 = vmatprep.subr.mxu0 0.0
        %1139 = vmatpush1.msra.mxu0 0.0
        %1140 = vmatprep.subr.mxu0 0.0
        %1141 = vmatpush1.msra.mxu0 0.0
        %1142 = vmatprep.subr.mxu0 0.0
        %1143 = vmatpush1.msra.mxu0 0.0
        %1144 = vmatprep.subr.mxu0 0.0
        %1145 = vmatpush1.msra.mxu0 0.0
        %1146 = vmatprep.subr.mxu0 0.0
        %1147 = vmatpush1.msra.mxu0 0.0
        %1148 = vmatprep.subr.mxu0 0.0
        %1149 = vmatpush1.msra.mxu0 0.0
        %1150 = vmatprep.subr.mxu0 0.0
        %1151 = vmatpush1.msra.mxu0 0.0
        %1152 = vmatprep.subr.mxu0 0.0
        %1153 = vmatpush1.msra.mxu0 0.0
        %1154 = vmatprep.subr.mxu0 0.0
        %1155 = vmatpush1.msra.mxu0 0.0
        %1156 = vmatprep.subr.mxu0 0.0
        %1157 = vmatpush1.msra.mxu0 0.0
        %1158 = vmatprep.subr.mxu0 0.0
        %1159 = vmatpush1.msra.mxu0 0.0
        %1160 = vmatprep.subr.mxu0 0.0
        %1161 = vmatpush1.msra.mxu0 0.0
        %1162 = vmatprep.subr.mxu0 0.0
        %1163 = vmatpush1.msra.mxu0 0.0
        %1164 = vmatprep.subr.mxu0 0.0
        %1165 = vmatpush1.msra.mxu0 0.0
        %1166 = vmatprep.subr.mxu0 0.0
        %1167 = vmatpush1.msra.mxu0 0.0
        %1168 = vmatprep.subr.mxu0 0.0
        %1169 = vmatpush1.msra.mxu0 0.0
        %1170 = vmatprep.subr.mxu0 0.0
        %1171 = vmatpush1.msra.mxu0 0.0
        %1172 = vmatprep.subr.mxu0 0.0
        %1173 = vmatpush1.msra.mxu0 0.0
        %1174 = vmatprep.mubr.f32.mxu0 0.0
        %1175 = vmatmul.mubr.f32.gmra.mrb[0].mxu0 %v1102
        %v1176 = vpop.f32.mrb[0].mxu0
        %v1177 = vadd.f32 %v1097, %v1176
        %v1178 = vpop.f32.mrb[0].mxu0
        %v1179 = vadd.f32 %v1099, %v1178
        %1180 = vdwg.mxu0
        %1181 = vrot.lane.b32.xlu0 %v963, 15
        %v1182 = vpop.permute.xlu0 %1181
        %1183 = vrot.lane.b32.xlu0 %v970, 15
        %v1184 = vpop.permute.xlu0 %1183
        %vm1185 = vcmp.lt.s32.totalorder %v976, 15
        %v1186 = vsel %vm1185, %v1182, %v1184
        %v1187 = vsel %vm1185, %v1184, %v1182
        %s1188 = scalar_lea.vmem [#allocation15], 4
        %v1189 = vld [vmem:[%s1188] sm:$0x3]
        %v1191 = vlaneseq
        %v1192 = vshrl.u32 %v1191, 7
        %v1193 = vsub.s32 0, %v1192
        %v1194 = vrot.slane %v1189, %v1193
        %v1195 = vlaneseq
        %v1196 = vshrl.u32 %v1195, 7
        %v1197 = vsub.s32 1, %v1196
        %v1198 = vrot.slane %v1189, %v1197
        %v1201 = vmul.f32 %v1187, %v1194
        %v1202 = vmul.f32 %v1186, %v1198
        %s1203 = scalar_lea.vmem %s11, 16
        %v1204 = vld [vmem:[%s1203] sm:$0xff]
        %v1206 = vsel %vm1019, %v1204, 0
        %v1209 = vsel %vm1023, %v1201, 0
        %v1212 = vsel %vm1023, %v1202, 0
        %1214 = vmatprep.subr.mxu0 %v1212
        %1215 = vmatpush1.msra.mxu0 %v1209
        %1216 = vmatprep.subr.mxu0 0.0
        %1217 = vmatpush1.msra.mxu0 0.0
        %1218 = vmatprep.subr.mxu0 0.0
        %1219 = vmatpush1.msra.mxu0 0.0
        %1220 = vmatprep.subr.mxu0 0.0
        %1221 = vmatpush1.msra.mxu0 0.0
        %1222 = vmatprep.subr.mxu0 0.0
        %1223 = vmatpush1.msra.mxu0 0.0
        %1224 = vmatprep.subr.mxu0 0.0
        %1225 = vmatpush1.msra.mxu0 0.0
        %1226 = vmatprep.subr.mxu0 0.0
        %1227 = vmatpush1.msra.mxu0 0.0
        %1228 = vmatprep.subr.mxu0 0.0
        %1229 = vmatpush1.msra.mxu0 0.0
        %1230 = vmatprep.subr.mxu0 0.0
        %1231 = vmatpush1.msra.mxu0 0.0
        %1232 = vmatprep.subr.mxu0 0.0
        %1233 = vmatpush1.msra.mxu0 0.0
        %1234 = vmatprep.subr.mxu0 0.0
        %1235 = vmatpush1.msra.mxu0 0.0
        %1236 = vmatprep.subr.mxu0 0.0
        %1237 = vmatpush1.msra.mxu0 0.0
        %1238 = vmatprep.subr.mxu0 0.0
        %1239 = vmatpush1.msra.mxu0 0.0
        %1240 = vmatprep.subr.mxu0 0.0
        %1241 = vmatpush1.msra.mxu0 0.0
        %1242 = vmatprep.subr.mxu0 0.0
        %1243 = vmatpush1.msra.mxu0 0.0
        %1244 = vmatprep.subr.mxu0 0.0
        %1245 = vmatpush1.msra.mxu0 0.0
        %1246 = vmatprep.subr.mxu0 0.0
        %1247 = vmatpush1.msra.mxu0 0.0
        %1248 = vmatprep.subr.mxu0 0.0
        %1249 = vmatpush1.msra.mxu0 0.0
        %1250 = vmatprep.subr.mxu0 0.0
        %1251 = vmatpush1.msra.mxu0 0.0
        %1252 = vmatprep.subr.mxu0 0.0
        %1253 = vmatpush1.msra.mxu0 0.0
        %1254 = vmatprep.subr.mxu0 0.0
        %1255 = vmatpush1.msra.mxu0 0.0
        %1256 = vmatprep.subr.mxu0 0.0
        %1257 = vmatpush1.msra.mxu0 0.0
        %1258 = vmatprep.subr.mxu0 0.0
        %1259 = vmatpush1.msra.mxu0 0.0
        %1260 = vmatprep.subr.mxu0 0.0
        %1261 = vmatpush1.msra.mxu0 0.0
        %1262 = vmatprep.subr.mxu0 0.0
        %1263 = vmatpush1.msra.mxu0 0.0
        %1264 = vmatprep.subr.mxu0 0.0
        %1265 = vmatpush1.msra.mxu0 0.0
        %1266 = vmatprep.subr.mxu0 0.0
        %1267 = vmatpush1.msra.mxu0 0.0
        %1268 = vmatprep.subr.mxu0 0.0
        %1269 = vmatpush1.msra.mxu0 0.0
        %1270 = vmatprep.subr.mxu0 0.0
        %1271 = vmatpush1.msra.mxu0 0.0
        %1272 = vmatprep.subr.mxu0 0.0
        %1273 = vmatpush1.msra.mxu0 0.0
        %1274 = vmatprep.subr.mxu0 0.0
        %1275 = vmatpush1.msra.mxu0 0.0
        %1276 = vmatprep.subr.mxu0 0.0
        %1277 = vmatpush1.msra.mxu0 0.0
        %1278 = vmatprep.mubr.f32.mxu0 0.0
        %1279 = vmatmul.mubr.f32.gmra.mrb[0].mxu0 %v1206
        %v1280 = vpop.f32.mrb[0].mxu0
        %v1281 = vadd.f32 0.0, %v1280
        %v1282 = vpop.f32.mrb[0].mxu0
        %v1283 = vadd.f32 0.0, %v1282
        %1284 = vdwg.mxu0
        %v1285 = vadd.f32 %v1177, %v1281
        %v1286 = vadd.f32 %v1179, %v1283
        %1287 = vrot.lane.b32.xlu0 %v963, 1
        %v1288 = vpop.permute.xlu0 %1287
        %1289 = vrot.lane.b32.xlu0 %v970, 1
        %v1290 = vpop.permute.xlu0 %1289
        %vm1291 = vcmp.lt.s32.totalorder %v976, 1
        %v1292 = vsel %vm1291, %v1288, %v1290
        %v1293 = vsel %vm1291, %v1290, %v1288
        %s1294 = scalar_lea.vmem [#allocation15], 6
        %v1295 = vld [vmem:[%s1294] sm:$0x3]
        %v1297 = vlaneseq
        %v1298 = vshrl.u32 %v1297, 7
        %v1299 = vsub.s32 0, %v1298
        %v1300 = vrot.slane %v1295, %v1299
        %v1301 = vlaneseq
        %v1302 = vshrl.u32 %v1301, 7
        %v1303 = vsub.s32 1, %v1302
        %v1304 = vrot.slane %v1295, %v1303
        %v1307 = vmul.f32 %v1293, %v1300
        %v1308 = vmul.f32 %v1292, %v1304
        %s1309 = scalar_lea.vmem %s11, 24
        %v1310 = vld [vmem:[%s1309] sm:$0xff]
        %v1312 = vsel %vm1019, %v1310, 0
        %v1315 = vsel %vm1023, %v1307, 0
        %v1318 = vsel %vm1023, %v1308, 0
        %1320 = vmatprep.subr.mxu0 %v1318
        %1321 = vmatpush1.msra.mxu0 %v1315
        %1322 = vmatprep.subr.mxu0 0.0
        %1323 = vmatpush1.msra.mxu0 0.0
        %1324 = vmatprep.subr.mxu0 0.0
        %1325 = vmatpush1.msra.mxu0 0.0
        %1326 = vmatprep.subr.mxu0 0.0
        %1327 = vmatpush1.msra.mxu0 0.0
        %1328 = vmatprep.subr.mxu0 0.0
        %1329 = vmatpush1.msra.mxu0 0.0
        %1330 = vmatprep.subr.mxu0 0.0
        %1331 = vmatpush1.msra.mxu0 0.0
        %1332 = vmatprep.subr.mxu0 0.0
        %1333 = vmatpush1.msra.mxu0 0.0
        %1334 = vmatprep.subr.mxu0 0.0
        %1335 = vmatpush1.msra.mxu0 0.0
        %1336 = vmatprep.subr.mxu0 0.0
        %1337 = vmatpush1.msra.mxu0 0.0
        %1338 = vmatprep.subr.mxu0 0.0
        %1339 = vmatpush1.msra.mxu0 0.0
        %1340 = vmatprep.subr.mxu0 0.0
        %1341 = vmatpush1.msra.mxu0 0.0
        %1342 = vmatprep.subr.mxu0 0.0
        %1343 = vmatpush1.msra.mxu0 0.0
        %1344 = vmatprep.subr.mxu0 0.0
        %1345 = vmatpush1.msra.mxu0 0.0
        %1346 = vmatprep.subr.mxu0 0.0
        %1347 = vmatpush1.msra.mxu0 0.0
        %1348 = vmatprep.subr.mxu0 0.0
        %1349 = vmatpush1.msra.mxu0 0.0
        %1350 = vmatprep.subr.mxu0 0.0
        %1351 = vmatpush1.msra.mxu0 0.0
        %1352 = vmatprep.subr.mxu0 0.0
        %1353 = vmatpush1.msra.mxu0 0.0
        %1354 = vmatprep.subr.mxu0 0.0
        %1355 = vmatpush1.msra.mxu0 0.0
        %1356 = vmatprep.subr.mxu0 0.0
        %1357 = vmatpush1.msra.mxu0 0.0
        %1358 = vmatprep.subr.mxu0 0.0
        %1359 = vmatpush1.msra.mxu0 0.0
        %1360 = vmatprep.subr.mxu0 0.0
        %1361 = vmatpush1.msra.mxu0 0.0
        %1362 = vmatprep.subr.mxu0 0.0
        %1363 = vmatpush1.msra.mxu0 0.0
        %1364 = vmatprep.subr.mxu0 0.0
        %1365 = vmatpush1.msra.mxu0 0.0
        %1366 = vmatprep.subr.mxu0 0.0
        %1367 = vmatpush1.msra.mxu0 0.0
        %1368 = vmatprep.subr.mxu0 0.0
        %1369 = vmatpush1.msra.mxu0 0.0
        %1370 = vmatprep.subr.mxu0 0.0
        %1371 = vmatpush1.msra.mxu0 0.0
        %1372 = vmatprep.subr.mxu0 0.0
        %1373 = vmatpush1.msra.mxu0 0.0
        %1374 = vmatprep.subr.mxu0 0.0
        %1375 = vmatpush1.msra.mxu0 0.0
        %1376 = vmatprep.subr.mxu0 0.0
        %1377 = vmatpush1.msra.mxu0 0.0
        %1378 = vmatprep.subr.mxu0 0.0
        %1379 = vmatpush1.msra.mxu0 0.0
        %1380 = vmatprep.subr.mxu0 0.0
        %1381 = vmatpush1.msra.mxu0 0.0
        %1382 = vmatprep.subr.mxu0 0.0
        %1383 = vmatpush1.msra.mxu0 0.0
        %1384 = vmatprep.mubr.f32.mxu0 0.0
        %1385 = vmatmul.mubr.f32.gmra.mrb[0].mxu0 %v1312
        %v1386 = vpop.f32.mrb[0].mxu0
        %v1387 = vadd.f32 0.0, %v1386
        %v1388 = vpop.f32.mrb[0].mxu0
        %v1389 = vadd.f32 0.0, %v1388
        %1390 = vdwg.mxu0
        %v1391 = vadd.f32 %v1285, %v1387
        %v1392 = vadd.f32 %v1286, %v1389
        %s1393 = scalar_lea.vmem %s11, 32
        %v1394 = vld [vmem:[%s1393] sm:$0xff]
        %v1396 = vsel %vm1019, %v1394, 0
        %v1399 = vsel %vm1023, %v963, 0
        %v1402 = vsel %vm1023, %v970, 0
        %1404 = vmatprep.subr.mxu0 %v1402
        %1405 = vmatpush1.msra.mxu0 %v1399
        %1406 = vmatprep.subr.mxu0 0.0
        %1407 = vmatpush1.msra.mxu0 0.0
        %1408 = vmatprep.subr.mxu0 0.0
        %1409 = vmatpush1.msra.mxu0 0.0
        %1410 = vmatprep.subr.mxu0 0.0
        %1411 = vmatpush1.msra.mxu0 0.0
        %1412 = vmatprep.subr.mxu0 0.0
        %1413 = vmatpush1.msra.mxu0 0.0
        %1414 = vmatprep.subr.mxu0 0.0
        %1415 = vmatpush1.msra.mxu0 0.0
        %1416 = vmatprep.subr.mxu0 0.0
        %1417 = vmatpush1.msra.mxu0 0.0
        %1418 = vmatprep.subr.mxu0 0.0
        %1419 = vmatpush1.msra.mxu0 0.0
        %1420 = vmatprep.subr.mxu0 0.0
        %1421 = vmatpush1.msra.mxu0 0.0
        %1422 = vmatprep.subr.mxu0 0.0
        %1423 = vmatpush1.msra.mxu0 0.0
        %1424 = vmatprep.subr.mxu0 0.0
        %1425 = vmatpush1.msra.mxu0 0.0
        %1426 = vmatprep.subr.mxu0 0.0
        %1427 = vmatpush1.msra.mxu0 0.0
        %1428 = vmatprep.subr.mxu0 0.0
        %1429 = vmatpush1.msra.mxu0 0.0
        %1430 = vmatprep.subr.mxu0 0.0
        %1431 = vmatpush1.msra.mxu0 0.0
        %1432 = vmatprep.subr.mxu0 0.0
        %1433 = vmatpush1.msra.mxu0 0.0
        %1434 = vmatprep.subr.mxu0 0.0
        %1435 = vmatpush1.msra.mxu0 0.0
        %1436 = vmatprep.subr.mxu0 0.0
        %1437 = vmatpush1.msra.mxu0 0.0
        %1438 = vmatprep.subr.mxu0 0.0
        %1439 = vmatpush1.msra.mxu0 0.0
        %1440 = vmatprep.subr.mxu0 0.0
        %1441 = vmatpush1.msra.mxu0 0.0
        %1442 = vmatprep.subr.mxu0 0.0
        %1443 = vmatpush1.msra.mxu0 0.0
        %1444 = vmatprep.subr.mxu0 0.0
        %1445 = vmatpush1.msra.mxu0 0.0
        %1446 = vmatprep.subr.mxu0 0.0
        %1447 = vmatpush1.msra.mxu0 0.0
        %1448 = vmatprep.subr.mxu0 0.0
        %1449 = vmatpush1.msra.mxu0 0.0
        %1450 = vmatprep.subr.mxu0 0.0
        %1451 = vmatpush1.msra.mxu0 0.0
        %1452 = vmatprep.subr.mxu0 0.0
        %1453 = vmatpush1.msra.mxu0 0.0
        %1454 = vmatprep.subr.mxu0 0.0
        %1455 = vmatpush1.msra.mxu0 0.0
        %1456 = vmatprep.subr.mxu0 0.0
        %1457 = vmatpush1.msra.mxu0 0.0
        %1458 = vmatprep.subr.mxu0 0.0
        %1459 = vmatpush1.msra.mxu0 0.0
        %1460 = vmatprep.subr.mxu0 0.0
        %1461 = vmatpush1.msra.mxu0 0.0
        %1462 = vmatprep.subr.mxu0 0.0
        %1463 = vmatpush1.msra.mxu0 0.0
        %1464 = vmatprep.subr.mxu0 0.0
        %1465 = vmatpush1.msra.mxu0 0.0
        %1466 = vmatprep.subr.mxu0 0.0
        %1467 = vmatpush1.msra.mxu0 0.0
        %1468 = vmatprep.mubr.f32.mxu0 0.0
        %1469 = vmatmul.mubr.f32.gmra.mrb[0].mxu0 %v1396
        %v1470 = vpop.f32.mrb[0].mxu0
        %v1471 = vadd.f32 0.0, %v1470
        %v1472 = vpop.f32.mrb[0].mxu0
        %v1473 = vadd.f32 0.0, %v1472
        %1474 = vdwg.mxu0
        %v1475 = vadd.f32 %v1391, %v1471
        %v1476 = vadd.f32 %v1392, %v1473
        %1477 = vrot.lane.b32.xlu0 %v963, 127
        %v1478 = vpop.permute.xlu0 %1477
        %1479 = vrot.lane.b32.xlu0 %v970, 127
        %v1480 = vpop.permute.xlu0 %1479
        %vm1481 = vcmp.lt.s32.totalorder %v976, 127
        %v1482 = vsel %vm1481, %v1478, %v1480
        %v1483 = vsel %vm1481, %v1480, %v1478
        %s1484 = scalar_lea.vmem [#allocation15], 10
        %v1485 = vld [vmem:[%s1484] sm:$0x3]
        %v1487 = vlaneseq
        %v1488 = vshrl.u32 %v1487, 7
        %v1489 = vsub.s32 0, %v1488
        %v1490 = vrot.slane %v1485, %v1489
        %v1491 = vlaneseq
        %v1492 = vshrl.u32 %v1491, 7
        %v1493 = vsub.s32 1, %v1492
        %v1494 = vrot.slane %v1485, %v1493
        %v1497 = vmul.f32 %v1482, %v1490
        %v1498 = vmul.f32 %v1483, %v1494
        %s1499 = scalar_lea.vmem %s11, 40
        %v1500 = vld [vmem:[%s1499] sm:$0xff]
        %v1502 = vsel %vm1019, %v1500, 0
        %v1505 = vsel %vm1023, %v1497, 0
        %v1508 = vsel %vm1023, %v1498, 0
        %1510 = vmatprep.subr.mxu0 %v1508
        %1511 = vmatpush1.msra.mxu0 %v1505
        %1512 = vmatprep.subr.mxu0 0.0
        %1513 = vmatpush1.msra.mxu0 0.0
        %1514 = vmatprep.subr.mxu0 0.0
        %1515 = vmatpush1.msra.mxu0 0.0
        %1516 = vmatprep.subr.mxu0 0.0
        %1517 = vmatpush1.msra.mxu0 0.0
        %1518 = vmatprep.subr.mxu0 0.0
        %1519 = vmatpush1.msra.mxu0 0.0
        %1520 = vmatprep.subr.mxu0 0.0
        %1521 = vmatpush1.msra.mxu0 0.0
        %1522 = vmatprep.subr.mxu0 0.0
        %1523 = vmatpush1.msra.mxu0 0.0
        %1524 = vmatprep.subr.mxu0 0.0
        %1525 = vmatpush1.msra.mxu0 0.0
        %1526 = vmatprep.subr.mxu0 0.0
        %1527 = vmatpush1.msra.mxu0 0.0
        %1528 = vmatprep.subr.mxu0 0.0
        %1529 = vmatpush1.msra.mxu0 0.0
        %1530 = vmatprep.subr.mxu0 0.0
        %1531 = vmatpush1.msra.mxu0 0.0
        %1532 = vmatprep.subr.mxu0 0.0
        %1533 = vmatpush1.msra.mxu0 0.0
        %1534 = vmatprep.subr.mxu0 0.0
        %1535 = vmatpush1.msra.mxu0 0.0
        %1536 = vmatprep.subr.mxu0 0.0
        %1537 = vmatpush1.msra.mxu0 0.0
        %1538 = vmatprep.subr.mxu0 0.0
        %1539 = vmatpush1.msra.mxu0 0.0
        %1540 = vmatprep.subr.mxu0 0.0
        %1541 = vmatpush1.msra.mxu0 0.0
        %1542 = vmatprep.subr.mxu0 0.0
        %1543 = vmatpush1.msra.mxu0 0.0
        %1544 = vmatprep.subr.mxu0 0.0
        %1545 = vmatpush1.msra.mxu0 0.0
        %1546 = vmatprep.subr.mxu0 0.0
        %1547 = vmatpush1.msra.mxu0 0.0
        %1548 = vmatprep.subr.mxu0 0.0
        %1549 = vmatpush1.msra.mxu0 0.0
        %1550 = vmatprep.subr.mxu0 0.0
        %1551 = vmatpush1.msra.mxu0 0.0
        %1552 = vmatprep.subr.mxu0 0.0
        %1553 = vmatpush1.msra.mxu0 0.0
        %1554 = vmatprep.subr.mxu0 0.0
        %1555 = vmatpush1.msra.mxu0 0.0
        %1556 = vmatprep.subr.mxu0 0.0
        %1557 = vmatpush1.msra.mxu0 0.0
        %1558 = vmatprep.subr.mxu0 0.0
        %1559 = vmatpush1.msra.mxu0 0.0
        %1560 = vmatprep.subr.mxu0 0.0
        %1561 = vmatpush1.msra.mxu0 0.0
        %1562 = vmatprep.subr.mxu0 0.0
        %1563 = vmatpush1.msra.mxu0 0.0
        %1564 = vmatprep.subr.mxu0 0.0
        %1565 = vmatpush1.msra.mxu0 0.0
        %1566 = vmatprep.subr.mxu0 0.0
        %1567 = vmatpush1.msra.mxu0 0.0
        %1568 = vmatprep.subr.mxu0 0.0
        %1569 = vmatpush1.msra.mxu0 0.0
        %1570 = vmatprep.subr.mxu0 0.0
        %1571 = vmatpush1.msra.mxu0 0.0
        %1572 = vmatprep.subr.mxu0 0.0
        %1573 = vmatpush1.msra.mxu0 0.0
        %1574 = vmatprep.mubr.f32.mxu0 0.0
        %1575 = vmatmul.mubr.f32.gmra.mrb[0].mxu0 %v1502
        %v1576 = vpop.f32.mrb[0].mxu0
        %v1577 = vadd.f32 0.0, %v1576
        %v1578 = vpop.f32.mrb[0].mxu0
        %v1579 = vadd.f32 0.0, %v1578
        %1580 = vdwg.mxu0
        %v1581 = vadd.f32 %v1475, %v1577
        %v1582 = vadd.f32 %v1476, %v1579
        %1583 = vrot.lane.b32.xlu0 %v963, 113
        %v1584 = vpop.permute.xlu0 %1583
        %1585 = vrot.lane.b32.xlu0 %v970, 113
        %v1586 = vpop.permute.xlu0 %1585
        %vm1587 = vcmp.lt.s32.totalorder %v976, 113
        %v1588 = vsel %vm1587, %v1584, %v1586
        %v1589 = vsel %vm1587, %v1586, %v1584
        %s1590 = scalar_lea.vmem [#allocation15], 12
        %v1591 = vld [vmem:[%s1590] sm:$0x3]
        %v1593 = vlaneseq
        %v1594 = vshrl.u32 %v1593, 7
        %v1595 = vsub.s32 0, %v1594
        %v1596 = vrot.slane %v1591, %v1595
        %v1597 = vlaneseq
        %v1598 = vshrl.u32 %v1597, 7
        %v1599 = vsub.s32 1, %v1598
        %v1600 = vrot.slane %v1591, %v1599
        %v1603 = vmul.f32 %v1588, %v1596
        %v1604 = vmul.f32 %v1589, %v1600
        %s1605 = scalar_lea.vmem %s11, 48
        %v1606 = vld [vmem:[%s1605] sm:$0xff]
        %v1608 = vsel %vm1019, %v1606, 0
        %v1611 = vsel %vm1023, %v1603, 0
        %v1614 = vsel %vm1023, %v1604, 0
        %1616 = vmatprep.subr.mxu0 %v1614
        %1617 = vmatpush1.msra.mxu0 %v1611
        %1618 = vmatprep.subr.mxu0 0.0
        %1619 = vmatpush1.msra.mxu0 0.0
        %1620 = vmatprep.subr.mxu0 0.0
        %1621 = vmatpush1.msra.mxu0 0.0
        %1622 = vmatprep.subr.mxu0 0.0
        %1623 = vmatpush1.msra.mxu0 0.0
        %1624 = vmatprep.subr.mxu0 0.0
        %1625 = vmatpush1.msra.mxu0 0.0
        %1626 = vmatprep.subr.mxu0 0.0
        %1627 = vmatpush1.msra.mxu0 0.0
        %1628 = vmatprep.subr.mxu0 0.0
        %1629 = vmatpush1.msra.mxu0 0.0
        %1630 = vmatprep.subr.mxu0 0.0
        %1631 = vmatpush1.msra.mxu0 0.0
        %1632 = vmatprep.subr.mxu0 0.0
        %1633 = vmatpush1.msra.mxu0 0.0
        %1634 = vmatprep.subr.mxu0 0.0
        %1635 = vmatpush1.msra.mxu0 0.0
        %1636 = vmatprep.subr.mxu0 0.0
        %1637 = vmatpush1.msra.mxu0 0.0
        %1638 = vmatprep.subr.mxu0 0.0
        %1639 = vmatpush1.msra.mxu0 0.0
        %1640 = vmatprep.subr.mxu0 0.0
        %1641 = vmatpush1.msra.mxu0 0.0
        %1642 = vmatprep.subr.mxu0 0.0
        %1643 = vmatpush1.msra.mxu0 0.0
        %1644 = vmatprep.subr.mxu0 0.0
        %1645 = vmatpush1.msra.mxu0 0.0
        %1646 = vmatprep.subr.mxu0 0.0
        %1647 = vmatpush1.msra.mxu0 0.0
        %1648 = vmatprep.subr.mxu0 0.0
        %1649 = vmatpush1.msra.mxu0 0.0
        %1650 = vmatprep.subr.mxu0 0.0
        %1651 = vmatpush1.msra.mxu0 0.0
        %1652 = vmatprep.subr.mxu0 0.0
        %1653 = vmatpush1.msra.mxu0 0.0
        %1654 = vmatprep.subr.mxu0 0.0
        %1655 = vmatpush1.msra.mxu0 0.0
        %1656 = vmatprep.subr.mxu0 0.0
        %1657 = vmatpush1.msra.mxu0 0.0
        %1658 = vmatprep.subr.mxu0 0.0
        %1659 = vmatpush1.msra.mxu0 0.0
        %1660 = vmatprep.subr.mxu0 0.0
        %1661 = vmatpush1.msra.mxu0 0.0
        %1662 = vmatprep.subr.mxu0 0.0
        %1663 = vmatpush1.msra.mxu0 0.0
        %1664 = vmatprep.subr.mxu0 0.0
        %1665 = vmatpush1.msra.mxu0 0.0
        %1666 = vmatprep.subr.mxu0 0.0
        %1667 = vmatpush1.msra.mxu0 0.0
        %1668 = vmatprep.subr.mxu0 0.0
        %1669 = vmatpush1.msra.mxu0 0.0
        %1670 = vmatprep.subr.mxu0 0.0
        %1671 = vmatpush1.msra.mxu0 0.0
        %1672 = vmatprep.subr.mxu0 0.0
        %1673 = vmatpush1.msra.mxu0 0.0
        %1674 = vmatprep.subr.mxu0 0.0
        %1675 = vmatpush1.msra.mxu0 0.0
        %1676 = vmatprep.subr.mxu0 0.0
        %1677 = vmatpush1.msra.mxu0 0.0
        %1678 = vmatprep.subr.mxu0 0.0
        %1679 = vmatpush1.msra.mxu0 0.0
        %1680 = vmatprep.mubr.f32.mxu0 0.0
        %1681 = vmatmul.mubr.f32.gmra.mrb[0].mxu0 %v1608
        %v1682 = vpop.f32.mrb[0].mxu0
        %v1683 = vadd.f32 0.0, %v1682
        %v1684 = vpop.f32.mrb[0].mxu0
        %v1685 = vadd.f32 0.0, %v1684
        %1686 = vdwg.mxu0
        %v1687 = vadd.f32 %v1581, %v1683
        %v1688 = vadd.f32 %v1582, %v1685
        %1689 = vrot.lane.b32.xlu0 %v963, 112
        %v1690 = vpop.permute.xlu0 %1689
        %1691 = vrot.lane.b32.xlu0 %v970, 112
        %v1692 = vpop.permute.xlu0 %1691
        %vm1693 = vcmp.lt.s32.totalorder %v976, 112
        %v1694 = vsel %vm1693, %v1690, %v1692
        %v1695 = vsel %vm1693, %v1692, %v1690
        %s1696 = scalar_lea.vmem [#allocation15], 14
        %v1697 = vld [vmem:[%s1696] sm:$0x3]
        %v1699 = vlaneseq
        %v1700 = vshrl.u32 %v1699, 7
        %v1701 = vsub.s32 0, %v1700
        %v1702 = vrot.slane %v1697, %v1701
        %v1703 = vlaneseq
        %v1704 = vshrl.u32 %v1703, 7
        %v1705 = vsub.s32 1, %v1704
        %v1706 = vrot.slane %v1697, %v1705
        %v1709 = vmul.f32 %v1694, %v1702
        %v1710 = vmul.f32 %v1695, %v1706
        %s1711 = scalar_lea.vmem %s11, 56
        %v1712 = vld [vmem:[%s1711] sm:$0xff]
        %v1714 = vsel %vm1019, %v1712, 0
        %v1717 = vsel %vm1023, %v1709, 0
        %v1720 = vsel %vm1023, %v1710, 0
        %1722 = vmatprep.subr.mxu0 %v1720
        %1723 = vmatpush1.msra.mxu0 %v1717
        %1724 = vmatprep.subr.mxu0 0.0
        %1725 = vmatpush1.msra.mxu0 0.0
        %1726 = vmatprep.subr.mxu0 0.0
        %1727 = vmatpush1.msra.mxu0 0.0
        %1728 = vmatprep.subr.mxu0 0.0
        %1729 = vmatpush1.msra.mxu0 0.0
        %1730 = vmatprep.subr.mxu0 0.0
        %1731 = vmatpush1.msra.mxu0 0.0
        %1732 = vmatprep.subr.mxu0 0.0
        %1733 = vmatpush1.msra.mxu0 0.0
        %1734 = vmatprep.subr.mxu0 0.0
        %1735 = vmatpush1.msra.mxu0 0.0
        %1736 = vmatprep.subr.mxu0 0.0
        %1737 = vmatpush1.msra.mxu0 0.0
        %1738 = vmatprep.subr.mxu0 0.0
        %1739 = vmatpush1.msra.mxu0 0.0
        %1740 = vmatprep.subr.mxu0 0.0
        %1741 = vmatpush1.msra.mxu0 0.0
        %1742 = vmatprep.subr.mxu0 0.0
        %1743 = vmatpush1.msra.mxu0 0.0
        %1744 = vmatprep.subr.mxu0 0.0
        %1745 = vmatpush1.msra.mxu0 0.0
        %1746 = vmatprep.subr.mxu0 0.0
        %1747 = vmatpush1.msra.mxu0 0.0
        %1748 = vmatprep.subr.mxu0 0.0
        %1749 = vmatpush1.msra.mxu0 0.0
        %1750 = vmatprep.subr.mxu0 0.0
        %1751 = vmatpush1.msra.mxu0 0.0
        %1752 = vmatprep.subr.mxu0 0.0
        %1753 = vmatpush1.msra.mxu0 0.0
        %1754 = vmatprep.subr.mxu0 0.0
        %1755 = vmatpush1.msra.mxu0 0.0
        %1756 = vmatprep.subr.mxu0 0.0
        %1757 = vmatpush1.msra.mxu0 0.0
        %1758 = vmatprep.subr.mxu0 0.0
        %1759 = vmatpush1.msra.mxu0 0.0
        %1760 = vmatprep.subr.mxu0 0.0
        %1761 = vmatpush1.msra.mxu0 0.0
        %1762 = vmatprep.subr.mxu0 0.0
        %1763 = vmatpush1.msra.mxu0 0.0
        %1764 = vmatprep.subr.mxu0 0.0
        %1765 = vmatpush1.msra.mxu0 0.0
        %1766 = vmatprep.subr.mxu0 0.0
        %1767 = vmatpush1.msra.mxu0 0.0
        %1768 = vmatprep.subr.mxu0 0.0
        %1769 = vmatpush1.msra.mxu0 0.0
        %1770 = vmatprep.subr.mxu0 0.0
        %1771 = vmatpush1.msra.mxu0 0.0
        %1772 = vmatprep.subr.mxu0 0.0
        %1773 = vmatpush1.msra.mxu0 0.0
        %1774 = vmatprep.subr.mxu0 0.0
        %1775 = vmatpush1.msra.mxu0 0.0
        %1776 = vmatprep.subr.mxu0 0.0
        %1777 = vmatpush1.msra.mxu0 0.0
        %1778 = vmatprep.subr.mxu0 0.0
        %1779 = vmatpush1.msra.mxu0 0.0
        %1780 = vmatprep.subr.mxu0 0.0
        %1781 = vmatpush1.msra.mxu0 0.0
        %1782 = vmatprep.subr.mxu0 0.0
        %1783 = vmatpush1.msra.mxu0 0.0
        %1784 = vmatprep.subr.mxu0 0.0
        %1785 = vmatpush1.msra.mxu0 0.0
        %1786 = vmatprep.mubr.f32.mxu0 0.0
        %1787 = vmatmul.mubr.f32.gmra.mrb[0].mxu0 %v1714
        %v1788 = vpop.f32.mrb[0].mxu0
        %v1789 = vadd.f32 0.0, %v1788
        %v1790 = vpop.f32.mrb[0].mxu0
        %v1791 = vadd.f32 0.0, %v1790
        %1792 = vdwg.mxu0
        %v1793 = vadd.f32 %v1687, %v1789
        %v1794 = vadd.f32 %v1688, %v1791
        %1795 = vrot.lane.b32.xlu0 %v963, 111
        %v1796 = vpop.permute.xlu0 %1795
        %1797 = vrot.lane.b32.xlu0 %v970, 111
        %v1798 = vpop.permute.xlu0 %1797
        %vm1799 = vcmp.lt.s32.totalorder %v976, 111
        %v1800 = vsel %vm1799, %v1796, %v1798
        %v1801 = vsel %vm1799, %v1798, %v1796
        %s1802 = scalar_lea.vmem [#allocation15], 16
        %v1803 = vld [vmem:[%s1802] sm:$0x3]
        %v1805 = vlaneseq
        %v1806 = vshrl.u32 %v1805, 7
        %v1807 = vsub.s32 0, %v1806
        %v1808 = vrot.slane %v1803, %v1807
        %v1809 = vlaneseq
        %v1810 = vshrl.u32 %v1809, 7
        %v1811 = vsub.s32 1, %v1810
        %v1812 = vrot.slane %v1803, %v1811
        %v1815 = vmul.f32 %v1800, %v1808
        %v1816 = vmul.f32 %v1801, %v1812
        %s1817 = scalar_lea.vmem %s11, 64
        %v1818 = vld [vmem:[%s1817] sm:$0xff]
        %v1820 = vsel %vm1019, %v1818, 0
        %v1823 = vsel %vm1023, %v1815, 0
        %v1826 = vsel %vm1023, %v1816, 0
        %1828 = vmatprep.subr.mxu0 %v1826
        %1829 = vmatpush1.msra.mxu0 %v1823
        %1830 = vmatprep.subr.mxu0 0.0
        %1831 = vmatpush1.msra.mxu0 0.0
        %1832 = vmatprep.subr.mxu0 0.0
        %1833 = vmatpush1.msra.mxu0 0.0
        %1834 = vmatprep.subr.mxu0 0.0
        %1835 = vmatpush1.msra.mxu0 0.0
        %1836 = vmatprep.subr.mxu0 0.0
        %1837 = vmatpush1.msra.mxu0 0.0
        %1838 = vmatprep.subr.mxu0 0.0
        %1839 = vmatpush1.msra.mxu0 0.0
        %1840 = vmatprep.subr.mxu0 0.0
        %1841 = vmatpush1.msra.mxu0 0.0
        %1842 = vmatprep.subr.mxu0 0.0
        %1843 = vmatpush1.msra.mxu0 0.0
        %1844 = vmatprep.subr.mxu0 0.0
        %1845 = vmatpush1.msra.mxu0 0.0
        %1846 = vmatprep.subr.mxu0 0.0
        %1847 = vmatpush1.msra.mxu0 0.0
        %1848 = vmatprep.subr.mxu0 0.0
        %1849 = vmatpush1.msra.mxu0 0.0
        %1850 = vmatprep.subr.mxu0 0.0
        %1851 = vmatpush1.msra.mxu0 0.0
        %1852 = vmatprep.subr.mxu0 0.0
        %1853 = vmatpush1.msra.mxu0 0.0
        %1854 = vmatprep.subr.mxu0 0.0
        %1855 = vmatpush1.msra.mxu0 0.0
        %1856 = vmatprep.subr.mxu0 0.0
        %1857 = vmatpush1.msra.mxu0 0.0
        %1858 = vmatprep.subr.mxu0 0.0
        %1859 = vmatpush1.msra.mxu0 0.0
        %1860 = vmatprep.subr.mxu0 0.0
        %1861 = vmatpush1.msra.mxu0 0.0
        %1862 = vmatprep.subr.mxu0 0.0
        %1863 = vmatpush1.msra.mxu0 0.0
        %1864 = vmatprep.subr.mxu0 0.0
        %1865 = vmatpush1.msra.mxu0 0.0
        %1866 = vmatprep.subr.mxu0 0.0
        %1867 = vmatpush1.msra.mxu0 0.0
        %1868 = vmatprep.subr.mxu0 0.0
        %1869 = vmatpush1.msra.mxu0 0.0
        %1870 = vmatprep.subr.mxu0 0.0
        %1871 = vmatpush1.msra.mxu0 0.0
        %1872 = vmatprep.subr.mxu0 0.0
        %1873 = vmatpush1.msra.mxu0 0.0
        %1874 = vmatprep.subr.mxu0 0.0
        %1875 = vmatpush1.msra.mxu0 0.0
        %1876 = vmatprep.subr.mxu0 0.0
        %1877 = vmatpush1.msra.mxu0 0.0
        %1878 = vmatprep.subr.mxu0 0.0
        %1879 = vmatpush1.msra.mxu0 0.0
        %1880 = vmatprep.subr.mxu0 0.0
        %1881 = vmatpush1.msra.mxu0 0.0
        %1882 = vmatprep.subr.mxu0 0.0
        %1883 = vmatpush1.msra.mxu0 0.0
        %1884 = vmatprep.subr.mxu0 0.0
        %1885 = vmatpush1.msra.mxu0 0.0
        %1886 = vmatprep.subr.mxu0 0.0
        %1887 = vmatpush1.msra.mxu0 0.0
        %1888 = vmatprep.subr.mxu0 0.0
        %1889 = vmatpush1.msra.mxu0 0.0
        %1890 = vmatprep.subr.mxu0 0.0
        %1891 = vmatpush1.msra.mxu0 0.0
        %1892 = vmatprep.mubr.f32.mxu0 0.0
        %1893 = vmatmul.mubr.f32.gmra.mrb[0].mxu0 %v1820
        %v1894 = vpop.f32.mrb[0].mxu0
        %v1895 = vadd.f32 0.0, %v1894
        %v1896 = vpop.f32.mrb[0].mxu0
        %v1897 = vadd.f32 0.0, %v1896
        %1898 = vdwg.mxu0
        %v1899 = vadd.f32 %v1793, %v1895
        %v1900 = vadd.f32 %v1794, %v1897
        %v1901 = vld [vmem:[%s12] sm:$0xff]
        %1903 = vset.pattern.permute.xlu0 0
        %1904 = vperm.xlu0 %1903, %v1901
        %v1905 = vpop.permute.xlu0 %1904
        %v1907 = vadd.f32 %v1899, %v1905
        %v1908 = vadd.f32 %v1900, %v1905
        %v1909 = vmax.f32 %v1907, 0.0
        %v1910 = vmax.f32 %v1908, 0.0
        %1911 = vrot.lane.b32.xlu0 %v1909, 17
        %v1912 = vpop.permute.xlu0 %1911
        %1913 = vrot.lane.b32.xlu0 %v1910, 17
        %v1914 = vpop.permute.xlu0 %1913
        %v1915 = vsel %vm977, %v1912, %v1914
        %v1916 = vsel %vm977, %v1914, %v1912
        %v1917 = vmul.f32 %v1916, %v985
        %v1918 = vmul.f32 %v1915, %v989
        %v1919 = vld [vmem:[%s13] sm:$0xff]
        %1920 = vrot.lane.b32.xlu0 %v1909, 16
        %v1921 = vpop.permute.xlu0 %1920
        %1922 = vrot.lane.b32.xlu0 %v1910, 16
        %v1923 = vpop.permute.xlu0 %1922
        %v1924 = vsel %vm999, %v1921, %v1923
        %v1925 = vsel %vm999, %v1923, %v1921
        %v1926 = vmul.f32 %v1925, %v1008
        %v1927 = vmul.f32 %v1924, %v1012
        %s1928 = scalar_lea.vmem %s13, 8
        %v1929 = vld [vmem:[%s1928] sm:$0xff]
        %vm1930 = vcmask 64512
        %v1932 = vsel %vm1930, %v1929, 0
        %1934 = vmatprep.subr.mxu0 %v1927
        %1935 = vmatpush1.msra.mxu0 %v1926
        %1936 = vmatprep.subr.mxu0 0.0
        %1937 = vmatpush1.msra.mxu0 0.0
        %1938 = vmatprep.subr.mxu0 0.0
        %1939 = vmatpush1.msra.mxu0 0.0
        %1940 = vmatprep.subr.mxu0 0.0
        %1941 = vmatpush1.msra.mxu0 0.0
        %1942 = vmatprep.subr.mxu0 0.0
        %1943 = vmatpush1.msra.mxu0 0.0
        %1944 = vmatprep.subr.mxu0 0.0
        %1945 = vmatpush1.msra.mxu0 0.0
        %1946 = vmatprep.subr.mxu0 0.0
        %1947 = vmatpush1.msra.mxu0 0.0
        %1948 = vmatprep.subr.mxu0 0.0
        %1949 = vmatpush1.msra.mxu0 0.0
        %1950 = vmatprep.subr.mxu0 0.0
        %1951 = vmatpush1.msra.mxu0 0.0
        %1952 = vmatprep.subr.mxu0 0.0
        %1953 = vmatpush1.msra.mxu0 0.0
        %1954 = vmatprep.subr.mxu0 0.0
        %1955 = vmatpush1.msra.mxu0 0.0
        %1956 = vmatprep.subr.mxu0 0.0
        %1957 = vmatpush1.msra.mxu0 0.0
        %1958 = vmatprep.subr.mxu0 0.0
        %1959 = vmatpush1.msra.mxu0 0.0
        %1960 = vmatprep.subr.mxu0 0.0
        %1961 = vmatpush1.msra.mxu0 0.0
        %1962 = vmatprep.subr.mxu0 0.0
        %1963 = vmatpush1.msra.mxu0 0.0
        %1964 = vmatprep.subr.mxu0 0.0
        %1965 = vmatpush1.msra.mxu0 0.0
        %1966 = vmatprep.subr.mxu0 0.0
        %1967 = vmatpush1.msra.mxu0 0.0
        %1968 = vmatprep.subr.mxu0 0.0
        %1969 = vmatpush1.msra.mxu0 0.0
        %1970 = vmatprep.subr.mxu0 0.0
        %1971 = vmatpush1.msra.mxu0 0.0
        %1972 = vmatprep.subr.mxu0 0.0
        %1973 = vmatpush1.msra.mxu0 0.0
        %1974 = vmatprep.subr.mxu0 0.0
        %1975 = vmatpush1.msra.mxu0 0.0
        %1976 = vmatprep.subr.mxu0 0.0
        %1977 = vmatpush1.msra.mxu0 0.0
        %1978 = vmatprep.subr.mxu0 0.0
        %1979 = vmatpush1.msra.mxu0 0.0
        %1980 = vmatprep.subr.mxu0 0.0
        %1981 = vmatpush1.msra.mxu0 0.0
        %1982 = vmatprep.subr.mxu0 0.0
        %1983 = vmatpush1.msra.mxu0 0.0
        %1984 = vmatprep.subr.mxu0 0.0
        %1985 = vmatpush1.msra.mxu0 0.0
        %1986 = vmatprep.subr.mxu0 0.0
        %1987 = vmatpush1.msra.mxu0 0.0
        %1988 = vmatprep.subr.mxu0 0.0
        %1989 = vmatpush1.msra.mxu0 0.0
        %1990 = vmatprep.subr.mxu0 0.0
        %1991 = vmatpush1.msra.mxu0 0.0
        %1992 = vmatprep.subr.mxu0 0.0
        %1993 = vmatpush1.msra.mxu0 0.0
        %1994 = vmatprep.subr.mxu0 0.0
        %1995 = vmatpush1.msra.mxu0 0.0
        %1996 = vmatprep.subr.mxu0 0.0
        %1997 = vmatpush1.msra.mxu0 0.0
        %1998 = vmatprep.mubr.f32.mxu0 0.0
        %1999 = vmatmul.mubr.f32.gmra.mrb[0].mxu0 %v1932
        %v2000 = vpop.f32.mrb[0].mxu0
        %v2001 = vadd.f32 0.0, %v2000
        %v2002 = vpop.f32.mrb[0].mxu0
        %v2003 = vadd.f32 0.0, %v2002
        %2004 = vdwg.mxu0
        %v2006 = vsel %vm1930, %v1919, 0
        %2008 = vmatprep.subr.mxu0 %v1918
        %2009 = vmatpush1.msra.mxu0 %v1917
        %2010 = vmatprep.subr.mxu0 0.0
        %2011 = vmatpush1.msra.mxu0 0.0
        %2012 = vmatprep.subr.mxu0 0.0
        %2013 = vmatpush1.msra.mxu0 0.0
        %2014 = vmatprep.subr.mxu0 0.0
        %2015 = vmatpush1.msra.mxu0 0.0
        %2016 = vmatprep.subr.mxu0 0.0
        %2017 = vmatpush1.msra.mxu0 0.0
        %2018 = vmatprep.subr.mxu0 0.0
        %2019 = vmatpush1.msra.mxu0 0.0
        %2020 = vmatprep.subr.mxu0 0.0
        %2021 = vmatpush1.msra.mxu0 0.0
        %2022 = vmatprep.subr.mxu0 0.0
        %2023 = vmatpush1.msra.mxu0 0.0
        %2024 = vmatprep.subr.mxu0 0.0
        %2025 = vmatpush1.msra.mxu0 0.0
        %2026 = vmatprep.subr.mxu0 0.0
        %2027 = vmatpush1.msra.mxu0 0.0
        %2028 = vmatprep.subr.mxu0 0.0
        %2029 = vmatpush1.msra.mxu0 0.0
        %2030 = vmatprep.subr.mxu0 0.0
        %2031 = vmatpush1.msra.mxu0 0.0
        %2032 = vmatprep.subr.mxu0 0.0
        %2033 = vmatpush1.msra.mxu0 0.0
        %2034 = vmatprep.subr.mxu0 0.0
        %2035 = vmatpush1.msra.mxu0 0.0
        %2036 = vmatprep.subr.mxu0 0.0
        %2037 = vmatpush1.msra.mxu0 0.0
        %2038 = vmatprep.subr.mxu0 0.0
        %2039 = vmatpush1.msra.mxu0 0.0
        %2040 = vmatprep.subr.mxu0 0.0
        %2041 = vmatpush1.msra.mxu0 0.0
        %2042 = vmatprep.subr.mxu0 0.0
        %2043 = vmatpush1.msra.mxu0 0.0
        %2044 = vmatprep.subr.mxu0 0.0
        %2045 = vmatpush1.msra.mxu0 0.0
        %2046 = vmatprep.subr.mxu0 0.0
        %2047 = vmatpush1.msra.mxu0 0.0
        %2048 = vmatprep.subr.mxu0 0.0
        %2049 = vmatpush1.msra.mxu0 0.0
        %2050 = vmatprep.subr.mxu0 0.0
        %2051 = vmatpush1.msra.mxu0 0.0
        %2052 = vmatprep.subr.mxu0 0.0
        %2053 = vmatpush1.msra.mxu0 0.0
        %2054 = vmatprep.subr.mxu0 0.0
        %2055 = vmatpush1.msra.mxu0 0.0
        %2056 = vmatprep.subr.mxu0 0.0
        %2057 = vmatpush1.msra.mxu0 0.0
        %2058 = vmatprep.subr.mxu0 0.0
        %2059 = vmatpush1.msra.mxu0 0.0
        %2060 = vmatprep.subr.mxu0 0.0
        %2061 = vmatpush1.msra.mxu0 0.0
        %2062 = vmatprep.subr.mxu0 0.0
        %2063 = vmatpush1.msra.mxu0 0.0
        %2064 = vmatprep.subr.mxu0 0.0
        %2065 = vmatpush1.msra.mxu0 0.0
        %2066 = vmatprep.subr.mxu0 0.0
        %2067 = vmatpush1.msra.mxu0 0.0
        %2068 = vmatprep.subr.mxu0 0.0
        %2069 = vmatpush1.msra.mxu0 0.0
        %2070 = vmatprep.subr.mxu0 0.0
        %2071 = vmatpush1.msra.mxu0 0.0
        %2072 = vmatprep.mubr.f32.mxu0 0.0
        %2073 = vmatmul.mubr.f32.gmra.mrb[0].mxu0 %v2006
        %v2074 = vpop.f32.mrb[0].mxu0
        %v2075 = vadd.f32 %v2001, %v2074
        %v2076 = vpop.f32.mrb[0].mxu0
        %v2077 = vadd.f32 %v2003, %v2076
        %2078 = vdwg.mxu0
        %2079 = vrot.lane.b32.xlu0 %v1909, 15
        %v2080 = vpop.permute.xlu0 %2079
        %2081 = vrot.lane.b32.xlu0 %v1910, 15
        %v2082 = vpop.permute.xlu0 %2081
        %v2083 = vsel %vm1185, %v2080, %v2082
        %v2084 = vsel %vm1185, %v2082, %v2080
        %v2085 = vmul.f32 %v2084, %v1194
        %v2086 = vmul.f32 %v2083, %v1198
        %s2087 = scalar_lea.vmem %s13, 16
        %v2088 = vld [vmem:[%s2087] sm:$0xff]
        %v2090 = vsel %vm1930, %v2088, 0
        %2092 = vmatprep.subr.mxu0 %v2086
        %2093 = vmatpush1.msra.mxu0 %v2085
        %2094 = vmatprep.subr.mxu0 0.0
        %2095 = vmatpush1.msra.mxu0 0.0
        %2096 = vmatprep.subr.mxu0 0.0
        %2097 = vmatpush1.msra.mxu0 0.0
        %2098 = vmatprep.subr.mxu0 0.0
        %2099 = vmatpush1.msra.mxu0 0.0
        %2100 = vmatprep.subr.mxu0 0.0
        %2101 = vmatpush1.msra.mxu0 0.0
        %2102 = vmatprep.subr.mxu0 0.0
        %2103 = vmatpush1.msra.mxu0 0.0
        %2104 = vmatprep.subr.mxu0 0.0
        %2105 = vmatpush1.msra.mxu0 0.0
        %2106 = vmatprep.subr.mxu0 0.0
        %2107 = vmatpush1.msra.mxu0 0.0
        %2108 = vmatprep.subr.mxu0 0.0
        %2109 = vmatpush1.msra.mxu0 0.0
        %2110 = vmatprep.subr.mxu0 0.0
        %2111 = vmatpush1.msra.mxu0 0.0
        %2112 = vmatprep.subr.mxu0 0.0
        %2113 = vmatpush1.msra.mxu0 0.0
        %2114 = vmatprep.subr.mxu0 0.0
        %2115 = vmatpush1.msra.mxu0 0.0
        %2116 = vmatprep.subr.mxu0 0.0
        %2117 = vmatpush1.msra.mxu0 0.0
        %2118 = vmatprep.subr.mxu0 0.0
        %2119 = vmatpush1.msra.mxu0 0.0
        %2120 = vmatprep.subr.mxu0 0.0
        %2121 = vmatpush1.msra.mxu0 0.0
        %2122 = vmatprep.subr.mxu0 0.0
        %2123 = vmatpush1.msra.mxu0 0.0
        %2124 = vmatprep.subr.mxu0 0.0
        %2125 = vmatpush1.msra.mxu0 0.0
        %2126 = vmatprep.subr.mxu0 0.0
        %2127 = vmatpush1.msra.mxu0 0.0
        %2128 = vmatprep.subr.mxu0 0.0
        %2129 = vmatpush1.msra.mxu0 0.0
        %2130 = vmatprep.subr.mxu0 0.0
        %2131 = vmatpush1.msra.mxu0 0.0
        %2132 = vmatprep.subr.mxu0 0.0
        %2133 = vmatpush1.msra.mxu0 0.0
        %2134 = vmatprep.subr.mxu0 0.0
        %2135 = vmatpush1.msra.mxu0 0.0
        %2136 = vmatprep.subr.mxu0 0.0
        %2137 = vmatpush1.msra.mxu0 0.0
        %2138 = vmatprep.subr.mxu0 0.0
        %2139 = vmatpush1.msra.mxu0 0.0
        %2140 = vmatprep.subr.mxu0 0.0
        %2141 = vmatpush1.msra.mxu0 0.0
        %2142 = vmatprep.subr.mxu0 0.0
        %2143 = vmatpush1.msra.mxu0 0.0
        %2144 = vmatprep.subr.mxu0 0.0
        %2145 = vmatpush1.msra.mxu0 0.0
        %2146 = vmatprep.subr.mxu0 0.0
        %2147 = vmatpush1.msra.mxu0 0.0
        %2148 = vmatprep.subr.mxu0 0.0
        %2149 = vmatpush1.msra.mxu0 0.0
        %2150 = vmatprep.subr.mxu0 0.0
        %2151 = vmatpush1.msra.mxu0 0.0
        %2152 = vmatprep.subr.mxu0 0.0
        %2153 = vmatpush1.msra.mxu0 0.0
        %2154 = vmatprep.subr.mxu0 0.0
        %2155 = vmatpush1.msra.mxu0 0.0
        %2156 = vmatprep.mubr.f32.mxu0 0.0
        %2157 = vmatmul.mubr.f32.gmra.mrb[0].mxu0 %v2090
        %v2158 = vpop.f32.mrb[0].mxu0
        %v2159 = vadd.f32 0.0, %v2158
        %v2160 = vpop.f32.mrb[0].mxu0
        %v2161 = vadd.f32 0.0, %v2160
        %2162 = vdwg.mxu0
        %v2163 = vadd.f32 %v2075, %v2159
        %v2164 = vadd.f32 %v2077, %v2161
        %2165 = vrot.lane.b32.xlu0 %v1909, 1
        %v2166 = vpop.permute.xlu0 %2165
        %2167 = vrot.lane.b32.xlu0 %v1910, 1
        %v2168 = vpop.permute.xlu0 %2167
        %v2169 = vsel %vm1291, %v2166, %v2168
        %v2170 = vsel %vm1291, %v2168, %v2166
        %v2171 = vmul.f32 %v2170, %v1300
        %v2172 = vmul.f32 %v2169, %v1304
        %s2173 = scalar_lea.vmem %s13, 24
        %v2174 = vld [vmem:[%s2173] sm:$0xff]
        %v2176 = vsel %vm1930, %v2174, 0
        %2178 = vmatprep.subr.mxu0 %v2172
        %2179 = vmatpush1.msra.mxu0 %v2171
        %2180 = vmatprep.subr.mxu0 0.0
        %2181 = vmatpush1.msra.mxu0 0.0
        %2182 = vmatprep.subr.mxu0 0.0
        %2183 = vmatpush1.msra.mxu0 0.0
        %2184 = vmatprep.subr.mxu0 0.0
        %2185 = vmatpush1.msra.mxu0 0.0
        %2186 = vmatprep.subr.mxu0 0.0
        %2187 = vmatpush1.msra.mxu0 0.0
        %2188 = vmatprep.subr.mxu0 0.0
        %2189 = vmatpush1.msra.mxu0 0.0
        %2190 = vmatprep.subr.mxu0 0.0
        %2191 = vmatpush1.msra.mxu0 0.0
        %2192 = vmatprep.subr.mxu0 0.0
        %2193 = vmatpush1.msra.mxu0 0.0
        %2194 = vmatprep.subr.mxu0 0.0
        %2195 = vmatpush1.msra.mxu0 0.0
        %2196 = vmatprep.subr.mxu0 0.0
        %2197 = vmatpush1.msra.mxu0 0.0
        %2198 = vmatprep.subr.mxu0 0.0
        %2199 = vmatpush1.msra.mxu0 0.0
        %2200 = vmatprep.subr.mxu0 0.0
        %2201 = vmatpush1.msra.mxu0 0.0
        %2202 = vmatprep.subr.mxu0 0.0
        %2203 = vmatpush1.msra.mxu0 0.0
        %2204 = vmatprep.subr.mxu0 0.0
        %2205 = vmatpush1.msra.mxu0 0.0
        %2206 = vmatprep.subr.mxu0 0.0
        %2207 = vmatpush1.msra.mxu0 0.0
        %2208 = vmatprep.subr.mxu0 0.0
        %2209 = vmatpush1.msra.mxu0 0.0
        %2210 = vmatprep.subr.mxu0 0.0
        %2211 = vmatpush1.msra.mxu0 0.0
        %2212 = vmatprep.subr.mxu0 0.0
        %2213 = vmatpush1.msra.mxu0 0.0
        %2214 = vmatprep.subr.mxu0 0.0
        %2215 = vmatpush1.msra.mxu0 0.0
        %2216 = vmatprep.subr.mxu0 0.0
        %2217 = vmatpush1.msra.mxu0 0.0
        %2218 = vmatprep.subr.mxu0 0.0
        %2219 = vmatpush1.msra.mxu0 0.0
        %2220 = vmatprep.subr.mxu0 0.0
        %2221 = vmatpush1.msra.mxu0 0.0
        %2222 = vmatprep.subr.mxu0 0.0
        %2223 = vmatpush1.msra.mxu0 0.0
        %2224 = vmatprep.subr.mxu0 0.0
        %2225 = vmatpush1.msra.mxu0 0.0
        %2226 = vmatprep.subr.mxu0 0.0
        %2227 = vmatpush1.msra.mxu0 0.0
        %2228 = vmatprep.subr.mxu0 0.0
        %2229 = vmatpush1.msra.mxu0 0.0
        %2230 = vmatprep.subr.mxu0 0.0
        %2231 = vmatpush1.msra.mxu0 0.0
        %2232 = vmatprep.subr.mxu0 0.0
        %2233 = vmatpush1.msra.mxu0 0.0
        %2234 = vmatprep.subr.mxu0 0.0
        %2235 = vmatpush1.msra.mxu0 0.0
        %2236 = vmatprep.subr.mxu0 0.0
        %2237 = vmatpush1.msra.mxu0 0.0
        %2238 = vmatprep.subr.mxu0 0.0
        %2239 = vmatpush1.msra.mxu0 0.0
        %2240 = vmatprep.subr.mxu0 0.0
        %2241 = vmatpush1.msra.mxu0 0.0
        %2242 = vmatprep.mubr.f32.mxu0 0.0
        %2243 = vmatmul.mubr.f32.gmra.mrb[0].mxu0 %v2176
        %v2244 = vpop.f32.mrb[0].mxu0
        %v2245 = vadd.f32 0.0, %v2244
        %v2246 = vpop.f32.mrb[0].mxu0
        %v2247 = vadd.f32 0.0, %v2246
        %2248 = vdwg.mxu0
        %v2249 = vadd.f32 %v2163, %v2245
        %v2250 = vadd.f32 %v2164, %v2247
        %s2251 = scalar_lea.vmem %s13, 32
        %v2252 = vld [vmem:[%s2251] sm:$0xff]
        %v2254 = vsel %vm1930, %v2252, 0
        %2256 = vmatprep.subr.mxu0 %v1910
        %2257 = vmatpush1.msra.mxu0 %v1909
        %2258 = vmatprep.subr.mxu0 0.0
        %2259 = vmatpush1.msra.mxu0 0.0
        %2260 = vmatprep.subr.mxu0 0.0
        %2261 = vmatpush1.msra.mxu0 0.0
        %2262 = vmatprep.subr.mxu0 0.0
        %2263 = vmatpush1.msra.mxu0 0.0
        %2264 = vmatprep.subr.mxu0 0.0
        %2265 = vmatpush1.msra.mxu0 0.0
        %2266 = vmatprep.subr.mxu0 0.0
        %2267 = vmatpush1.msra.mxu0 0.0
        %2268 = vmatprep.subr.mxu0 0.0
        %2269 = vmatpush1.msra.mxu0 0.0
        %2270 = vmatprep.subr.mxu0 0.0
        %2271 = vmatpush1.msra.mxu0 0.0
        %2272 = vmatprep.subr.mxu0 0.0
        %2273 = vmatpush1.msra.mxu0 0.0
        %2274 = vmatprep.subr.mxu0 0.0
        %2275 = vmatpush1.msra.mxu0 0.0
        %2276 = vmatprep.subr.mxu0 0.0
        %2277 = vmatpush1.msra.mxu0 0.0
        %2278 = vmatprep.subr.mxu0 0.0
        %2279 = vmatpush1.msra.mxu0 0.0
        %2280 = vmatprep.subr.mxu0 0.0
        %2281 = vmatpush1.msra.mxu0 0.0
        %2282 = vmatprep.subr.mxu0 0.0
        %2283 = vmatpush1.msra.mxu0 0.0
        %2284 = vmatprep.subr.mxu0 0.0
        %2285 = vmatpush1.msra.mxu0 0.0
        %2286 = vmatprep.subr.mxu0 0.0
        %2287 = vmatpush1.msra.mxu0 0.0
        %2288 = vmatprep.subr.mxu0 0.0
        %2289 = vmatpush1.msra.mxu0 0.0
        %2290 = vmatprep.subr.mxu0 0.0
        %2291 = vmatpush1.msra.mxu0 0.0
        %2292 = vmatprep.subr.mxu0 0.0
        %2293 = vmatpush1.msra.mxu0 0.0
        %2294 = vmatprep.subr.mxu0 0.0
        %2295 = vmatpush1.msra.mxu0 0.0
        %2296 = vmatprep.subr.mxu0 0.0
        %2297 = vmatpush1.msra.mxu0 0.0
        %2298 = vmatprep.subr.mxu0 0.0
        %2299 = vmatpush1.msra.mxu0 0.0
        %2300 = vmatprep.subr.mxu0 0.0
        %2301 = vmatpush1.msra.mxu0 0.0
        %2302 = vmatprep.subr.mxu0 0.0
        %2303 = vmatpush1.msra.mxu0 0.0
        %2304 = vmatprep.subr.mxu0 0.0
        %2305 = vmatpush1.msra.mxu0 0.0
        %2306 = vmatprep.subr.mxu0 0.0
        %2307 = vmatpush1.msra.mxu0 0.0
        %2308 = vmatprep.subr.mxu0 0.0
        %2309 = vmatpush1.msra.mxu0 0.0
        %2310 = vmatprep.subr.mxu0 0.0
        %2311 = vmatpush1.msra.mxu0 0.0
        %2312 = vmatprep.subr.mxu0 0.0
        %2313 = vmatpush1.msra.mxu0 0.0
        %2314 = vmatprep.subr.mxu0 0.0
        %2315 = vmatpush1.msra.mxu0 0.0
        %2316 = vmatprep.subr.mxu0 0.0
        %2317 = vmatpush1.msra.mxu0 0.0
        %2318 = vmatprep.subr.mxu0 0.0
        %2319 = vmatpush1.msra.mxu0 0.0
        %2320 = vmatprep.mubr.f32.mxu0 0.0
        %2321 = vmatmul.mubr.f32.gmra.mrb[0].mxu0 %v2254
        %v2322 = vpop.f32.mrb[0].mxu0
        %v2323 = vadd.f32 0.0, %v2322
        %v2324 = vpop.f32.mrb[0].mxu0
        %v2325 = vadd.f32 0.0, %v2324
        %2326 = vdwg.mxu0
        %v2327 = vadd.f32 %v2249, %v2323
        %v2328 = vadd.f32 %v2250, %v2325
        %2329 = vrot.lane.b32.xlu0 %v1909, 127
        %v2330 = vpop.permute.xlu0 %2329
        %2331 = vrot.lane.b32.xlu0 %v1910, 127
        %v2332 = vpop.permute.xlu0 %2331
        %v2333 = vsel %vm1481, %v2330, %v2332
        %v2334 = vsel %vm1481, %v2332, %v2330
        %v2335 = vmul.f32 %v2333, %v1490
        %v2336 = vmul.f32 %v2334, %v1494
        %s2337 = scalar_lea.vmem %s13, 40
        %v2338 = vld [vmem:[%s2337] sm:$0xff]
        %v2340 = vsel %vm1930, %v2338, 0
        %2342 = vmatprep.subr.mxu0 %v2336
        %2343 = vmatpush1.msra.mxu0 %v2335
        %2344 = vmatprep.subr.mxu0 0.0
        %2345 = vmatpush1.msra.mxu0 0.0
        %2346 = vmatprep.subr.mxu0 0.0
        %2347 = vmatpush1.msra.mxu0 0.0
        %2348 = vmatprep.subr.mxu0 0.0
        %2349 = vmatpush1.msra.mxu0 0.0
        %2350 = vmatprep.subr.mxu0 0.0
        %2351 = vmatpush1.msra.mxu0 0.0
        %2352 = vmatprep.subr.mxu0 0.0
        %2353 = vmatpush1.msra.mxu0 0.0
        %2354 = vmatprep.subr.mxu0 0.0
        %2355 = vmatpush1.msra.mxu0 0.0
        %2356 = vmatprep.subr.mxu0 0.0
        %2357 = vmatpush1.msra.mxu0 0.0
        %2358 = vmatprep.subr.mxu0 0.0
        %2359 = vmatpush1.msra.mxu0 0.0
        %2360 = vmatprep.subr.mxu0 0.0
        %2361 = vmatpush1.msra.mxu0 0.0
        %2362 = vmatprep.subr.mxu0 0.0
        %2363 = vmatpush1.msra.mxu0 0.0
        %2364 = vmatprep.subr.mxu0 0.0
        %2365 = vmatpush1.msra.mxu0 0.0
        %2366 = vmatprep.subr.mxu0 0.0
        %2367 = vmatpush1.msra.mxu0 0.0
        %2368 = vmatprep.subr.mxu0 0.0
        %2369 = vmatpush1.msra.mxu0 0.0
        %2370 = vmatprep.subr.mxu0 0.0
        %2371 = vmatpush1.msra.mxu0 0.0
        %2372 = vmatprep.subr.mxu0 0.0
        %2373 = vmatpush1.msra.mxu0 0.0
        %2374 = vmatprep.subr.mxu0 0.0
        %2375 = vmatpush1.msra.mxu0 0.0
        %2376 = vmatprep.subr.mxu0 0.0
        %2377 = vmatpush1.msra.mxu0 0.0
        %2378 = vmatprep.subr.mxu0 0.0
        %2379 = vmatpush1.msra.mxu0 0.0
        %2380 = vmatprep.subr.mxu0 0.0
        %2381 = vmatpush1.msra.mxu0 0.0
        %2382 = vmatprep.subr.mxu0 0.0
        %2383 = vmatpush1.msra.mxu0 0.0
        %2384 = vmatprep.subr.mxu0 0.0
        %2385 = vmatpush1.msra.mxu0 0.0
        %2386 = vmatprep.subr.mxu0 0.0
        %2387 = vmatpush1.msra.mxu0 0.0
        %2388 = vmatprep.subr.mxu0 0.0
        %2389 = vmatpush1.msra.mxu0 0.0
        %2390 = vmatprep.subr.mxu0 0.0
        %2391 = vmatpush1.msra.mxu0 0.0
        %2392 = vmatprep.subr.mxu0 0.0
        %2393 = vmatpush1.msra.mxu0 0.0
        %2394 = vmatprep.subr.mxu0 0.0
        %2395 = vmatpush1.msra.mxu0 0.0
        %2396 = vmatprep.subr.mxu0 0.0
        %2397 = vmatpush1.msra.mxu0 0.0
        %2398 = vmatprep.subr.mxu0 0.0
        %2399 = vmatpush1.msra.mxu0 0.0
        %2400 = vmatprep.subr.mxu0 0.0
        %2401 = vmatpush1.msra.mxu0 0.0
        %2402 = vmatprep.subr.mxu0 0.0
        %2403 = vmatpush1.msra.mxu0 0.0
        %2404 = vmatprep.subr.mxu0 0.0
        %2405 = vmatpush1.msra.mxu0 0.0
        %2406 = vmatprep.mubr.f32.mxu0 0.0
        %2407 = vmatmul.mubr.f32.gmra.mrb[0].mxu0 %v2340
        %v2408 = vpop.f32.mrb[0].mxu0
        %v2409 = vadd.f32 0.0, %v2408
        %v2410 = vpop.f32.mrb[0].mxu0
        %v2411 = vadd.f32 0.0, %v2410
        %2412 = vdwg.mxu0
        %v2413 = vadd.f32 %v2327, %v2409
        %v2414 = vadd.f32 %v2328, %v2411
        %2415 = vrot.lane.b32.xlu0 %v1909, 113
        %v2416 = vpop.permute.xlu0 %2415
        %2417 = vrot.lane.b32.xlu0 %v1910, 113
        %v2418 = vpop.permute.xlu0 %2417
        %v2419 = vsel %vm1587, %v2416, %v2418
        %v2420 = vsel %vm1587, %v2418, %v2416
        %v2421 = vmul.f32 %v2419, %v1596
        %v2422 = vmul.f32 %v2420, %v1600
        %s2423 = scalar_lea.vmem %s13, 48
        %v2424 = vld [vmem:[%s2423] sm:$0xff]
        %v2426 = vsel %vm1930, %v2424, 0
        %2428 = vmatprep.subr.mxu0 %v2422
        %2429 = vmatpush1.msra.mxu0 %v2421
        %2430 = vmatprep.subr.mxu0 0.0
        %2431 = vmatpush1.msra.mxu0 0.0
        %2432 = vmatprep.subr.mxu0 0.0
        %2433 = vmatpush1.msra.mxu0 0.0
        %2434 = vmatprep.subr.mxu0 0.0
        %2435 = vmatpush1.msra.mxu0 0.0
        %2436 = vmatprep.subr.mxu0 0.0
        %2437 = vmatpush1.msra.mxu0 0.0
        %2438 = vmatprep.subr.mxu0 0.0
        %2439 = vmatpush1.msra.mxu0 0.0
        %2440 = vmatprep.subr.mxu0 0.0
        %2441 = vmatpush1.msra.mxu0 0.0
        %2442 = vmatprep.subr.mxu0 0.0
        %2443 = vmatpush1.msra.mxu0 0.0
        %2444 = vmatprep.subr.mxu0 0.0
        %2445 = vmatpush1.msra.mxu0 0.0
        %2446 = vmatprep.subr.mxu0 0.0
        %2447 = vmatpush1.msra.mxu0 0.0
        %2448 = vmatprep.subr.mxu0 0.0
        %2449 = vmatpush1.msra.mxu0 0.0
        %2450 = vmatprep.subr.mxu0 0.0
        %2451 = vmatpush1.msra.mxu0 0.0
        %2452 = vmatprep.subr.mxu0 0.0
        %2453 = vmatpush1.msra.mxu0 0.0
        %2454 = vmatprep.subr.mxu0 0.0
        %2455 = vmatpush1.msra.mxu0 0.0
        %2456 = vmatprep.subr.mxu0 0.0
        %2457 = vmatpush1.msra.mxu0 0.0
        %2458 = vmatprep.subr.mxu0 0.0
        %2459 = vmatpush1.msra.mxu0 0.0
        %2460 = vmatprep.subr.mxu0 0.0
        %2461 = vmatpush1.msra.mxu0 0.0
        %2462 = vmatprep.subr.mxu0 0.0
        %2463 = vmatpush1.msra.mxu0 0.0
        %2464 = vmatprep.subr.mxu0 0.0
        %2465 = vmatpush1.msra.mxu0 0.0
        %2466 = vmatprep.subr.mxu0 0.0
        %2467 = vmatpush1.msra.mxu0 0.0
        %2468 = vmatprep.subr.mxu0 0.0
        %2469 = vmatpush1.msra.mxu0 0.0
        %2470 = vmatprep.subr.mxu0 0.0
        %2471 = vmatpush1.msra.mxu0 0.0
        %2472 = vmatprep.subr.mxu0 0.0
        %2473 = vmatpush1.msra.mxu0 0.0
        %2474 = vmatprep.subr.mxu0 0.0
        %2475 = vmatpush1.msra.mxu0 0.0
        %2476 = vmatprep.subr.mxu0 0.0
        %2477 = vmatpush1.msra.mxu0 0.0
        %2478 = vmatprep.subr.mxu0 0.0
        %2479 = vmatpush1.msra.mxu0 0.0
        %2480 = vmatprep.subr.mxu0 0.0
        %2481 = vmatpush1.msra.mxu0 0.0
        %2482 = vmatprep.subr.mxu0 0.0
        %2483 = vmatpush1.msra.mxu0 0.0
        %2484 = vmatprep.subr.mxu0 0.0
        %2485 = vmatpush1.msra.mxu0 0.0
        %2486 = vmatprep.subr.mxu0 0.0
        %2487 = vmatpush1.msra.mxu0 0.0
        %2488 = vmatprep.subr.mxu0 0.0
        %2489 = vmatpush1.msra.mxu0 0.0
        %2490 = vmatprep.subr.mxu0 0.0
        %2491 = vmatpush1.msra.mxu0 0.0
        %2492 = vmatprep.mubr.f32.mxu0 0.0
        %2493 = vmatmul.mubr.f32.gmra.mrb[0].mxu0 %v2426
        %v2494 = vpop.f32.mrb[0].mxu0
        %v2495 = vadd.f32 0.0, %v2494
        %v2496 = vpop.f32.mrb[0].mxu0
        %v2497 = vadd.f32 0.0, %v2496
        %2498 = vdwg.mxu0
        %v2499 = vadd.f32 %v2413, %v2495
        %v2500 = vadd.f32 %v2414, %v2497
        %2501 = vrot.lane.b32.xlu0 %v1909, 112
        %v2502 = vpop.permute.xlu0 %2501
        %2503 = vrot.lane.b32.xlu0 %v1910, 112
        %v2504 = vpop.permute.xlu0 %2503
        %v2505 = vsel %vm1693, %v2502, %v2504
        %v2506 = vsel %vm1693, %v2504, %v2502
        %v2507 = vmul.f32 %v2505, %v1702
        %v2508 = vmul.f32 %v2506, %v1706
        %s2509 = scalar_lea.vmem %s13, 56
        %v2510 = vld [vmem:[%s2509] sm:$0xff]
        %v2512 = vsel %vm1930, %v2510, 0
        %2514 = vmatprep.subr.mxu0 %v2508
        %2515 = vmatpush1.msra.mxu0 %v2507
        %2516 = vmatprep.subr.mxu0 0.0
        %2517 = vmatpush1.msra.mxu0 0.0
        %2518 = vmatprep.subr.mxu0 0.0
        %2519 = vmatpush1.msra.mxu0 0.0
        %2520 = vmatprep.subr.mxu0 0.0
        %2521 = vmatpush1.msra.mxu0 0.0
        %2522 = vmatprep.subr.mxu0 0.0
        %2523 = vmatpush1.msra.mxu0 0.0
        %2524 = vmatprep.subr.mxu0 0.0
        %2525 = vmatpush1.msra.mxu0 0.0
        %2526 = vmatprep.subr.mxu0 0.0
        %2527 = vmatpush1.msra.mxu0 0.0
        %2528 = vmatprep.subr.mxu0 0.0
        %2529 = vmatpush1.msra.mxu0 0.0
        %2530 = vmatprep.subr.mxu0 0.0
        %2531 = vmatpush1.msra.mxu0 0.0
        %2532 = vmatprep.subr.mxu0 0.0
        %2533 = vmatpush1.msra.mxu0 0.0
        %2534 = vmatprep.subr.mxu0 0.0
        %2535 = vmatpush1.msra.mxu0 0.0
        %2536 = vmatprep.subr.mxu0 0.0
        %2537 = vmatpush1.msra.mxu0 0.0
        %2538 = vmatprep.subr.mxu0 0.0
        %2539 = vmatpush1.msra.mxu0 0.0
        %2540 = vmatprep.subr.mxu0 0.0
        %2541 = vmatpush1.msra.mxu0 0.0
        %2542 = vmatprep.subr.mxu0 0.0
        %2543 = vmatpush1.msra.mxu0 0.0
        %2544 = vmatprep.subr.mxu0 0.0
        %2545 = vmatpush1.msra.mxu0 0.0
        %2546 = vmatprep.subr.mxu0 0.0
        %2547 = vmatpush1.msra.mxu0 0.0
        %2548 = vmatprep.subr.mxu0 0.0
        %2549 = vmatpush1.msra.mxu0 0.0
        %2550 = vmatprep.subr.mxu0 0.0
        %2551 = vmatpush1.msra.mxu0 0.0
        %2552 = vmatprep.subr.mxu0 0.0
        %2553 = vmatpush1.msra.mxu0 0.0
        %2554 = vmatprep.subr.mxu0 0.0
        %2555 = vmatpush1.msra.mxu0 0.0
        %2556 = vmatprep.subr.mxu0 0.0
        %2557 = vmatpush1.msra.mxu0 0.0
        %2558 = vmatprep.subr.mxu0 0.0
        %2559 = vmatpush1.msra.mxu0 0.0
        %2560 = vmatprep.subr.mxu0 0.0
        %2561 = vmatpush1.msra.mxu0 0.0
        %2562 = vmatprep.subr.mxu0 0.0
        %2563 = vmatpush1.msra.mxu0 0.0
        %2564 = vmatprep.subr.mxu0 0.0
        %2565 = vmatpush1.msra.mxu0 0.0
        %2566 = vmatprep.subr.mxu0 0.0
        %2567 = vmatpush1.msra.mxu0 0.0
        %2568 = vmatprep.subr.mxu0 0.0
        %2569 = vmatpush1.msra.mxu0 0.0
        %2570 = vmatprep.subr.mxu0 0.0
        %2571 = vmatpush1.msra.mxu0 0.0
        %2572 = vmatprep.subr.mxu0 0.0
        %2573 = vmatpush1.msra.mxu0 0.0
        %2574 = vmatprep.subr.mxu0 0.0
        %2575 = vmatpush1.msra.mxu0 0.0
        %2576 = vmatprep.subr.mxu0 0.0
        %2577 = vmatpush1.msra.mxu0 0.0
        %2578 = vmatprep.mubr.f32.mxu0 0.0
        %2579 = vmatmul.mubr.f32.gmra.mrb[0].mxu0 %v2512
        %v2580 = vpop.f32.mrb[0].mxu0
        %v2581 = vadd.f32 0.0, %v2580
        %v2582 = vpop.f32.mrb[0].mxu0
        %v2583 = vadd.f32 0.0, %v2582
        %2584 = vdwg.mxu0
        %v2585 = vadd.f32 %v2499, %v2581
        %v2586 = vadd.f32 %v2500, %v2583
        %2587 = vrot.lane.b32.xlu0 %v1909, 111
        %v2588 = vpop.permute.xlu0 %2587
        %2589 = vrot.lane.b32.xlu0 %v1910, 111
        %v2590 = vpop.permute.xlu0 %2589
        %v2591 = vsel %vm1799, %v2588, %v2590
        %v2592 = vsel %vm1799, %v2590, %v2588
        %v2593 = vmul.f32 %v2591, %v1808
        %v2594 = vmul.f32 %v2592, %v1812
        %s2595 = scalar_lea.vmem %s13, 64
        %v2596 = vld [vmem:[%s2595] sm:$0xff]
        %v2598 = vsel %vm1930, %v2596, 0
        %2600 = vmatprep.subr.mxu0 %v2594
        %2601 = vmatpush1.msra.mxu0 %v2593
        %2602 = vmatprep.subr.mxu0 0.0
        %2603 = vmatpush1.msra.mxu0 0.0
        %2604 = vmatprep.subr.mxu0 0.0
        %2605 = vmatpush1.msra.mxu0 0.0
        %2606 = vmatprep.subr.mxu0 0.0
        %2607 = vmatpush1.msra.mxu0 0.0
        %2608 = vmatprep.subr.mxu0 0.0
        %2609 = vmatpush1.msra.mxu0 0.0
        %2610 = vmatprep.subr.mxu0 0.0
        %2611 = vmatpush1.msra.mxu0 0.0
        %2612 = vmatprep.subr.mxu0 0.0
        %2613 = vmatpush1.msra.mxu0 0.0
        %2614 = vmatprep.subr.mxu0 0.0
        %2615 = vmatpush1.msra.mxu0 0.0
        %2616 = vmatprep.subr.mxu0 0.0
        %2617 = vmatpush1.msra.mxu0 0.0
        %2618 = vmatprep.subr.mxu0 0.0
        %2619 = vmatpush1.msra.mxu0 0.0
        %2620 = vmatprep.subr.mxu0 0.0
        %2621 = vmatpush1.msra.mxu0 0.0
        %2622 = vmatprep.subr.mxu0 0.0
        %2623 = vmatpush1.msra.mxu0 0.0
        %2624 = vmatprep.subr.mxu0 0.0
        %2625 = vmatpush1.msra.mxu0 0.0
        %2626 = vmatprep.subr.mxu0 0.0
        %2627 = vmatpush1.msra.mxu0 0.0
        %2628 = vmatprep.subr.mxu0 0.0
        %2629 = vmatpush1.msra.mxu0 0.0
        %2630 = vmatprep.subr.mxu0 0.0
        %2631 = vmatpush1.msra.mxu0 0.0
        %2632 = vmatprep.subr.mxu0 0.0
        %2633 = vmatpush1.msra.mxu0 0.0
        %2634 = vmatprep.subr.mxu0 0.0
        %2635 = vmatpush1.msra.mxu0 0.0
        %2636 = vmatprep.subr.mxu0 0.0
        %2637 = vmatpush1.msra.mxu0 0.0
        %2638 = vmatprep.subr.mxu0 0.0
        %2639 = vmatpush1.msra.mxu0 0.0
        %2640 = vmatprep.subr.mxu0 0.0
        %2641 = vmatpush1.msra.mxu0 0.0
        %2642 = vmatprep.subr.mxu0 0.0
        %2643 = vmatpush1.msra.mxu0 0.0
        %2644 = vmatprep.subr.mxu0 0.0
        %2645 = vmatpush1.msra.mxu0 0.0
        %2646 = vmatprep.subr.mxu0 0.0
        %2647 = vmatpush1.msra.mxu0 0.0
        %2648 = vmatprep.subr.mxu0 0.0
        %2649 = vmatpush1.msra.mxu0 0.0
        %2650 = vmatprep.subr.mxu0 0.0
        %2651 = vmatpush1.msra.mxu0 0.0
        %2652 = vmatprep.subr.mxu0 0.0
        %2653 = vmatpush1.msra.mxu0 0.0
        %2654 = vmatprep.subr.mxu0 0.0
        %2655 = vmatpush1.msra.mxu0 0.0
        %2656 = vmatprep.subr.mxu0 0.0
        %2657 = vmatpush1.msra.mxu0 0.0
        %2658 = vmatprep.subr.mxu0 0.0
        %2659 = vmatpush1.msra.mxu0 0.0
        %2660 = vmatprep.subr.mxu0 0.0
        %2661 = vmatpush1.msra.mxu0 0.0
        %2662 = vmatprep.subr.mxu0 0.0
        %2663 = vmatpush1.msra.mxu0 0.0
        %2664 = vmatprep.mubr.f32.mxu0 0.0
        %2665 = vmatmul.mubr.f32.gmra.mrb[0].mxu0 %v2598
        %v2666 = vpop.f32.mrb[0].mxu0
        %v2667 = vadd.f32 0.0, %v2666
        %v2668 = vpop.f32.mrb[0].mxu0
        %v2669 = vadd.f32 0.0, %v2668
        %2670 = vdwg.mxu0
        %v2671 = vadd.f32 %v2585, %v2667
        %v2672 = vadd.f32 %v2586, %v2669
        %v2673 = vld [vmem:[%s14] sm:$0xff]
        %2675 = vset.pattern.permute.xlu0 0
        %2676 = vperm.xlu0 %2675, %v2673
        %v2677 = vpop.permute.xlu0 %2676
        %v2679 = vadd.f32 %v2671, %v2677
        %v2680 = vadd.f32 %v2672, %v2677
        %v2681 = vmax.f32 %v2679, 0.0
        %v2682 = vmax.f32 %v2680, 0.0
        %2683 = vrot.lane.b32.xlu0 %v2681, 17
        %v2684 = vpop.permute.xlu0 %2683
        %2685 = vrot.lane.b32.xlu0 %v2682, 17
        %v2686 = vpop.permute.xlu0 %2685
        %v2687 = vsel %vm977, %v2684, %v2686
        %v2688 = vsel %vm977, %v2686, %v2684
        %v2689 = vmul.f32 %v2688, %v985
        %v2690 = vmul.f32 %v2687, %v989
        %v2691 = vld [vmem:[%s15] sm:$0x3]
        %2692 = vrot.lane.b32.xlu0 %v2681, 16
        %v2693 = vpop.permute.xlu0 %2692
        %2694 = vrot.lane.b32.xlu0 %v2682, 16
        %v2695 = vpop.permute.xlu0 %2694
        %v2696 = vsel %vm999, %v2693, %v2695
        %v2697 = vsel %vm999, %v2695, %v2693
        %v2698 = vmul.f32 %v2697, %v1008
        %v2699 = vmul.f32 %v2696, %v1012
        %s2700 = scalar_lea.vmem %s15, 2
        %v2701 = vld [vmem:[%s2700] sm:$0x3]
        %v2703 = vsel %vm1930, %v2701, 0
        %2705 = vmatprep.subr.mxu0 %v2699
        %2706 = vmatpush1.msra.mxu0 %v2698
        %2707 = vmatprep.subr.mxu0 0.0
        %2708 = vmatpush1.msra.mxu0 0.0
        %2709 = vmatprep.subr.mxu0 0.0
        %2710 = vmatpush1.msra.mxu0 0.0
        %2711 = vmatprep.subr.mxu0 0.0
        %2712 = vmatpush1.msra.mxu0 0.0
        %2713 = vmatprep.subr.mxu0 0.0
        %2714 = vmatpush1.msra.mxu0 0.0
        %2715 = vmatprep.subr.mxu0 0.0
        %2716 = vmatpush1.msra.mxu0 0.0
        %2717 = vmatprep.subr.mxu0 0.0
        %2718 = vmatpush1.msra.mxu0 0.0
        %2719 = vmatprep.subr.mxu0 0.0
        %2720 = vmatpush1.msra.mxu0 0.0
        %2721 = vmatprep.subr.mxu0 0.0
        %2722 = vmatpush1.msra.mxu0 0.0
        %2723 = vmatprep.subr.mxu0 0.0
        %2724 = vmatpush1.msra.mxu0 0.0
        %2725 = vmatprep.subr.mxu0 0.0
        %2726 = vmatpush1.msra.mxu0 0.0
        %2727 = vmatprep.subr.mxu0 0.0
        %2728 = vmatpush1.msra.mxu0 0.0
        %2729 = vmatprep.subr.mxu0 0.0
        %2730 = vmatpush1.msra.mxu0 0.0
        %2731 = vmatprep.subr.mxu0 0.0
        %2732 = vmatpush1.msra.mxu0 0.0
        %2733 = vmatprep.subr.mxu0 0.0
        %2734 = vmatpush1.msra.mxu0 0.0
        %2735 = vmatprep.subr.mxu0 0.0
        %2736 = vmatpush1.msra.mxu0 0.0
        %2737 = vmatprep.subr.mxu0 0.0
        %2738 = vmatpush1.msra.mxu0 0.0
        %2739 = vmatprep.subr.mxu0 0.0
        %2740 = vmatpush1.msra.mxu0 0.0
        %2741 = vmatprep.subr.mxu0 0.0
        %2742 = vmatpush1.msra.mxu0 0.0
        %2743 = vmatprep.subr.mxu0 0.0
        %2744 = vmatpush1.msra.mxu0 0.0
        %2745 = vmatprep.subr.mxu0 0.0
        %2746 = vmatpush1.msra.mxu0 0.0
        %2747 = vmatprep.subr.mxu0 0.0
        %2748 = vmatpush1.msra.mxu0 0.0
        %2749 = vmatprep.subr.mxu0 0.0
        %2750 = vmatpush1.msra.mxu0 0.0
        %2751 = vmatprep.subr.mxu0 0.0
        %2752 = vmatpush1.msra.mxu0 0.0
        %2753 = vmatprep.subr.mxu0 0.0
        %2754 = vmatpush1.msra.mxu0 0.0
        %2755 = vmatprep.subr.mxu0 0.0
        %2756 = vmatpush1.msra.mxu0 0.0
        %2757 = vmatprep.subr.mxu0 0.0
        %2758 = vmatpush1.msra.mxu0 0.0
        %2759 = vmatprep.subr.mxu0 0.0
        %2760 = vmatpush1.msra.mxu0 0.0
        %2761 = vmatprep.subr.mxu0 0.0
        %2762 = vmatpush1.msra.mxu0 0.0
        %2763 = vmatprep.subr.mxu0 0.0
        %2764 = vmatpush1.msra.mxu0 0.0
        %2765 = vmatprep.subr.mxu0 0.0
        %2766 = vmatpush1.msra.mxu0 0.0
        %2767 = vmatprep.subr.mxu0 0.0
        %2768 = vmatpush1.msra.mxu0 0.0
        %2769 = vmatprep.mubr.f32.mxu0 0.0
        %2770 = vmatmul.mubr.f32.gmra.mrb[0].mxu0 %v2703
        %v2771 = vpop.f32.mrb[0].mxu0
        %v2772 = vadd.f32 0.0, %v2771
        %v2773 = vpop.f32.mrb[0].mxu0
        %v2774 = vadd.f32 0.0, %v2773
        %2775 = vdwg.mxu0
        %v2777 = vsel %vm1930, %v2691, 0
        %2779 = vmatprep.subr.mxu0 %v2690
        %2780 = vmatpush1.msra.mxu0 %v2689
        %2781 = vmatprep.subr.mxu0 0.0
        %2782 = vmatpush1.msra.mxu0 0.0
        %2783 = vmatprep.subr.mxu0 0.0
        %2784 = vmatpush1.msra.mxu0 0.0
        %2785 = vmatprep.subr.mxu0 0.0
        %2786 = vmatpush1.msra.mxu0 0.0
        %2787 = vmatprep.subr.mxu0 0.0
        %2788 = vmatpush1.msra.mxu0 0.0
        %2789 = vmatprep.subr.mxu0 0.0
        %2790 = vmatpush1.msra.mxu0 0.0
        %2791 = vmatprep.subr.mxu0 0.0
        %2792 = vmatpush1.msra.mxu0 0.0
        %2793 = vmatprep.subr.mxu0 0.0
        %2794 = vmatpush1.msra.mxu0 0.0
        %2795 = vmatprep.subr.mxu0 0.0
        %2796 = vmatpush1.msra.mxu0 0.0
        %2797 = vmatprep.subr.mxu0 0.0
        %2798 = vmatpush1.msra.mxu0 0.0
        %2799 = vmatprep.subr.mxu0 0.0
        %2800 = vmatpush1.msra.mxu0 0.0
        %2801 = vmatprep.subr.mxu0 0.0
        %2802 = vmatpush1.msra.mxu0 0.0
        %2803 = vmatprep.subr.mxu0 0.0
        %2804 = vmatpush1.msra.mxu0 0.0
        %2805 = vmatprep.subr.mxu0 0.0
        %2806 = vmatpush1.msra.mxu0 0.0
        %2807 = vmatprep.subr.mxu0 0.0
        %2808 = vmatpush1.msra.mxu0 0.0
        %2809 = vmatprep.subr.mxu0 0.0
        %2810 = vmatpush1.msra.mxu0 0.0
        %2811 = vmatprep.subr.mxu0 0.0
        %2812 = vmatpush1.msra.mxu0 0.0
        %2813 = vmatprep.subr.mxu0 0.0
        %2814 = vmatpush1.msra.mxu0 0.0
        %2815 = vmatprep.subr.mxu0 0.0
        %2816 = vmatpush1.msra.mxu0 0.0
        %2817 = vmatprep.subr.mxu0 0.0
        %2818 = vmatpush1.msra.mxu0 0.0
        %2819 = vmatprep.subr.mxu0 0.0
        %2820 = vmatpush1.msra.mxu0 0.0
        %2821 = vmatprep.subr.mxu0 0.0
        %2822 = vmatpush1.msra.mxu0 0.0
        %2823 = vmatprep.subr.mxu0 0.0
        %2824 = vmatpush1.msra.mxu0 0.0
        %2825 = vmatprep.subr.mxu0 0.0
        %2826 = vmatpush1.msra.mxu0 0.0
        %2827 = vmatprep.subr.mxu0 0.0
        %2828 = vmatpush1.msra.mxu0 0.0
        %2829 = vmatprep.subr.mxu0 0.0
        %2830 = vmatpush1.msra.mxu0 0.0
        %2831 = vmatprep.subr.mxu0 0.0
        %2832 = vmatpush1.msra.mxu0 0.0
        %2833 = vmatprep.subr.mxu0 0.0
        %2834 = vmatpush1.msra.mxu0 0.0
        %2835 = vmatprep.subr.mxu0 0.0
        %2836 = vmatpush1.msra.mxu0 0.0
        %2837 = vmatprep.subr.mxu0 0.0
        %2838 = vmatpush1.msra.mxu0 0.0
        %2839 = vmatprep.subr.mxu0 0.0
        %2840 = vmatpush1.msra.mxu0 0.0
        %2841 = vmatprep.subr.mxu0 0.0
        %2842 = vmatpush1.msra.mxu0 0.0
        %2843 = vmatprep.mubr.f32.mxu0 0.0
        %2844 = vmatmul.mubr.f32.gmra.mrb[0].mxu0 %v2777
        %v2845 = vpop.f32.mrb[0].mxu0
        %v2846 = vadd.f32 %v2772, %v2845
        %v2847 = vpop.f32.mrb[0].mxu0
        %v2848 = vadd.f32 %v2774, %v2847
        %2849 = vdwg.mxu0
        %2850 = vrot.lane.b32.xlu0 %v2681, 15
        %v2851 = vpop.permute.xlu0 %2850
        %2852 = vrot.lane.b32.xlu0 %v2682, 15
        %v2853 = vpop.permute.xlu0 %2852
        %v2854 = vsel %vm1185, %v2851, %v2853
        %v2855 = vsel %vm1185, %v2853, %v2851
        %v2856 = vmul.f32 %v2855, %v1194
        %v2857 = vmul.f32 %v2854, %v1198
        %s2858 = scalar_lea.vmem %s15, 4
        %v2859 = vld [vmem:[%s2858] sm:$0x3]
        %v2861 = vsel %vm1930, %v2859, 0
        %2863 = vmatprep.subr.mxu0 %v2857
        %2864 = vmatpush1.msra.mxu0 %v2856
        %2865 = vmatprep.subr.mxu0 0.0
        %2866 = vmatpush1.msra.mxu0 0.0
        %2867 = vmatprep.subr.mxu0 0.0
        %2868 = vmatpush1.msra.mxu0 0.0
        %2869 = vmatprep.subr.mxu0 0.0
        %2870 = vmatpush1.msra.mxu0 0.0
        %2871 = vmatprep.subr.mxu0 0.0
        %2872 = vmatpush1.msra.mxu0 0.0
        %2873 = vmatprep.subr.mxu0 0.0
        %2874 = vmatpush1.msra.mxu0 0.0
        %2875 = vmatprep.subr.mxu0 0.0
        %2876 = vmatpush1.msra.mxu0 0.0
        %2877 = vmatprep.subr.mxu0 0.0
        %2878 = vmatpush1.msra.mxu0 0.0
        %2879 = vmatprep.subr.mxu0 0.0
        %2880 = vmatpush1.msra.mxu0 0.0
        %2881 = vmatprep.subr.mxu0 0.0
        %2882 = vmatpush1.msra.mxu0 0.0
        %2883 = vmatprep.subr.mxu0 0.0
        %2884 = vmatpush1.msra.mxu0 0.0
        %2885 = vmatprep.subr.mxu0 0.0
        %2886 = vmatpush1.msra.mxu0 0.0
        %2887 = vmatprep.subr.mxu0 0.0
        %2888 = vmatpush1.msra.mxu0 0.0
        %2889 = vmatprep.subr.mxu0 0.0
        %2890 = vmatpush1.msra.mxu0 0.0
        %2891 = vmatprep.subr.mxu0 0.0
        %2892 = vmatpush1.msra.mxu0 0.0
        %2893 = vmatprep.subr.mxu0 0.0
        %2894 = vmatpush1.msra.mxu0 0.0
        %2895 = vmatprep.subr.mxu0 0.0
        %2896 = vmatpush1.msra.mxu0 0.0
        %2897 = vmatprep.subr.mxu0 0.0
        %2898 = vmatpush1.msra.mxu0 0.0
        %2899 = vmatprep.subr.mxu0 0.0
        %2900 = vmatpush1.msra.mxu0 0.0
        %2901 = vmatprep.subr.mxu0 0.0
        %2902 = vmatpush1.msra.mxu0 0.0
        %2903 = vmatprep.subr.mxu0 0.0
        %2904 = vmatpush1.msra.mxu0 0.0
        %2905 = vmatprep.subr.mxu0 0.0
        %2906 = vmatpush1.msra.mxu0 0.0
        %2907 = vmatprep.subr.mxu0 0.0
        %2908 = vmatpush1.msra.mxu0 0.0
        %2909 = vmatprep.subr.mxu0 0.0
        %2910 = vmatpush1.msra.mxu0 0.0
        %2911 = vmatprep.subr.mxu0 0.0
        %2912 = vmatpush1.msra.mxu0 0.0
        %2913 = vmatprep.subr.mxu0 0.0
        %2914 = vmatpush1.msra.mxu0 0.0
        %2915 = vmatprep.subr.mxu0 0.0
        %2916 = vmatpush1.msra.mxu0 0.0
        %2917 = vmatprep.subr.mxu0 0.0
        %2918 = vmatpush1.msra.mxu0 0.0
        %2919 = vmatprep.subr.mxu0 0.0
        %2920 = vmatpush1.msra.mxu0 0.0
        %2921 = vmatprep.subr.mxu0 0.0
        %2922 = vmatpush1.msra.mxu0 0.0
        %2923 = vmatprep.subr.mxu0 0.0
        %2924 = vmatpush1.msra.mxu0 0.0
        %2925 = vmatprep.subr.mxu0 0.0
        %2926 = vmatpush1.msra.mxu0 0.0
        %2927 = vmatprep.mubr.f32.mxu0 0.0
        %2928 = vmatmul.mubr.f32.gmra.mrb[0].mxu0 %v2861
        %v2929 = vpop.f32.mrb[0].mxu0
        %v2930 = vadd.f32 0.0, %v2929
        %v2931 = vpop.f32.mrb[0].mxu0
        %v2932 = vadd.f32 0.0, %v2931
        %2933 = vdwg.mxu0
        %v2934 = vadd.f32 %v2846, %v2930
        %v2935 = vadd.f32 %v2848, %v2932
        %2936 = vrot.lane.b32.xlu0 %v2681, 1
        %v2937 = vpop.permute.xlu0 %2936
        %2938 = vrot.lane.b32.xlu0 %v2682, 1
        %v2939 = vpop.permute.xlu0 %2938
        %v2940 = vsel %vm1291, %v2937, %v2939
        %v2941 = vsel %vm1291, %v2939, %v2937
        %v2942 = vmul.f32 %v2941, %v1300
        %v2943 = vmul.f32 %v2940, %v1304
        %s2944 = scalar_lea.vmem %s15, 6
        %v2945 = vld [vmem:[%s2944] sm:$0x3]
        %v2947 = vsel %vm1930, %v2945, 0
        %2949 = vmatprep.subr.mxu0 %v2943
        %2950 = vmatpush1.msra.mxu0 %v2942
        %2951 = vmatprep.subr.mxu0 0.0
        %2952 = vmatpush1.msra.mxu0 0.0
        %2953 = vmatprep.subr.mxu0 0.0
        %2954 = vmatpush1.msra.mxu0 0.0
        %2955 = vmatprep.subr.mxu0 0.0
        %2956 = vmatpush1.msra.mxu0 0.0
        %2957 = vmatprep.subr.mxu0 0.0
        %2958 = vmatpush1.msra.mxu0 0.0
        %2959 = vmatprep.subr.mxu0 0.0
        %2960 = vmatpush1.msra.mxu0 0.0
        %2961 = vmatprep.subr.mxu0 0.0
        %2962 = vmatpush1.msra.mxu0 0.0
        %2963 = vmatprep.subr.mxu0 0.0
        %2964 = vmatpush1.msra.mxu0 0.0
        %2965 = vmatprep.subr.mxu0 0.0
        %2966 = vmatpush1.msra.mxu0 0.0
        %2967 = vmatprep.subr.mxu0 0.0
        %2968 = vmatpush1.msra.mxu0 0.0
        %2969 = vmatprep.subr.mxu0 0.0
        %2970 = vmatpush1.msra.mxu0 0.0
        %2971 = vmatprep.subr.mxu0 0.0
        %2972 = vmatpush1.msra.mxu0 0.0
        %2973 = vmatprep.subr.mxu0 0.0
        %2974 = vmatpush1.msra.mxu0 0.0
        %2975 = vmatprep.subr.mxu0 0.0
        %2976 = vmatpush1.msra.mxu0 0.0
        %2977 = vmatprep.subr.mxu0 0.0
        %2978 = vmatpush1.msra.mxu0 0.0
        %2979 = vmatprep.subr.mxu0 0.0
        %2980 = vmatpush1.msra.mxu0 0.0
        %2981 = vmatprep.subr.mxu0 0.0
        %2982 = vmatpush1.msra.mxu0 0.0
        %2983 = vmatprep.subr.mxu0 0.0
        %2984 = vmatpush1.msra.mxu0 0.0
        %2985 = vmatprep.subr.mxu0 0.0
        %2986 = vmatpush1.msra.mxu0 0.0
        %2987 = vmatprep.subr.mxu0 0.0
        %2988 = vmatpush1.msra.mxu0 0.0
        %2989 = vmatprep.subr.mxu0 0.0
        %2990 = vmatpush1.msra.mxu0 0.0
        %2991 = vmatprep.subr.mxu0 0.0
        %2992 = vmatpush1.msra.mxu0 0.0
        %2993 = vmatprep.subr.mxu0 0.0
        %2994 = vmatpush1.msra.mxu0 0.0
        %2995 = vmatprep.subr.mxu0 0.0
        %2996 = vmatpush1.msra.mxu0 0.0
        %2997 = vmatprep.subr.mxu0 0.0
        %2998 = vmatpush1.msra.mxu0 0.0
        %2999 = vmatprep.subr.mxu0 0.0
        %3000 = vmatpush1.msra.mxu0 0.0
        %3001 = vmatprep.subr.mxu0 0.0
        %3002 = vmatpush1.msra.mxu0 0.0
        %3003 = vmatprep.subr.mxu0 0.0
        %3004 = vmatpush1.msra.mxu0 0.0
        %3005 = vmatprep.subr.mxu0 0.0
        %3006 = vmatpush1.msra.mxu0 0.0
        %3007 = vmatprep.subr.mxu0 0.0
        %3008 = vmatpush1.msra.mxu0 0.0
        %3009 = vmatprep.subr.mxu0 0.0
        %3010 = vmatpush1.msra.mxu0 0.0
        %3011 = vmatprep.subr.mxu0 0.0
        %3012 = vmatpush1.msra.mxu0 0.0
        %3013 = vmatprep.mubr.f32.mxu0 0.0
        %3014 = vmatmul.mubr.f32.gmra.mrb[0].mxu0 %v2947
        %v3015 = vpop.f32.mrb[0].mxu0
        %v3016 = vadd.f32 0.0, %v3015
        %v3017 = vpop.f32.mrb[0].mxu0
        %v3018 = vadd.f32 0.0, %v3017
        %3019 = vdwg.mxu0
        %v3020 = vadd.f32 %v2934, %v3016
        %v3021 = vadd.f32 %v2935, %v3018
        %s3022 = scalar_lea.vmem %s15, 8
        %v3023 = vld [vmem:[%s3022] sm:$0x3]
        %v3025 = vsel %vm1930, %v3023, 0
        %3027 = vmatprep.subr.mxu0 %v2682
        %3028 = vmatpush1.msra.mxu0 %v2681
        %3029 = vmatprep.subr.mxu0 0.0
        %3030 = vmatpush1.msra.mxu0 0.0
        %3031 = vmatprep.subr.mxu0 0.0
        %3032 = vmatpush1.msra.mxu0 0.0
        %3033 = vmatprep.subr.mxu0 0.0
        %3034 = vmatpush1.msra.mxu0 0.0
        %3035 = vmatprep.subr.mxu0 0.0
        %3036 = vmatpush1.msra.mxu0 0.0
        %3037 = vmatprep.subr.mxu0 0.0
        %3038 = vmatpush1.msra.mxu0 0.0
        %3039 = vmatprep.subr.mxu0 0.0
        %3040 = vmatpush1.msra.mxu0 0.0
        %3041 = vmatprep.subr.mxu0 0.0
        %3042 = vmatpush1.msra.mxu0 0.0
        %3043 = vmatprep.subr.mxu0 0.0
        %3044 = vmatpush1.msra.mxu0 0.0
        %3045 = vmatprep.subr.mxu0 0.0
        %3046 = vmatpush1.msra.mxu0 0.0
        %3047 = vmatprep.subr.mxu0 0.0
        %3048 = vmatpush1.msra.mxu0 0.0
        %3049 = vmatprep.subr.mxu0 0.0
        %3050 = vmatpush1.msra.mxu0 0.0
        %3051 = vmatprep.subr.mxu0 0.0
        %3052 = vmatpush1.msra.mxu0 0.0
        %3053 = vmatprep.subr.mxu0 0.0
        %3054 = vmatpush1.msra.mxu0 0.0
        %3055 = vmatprep.subr.mxu0 0.0
        %3056 = vmatpush1.msra.mxu0 0.0
        %3057 = vmatprep.subr.mxu0 0.0
        %3058 = vmatpush1.msra.mxu0 0.0
        %3059 = vmatprep.subr.mxu0 0.0
        %3060 = vmatpush1.msra.mxu0 0.0
        %3061 = vmatprep.subr.mxu0 0.0
        %3062 = vmatpush1.msra.mxu0 0.0
        %3063 = vmatprep.subr.mxu0 0.0
        %3064 = vmatpush1.msra.mxu0 0.0
        %3065 = vmatprep.subr.mxu0 0.0
        %3066 = vmatpush1.msra.mxu0 0.0
        %3067 = vmatprep.subr.mxu0 0.0
        %3068 = vmatpush1.msra.mxu0 0.0
        %3069 = vmatprep.subr.mxu0 0.0
        %3070 = vmatpush1.msra.mxu0 0.0
        %3071 = vmatprep.subr.mxu0 0.0
        %3072 = vmatpush1.msra.mxu0 0.0
        %3073 = vmatprep.subr.mxu0 0.0
        %3074 = vmatpush1.msra.mxu0 0.0
        %3075 = vmatprep.subr.mxu0 0.0
        %3076 = vmatpush1.msra.mxu0 0.0
        %3077 = vmatprep.subr.mxu0 0.0
        %3078 = vmatpush1.msra.mxu0 0.0
        %3079 = vmatprep.subr.mxu0 0.0
        %3080 = vmatpush1.msra.mxu0 0.0
        %3081 = vmatprep.subr.mxu0 0.0
        %3082 = vmatpush1.msra.mxu0 0.0
        %3083 = vmatprep.subr.mxu0 0.0
        %3084 = vmatpush1.msra.mxu0 0.0
        %3085 = vmatprep.subr.mxu0 0.0
        %3086 = vmatpush1.msra.mxu0 0.0
        %3087 = vmatprep.subr.mxu0 0.0
        %3088 = vmatpush1.msra.mxu0 0.0
        %3089 = vmatprep.subr.mxu0 0.0
        %3090 = vmatpush1.msra.mxu0 0.0
        %3091 = vmatprep.mubr.f32.mxu0 0.0
        %3092 = vmatmul.mubr.f32.gmra.mrb[0].mxu0 %v3025
        %v3093 = vpop.f32.mrb[0].mxu0
        %v3094 = vadd.f32 0.0, %v3093
        %v3095 = vpop.f32.mrb[0].mxu0
        %v3096 = vadd.f32 0.0, %v3095
        %3097 = vdwg.mxu0
        %v3098 = vadd.f32 %v3020, %v3094
        %v3099 = vadd.f32 %v3021, %v3096
        %3100 = vrot.lane.b32.xlu0 %v2681, 127
        %v3101 = vpop.permute.xlu0 %3100
        %3102 = vrot.lane.b32.xlu0 %v2682, 127
        %v3103 = vpop.permute.xlu0 %3102
        %v3104 = vsel %vm1481, %v3101, %v3103
        %v3105 = vsel %vm1481, %v3103, %v3101
        %v3106 = vmul.f32 %v3104, %v1490
        %v3107 = vmul.f32 %v3105, %v1494
        %s3108 = scalar_lea.vmem %s15, 10
        %v3109 = vld [vmem:[%s3108] sm:$0x3]
        %v3111 = vsel %vm1930, %v3109, 0
        %3113 = vmatprep.subr.mxu0 %v3107
        %3114 = vmatpush1.msra.mxu0 %v3106
        %3115 = vmatprep.subr.mxu0 0.0
        %3116 = vmatpush1.msra.mxu0 0.0
        %3117 = vmatprep.subr.mxu0 0.0
        %3118 = vmatpush1.msra.mxu0 0.0
        %3119 = vmatprep.subr.mxu0 0.0
        %3120 = vmatpush1.msra.mxu0 0.0
        %3121 = vmatprep.subr.mxu0 0.0
        %3122 = vmatpush1.msra.mxu0 0.0
        %3123 = vmatprep.subr.mxu0 0.0
        %3124 = vmatpush1.msra.mxu0 0.0
        %3125 = vmatprep.subr.mxu0 0.0
        %3126 = vmatpush1.msra.mxu0 0.0
        %3127 = vmatprep.subr.mxu0 0.0
        %3128 = vmatpush1.msra.mxu0 0.0
        %3129 = vmatprep.subr.mxu0 0.0
        %3130 = vmatpush1.msra.mxu0 0.0
        %3131 = vmatprep.subr.mxu0 0.0
        %3132 = vmatpush1.msra.mxu0 0.0
        %3133 = vmatprep.subr.mxu0 0.0
        %3134 = vmatpush1.msra.mxu0 0.0
        %3135 = vmatprep.subr.mxu0 0.0
        %3136 = vmatpush1.msra.mxu0 0.0
        %3137 = vmatprep.subr.mxu0 0.0
        %3138 = vmatpush1.msra.mxu0 0.0
        %3139 = vmatprep.subr.mxu0 0.0
        %3140 = vmatpush1.msra.mxu0 0.0
        %3141 = vmatprep.subr.mxu0 0.0
        %3142 = vmatpush1.msra.mxu0 0.0
        %3143 = vmatprep.subr.mxu0 0.0
        %3144 = vmatpush1.msra.mxu0 0.0
        %3145 = vmatprep.subr.mxu0 0.0
        %3146 = vmatpush1.msra.mxu0 0.0
        %3147 = vmatprep.subr.mxu0 0.0
        %3148 = vmatpush1.msra.mxu0 0.0
        %3149 = vmatprep.subr.mxu0 0.0
        %3150 = vmatpush1.msra.mxu0 0.0
        %3151 = vmatprep.subr.mxu0 0.0
        %3152 = vmatpush1.msra.mxu0 0.0
        %3153 = vmatprep.subr.mxu0 0.0
        %3154 = vmatpush1.msra.mxu0 0.0
        %3155 = vmatprep.subr.mxu0 0.0
        %3156 = vmatpush1.msra.mxu0 0.0
        %3157 = vmatprep.subr.mxu0 0.0
        %3158 = vmatpush1.msra.mxu0 0.0
        %3159 = vmatprep.subr.mxu0 0.0
        %3160 = vmatpush1.msra.mxu0 0.0
        %3161 = vmatprep.subr.mxu0 0.0
        %3162 = vmatpush1.msra.mxu0 0.0
        %3163 = vmatprep.subr.mxu0 0.0
        %3164 = vmatpush1.msra.mxu0 0.0
        %3165 = vmatprep.subr.mxu0 0.0
        %3166 = vmatpush1.msra.mxu0 0.0
        %3167 = vmatprep.subr.mxu0 0.0
        %3168 = vmatpush1.msra.mxu0 0.0
        %3169 = vmatprep.subr.mxu0 0.0
        %3170 = vmatpush1.msra.mxu0 0.0
        %3171 = vmatprep.subr.mxu0 0.0
        %3172 = vmatpush1.msra.mxu0 0.0
        %3173 = vmatprep.subr.mxu0 0.0
        %3174 = vmatpush1.msra.mxu0 0.0
        %3175 = vmatprep.subr.mxu0 0.0
        %3176 = vmatpush1.msra.mxu0 0.0
        %3177 = vmatprep.mubr.f32.mxu0 0.0
        %3178 = vmatmul.mubr.f32.gmra.mrb[0].mxu0 %v3111
        %v3179 = vpop.f32.mrb[0].mxu0
        %v3180 = vadd.f32 0.0, %v3179
        %v3181 = vpop.f32.mrb[0].mxu0
        %v3182 = vadd.f32 0.0, %v3181
        %3183 = vdwg.mxu0
        %v3184 = vadd.f32 %v3098, %v3180
        %v3185 = vadd.f32 %v3099, %v3182
        %3186 = vrot.lane.b32.xlu0 %v2681, 113
        %v3187 = vpop.permute.xlu0 %3186
        %3188 = vrot.lane.b32.xlu0 %v2682, 113
        %v3189 = vpop.permute.xlu0 %3188
        %v3190 = vsel %vm1587, %v3187, %v3189
        %v3191 = vsel %vm1587, %v3189, %v3187
        %v3192 = vmul.f32 %v3190, %v1596
        %v3193 = vmul.f32 %v3191, %v1600
        %s3194 = scalar_lea.vmem %s15, 12
        %v3195 = vld [vmem:[%s3194] sm:$0x3]
        %v3197 = vsel %vm1930, %v3195, 0
        %3199 = vmatprep.subr.mxu0 %v3193
        %3200 = vmatpush1.msra.mxu0 %v3192
        %3201 = vmatprep.subr.mxu0 0.0
        %3202 = vmatpush1.msra.mxu0 0.0
        %3203 = vmatprep.subr.mxu0 0.0
        %3204 = vmatpush1.msra.mxu0 0.0
        %3205 = vmatprep.subr.mxu0 0.0
        %3206 = vmatpush1.msra.mxu0 0.0
        %3207 = vmatprep.subr.mxu0 0.0
        %3208 = vmatpush1.msra.mxu0 0.0
        %3209 = vmatprep.subr.mxu0 0.0
        %3210 = vmatpush1.msra.mxu0 0.0
        %3211 = vmatprep.subr.mxu0 0.0
        %3212 = vmatpush1.msra.mxu0 0.0
        %3213 = vmatprep.subr.mxu0 0.0
        %3214 = vmatpush1.msra.mxu0 0.0
        %3215 = vmatprep.subr.mxu0 0.0
        %3216 = vmatpush1.msra.mxu0 0.0
        %3217 = vmatprep.subr.mxu0 0.0
        %3218 = vmatpush1.msra.mxu0 0.0
        %3219 = vmatprep.subr.mxu0 0.0
        %3220 = vmatpush1.msra.mxu0 0.0
        %3221 = vmatprep.subr.mxu0 0.0
        %3222 = vmatpush1.msra.mxu0 0.0
        %3223 = vmatprep.subr.mxu0 0.0
        %3224 = vmatpush1.msra.mxu0 0.0
        %3225 = vmatprep.subr.mxu0 0.0
        %3226 = vmatpush1.msra.mxu0 0.0
        %3227 = vmatprep.subr.mxu0 0.0
        %3228 = vmatpush1.msra.mxu0 0.0
        %3229 = vmatprep.subr.mxu0 0.0
        %3230 = vmatpush1.msra.mxu0 0.0
        %3231 = vmatprep.subr.mxu0 0.0
        %3232 = vmatpush1.msra.mxu0 0.0
        %3233 = vmatprep.subr.mxu0 0.0
        %3234 = vmatpush1.msra.mxu0 0.0
        %3235 = vmatprep.subr.mxu0 0.0
        %3236 = vmatpush1.msra.mxu0 0.0
        %3237 = vmatprep.subr.mxu0 0.0
        %3238 = vmatpush1.msra.mxu0 0.0
        %3239 = vmatprep.subr.mxu0 0.0
        %3240 = vmatpush1.msra.mxu0 0.0
        %3241 = vmatprep.subr.mxu0 0.0
        %3242 = vmatpush1.msra.mxu0 0.0
        %3243 = vmatprep.subr.mxu0 0.0
        %3244 = vmatpush1.msra.mxu0 0.0
        %3245 = vmatprep.subr.mxu0 0.0
        %3246 = vmatpush1.msra.mxu0 0.0
        %3247 = vmatprep.subr.mxu0 0.0
        %3248 = vmatpush1.msra.mxu0 0.0
        %3249 = vmatprep.subr.mxu0 0.0
        %3250 = vmatpush1.msra.mxu0 0.0
        %3251 = vmatprep.subr.mxu0 0.0
        %3252 = vmatpush1.msra.mxu0 0.0
        %3253 = vmatprep.subr.mxu0 0.0
        %3254 = vmatpush1.msra.mxu0 0.0
        %3255 = vmatprep.subr.mxu0 0.0
        %3256 = vmatpush1.msra.mxu0 0.0
        %3257 = vmatprep.subr.mxu0 0.0
        %3258 = vmatpush1.msra.mxu0 0.0
        %3259 = vmatprep.subr.mxu0 0.0
        %3260 = vmatpush1.msra.mxu0 0.0
        %3261 = vmatprep.subr.mxu0 0.0
        %3262 = vmatpush1.msra.mxu0 0.0
        %3263 = vmatprep.mubr.f32.mxu0 0.0
        %3264 = vmatmul.mubr.f32.gmra.mrb[0].mxu0 %v3197
        %v3265 = vpop.f32.mrb[0].mxu0
        %v3266 = vadd.f32 0.0, %v3265
        %v3267 = vpop.f32.mrb[0].mxu0
        %v3268 = vadd.f32 0.0, %v3267
        %3269 = vdwg.mxu0
        %v3270 = vadd.f32 %v3184, %v3266
        %v3271 = vadd.f32 %v3185, %v3268
        %3272 = vrot.lane.b32.xlu0 %v2681, 112
        %v3273 = vpop.permute.xlu0 %3272
        %3274 = vrot.lane.b32.xlu0 %v2682, 112
        %v3275 = vpop.permute.xlu0 %3274
        %v3276 = vsel %vm1693, %v3273, %v3275
        %v3277 = vsel %vm1693, %v3275, %v3273
        %v3278 = vmul.f32 %v3276, %v1702
        %v3279 = vmul.f32 %v3277, %v1706
        %s3280 = scalar_lea.vmem %s15, 14
        %v3281 = vld [vmem:[%s3280] sm:$0x3]
        %v3283 = vsel %vm1930, %v3281, 0
        %3285 = vmatprep.subr.mxu0 %v3279
        %3286 = vmatpush1.msra.mxu0 %v3278
        %3287 = vmatprep.subr.mxu0 0.0
        %3288 = vmatpush1.msra.mxu0 0.0
        %3289 = vmatprep.subr.mxu0 0.0
        %3290 = vmatpush1.msra.mxu0 0.0
        %3291 = vmatprep.subr.mxu0 0.0
        %3292 = vmatpush1.msra.mxu0 0.0
        %3293 = vmatprep.subr.mxu0 0.0
        %3294 = vmatpush1.msra.mxu0 0.0
        %3295 = vmatprep.subr.mxu0 0.0
        %3296 = vmatpush1.msra.mxu0 0.0
        %3297 = vmatprep.subr.mxu0 0.0
        %3298 = vmatpush1.msra.mxu0 0.0
        %3299 = vmatprep.subr.mxu0 0.0
        %3300 = vmatpush1.msra.mxu0 0.0
        %3301 = vmatprep.subr.mxu0 0.0
        %3302 = vmatpush1.msra.mxu0 0.0
        %3303 = vmatprep.subr.mxu0 0.0
        %3304 = vmatpush1.msra.mxu0 0.0
        %3305 = vmatprep.subr.mxu0 0.0
        %3306 = vmatpush1.msra.mxu0 0.0
        %3307 = vmatprep.subr.mxu0 0.0
        %3308 = vmatpush1.msra.mxu0 0.0
        %3309 = vmatprep.subr.mxu0 0.0
        %3310 = vmatpush1.msra.mxu0 0.0
        %3311 = vmatprep.subr.mxu0 0.0
        %3312 = vmatpush1.msra.mxu0 0.0
        %3313 = vmatprep.subr.mxu0 0.0
        %3314 = vmatpush1.msra.mxu0 0.0
        %3315 = vmatprep.subr.mxu0 0.0
        %3316 = vmatpush1.msra.mxu0 0.0
        %3317 = vmatprep.subr.mxu0 0.0
        %3318 = vmatpush1.msra.mxu0 0.0
        %3319 = vmatprep.subr.mxu0 0.0
        %3320 = vmatpush1.msra.mxu0 0.0
        %3321 = vmatprep.subr.mxu0 0.0
        %3322 = vmatpush1.msra.mxu0 0.0
        %3323 = vmatprep.subr.mxu0 0.0
        %3324 = vmatpush1.msra.mxu0 0.0
        %3325 = vmatprep.subr.mxu0 0.0
        %3326 = vmatpush1.msra.mxu0 0.0
        %3327 = vmatprep.subr.mxu0 0.0
        %3328 = vmatpush1.msra.mxu0 0.0
        %3329 = vmatprep.subr.mxu0 0.0
        %3330 = vmatpush1.msra.mxu0 0.0
        %3331 = vmatprep.subr.mxu0 0.0
        %3332 = vmatpush1.msra.mxu0 0.0
        %3333 = vmatprep.subr.mxu0 0.0
        %3334 = vmatpush1.msra.mxu0 0.0
        %3335 = vmatprep.subr.mxu0 0.0
        %3336 = vmatpush1.msra.mxu0 0.0
        %3337 = vmatprep.subr.mxu0 0.0
        %3338 = vmatpush1.msra.mxu0 0.0
        %3339 = vmatprep.subr.mxu0 0.0
        %3340 = vmatpush1.msra.mxu0 0.0
        %3341 = vmatprep.subr.mxu0 0.0
        %3342 = vmatpush1.msra.mxu0 0.0
        %3343 = vmatprep.subr.mxu0 0.0
        %3344 = vmatpush1.msra.mxu0 0.0
        %3345 = vmatprep.subr.mxu0 0.0
        %3346 = vmatpush1.msra.mxu0 0.0
        %3347 = vmatprep.subr.mxu0 0.0
        %3348 = vmatpush1.msra.mxu0 0.0
        %3349 = vmatprep.mubr.f32.mxu0 0.0
        %3350 = vmatmul.mubr.f32.gmra.mrb[0].mxu0 %v3283
        %v3351 = vpop.f32.mrb[0].mxu0
        %v3352 = vadd.f32 0.0, %v3351
        %v3353 = vpop.f32.mrb[0].mxu0
        %v3354 = vadd.f32 0.0, %v3353
        %3355 = vdwg.mxu0
        %v3356 = vadd.f32 %v3270, %v3352
        %v3357 = vadd.f32 %v3271, %v3354
        %3358 = vrot.lane.b32.xlu0 %v2681, 111
        %v3359 = vpop.permute.xlu0 %3358
        %3360 = vrot.lane.b32.xlu0 %v2682, 111
        %v3361 = vpop.permute.xlu0 %3360
        %v3362 = vsel %vm1799, %v3359, %v3361
        %v3363 = vsel %vm1799, %v3361, %v3359
        %v3364 = vmul.f32 %v3362, %v1808
        %v3365 = vmul.f32 %v3363, %v1812
        %s3366 = scalar_lea.vmem %s15, 16
        %v3367 = vld [vmem:[%s3366] sm:$0x3]
        %v3369 = vsel %vm1930, %v3367, 0
        %3371 = vmatprep.subr.mxu0 %v3365
        %3372 = vmatpush1.msra.mxu0 %v3364
        %3373 = vmatprep.subr.mxu0 0.0
        %3374 = vmatpush1.msra.mxu0 0.0
        %3375 = vmatprep.subr.mxu0 0.0
        %3376 = vmatpush1.msra.mxu0 0.0
        %3377 = vmatprep.subr.mxu0 0.0
        %3378 = vmatpush1.msra.mxu0 0.0
        %3379 = vmatprep.subr.mxu0 0.0
        %3380 = vmatpush1.msra.mxu0 0.0
        %3381 = vmatprep.subr.mxu0 0.0
        %3382 = vmatpush1.msra.mxu0 0.0
        %3383 = vmatprep.subr.mxu0 0.0
        %3384 = vmatpush1.msra.mxu0 0.0
        %3385 = vmatprep.subr.mxu0 0.0
        %3386 = vmatpush1.msra.mxu0 0.0
        %3387 = vmatprep.subr.mxu0 0.0
        %3388 = vmatpush1.msra.mxu0 0.0
        %3389 = vmatprep.subr.mxu0 0.0
        %3390 = vmatpush1.msra.mxu0 0.0
        %3391 = vmatprep.subr.mxu0 0.0
        %3392 = vmatpush1.msra.mxu0 0.0
        %3393 = vmatprep.subr.mxu0 0.0
        %3394 = vmatpush1.msra.mxu0 0.0
        %3395 = vmatprep.subr.mxu0 0.0
        %3396 = vmatpush1.msra.mxu0 0.0
        %3397 = vmatprep.subr.mxu0 0.0
        %3398 = vmatpush1.msra.mxu0 0.0
        %3399 = vmatprep.subr.mxu0 0.0
        %3400 = vmatpush1.msra.mxu0 0.0
        %3401 = vmatprep.subr.mxu0 0.0
        %3402 = vmatpush1.msra.mxu0 0.0
        %3403 = vmatprep.subr.mxu0 0.0
        %3404 = vmatpush1.msra.mxu0 0.0
        %3405 = vmatprep.subr.mxu0 0.0
        %3406 = vmatpush1.msra.mxu0 0.0
        %3407 = vmatprep.subr.mxu0 0.0
        %3408 = vmatpush1.msra.mxu0 0.0
        %3409 = vmatprep.subr.mxu0 0.0
        %3410 = vmatpush1.msra.mxu0 0.0
        %3411 = vmatprep.subr.mxu0 0.0
        %3412 = vmatpush1.msra.mxu0 0.0
        %3413 = vmatprep.subr.mxu0 0.0
        %3414 = vmatpush1.msra.mxu0 0.0
        %3415 = vmatprep.subr.mxu0 0.0
        %3416 = vmatpush1.msra.mxu0 0.0
        %3417 = vmatprep.subr.mxu0 0.0
        %3418 = vmatpush1.msra.mxu0 0.0
        %3419 = vmatprep.subr.mxu0 0.0
        %3420 = vmatpush1.msra.mxu0 0.0
        %3421 = vmatprep.subr.mxu0 0.0
        %3422 = vmatpush1.msra.mxu0 0.0
        %3423 = vmatprep.subr.mxu0 0.0
        %3424 = vmatpush1.msra.mxu0 0.0
        %3425 = vmatprep.subr.mxu0 0.0
        %3426 = vmatpush1.msra.mxu0 0.0
        %3427 = vmatprep.subr.mxu0 0.0
        %3428 = vmatpush1.msra.mxu0 0.0
        %3429 = vmatprep.subr.mxu0 0.0
        %3430 = vmatpush1.msra.mxu0 0.0
        %3431 = vmatprep.subr.mxu0 0.0
        %3432 = vmatpush1.msra.mxu0 0.0
        %3433 = vmatprep.subr.mxu0 0.0
        %3434 = vmatpush1.msra.mxu0 0.0
        %3435 = vmatprep.mubr.f32.mxu0 0.0
        %3436 = vmatmul.mubr.f32.gmra.mrb[0].mxu0 %v3369
        %v3437 = vpop.f32.mrb[0].mxu0
        %v3438 = vadd.f32 0.0, %v3437
        %v3439 = vpop.f32.mrb[0].mxu0
        %v3440 = vadd.f32 0.0, %v3439
        %3441 = vdwg.mxu0
        %v3442 = vadd.f32 %v3356, %v3438
        %v3443 = vadd.f32 %v3357, %v3440
        %v3444 = vld [vmem:[%s16] sm:$0x3]
        %3446 = vset.pattern.permute.xlu0 0
        %3447 = vperm.xlu0 %3446, %v3444
        %v3448 = vpop.permute.xlu0 %3447
        %v3450 = vadd.f32 %v3442, %v3448
        %v3451 = vadd.f32 %v3443, %v3448
        %3453 = vrot.lane.b32.xlu0 %v3450, 112
        %v3454 = vpop.permute.xlu0 %3453
        %3456 = vrot.lane.b32.xlu0 %v3450, 96
        %v3457 = vpop.permute.xlu0 %3456
        %3459 = vrot.lane.b32.xlu0 %v3450, 80
        %v3460 = vpop.permute.xlu0 %3459
        %3462 = vrot.lane.b32.xlu0 %v3450, 64
        %v3463 = vpop.permute.xlu0 %3462
        %3465 = vrot.lane.b32.xlu0 %v3450, 48
        %v3466 = vpop.permute.xlu0 %3465
        %3468 = vrot.lane.b32.xlu0 %v3450, 32
        %v3469 = vpop.permute.xlu0 %3468
        %3471 = vrot.lane.b32.xlu0 %v3450, 16
        %v3472 = vpop.permute.xlu0 %3471
        %3475 = vrot.lane.b32.xlu0 %v3451, 112
        %v3476 = vpop.permute.xlu0 %3475
        %3478 = vrot.lane.b32.xlu0 %v3451, 96
        %v3479 = vpop.permute.xlu0 %3478
        %3481 = vrot.lane.b32.xlu0 %v3451, 80
        %v3482 = vpop.permute.xlu0 %3481
        %3484 = vrot.lane.b32.xlu0 %v3451, 64
        %v3485 = vpop.permute.xlu0 %3484
        %3487 = vrot.lane.b32.xlu0 %v3451, 48
        %v3488 = vpop.permute.xlu0 %3487
        %3490 = vrot.lane.b32.xlu0 %v3451, 32
        %v3491 = vpop.permute.xlu0 %3490
        %3493 = vrot.lane.b32.xlu0 %v3451, 16
        %v3494 = vpop.permute.xlu0 %3493
        %v3496 = vcombine.low %v3450, %v3457
        %v3498 = vunpack.c.l.s4 1983009808
        %v3499 = vunpack.c.0.s8 %v3498
        %v3500 = vlaneseq
        %v3501 = vshrl.u32 %v3500, 7
        %v3502 = vsub.s32 %v3499, %v3501
        %v3503 = vrot.slane %v3496, %v3502
        %v3504 = vcombine.low %v3454, %v3460
        %v3506 = vunpack.c.l.s4 1983009808
        %v3507 = vunpack.c.0.s8 %v3506
        %v3508 = vlaneseq
        %v3509 = vshrl.u32 %v3508, 7
        %v3510 = vsub.s32 %v3507, %v3509
        %v3511 = vrot.slane %v3504, %v3510
        %v3512 = vcombine.low %v3463, %v3469
        %v3514 = vunpack.c.l.s4 1983009808
        %v3515 = vunpack.c.0.s8 %v3514
        %v3516 = vlaneseq
        %v3517 = vshrl.u32 %v3516, 7
        %v3518 = vsub.s32 %v3515, %v3517
        %v3519 = vrot.slane %v3512, %v3518
        %v3520 = vcombine.low %v3466, %v3472
        %v3522 = vunpack.c.l.s4 1983009808
        %v3523 = vunpack.c.0.s8 %v3522
        %v3524 = vlaneseq
        %v3525 = vshrl.u32 %v3524, 7
        %v3526 = vsub.s32 %v3523, %v3525
        %v3527 = vrot.slane %v3520, %v3526
        %v3528 = vcombine.low %v3503, %v3511
        %v3530 = vunpack.c.l.s4 1934713408
        %v3531 = vunpack.c.0.s8 %v3530
        %v3532 = vlaneseq
        %v3533 = vshrl.u32 %v3532, 7
        %v3534 = vsub.s32 %v3531, %v3533
        %v3535 = vrot.slane %v3528, %v3534
        %v3536 = vcombine.low %v3519, %v3527
        %v3538 = vunpack.c.l.s4 1934713408
        %v3539 = vunpack.c.0.s8 %v3538
        %v3540 = vlaneseq
        %v3541 = vshrl.u32 %v3540, 7
        %v3542 = vsub.s32 %v3539, %v3541
        %v3543 = vrot.slane %v3536, %v3542
        %v3544 = vcombine.low %v3535, %v3543
        %v3545 = vcombine.high %v3535, %v3543
        %v3546 = vcombine.low %v3451, %v3479
        %v3548 = vunpack.c.l.s4 1983009808
        %v3549 = vunpack.c.0.s8 %v3548
        %v3550 = vlaneseq
        %v3551 = vshrl.u32 %v3550, 7
        %v3552 = vsub.s32 %v3549, %v3551
        %v3553 = vrot.slane %v3546, %v3552
        %v3554 = vcombine.low %v3476, %v3482
        %v3556 = vunpack.c.l.s4 1983009808
        %v3557 = vunpack.c.0.s8 %v3556
        %v3558 = vlaneseq
        %v3559 = vshrl.u32 %v3558, 7
        %v3560 = vsub.s32 %v3557, %v3559
        %v3561 = vrot.slane %v3554, %v3560
        %v3562 = vcombine.low %v3485, %v3491
        %v3564 = vunpack.c.l.s4 1983009808
        %v3565 = vunpack.c.0.s8 %v3564
        %v3566 = vlaneseq
        %v3567 = vshrl.u32 %v3566, 7
        %v3568 = vsub.s32 %v3565, %v3567
        %v3569 = vrot.slane %v3562, %v3568
        %v3570 = vcombine.low %v3488, %v3494
        %v3572 = vunpack.c.l.s4 1983009808
        %v3573 = vunpack.c.0.s8 %v3572
        %v3574 = vlaneseq
        %v3575 = vshrl.u32 %v3574, 7
        %v3576 = vsub.s32 %v3573, %v3575
        %v3577 = vrot.slane %v3570, %v3576
        %v3578 = vcombine.low %v3553, %v3561
        %v3580 = vunpack.c.l.s4 1934713408
        %v3581 = vunpack.c.0.s8 %v3580
        %v3582 = vlaneseq
        %v3583 = vshrl.u32 %v3582, 7
        %v3584 = vsub.s32 %v3581, %v3583
        %v3585 = vrot.slane %v3578, %v3584
        %v3586 = vcombine.low %v3569, %v3577
        %v3588 = vunpack.c.l.s4 1934713408
        %v3589 = vunpack.c.0.s8 %v3588
        %v3590 = vlaneseq
        %v3591 = vshrl.u32 %v3590, 7
        %v3592 = vsub.s32 %v3589, %v3591
        %v3593 = vrot.slane %v3586, %v3592
        %v3594 = vcombine.low %v3585, %v3593
        %v3595 = vcombine.high %v3585, %v3593
        %v3596 = vld [vmem:[%s752] sm:$0xff]
        %v3597 = vld [vmem:[%s752 + $0x8] sm:$0xff]
        %v3598 = vld [vmem:[%s752 + $0x10] sm:$0xff]
        %v3599 = vld [vmem:[%s752 + $0x18] sm:$0xff]
        %v3600 = vld [vmem:[%s752 + $0x20] sm:$0xff]
        %v3601 = vld [vmem:[%s752 + $0x28] sm:$0xff]
        %v3602 = vld [vmem:[%s752 + $0x30] sm:$0xff]
        %v3603 = vld [vmem:[%s752 + $0x38] sm:$0xff]
        %v3604 = vld [vmem:[%s757] sm:$0xff]
        %v3605 = vld [vmem:[%s757 + $0x8] sm:$0xff]
        %v3606 = vld [vmem:[%s757 + $0x10] sm:$0xff]
        %v3607 = vld [vmem:[%s757 + $0x18] sm:$0xff]
        %v3608 = vld [vmem:[%s757 + $0x20] sm:$0xff]
        %v3609 = vld [vmem:[%s757 + $0x28] sm:$0xff]
        %v3610 = vld [vmem:[%s757 + $0x30] sm:$0xff]
        %v3611 = vld [vmem:[%s757 + $0x38] sm:$0xff]
        %v3612 = vld [vmem:[%s648] sm:$0xff]
        %v3613 = vld [vmem:[%s648 + $0x8] sm:$0xff]
        %v3614 = vld [vmem:[#allocation9] sm:$0xff]
        %v3615 = vld [vmem:[#allocation9 + $0x8] sm:$0xff]
        %v3616 = vld [vmem:[#allocation11] sm:$0xff]
        %v3617 = vld [vmem:[#allocation11 + $0x8] sm:$0xff]
        %v3618 = vld [vmem:[#allocation12] sm:$0xff]
        %v3619 = vld [vmem:[#allocation12 + $0x8] sm:$0xff]
        %v3620 = vld [vmem:[#allocation14] sm:$0xff]
        %v3621 = vld [vmem:[#allocation14 + $0x8] sm:$0xff]
        %v3622 = vmul.f32 %v3596, %v758
        %v3623 = vmul.f32 %v3597, %v759
        %v3624 = vmul.f32 %v3598, %v758
        %v3625 = vmul.f32 %v3599, %v759
        %v3626 = vmul.f32 %v3600, %v758
        %v3627 = vmul.f32 %v3601, %v759
        %v3628 = vmul.f32 %v3602, %v758
        %v3629 = vmul.f32 %v3603, %v759
        %v3630 = vmul.f32 %v3604, %v760
        %v3631 = vmul.f32 %v3605, %v761
        %v3632 = vmul.f32 %v3606, %v760
        %v3633 = vmul.f32 %v3607, %v761
        %v3634 = vmul.f32 %v3608, %v760
        %v3635 = vmul.f32 %v3609, %v761
        %v3636 = vmul.f32 %v3610, %v760
        %v3637 = vmul.f32 %v3611, %v761
        %v3638 = vsub.f32 %v3622, %v3630
        %v3639 = vsub.f32 %v3623, %v3631
        %v3640 = vsub.f32 %v3624, %v3632
        %v3641 = vsub.f32 %v3625, %v3633
        %v3642 = vsub.f32 %v3626, %v3634
        %v3643 = vsub.f32 %v3627, %v3635
        %v3644 = vsub.f32 %v3628, %v3636
        %v3645 = vsub.f32 %v3629, %v3637
        %v3646 = vmul.f32 %v3596, %v760
        %v3647 = vmul.f32 %v3597, %v761
        %v3648 = vmul.f32 %v3598, %v760
        %v3649 = vmul.f32 %v3599, %v761
        %v3650 = vmul.f32 %v3600, %v760
        %v3651 = vmul.f32 %v3601, %v761
        %v3652 = vmul.f32 %v3602, %v760
        %v3653 = vmul.f32 %v3603, %v761
        %v3654 = vmul.f32 %v3604, %v758
        %v3655 = vmul.f32 %v3605, %v759
        %v3656 = vmul.f32 %v3606, %v758
        %v3657 = vmul.f32 %v3607, %v759
        %v3658 = vmul.f32 %v3608, %v758
        %v3659 = vmul.f32 %v3609, %v759
        %v3660 = vmul.f32 %v3610, %v758
        %v3661 = vmul.f32 %v3611, %v759
        %v3662 = vadd.f32 %v3646, %v3654
        %v3663 = vadd.f32 %v3647, %v3655
        %v3664 = vadd.f32 %v3648, %v3656
        %v3665 = vadd.f32 %v3649, %v3657
        %v3666 = vadd.f32 %v3650, %v3658
        %v3667 = vadd.f32 %v3651, %v3659
        %v3668 = vadd.f32 %v3652, %v3660
        %v3669 = vadd.f32 %v3653, %v3661
        %v3670 = vadd.f32 %v3638, %v3662
        %v3671 = vadd.f32 %v3639, %v3663
        %v3672 = vadd.f32 %v3640, %v3664
        %v3673 = vadd.f32 %v3641, %v3665
        %v3674 = vadd.f32 %v3642, %v3666
        %v3675 = vadd.f32 %v3643, %v3667
        %v3676 = vadd.f32 %v3644, %v3668
        %v3677 = vadd.f32 %v3645, %v3669
        %v3679 = vsel %vm950, %v3670, 0
        %v3682 = vsel %vm950, %v3671, 0
        %v3685 = vsel %vm950, %v3672, 0
        %v3688 = vsel %vm950, %v3673, 0
        %v3691 = vsel %vm950, %v3674, 0
        %v3694 = vsel %vm950, %v3675, 0
        %v3697 = vsel %vm950, %v3676, 0
        %v3700 = vsel %vm950, %v3677, 0
        %3702 = vmatprep.subr.mxu0 0.0
        %3703 = vmatpush1.msra.mxu0 %v3618
        %3704 = vmatprep.subr.mxu0 0.0
        %3705 = vmatpush1.msra.mxu0 %v3619
        %3706 = vmatprep.subr.mxu0 0.0
        %3707 = vmatpush1.msra.mxu0 0.0
        %3708 = vmatprep.subr.mxu0 0.0
        %3709 = vmatpush1.msra.mxu0 0.0
        %3710 = vmatprep.subr.mxu0 0.0
        %3711 = vmatpush1.msra.mxu0 0.0
        %3712 = vmatprep.subr.mxu0 0.0
        %3713 = vmatpush1.msra.mxu0 0.0
        %3714 = vmatprep.subr.mxu0 0.0
        %3715 = vmatpush1.msra.mxu0 0.0
        %3716 = vmatprep.subr.mxu0 0.0
        %3717 = vmatpush1.msra.mxu0 0.0
        %3718 = vmatprep.subr.mxu0 0.0
        %3719 = vmatpush1.msra.mxu0 0.0
        %3720 = vmatprep.subr.mxu0 0.0
        %3721 = vmatpush1.msra.mxu0 0.0
        %3722 = vmatprep.subr.mxu0 0.0
        %3723 = vmatpush1.msra.mxu0 0.0
        %3724 = vmatprep.subr.mxu0 0.0
        %3725 = vmatpush1.msra.mxu0 0.0
        %3726 = vmatprep.subr.mxu0 0.0
        %3727 = vmatpush1.msra.mxu0 0.0
        %3728 = vmatprep.subr.mxu0 0.0
        %3729 = vmatpush1.msra.mxu0 0.0
        %3730 = vmatprep.subr.mxu0 0.0
        %3731 = vmatpush1.msra.mxu0 0.0
        %3732 = vmatprep.subr.mxu0 0.0
        %3733 = vmatpush1.msra.mxu0 0.0
        %3734 = vmatprep.subr.mxu0 0.0
        %3735 = vmatpush1.msra.mxu0 0.0
        %3736 = vmatprep.subr.mxu0 0.0
        %3737 = vmatpush1.msra.mxu0 0.0
        %3738 = vmatprep.subr.mxu0 0.0
        %3739 = vmatpush1.msra.mxu0 0.0
        %3740 = vmatprep.subr.mxu0 0.0
        %3741 = vmatpush1.msra.mxu0 0.0
        %3742 = vmatprep.subr.mxu0 0.0
        %3743 = vmatpush1.msra.mxu0 0.0
        %3744 = vmatprep.subr.mxu0 0.0
        %3745 = vmatpush1.msra.mxu0 0.0
        %3746 = vmatprep.subr.mxu0 0.0
        %3747 = vmatpush1.msra.mxu0 0.0
        %3748 = vmatprep.subr.mxu0 0.0
        %3749 = vmatpush1.msra.mxu0 0.0
        %3750 = vmatprep.subr.mxu0 0.0
        %3751 = vmatpush1.msra.mxu0 0.0
        %3752 = vmatprep.subr.mxu0 0.0
        %3753 = vmatpush1.msra.mxu0 0.0
        %3754 = vmatprep.subr.mxu0 0.0
        %3755 = vmatpush1.msra.mxu0 0.0
        %3756 = vmatprep.subr.mxu0 0.0
        %3757 = vmatpush1.msra.mxu0 0.0
        %3758 = vmatprep.subr.mxu0 0.0
        %3759 = vmatpush1.msra.mxu0 0.0
        %3760 = vmatprep.subr.mxu0 0.0
        %3761 = vmatpush1.msra.mxu0 0.0
        %3762 = vmatprep.subr.mxu0 0.0
        %3763 = vmatpush1.msra.mxu0 0.0
        %3764 = vmatprep.subr.mxu0 0.0
        %3765 = vmatpush1.msra.mxu0 0.0
        %3766 = vmatprep.mubr.f32.mxu0 0.0
        %3767 = vmatmul.mubr.f32.gmra.mrb[0].mxu0 %v3679
        %v3768 = vpop.f32.mrb[0].mxu0
        %v3769 = vadd.f32 0.0, %v3768
        %v3770 = vpop.f32.mrb[0].mxu0
        %3771 = vmatprep.mubr.f32.mxu0 0.0
        %3772 = vmatmul.mubr.f32.gmra.mrb[0].mxu0 %v3682
        %v3773 = vpop.f32.mrb[0].mxu0
        %v3774 = vadd.f32 0.0, %v3773
        %v3775 = vpop.f32.mrb[0].mxu0
        %3776 = vmatprep.mubr.f32.mxu0 0.0
        %3777 = vmatmul.mubr.f32.gmra.mrb[0].mxu0 %v3685
        %v3778 = vpop.f32.mrb[0].mxu0
        %v3779 = vadd.f32 0.0, %v3778
        %v3780 = vpop.f32.mrb[0].mxu0
        %3781 = vmatprep.mubr.f32.mxu0 0.0
        %3782 = vmatmul.mubr.f32.gmra.mrb[0].mxu0 %v3688
        %v3783 = vpop.f32.mrb[0].mxu0
        %v3784 = vadd.f32 0.0, %v3783
        %v3785 = vpop.f32.mrb[0].mxu0
        %3786 = vmatprep.mubr.f32.mxu0 0.0
        %3787 = vmatmul.mubr.f32.gmra.mrb[0].mxu0 %v3691
        %v3788 = vpop.f32.mrb[0].mxu0
        %v3789 = vadd.f32 0.0, %v3788
        %v3790 = vpop.f32.mrb[0].mxu0
        %3791 = vmatprep.mubr.f32.mxu0 0.0
        %3792 = vmatmul.mubr.f32.gmra.mrb[0].mxu0 %v3694
        %v3793 = vpop.f32.mrb[0].mxu0
        %v3794 = vadd.f32 0.0, %v3793
        %v3795 = vpop.f32.mrb[0].mxu0
        %3796 = vmatprep.mubr.f32.mxu0 0.0
        %3797 = vmatmul.mubr.f32.gmra.mrb[0].mxu0 %v3697
        %v3798 = vpop.f32.mrb[0].mxu0
        %v3799 = vadd.f32 0.0, %v3798
        %v3800 = vpop.f32.mrb[0].mxu0
        %3801 = vmatprep.mubr.f32.mxu0 0.0
        %3802 = vmatmul.mubr.f32.gmra.mrb[0].mxu0 %v3700
        %v3803 = vpop.f32.mrb[0].mxu0
        %v3804 = vadd.f32 0.0, %v3803
        %v3805 = vpop.f32.mrb[0].mxu0
        %3806 = vdwg.mxu0
        %v3807 = vsub.f32 %v3620, %v3618
        %v3808 = vsub.f32 %v3621, %v3619
        %v3810 = vsel %vm950, %v3638, 0
        %v3813 = vsel %vm950, %v3639, 0
        %v3816 = vsel %vm950, %v3640, 0
        %v3819 = vsel %vm950, %v3641, 0
        %v3822 = vsel %vm950, %v3642, 0
        %v3825 = vsel %vm950, %v3643, 0
        %v3828 = vsel %vm950, %v3644, 0
        %v3831 = vsel %vm950, %v3645, 0
        %3833 = vmatprep.subr.mxu0 0.0
        %3834 = vmatpush1.msra.mxu0 %v3807
        %3835 = vmatprep.subr.mxu0 0.0
        %3836 = vmatpush1.msra.mxu0 %v3808
        %3837 = vmatprep.subr.mxu0 0.0
        %3838 = vmatpush1.msra.mxu0 0.0
        %3839 = vmatprep.subr.mxu0 0.0
        %3840 = vmatpush1.msra.mxu0 0.0
        %3841 = vmatprep.subr.mxu0 0.0
        %3842 = vmatpush1.msra.mxu0 0.0
        %3843 = vmatprep.subr.mxu0 0.0
        %3844 = vmatpush1.msra.mxu0 0.0
        %3845 = vmatprep.subr.mxu0 0.0
        %3846 = vmatpush1.msra.mxu0 0.0
        %3847 = vmatprep.subr.mxu0 0.0
        %3848 = vmatpush1.msra.mxu0 0.0
        %3849 = vmatprep.subr.mxu0 0.0
        %3850 = vmatpush1.msra.mxu0 0.0
        %3851 = vmatprep.subr.mxu0 0.0
        %3852 = vmatpush1.msra.mxu0 0.0
        %3853 = vmatprep.subr.mxu0 0.0
        %3854 = vmatpush1.msra.mxu0 0.0
        %3855 = vmatprep.subr.mxu0 0.0
        %3856 = vmatpush1.msra.mxu0 0.0
        %3857 = vmatprep.subr.mxu0 0.0
        %3858 = vmatpush1.msra.mxu0 0.0
        %3859 = vmatprep.subr.mxu0 0.0
        %3860 = vmatpush1.msra.mxu0 0.0
        %3861 = vmatprep.subr.mxu0 0.0
        %3862 = vmatpush1.msra.mxu0 0.0
        %3863 = vmatprep.subr.mxu0 0.0
        %3864 = vmatpush1.msra.mxu0 0.0
        %3865 = vmatprep.subr.mxu0 0.0
        %3866 = vmatpush1.msra.mxu0 0.0
        %3867 = vmatprep.subr.mxu0 0.0
        %3868 = vmatpush1.msra.mxu0 0.0
        %3869 = vmatprep.subr.mxu0 0.0
        %3870 = vmatpush1.msra.mxu0 0.0
        %3871 = vmatprep.subr.mxu0 0.0
        %3872 = vmatpush1.msra.mxu0 0.0
        %3873 = vmatprep.subr.mxu0 0.0
        %3874 = vmatpush1.msra.mxu0 0.0
        %3875 = vmatprep.subr.mxu0 0.0
        %3876 = vmatpush1.msra.mxu0 0.0
        %3877 = vmatprep.subr.mxu0 0.0
        %3878 = vmatpush1.msra.mxu0 0.0
        %3879 = vmatprep.subr.mxu0 0.0
        %3880 = vmatpush1.msra.mxu0 0.0
        %3881 = vmatprep.subr.mxu0 0.0
        %3882 = vmatpush1.msra.mxu0 0.0
        %3883 = vmatprep.subr.mxu0 0.0
        %3884 = vmatpush1.msra.mxu0 0.0
        %3885 = vmatprep.subr.mxu0 0.0
        %3886 = vmatpush1.msra.mxu0 0.0
        %3887 = vmatprep.subr.mxu0 0.0
        %3888 = vmatpush1.msra.mxu0 0.0
        %3889 = vmatprep.subr.mxu0 0.0
        %3890 = vmatpush1.msra.mxu0 0.0
        %3891 = vmatprep.subr.mxu0 0.0
        %3892 = vmatpush1.msra.mxu0 0.0
        %3893 = vmatprep.subr.mxu0 0.0
        %3894 = vmatpush1.msra.mxu0 0.0
        %3895 = vmatprep.subr.mxu0 0.0
        %3896 = vmatpush1.msra.mxu0 0.0
        %3897 = vmatprep.mubr.f32.mxu0 0.0
        %3898 = vmatmul.mubr.f32.gmra.mrb[0].mxu0 %v3810
        %v3899 = vpop.f32.mrb[0].mxu0
        %v3900 = vadd.f32 0.0, %v3899
        %v3901 = vpop.f32.mrb[0].mxu0
        %3902 = vmatprep.mubr.f32.mxu0 0.0
        %3903 = vmatmul.mubr.f32.gmra.mrb[0].mxu0 %v3813
        %v3904 = vpop.f32.mrb[0].mxu0
        %v3905 = vadd.f32 0.0, %v3904
        %v3906 = vpop.f32.mrb[0].mxu0
        %3907 = vmatprep.mubr.f32.mxu0 0.0
        %3908 = vmatmul.mubr.f32.gmra.mrb[0].mxu0 %v3816
        %v3909 = vpop.f32.mrb[0].mxu0
        %v3910 = vadd.f32 0.0, %v3909
        %v3911 = vpop.f32.mrb[0].mxu0
        %3912 = vmatprep.mubr.f32.mxu0 0.0
        %3913 = vmatmul.mubr.f32.gmra.mrb[0].mxu0 %v3819
        %v3914 = vpop.f32.mrb[0].mxu0
        %v3915 = vadd.f32 0.0, %v3914
        %v3916 = vpop.f32.mrb[0].mxu0
        %3917 = vmatprep.mubr.f32.mxu0 0.0
        %3918 = vmatmul.mubr.f32.gmra.mrb[0].mxu0 %v3822
        %v3919 = vpop.f32.mrb[0].mxu0
        %v3920 = vadd.f32 0.0, %v3919
        %v3921 = vpop.f32.mrb[0].mxu0
        %3922 = vmatprep.mubr.f32.mxu0 0.0
        %3923 = vmatmul.mubr.f32.gmra.mrb[0].mxu0 %v3825
        %v3924 = vpop.f32.mrb[0].mxu0
        %v3925 = vadd.f32 0.0, %v3924
        %v3926 = vpop.f32.mrb[0].mxu0
        %3927 = vmatprep.mubr.f32.mxu0 0.0
        %3928 = vmatmul.mubr.f32.gmra.mrb[0].mxu0 %v3828
        %v3929 = vpop.f32.mrb[0].mxu0
        %v3930 = vadd.f32 0.0, %v3929
        %v3931 = vpop.f32.mrb[0].mxu0
        %3932 = vmatprep.mubr.f32.mxu0 0.0
        %3933 = vmatmul.mubr.f32.gmra.mrb[0].mxu0 %v3831
        %v3934 = vpop.f32.mrb[0].mxu0
        %v3935 = vadd.f32 0.0, %v3934
        %v3936 = vpop.f32.mrb[0].mxu0
        %3937 = vdwg.mxu0
        %v3938 = vadd.f32 %v3618, %v3620
        %v3939 = vadd.f32 %v3619, %v3621
        %v3941 = vsel %vm950, %v3662, 0
        %v3944 = vsel %vm950, %v3663, 0
        %v3947 = vsel %vm950, %v3664, 0
        %v3950 = vsel %vm950, %v3665, 0
        %v3953 = vsel %vm950, %v3666, 0
        %v3956 = vsel %vm950, %v3667, 0
        %v3959 = vsel %vm950, %v3668, 0
        %v3962 = vsel %vm950, %v3669, 0
        %3964 = vmatprep.subr.mxu0 0.0
        %3965 = vmatpush1.msra.mxu0 %v3938
        %3966 = vmatprep.subr.mxu0 0.0
        %3967 = vmatpush1.msra.mxu0 %v3939
        %3968 = vmatprep.subr.mxu0 0.0
        %3969 = vmatpush1.msra.mxu0 0.0
        %3970 = vmatprep.subr.mxu0 0.0
        %3971 = vmatpush1.msra.mxu0 0.0
        %3972 = vmatprep.subr.mxu0 0.0
        %3973 = vmatpush1.msra.mxu0 0.0
        %3974 = vmatprep.subr.mxu0 0.0
        %3975 = vmatpush1.msra.mxu0 0.0
        %3976 = vmatprep.subr.mxu0 0.0
        %3977 = vmatpush1.msra.mxu0 0.0
        %3978 = vmatprep.subr.mxu0 0.0
        %3979 = vmatpush1.msra.mxu0 0.0
        %3980 = vmatprep.subr.mxu0 0.0
        %3981 = vmatpush1.msra.mxu0 0.0
        %3982 = vmatprep.subr.mxu0 0.0
        %3983 = vmatpush1.msra.mxu0 0.0
        %3984 = vmatprep.subr.mxu0 0.0
        %3985 = vmatpush1.msra.mxu0 0.0
        %3986 = vmatprep.subr.mxu0 0.0
        %3987 = vmatpush1.msra.mxu0 0.0
        %3988 = vmatprep.subr.mxu0 0.0
        %3989 = vmatpush1.msra.mxu0 0.0
        %3990 = vmatprep.subr.mxu0 0.0
        %3991 = vmatpush1.msra.mxu0 0.0
        %3992 = vmatprep.subr.mxu0 0.0
        %3993 = vmatpush1.msra.mxu0 0.0
        %3994 = vmatprep.subr.mxu0 0.0
        %3995 = vmatpush1.msra.mxu0 0.0
        %3996 = vmatprep.subr.mxu0 0.0
        %3997 = vmatpush1.msra.mxu0 0.0
        %3998 = vmatprep.subr.mxu0 0.0
        %3999 = vmatpush1.msra.mxu0 0.0
        %4000 = vmatprep.subr.mxu0 0.0
        %4001 = vmatpush1.msra.mxu0 0.0
        %4002 = vmatprep.subr.mxu0 0.0
        %4003 = vmatpush1.msra.mxu0 0.0
        %4004 = vmatprep.subr.mxu0 0.0
        %4005 = vmatpush1.msra.mxu0 0.0
        %4006 = vmatprep.subr.mxu0 0.0
        %4007 = vmatpush1.msra.mxu0 0.0
        %4008 = vmatprep.subr.mxu0 0.0
        %4009 = vmatpush1.msra.mxu0 0.0
        %4010 = vmatprep.subr.mxu0 0.0
        %4011 = vmatpush1.msra.mxu0 0.0
        %4012 = vmatprep.subr.mxu0 0.0
        %4013 = vmatpush1.msra.mxu0 0.0
        %4014 = vmatprep.subr.mxu0 0.0
        %4015 = vmatpush1.msra.mxu0 0.0
        %4016 = vmatprep.subr.mxu0 0.0
        %4017 = vmatpush1.msra.mxu0 0.0
        %4018 = vmatprep.subr.mxu0 0.0
        %4019 = vmatpush1.msra.mxu0 0.0
        %4020 = vmatprep.subr.mxu0 0.0
        %4021 = vmatpush1.msra.mxu0 0.0
        %4022 = vmatprep.subr.mxu0 0.0
        %4023 = vmatpush1.msra.mxu0 0.0
        %4024 = vmatprep.subr.mxu0 0.0
        %4025 = vmatpush1.msra.mxu0 0.0
        %4026 = vmatprep.subr.mxu0 0.0
        %4027 = vmatpush1.msra.mxu0 0.0
        %4028 = vmatprep.mubr.f32.mxu0 0.0
        %4029 = vmatmul.mubr.f32.gmra.mrb[0].mxu0 %v3941
        %v4030 = vpop.f32.mrb[0].mxu0
        %v4031 = vadd.f32 0.0, %v4030
        %v4032 = vpop.f32.mrb[0].mxu0
        %4033 = vmatprep.mubr.f32.mxu0 0.0
        %4034 = vmatmul.mubr.f32.gmra.mrb[0].mxu0 %v3944
        %v4035 = vpop.f32.mrb[0].mxu0
        %v4036 = vadd.f32 0.0, %v4035
        %v4037 = vpop.f32.mrb[0].mxu0
        %4038 = vmatprep.mubr.f32.mxu0 0.0
        %4039 = vmatmul.mubr.f32.gmra.mrb[0].mxu0 %v3947
        %v4040 = vpop.f32.mrb[0].mxu0
        %v4041 = vadd.f32 0.0, %v4040
        %v4042 = vpop.f32.mrb[0].mxu0
        %4043 = vmatprep.mubr.f32.mxu0 0.0
        %4044 = vmatmul.mubr.f32.gmra.mrb[0].mxu0 %v3950
        %v4045 = vpop.f32.mrb[0].mxu0
        %v4046 = vadd.f32 0.0, %v4045
        %v4047 = vpop.f32.mrb[0].mxu0
        %4048 = vmatprep.mubr.f32.mxu0 0.0
        %4049 = vmatmul.mubr.f32.gmra.mrb[0].mxu0 %v3953
        %v4050 = vpop.f32.mrb[0].mxu0
        %v4051 = vadd.f32 0.0, %v4050
        %v4052 = vpop.f32.mrb[0].mxu0
        %4053 = vmatprep.mubr.f32.mxu0 0.0
        %4054 = vmatmul.mubr.f32.gmra.mrb[0].mxu0 %v3956
        %v4055 = vpop.f32.mrb[0].mxu0
        %v4056 = vadd.f32 0.0, %v4055
        %v4057 = vpop.f32.mrb[0].mxu0
        %4058 = vmatprep.mubr.f32.mxu0 0.0
        %4059 = vmatmul.mubr.f32.gmra.mrb[0].mxu0 %v3959
        %v4060 = vpop.f32.mrb[0].mxu0
        %v4061 = vadd.f32 0.0, %v4060
        %v4062 = vpop.f32.mrb[0].mxu0
        %4063 = vmatprep.mubr.f32.mxu0 0.0
        %4064 = vmatmul.mubr.f32.gmra.mrb[0].mxu0 %v3962
        %v4065 = vpop.f32.mrb[0].mxu0
        %v4066 = vadd.f32 0.0, %v4065
        %v4067 = vpop.f32.mrb[0].mxu0
        %4068 = vdwg.mxu0
        %v4069 = vsub.f32 %v3769, %v4031
        %v4070 = vsub.f32 %v3774, %v4036
        %v4071 = vsub.f32 %v3779, %v4041
        %v4072 = vsub.f32 %v3784, %v4046
        %v4073 = vsub.f32 %v3789, %v4051
        %v4074 = vsub.f32 %v3794, %v4056
        %v4075 = vsub.f32 %v3799, %v4061
        %v4076 = vsub.f32 %v3804, %v4066
        %v4077 = vadd.f32 %v3769, %v3900
        %v4078 = vadd.f32 %v3774, %v3905
        %v4079 = vadd.f32 %v3779, %v3910
        %v4080 = vadd.f32 %v3784, %v3915
        %v4081 = vadd.f32 %v3789, %v3920
        %v4082 = vadd.f32 %v3794, %v3925
        %v4083 = vadd.f32 %v3799, %v3930
        %v4084 = vadd.f32 %v3804, %v3935
        %v4085 = vadd.f32 %v3614, %v3616
        %v4086 = vadd.f32 %v3615, %v3617
        %v4088 = vsel %vm950, %v4085, 0
        %v4091 = vsel %vm950, %v4086, 0
        %4093 = vmatprep.subr.mxu0 0.0
        %4094 = vmatpush1.msra.mxu0 %v4069
        %4095 = vmatprep.subr.mxu0 0.0
        %4096 = vmatpush1.msra.mxu0 %v4070
        %4097 = vmatprep.subr.mxu0 0.0
        %4098 = vmatpush1.msra.mxu0 0.0
        %4099 = vmatprep.subr.mxu0 0.0
        %4100 = vmatpush1.msra.mxu0 0.0
        %4101 = vmatprep.subr.mxu0 0.0
        %4102 = vmatpush1.msra.mxu0 0.0
        %4103 = vmatprep.subr.mxu0 0.0
        %4104 = vmatpush1.msra.mxu0 0.0
        %4105 = vmatprep.subr.mxu0 0.0
        %4106 = vmatpush1.msra.mxu0 0.0
        %4107 = vmatprep.subr.mxu0 0.0
        %4108 = vmatpush1.msra.mxu0 0.0
        %4109 = vmatprep.subr.mxu0 0.0
        %4110 = vmatpush1.msra.mxu0 0.0
        %4111 = vmatprep.subr.mxu0 0.0
        %4112 = vmatpush1.msra.mxu0 0.0
        %4113 = vmatprep.subr.mxu0 0.0
        %4114 = vmatpush1.msra.mxu0 0.0
        %4115 = vmatprep.subr.mxu0 0.0
        %4116 = vmatpush1.msra.mxu0 0.0
        %4117 = vmatprep.subr.mxu0 0.0
        %4118 = vmatpush1.msra.mxu0 0.0
        %4119 = vmatprep.subr.mxu0 0.0
        %4120 = vmatpush1.msra.mxu0 0.0
        %4121 = vmatprep.subr.mxu0 0.0
        %4122 = vmatpush1.msra.mxu0 0.0
        %4123 = vmatprep.subr.mxu0 0.0
        %4124 = vmatpush1.msra.mxu0 0.0
        %4125 = vmatprep.subr.mxu0 0.0
        %4126 = vmatpush1.msra.mxu0 0.0
        %4127 = vmatprep.subr.mxu0 0.0
        %4128 = vmatpush1.msra.mxu0 0.0
        %4129 = vmatprep.subr.mxu0 0.0
        %4130 = vmatpush1.msra.mxu0 0.0
        %4131 = vmatprep.subr.mxu0 0.0
        %4132 = vmatpush1.msra.mxu0 0.0
        %4133 = vmatprep.subr.mxu0 0.0
        %4134 = vmatpush1.msra.mxu0 0.0
        %4135 = vmatprep.subr.mxu0 0.0
        %4136 = vmatpush1.msra.mxu0 0.0
        %4137 = vmatprep.subr.mxu0 0.0
        %4138 = vmatpush1.msra.mxu0 0.0
        %4139 = vmatprep.subr.mxu0 0.0
        %4140 = vmatpush1.msra.mxu0 0.0
        %4141 = vmatprep.subr.mxu0 0.0
        %4142 = vmatpush1.msra.mxu0 0.0
        %4143 = vmatprep.subr.mxu0 0.0
        %4144 = vmatpush1.msra.mxu0 0.0
        %4145 = vmatprep.subr.mxu0 0.0
        %4146 = vmatpush1.msra.mxu0 0.0
        %4147 = vmatprep.subr.mxu0 0.0
        %4148 = vmatpush1.msra.mxu0 0.0
        %4149 = vmatprep.subr.mxu0 0.0
        %4150 = vmatpush1.msra.mxu0 0.0
        %4151 = vmatprep.subr.mxu0 0.0
        %4152 = vmatpush1.msra.mxu0 0.0
        %4153 = vmatprep.subr.mxu0 0.0
        %4154 = vmatpush1.msra.mxu0 0.0
        %4155 = vmatprep.subr.mxu0 0.0
        %4156 = vmatpush1.msra.mxu0 0.0
        %4157 = vmatprep.mubr.f32.mxu0 0.0
        %4158 = vmatmul.mubr.f32.gmra.mrb[0].mxu0 %v4088
        %v4159 = vpop.f32.mrb[0].mxu0
        %v4160 = vadd.f32 0.0, %v4159
        %v4161 = vpop.f32.mrb[0].mxu0
        %4162 = vmatprep.mubr.f32.mxu0 0.0
        %4163 = vmatmul.mubr.f32.gmra.mrb[0].mxu0 %v4091
        %v4164 = vpop.f32.mrb[0].mxu0
        %v4165 = vadd.f32 0.0, %v4164
        %v4166 = vpop.f32.mrb[0].mxu0
        %4167 = vdwg.mxu0
        %4168 = vmatprep.subr.mxu0 0.0
        %4169 = vmatpush1.msra.mxu0 %v4071
        %4170 = vmatprep.subr.mxu0 0.0
        %4171 = vmatpush1.msra.mxu0 %v4072
        %4172 = vmatprep.subr.mxu0 0.0
        %4173 = vmatpush1.msra.mxu0 0.0
        %4174 = vmatprep.subr.mxu0 0.0
        %4175 = vmatpush1.msra.mxu0 0.0
        %4176 = vmatprep.subr.mxu0 0.0
        %4177 = vmatpush1.msra.mxu0 0.0
        %4178 = vmatprep.subr.mxu0 0.0
        %4179 = vmatpush1.msra.mxu0 0.0
        %4180 = vmatprep.subr.mxu0 0.0
        %4181 = vmatpush1.msra.mxu0 0.0
        %4182 = vmatprep.subr.mxu0 0.0
        %4183 = vmatpush1.msra.mxu0 0.0
        %4184 = vmatprep.subr.mxu0 0.0
        %4185 = vmatpush1.msra.mxu0 0.0
        %4186 = vmatprep.subr.mxu0 0.0
        %4187 = vmatpush1.msra.mxu0 0.0
        %4188 = vmatprep.subr.mxu0 0.0
        %4189 = vmatpush1.msra.mxu0 0.0
        %4190 = vmatprep.subr.mxu0 0.0
        %4191 = vmatpush1.msra.mxu0 0.0
        %4192 = vmatprep.subr.mxu0 0.0
        %4193 = vmatpush1.msra.mxu0 0.0
        %4194 = vmatprep.subr.mxu0 0.0
        %4195 = vmatpush1.msra.mxu0 0.0
        %4196 = vmatprep.subr.mxu0 0.0
        %4197 = vmatpush1.msra.mxu0 0.0
        %4198 = vmatprep.subr.mxu0 0.0
        %4199 = vmatpush1.msra.mxu0 0.0
        %4200 = vmatprep.subr.mxu0 0.0
        %4201 = vmatpush1.msra.mxu0 0.0
        %4202 = vmatprep.subr.mxu0 0.0
        %4203 = vmatpush1.msra.mxu0 0.0
        %4204 = vmatprep.subr.mxu0 0.0
        %4205 = vmatpush1.msra.mxu0 0.0
        %4206 = vmatprep.subr.mxu0 0.0
        %4207 = vmatpush1.msra.mxu0 0.0
        %4208 = vmatprep.subr.mxu0 0.0
        %4209 = vmatpush1.msra.mxu0 0.0
        %4210 = vmatprep.subr.mxu0 0.0
        %4211 = vmatpush1.msra.mxu0 0.0
        %4212 = vmatprep.subr.mxu0 0.0
        %4213 = vmatpush1.msra.mxu0 0.0
        %4214 = vmatprep.subr.mxu0 0.0
        %4215 = vmatpush1.msra.mxu0 0.0
        %4216 = vmatprep.subr.mxu0 0.0
        %4217 = vmatpush1.msra.mxu0 0.0
        %4218 = vmatprep.subr.mxu0 0.0
        %4219 = vmatpush1.msra.mxu0 0.0
        %4220 = vmatprep.subr.mxu0 0.0
        %4221 = vmatpush1.msra.mxu0 0.0
        %4222 = vmatprep.subr.mxu0 0.0
        %4223 = vmatpush1.msra.mxu0 0.0
        %4224 = vmatprep.subr.mxu0 0.0
        %4225 = vmatpush1.msra.mxu0 0.0
        %4226 = vmatprep.subr.mxu0 0.0
        %4227 = vmatpush1.msra.mxu0 0.0
        %4228 = vmatprep.subr.mxu0 0.0
        %4229 = vmatpush1.msra.mxu0 0.0
        %4230 = vmatprep.subr.mxu0 0.0
        %4231 = vmatpush1.msra.mxu0 0.0
        %4232 = vmatprep.mubr.f32.mxu0 0.0
        %4233 = vmatmul.mubr.f32.gmra.mrb[0].mxu0 %v4088
        %v4234 = vpop.f32.mrb[0].mxu0
        %v4235 = vadd.f32 0.0, %v4234
        %v4236 = vpop.f32.mrb[0].mxu0
        %4237 = vmatprep.mubr.f32.mxu0 0.0
        %4238 = vmatmul.mubr.f32.gmra.mrb[0].mxu0 %v4091
        %v4239 = vpop.f32.mrb[0].mxu0
        %v4240 = vadd.f32 0.0, %v4239
        %v4241 = vpop.f32.mrb[0].mxu0
        %4242 = vdwg.mxu0
        %4243 = vmatprep.subr.mxu0 0.0
        %4244 = vmatpush1.msra.mxu0 %v4073
        %4245 = vmatprep.subr.mxu0 0.0
        %4246 = vmatpush1.msra.mxu0 %v4074
        %4247 = vmatprep.subr.mxu0 0.0
        %4248 = vmatpush1.msra.mxu0 0.0
        %4249 = vmatprep.subr.mxu0 0.0
        %4250 = vmatpush1.msra.mxu0 0.0
        %4251 = vmatprep.subr.mxu0 0.0
        %4252 = vmatpush1.msra.mxu0 0.0
        %4253 = vmatprep.subr.mxu0 0.0
        %4254 = vmatpush1.msra.mxu0 0.0
        %4255 = vmatprep.subr.mxu0 0.0
        %4256 = vmatpush1.msra.mxu0 0.0
        %4257 = vmatprep.subr.mxu0 0.0
        %4258 = vmatpush1.msra.mxu0 0.0
        %4259 = vmatprep.subr.mxu0 0.0
        %4260 = vmatpush1.msra.mxu0 0.0
        %4261 = vmatprep.subr.mxu0 0.0
        %4262 = vmatpush1.msra.mxu0 0.0
        %4263 = vmatprep.subr.mxu0 0.0
        %4264 = vmatpush1.msra.mxu0 0.0
        %4265 = vmatprep.subr.mxu0 0.0
        %4266 = vmatpush1.msra.mxu0 0.0
        %4267 = vmatprep.subr.mxu0 0.0
        %4268 = vmatpush1.msra.mxu0 0.0
        %4269 = vmatprep.subr.mxu0 0.0
        %4270 = vmatpush1.msra.mxu0 0.0
        %4271 = vmatprep.subr.mxu0 0.0
        %4272 = vmatpush1.msra.mxu0 0.0
        %4273 = vmatprep.subr.mxu0 0.0
        %4274 = vmatpush1.msra.mxu0 0.0
        %4275 = vmatprep.subr.mxu0 0.0
        %4276 = vmatpush1.msra.mxu0 0.0
        %4277 = vmatprep.subr.mxu0 0.0
        %4278 = vmatpush1.msra.mxu0 0.0
        %4279 = vmatprep.subr.mxu0 0.0
        %4280 = vmatpush1.msra.mxu0 0.0
        %4281 = vmatprep.subr.mxu0 0.0
        %4282 = vmatpush1.msra.mxu0 0.0
        %4283 = vmatprep.subr.mxu0 0.0
        %4284 = vmatpush1.msra.mxu0 0.0
        %4285 = vmatprep.subr.mxu0 0.0
        %4286 = vmatpush1.msra.mxu0 0.0
        %4287 = vmatprep.subr.mxu0 0.0
        %4288 = vmatpush1.msra.mxu0 0.0
        %4289 = vmatprep.subr.mxu0 0.0
        %4290 = vmatpush1.msra.mxu0 0.0
        %4291 = vmatprep.subr.mxu0 0.0
        %4292 = vmatpush1.msra.mxu0 0.0
        %4293 = vmatprep.subr.mxu0 0.0
        %4294 = vmatpush1.msra.mxu0 0.0
        %4295 = vmatprep.subr.mxu0 0.0
        %4296 = vmatpush1.msra.mxu0 0.0
        %4297 = vmatprep.subr.mxu0 0.0
        %4298 = vmatpush1.msra.mxu0 0.0
        %4299 = vmatprep.subr.mxu0 0.0
        %4300 = vmatpush1.msra.mxu0 0.0
        %4301 = vmatprep.subr.mxu0 0.0
        %4302 = vmatpush1.msra.mxu0 0.0
        %4303 = vmatprep.subr.mxu0 0.0
        %4304 = vmatpush1.msra.mxu0 0.0
        %4305 = vmatprep.subr.mxu0 0.0
        %4306 = vmatpush1.msra.mxu0 0.0
        %4307 = vmatprep.mubr.f32.mxu0 0.0
        %4308 = vmatmul.mubr.f32.gmra.mrb[0].mxu0 %v4088
        %v4309 = vpop.f32.mrb[0].mxu0
        %v4310 = vadd.f32 0.0, %v4309
        %v4311 = vpop.f32.mrb[0].mxu0
        %4312 = vmatprep.mubr.f32.mxu0 0.0
        %4313 = vmatmul.mubr.f32.gmra.mrb[0].mxu0 %v4091
        %v4314 = vpop.f32.mrb[0].mxu0
        %v4315 = vadd.f32 0.0, %v4314
        %v4316 = vpop.f32.mrb[0].mxu0
        %4317 = vdwg.mxu0
        %4318 = vmatprep.subr.mxu0 0.0
        %4319 = vmatpush1.msra.mxu0 %v4075
        %4320 = vmatprep.subr.mxu0 0.0
        %4321 = vmatpush1.msra.mxu0 %v4076
        %4322 = vmatprep.subr.mxu0 0.0
        %4323 = vmatpush1.msra.mxu0 0.0
        %4324 = vmatprep.subr.mxu0 0.0
        %4325 = vmatpush1.msra.mxu0 0.0
        %4326 = vmatprep.subr.mxu0 0.0
        %4327 = vmatpush1.msra.mxu0 0.0
        %4328 = vmatprep.subr.mxu0 0.0
        %4329 = vmatpush1.msra.mxu0 0.0
        %4330 = vmatprep.subr.mxu0 0.0
        %4331 = vmatpush1.msra.mxu0 0.0
        %4332 = vmatprep.subr.mxu0 0.0
        %4333 = vmatpush1.msra.mxu0 0.0
        %4334 = vmatprep.subr.mxu0 0.0
        %4335 = vmatpush1.msra.mxu0 0.0
        %4336 = vmatprep.subr.mxu0 0.0
        %4337 = vmatpush1.msra.mxu0 0.0
        %4338 = vmatprep.subr.mxu0 0.0
        %4339 = vmatpush1.msra.mxu0 0.0
        %4340 = vmatprep.subr.mxu0 0.0
        %4341 = vmatpush1.msra.mxu0 0.0
        %4342 = vmatprep.subr.mxu0 0.0
        %4343 = vmatpush1.msra.mxu0 0.0
        %4344 = vmatprep.subr.mxu0 0.0
        %4345 = vmatpush1.msra.mxu0 0.0
        %4346 = vmatprep.subr.mxu0 0.0
        %4347 = vmatpush1.msra.mxu0 0.0
        %4348 = vmatprep.subr.mxu0 0.0
        %4349 = vmatpush1.msra.mxu0 0.0
        %4350 = vmatprep.subr.mxu0 0.0
        %4351 = vmatpush1.msra.mxu0 0.0
        %4352 = vmatprep.subr.mxu0 0.0
        %4353 = vmatpush1.msra.mxu0 0.0
        %4354 = vmatprep.subr.mxu0 0.0
        %4355 = vmatpush1.msra.mxu0 0.0
        %4356 = vmatprep.subr.mxu0 0.0
        %4357 = vmatpush1.msra.mxu0 0.0
        %4358 = vmatprep.subr.mxu0 0.0
        %4359 = vmatpush1.msra.mxu0 0.0
        %4360 = vmatprep.subr.mxu0 0.0
        %4361 = vmatpush1.msra.mxu0 0.0
        %4362 = vmatprep.subr.mxu0 0.0
        %4363 = vmatpush1.msra.mxu0 0.0
        %4364 = vmatprep.subr.mxu0 0.0
        %4365 = vmatpush1.msra.mxu0 0.0
        %4366 = vmatprep.subr.mxu0 0.0
        %4367 = vmatpush1.msra.mxu0 0.0
        %4368 = vmatprep.subr.mxu0 0.0
        %4369 = vmatpush1.msra.mxu0 0.0
        %4370 = vmatprep.subr.mxu0 0.0
        %4371 = vmatpush1.msra.mxu0 0.0
        %4372 = vmatprep.subr.mxu0 0.0
        %4373 = vmatpush1.msra.mxu0 0.0
        %4374 = vmatprep.subr.mxu0 0.0
        %4375 = vmatpush1.msra.mxu0 0.0
        %4376 = vmatprep.subr.mxu0 0.0
        %4377 = vmatpush1.msra.mxu0 0.0
        %4378 = vmatprep.subr.mxu0 0.0
        %4379 = vmatpush1.msra.mxu0 0.0
        %4380 = vmatprep.subr.mxu0 0.0
        %4381 = vmatpush1.msra.mxu0 0.0
        %4382 = vmatprep.mubr.f32.mxu0 0.0
        %4383 = vmatmul.mubr.f32.gmra.mrb[0].mxu0 %v4088
        %v4384 = vpop.f32.mrb[0].mxu0
        %v4385 = vadd.f32 0.0, %v4384
        %v4386 = vpop.f32.mrb[0].mxu0
        %4387 = vmatprep.mubr.f32.mxu0 0.0
        %4388 = vmatmul.mubr.f32.gmra.mrb[0].mxu0 %v4091
        %v4389 = vpop.f32.mrb[0].mxu0
        %v4390 = vadd.f32 0.0, %v4389
        %v4391 = vpop.f32.mrb[0].mxu0
        %4392 = vdwg.mxu0
        %v4393 = vsub.f32 %v4077, %v4069
        %v4394 = vsub.f32 %v4078, %v4070
        %v4395 = vsub.f32 %v4079, %v4071
        %v4396 = vsub.f32 %v4080, %v4072
        %v4397 = vsub.f32 %v4081, %v4073
        %v4398 = vsub.f32 %v4082, %v4074
        %v4399 = vsub.f32 %v4083, %v4075
        %v4400 = vsub.f32 %v4084, %v4076
        %v4402 = vsel %vm950, %v3614, 0
        %v4405 = vsel %vm950, %v3615, 0
        %4407 = vmatprep.subr.mxu0 0.0
        %4408 = vmatpush1.msra.mxu0 %v4393
        %4409 = vmatprep.subr.mxu0 0.0
        %4410 = vmatpush1.msra.mxu0 %v4394
        %4411 = vmatprep.subr.mxu0 0.0
        %4412 = vmatpush1.msra.mxu0 0.0
        %4413 = vmatprep.subr.mxu0 0.0
        %4414 = vmatpush1.msra.mxu0 0.0
        %4415 = vmatprep.subr.mxu0 0.0
        %4416 = vmatpush1.msra.mxu0 0.0
        %4417 = vmatprep.subr.mxu0 0.0
        %4418 = vmatpush1.msra.mxu0 0.0
        %4419 = vmatprep.subr.mxu0 0.0
        %4420 = vmatpush1.msra.mxu0 0.0
        %4421 = vmatprep.subr.mxu0 0.0
        %4422 = vmatpush1.msra.mxu0 0.0
        %4423 = vmatprep.subr.mxu0 0.0
        %4424 = vmatpush1.msra.mxu0 0.0
        %4425 = vmatprep.subr.mxu0 0.0
        %4426 = vmatpush1.msra.mxu0 0.0
        %4427 = vmatprep.subr.mxu0 0.0
        %4428 = vmatpush1.msra.mxu0 0.0
        %4429 = vmatprep.subr.mxu0 0.0
        %4430 = vmatpush1.msra.mxu0 0.0
        %4431 = vmatprep.subr.mxu0 0.0
        %4432 = vmatpush1.msra.mxu0 0.0
        %4433 = vmatprep.subr.mxu0 0.0
        %4434 = vmatpush1.msra.mxu0 0.0
        %4435 = vmatprep.subr.mxu0 0.0
        %4436 = vmatpush1.msra.mxu0 0.0
        %4437 = vmatprep.subr.mxu0 0.0
        %4438 = vmatpush1.msra.mxu0 0.0
        %4439 = vmatprep.subr.mxu0 0.0
        %4440 = vmatpush1.msra.mxu0 0.0
        %4441 = vmatprep.subr.mxu0 0.0
        %4442 = vmatpush1.msra.mxu0 0.0
        %4443 = vmatprep.subr.mxu0 0.0
        %4444 = vmatpush1.msra.mxu0 0.0
        %4445 = vmatprep.subr.mxu0 0.0
        %4446 = vmatpush1.msra.mxu0 0.0
        %4447 = vmatprep.subr.mxu0 0.0
        %4448 = vmatpush1.msra.mxu0 0.0
        %4449 = vmatprep.subr.mxu0 0.0
        %4450 = vmatpush1.msra.mxu0 0.0
        %4451 = vmatprep.subr.mxu0 0.0
        %4452 = vmatpush1.msra.mxu0 0.0
        %4453 = vmatprep.subr.mxu0 0.0
        %4454 = vmatpush1.msra.mxu0 0.0
        %4455 = vmatprep.subr.mxu0 0.0
        %4456 = vmatpush1.msra.mxu0 0.0
        %4457 = vmatprep.subr.mxu0 0.0
        %4458 = vmatpush1.msra.mxu0 0.0
        %4459 = vmatprep.subr.mxu0 0.0
        %4460 = vmatpush1.msra.mxu0 0.0
        %4461 = vmatprep.subr.mxu0 0.0
        %4462 = vmatpush1.msra.mxu0 0.0
        %4463 = vmatprep.subr.mxu0 0.0
        %4464 = vmatpush1.msra.mxu0 0.0
        %4465 = vmatprep.subr.mxu0 0.0
        %4466 = vmatpush1.msra.mxu0 0.0
        %4467 = vmatprep.subr.mxu0 0.0
        %4468 = vmatpush1.msra.mxu0 0.0
        %4469 = vmatprep.subr.mxu0 0.0
        %4470 = vmatpush1.msra.mxu0 0.0
        %4471 = vmatprep.mubr.f32.mxu0 0.0
        %4472 = vmatmul.mubr.f32.gmra.mrb[0].mxu0 %v4402
        %v4473 = vpop.f32.mrb[0].mxu0
        %v4474 = vadd.f32 0.0, %v4473
        %v4475 = vpop.f32.mrb[0].mxu0
        %4476 = vmatprep.mubr.f32.mxu0 0.0
        %4477 = vmatmul.mubr.f32.gmra.mrb[0].mxu0 %v4405
        %v4478 = vpop.f32.mrb[0].mxu0
        %v4479 = vadd.f32 0.0, %v4478
        %v4480 = vpop.f32.mrb[0].mxu0
        %4481 = vdwg.mxu0
        %4482 = vmatprep.subr.mxu0 0.0
        %4483 = vmatpush1.msra.mxu0 %v4395
        %4484 = vmatprep.subr.mxu0 0.0
        %4485 = vmatpush1.msra.mxu0 %v4396
        %4486 = vmatprep.subr.mxu0 0.0
        %4487 = vmatpush1.msra.mxu0 0.0
        %4488 = vmatprep.subr.mxu0 0.0
        %4489 = vmatpush1.msra.mxu0 0.0
        %4490 = vmatprep.subr.mxu0 0.0
        %4491 = vmatpush1.msra.mxu0 0.0
        %4492 = vmatprep.subr.mxu0 0.0
        %4493 = vmatpush1.msra.mxu0 0.0
        %4494 = vmatprep.subr.mxu0 0.0
        %4495 = vmatpush1.msra.mxu0 0.0
        %4496 = vmatprep.subr.mxu0 0.0
        %4497 = vmatpush1.msra.mxu0 0.0
        %4498 = vmatprep.subr.mxu0 0.0
        %4499 = vmatpush1.msra.mxu0 0.0
        %4500 = vmatprep.subr.mxu0 0.0
        %4501 = vmatpush1.msra.mxu0 0.0
        %4502 = vmatprep.subr.mxu0 0.0
        %4503 = vmatpush1.msra.mxu0 0.0
        %4504 = vmatprep.subr.mxu0 0.0
        %4505 = vmatpush1.msra.mxu0 0.0
        %4506 = vmatprep.subr.mxu0 0.0
        %4507 = vmatpush1.msra.mxu0 0.0
        %4508 = vmatprep.subr.mxu0 0.0
        %4509 = vmatpush1.msra.mxu0 0.0
        %4510 = vmatprep.subr.mxu0 0.0
        %4511 = vmatpush1.msra.mxu0 0.0
        %4512 = vmatprep.subr.mxu0 0.0
        %4513 = vmatpush1.msra.mxu0 0.0
        %4514 = vmatprep.subr.mxu0 0.0
        %4515 = vmatpush1.msra.mxu0 0.0
        %4516 = vmatprep.subr.mxu0 0.0
        %4517 = vmatpush1.msra.mxu0 0.0
        %4518 = vmatprep.subr.mxu0 0.0
        %4519 = vmatpush1.msra.mxu0 0.0
        %4520 = vmatprep.subr.mxu0 0.0
        %4521 = vmatpush1.msra.mxu0 0.0
        %4522 = vmatprep.subr.mxu0 0.0
        %4523 = vmatpush1.msra.mxu0 0.0
        %4524 = vmatprep.subr.mxu0 0.0
        %4525 = vmatpush1.msra.mxu0 0.0
        %4526 = vmatprep.subr.mxu0 0.0
        %4527 = vmatpush1.msra.mxu0 0.0
        %4528 = vmatprep.subr.mxu0 0.0
        %4529 = vmatpush1.msra.mxu0 0.0
        %4530 = vmatprep.subr.mxu0 0.0
        %4531 = vmatpush1.msra.mxu0 0.0
        %4532 = vmatprep.subr.mxu0 0.0
        %4533 = vmatpush1.msra.mxu0 0.0
        %4534 = vmatprep.subr.mxu0 0.0
        %4535 = vmatpush1.msra.mxu0 0.0
        %4536 = vmatprep.subr.mxu0 0.0
        %4537 = vmatpush1.msra.mxu0 0.0
        %4538 = vmatprep.subr.mxu0 0.0
        %4539 = vmatpush1.msra.mxu0 0.0
        %4540 = vmatprep.subr.mxu0 0.0
        %4541 = vmatpush1.msra.mxu0 0.0
        %4542 = vmatprep.subr.mxu0 0.0
        %4543 = vmatpush1.msra.mxu0 0.0
        %4544 = vmatprep.subr.mxu0 0.0
        %4545 = vmatpush1.msra.mxu0 0.0
        %4546 = vmatprep.mubr.f32.mxu0 0.0
        %4547 = vmatmul.mubr.f32.gmra.mrb[0].mxu0 %v4402
        %v4548 = vpop.f32.mrb[0].mxu0
        %v4549 = vadd.f32 0.0, %v4548
        %v4550 = vpop.f32.mrb[0].mxu0
        %4551 = vmatprep.mubr.f32.mxu0 0.0
        %4552 = vmatmul.mubr.f32.gmra.mrb[0].mxu0 %v4405
        %v4553 = vpop.f32.mrb[0].mxu0
        %v4554 = vadd.f32 0.0, %v4553
        %v4555 = vpop.f32.mrb[0].mxu0
        %4556 = vdwg.mxu0
        %4557 = vmatprep.subr.mxu0 0.0
        %4558 = vmatpush1.msra.mxu0 %v4397
        %4559 = vmatprep.subr.mxu0 0.0
        %4560 = vmatpush1.msra.mxu0 %v4398
        %4561 = vmatprep.subr.mxu0 0.0
        %4562 = vmatpush1.msra.mxu0 0.0
        %4563 = vmatprep.subr.mxu0 0.0
        %4564 = vmatpush1.msra.mxu0 0.0
        %4565 = vmatprep.subr.mxu0 0.0
        %4566 = vmatpush1.msra.mxu0 0.0
        %4567 = vmatprep.subr.mxu0 0.0
        %4568 = vmatpush1.msra.mxu0 0.0
        %4569 = vmatprep.subr.mxu0 0.0
        %4570 = vmatpush1.msra.mxu0 0.0
        %4571 = vmatprep.subr.mxu0 0.0
        %4572 = vmatpush1.msra.mxu0 0.0
        %4573 = vmatprep.subr.mxu0 0.0
        %4574 = vmatpush1.msra.mxu0 0.0
        %4575 = vmatprep.subr.mxu0 0.0
        %4576 = vmatpush1.msra.mxu0 0.0
        %4577 = vmatprep.subr.mxu0 0.0
        %4578 = vmatpush1.msra.mxu0 0.0
        %4579 = vmatprep.subr.mxu0 0.0
        %4580 = vmatpush1.msra.mxu0 0.0
        %4581 = vmatprep.subr.mxu0 0.0
        %4582 = vmatpush1.msra.mxu0 0.0
        %4583 = vmatprep.subr.mxu0 0.0
        %4584 = vmatpush1.msra.mxu0 0.0
        %4585 = vmatprep.subr.mxu0 0.0
        %4586 = vmatpush1.msra.mxu0 0.0
        %4587 = vmatprep.subr.mxu0 0.0
        %4588 = vmatpush1.msra.mxu0 0.0
        %4589 = vmatprep.subr.mxu0 0.0
        %4590 = vmatpush1.msra.mxu0 0.0
        %4591 = vmatprep.subr.mxu0 0.0
        %4592 = vmatpush1.msra.mxu0 0.0
        %4593 = vmatprep.subr.mxu0 0.0
        %4594 = vmatpush1.msra.mxu0 0.0
        %4595 = vmatprep.subr.mxu0 0.0
        %4596 = vmatpush1.msra.mxu0 0.0
        %4597 = vmatprep.subr.mxu0 0.0
        %4598 = vmatpush1.msra.mxu0 0.0
        %4599 = vmatprep.subr.mxu0 0.0
        %4600 = vmatpush1.msra.mxu0 0.0
        %4601 = vmatprep.subr.mxu0 0.0
        %4602 = vmatpush1.msra.mxu0 0.0
        %4603 = vmatprep.subr.mxu0 0.0
        %4604 = vmatpush1.msra.mxu0 0.0
        %4605 = vmatprep.subr.mxu0 0.0
        %4606 = vmatpush1.msra.mxu0 0.0
        %4607 = vmatprep.subr.mxu0 0.0
        %4608 = vmatpush1.msra.mxu0 0.0
        %4609 = vmatprep.subr.mxu0 0.0
        %4610 = vmatpush1.msra.mxu0 0.0
        %4611 = vmatprep.subr.mxu0 0.0
        %4612 = vmatpush1.msra.mxu0 0.0
        %4613 = vmatprep.subr.mxu0 0.0
        %4614 = vmatpush1.msra.mxu0 0.0
        %4615 = vmatprep.subr.mxu0 0.0
        %4616 = vmatpush1.msra.mxu0 0.0
        %4617 = vmatprep.subr.mxu0 0.0
        %4618 = vmatpush1.msra.mxu0 0.0
        %4619 = vmatprep.subr.mxu0 0.0
        %4620 = vmatpush1.msra.mxu0 0.0
        %4621 = vmatprep.mubr.f32.mxu0 0.0
        %4622 = vmatmul.mubr.f32.gmra.mrb[0].mxu0 %v4402
        %v4623 = vpop.f32.mrb[0].mxu0
        %v4624 = vadd.f32 0.0, %v4623
        %v4625 = vpop.f32.mrb[0].mxu0
        %4626 = vmatprep.mubr.f32.mxu0 0.0
        %4627 = vmatmul.mubr.f32.gmra.mrb[0].mxu0 %v4405
        %v4628 = vpop.f32.mrb[0].mxu0
        %v4629 = vadd.f32 0.0, %v4628
        %v4630 = vpop.f32.mrb[0].mxu0
        %4631 = vdwg.mxu0
        %4632 = vmatprep.subr.mxu0 0.0
        %4633 = vmatpush1.msra.mxu0 %v4399
        %4634 = vmatprep.subr.mxu0 0.0
        %4635 = vmatpush1.msra.mxu0 %v4400
        %4636 = vmatprep.subr.mxu0 0.0
        %4637 = vmatpush1.msra.mxu0 0.0
        %4638 = vmatprep.subr.mxu0 0.0
        %4639 = vmatpush1.msra.mxu0 0.0
        %4640 = vmatprep.subr.mxu0 0.0
        %4641 = vmatpush1.msra.mxu0 0.0
        %4642 = vmatprep.subr.mxu0 0.0
        %4643 = vmatpush1.msra.mxu0 0.0
        %4644 = vmatprep.subr.mxu0 0.0
        %4645 = vmatpush1.msra.mxu0 0.0
        %4646 = vmatprep.subr.mxu0 0.0
        %4647 = vmatpush1.msra.mxu0 0.0
        %4648 = vmatprep.subr.mxu0 0.0
        %4649 = vmatpush1.msra.mxu0 0.0
        %4650 = vmatprep.subr.mxu0 0.0
        %4651 = vmatpush1.msra.mxu0 0.0
        %4652 = vmatprep.subr.mxu0 0.0
        %4653 = vmatpush1.msra.mxu0 0.0
        %4654 = vmatprep.subr.mxu0 0.0
        %4655 = vmatpush1.msra.mxu0 0.0
        %4656 = vmatprep.subr.mxu0 0.0
        %4657 = vmatpush1.msra.mxu0 0.0
        %4658 = vmatprep.subr.mxu0 0.0
        %4659 = vmatpush1.msra.mxu0 0.0
        %4660 = vmatprep.subr.mxu0 0.0
        %4661 = vmatpush1.msra.mxu0 0.0
        %4662 = vmatprep.subr.mxu0 0.0
        %4663 = vmatpush1.msra.mxu0 0.0
        %4664 = vmatprep.subr.mxu0 0.0
        %4665 = vmatpush1.msra.mxu0 0.0
        %4666 = vmatprep.subr.mxu0 0.0
        %4667 = vmatpush1.msra.mxu0 0.0
        %4668 = vmatprep.subr.mxu0 0.0
        %4669 = vmatpush1.msra.mxu0 0.0
        %4670 = vmatprep.subr.mxu0 0.0
        %4671 = vmatpush1.msra.mxu0 0.0
        %4672 = vmatprep.subr.mxu0 0.0
        %4673 = vmatpush1.msra.mxu0 0.0
        %4674 = vmatprep.subr.mxu0 0.0
        %4675 = vmatpush1.msra.mxu0 0.0
        %4676 = vmatprep.subr.mxu0 0.0
        %4677 = vmatpush1.msra.mxu0 0.0
        %4678 = vmatprep.subr.mxu0 0.0
        %4679 = vmatpush1.msra.mxu0 0.0
        %4680 = vmatprep.subr.mxu0 0.0
        %4681 = vmatpush1.msra.mxu0 0.0
        %4682 = vmatprep.subr.mxu0 0.0
        %4683 = vmatpush1.msra.mxu0 0.0
        %4684 = vmatprep.subr.mxu0 0.0
        %4685 = vmatpush1.msra.mxu0 0.0
        %4686 = vmatprep.subr.mxu0 0.0
        %4687 = vmatpush1.msra.mxu0 0.0
        %4688 = vmatprep.subr.mxu0 0.0
        %4689 = vmatpush1.msra.mxu0 0.0
        %4690 = vmatprep.subr.mxu0 0.0
        %4691 = vmatpush1.msra.mxu0 0.0
        %4692 = vmatprep.subr.mxu0 0.0
        %4693 = vmatpush1.msra.mxu0 0.0
        %4694 = vmatprep.subr.mxu0 0.0
        %4695 = vmatpush1.msra.mxu0 0.0
        %4696 = vmatprep.mubr.f32.mxu0 0.0
        %4697 = vmatmul.mubr.f32.gmra.mrb[0].mxu0 %v4402
        %v4698 = vpop.f32.mrb[0].mxu0
        %v4699 = vadd.f32 0.0, %v4698
        %v4700 = vpop.f32.mrb[0].mxu0
        %4701 = vmatprep.mubr.f32.mxu0 0.0
        %4702 = vmatmul.mubr.f32.gmra.mrb[0].mxu0 %v4405
        %v4703 = vpop.f32.mrb[0].mxu0
        %v4704 = vadd.f32 0.0, %v4703
        %v4705 = vpop.f32.mrb[0].mxu0
        %4706 = vdwg.mxu0
        %v4707 = vadd.f32 %v4069, %v4077
        %v4708 = vadd.f32 %v4070, %v4078
        %v4709 = vadd.f32 %v4071, %v4079
        %v4710 = vadd.f32 %v4072, %v4080
        %v4711 = vadd.f32 %v4073, %v4081
        %v4712 = vadd.f32 %v4074, %v4082
        %v4713 = vadd.f32 %v4075, %v4083
        %v4714 = vadd.f32 %v4076, %v4084
        %v4716 = vsel %vm950, %v3616, 0
        %v4719 = vsel %vm950, %v3617, 0
        %4721 = vmatprep.subr.mxu0 0.0
        %4722 = vmatpush1.msra.mxu0 %v4707
        %4723 = vmatprep.subr.mxu0 0.0
        %4724 = vmatpush1.msra.mxu0 %v4708
        %4725 = vmatprep.subr.mxu0 0.0
        %4726 = vmatpush1.msra.mxu0 0.0
        %4727 = vmatprep.subr.mxu0 0.0
        %4728 = vmatpush1.msra.mxu0 0.0
        %4729 = vmatprep.subr.mxu0 0.0
        %4730 = vmatpush1.msra.mxu0 0.0
        %4731 = vmatprep.subr.mxu0 0.0
        %4732 = vmatpush1.msra.mxu0 0.0
        %4733 = vmatprep.subr.mxu0 0.0
        %4734 = vmatpush1.msra.mxu0 0.0
        %4735 = vmatprep.subr.mxu0 0.0
        %4736 = vmatpush1.msra.mxu0 0.0
        %4737 = vmatprep.subr.mxu0 0.0
        %4738 = vmatpush1.msra.mxu0 0.0
        %4739 = vmatprep.subr.mxu0 0.0
        %4740 = vmatpush1.msra.mxu0 0.0
        %4741 = vmatprep.subr.mxu0 0.0
        %4742 = vmatpush1.msra.mxu0 0.0
        %4743 = vmatprep.subr.mxu0 0.0
        %4744 = vmatpush1.msra.mxu0 0.0
        %4745 = vmatprep.subr.mxu0 0.0
        %4746 = vmatpush1.msra.mxu0 0.0
        %4747 = vmatprep.subr.mxu0 0.0
        %4748 = vmatpush1.msra.mxu0 0.0
        %4749 = vmatprep.subr.mxu0 0.0
        %4750 = vmatpush1.msra.mxu0 0.0
        %4751 = vmatprep.subr.mxu0 0.0
        %4752 = vmatpush1.msra.mxu0 0.0
        %4753 = vmatprep.subr.mxu0 0.0
        %4754 = vmatpush1.msra.mxu0 0.0
        %4755 = vmatprep.subr.mxu0 0.0
        %4756 = vmatpush1.msra.mxu0 0.0
        %4757 = vmatprep.subr.mxu0 0.0
        %4758 = vmatpush1.msra.mxu0 0.0
        %4759 = vmatprep.subr.mxu0 0.0
        %4760 = vmatpush1.msra.mxu0 0.0
        %4761 = vmatprep.subr.mxu0 0.0
        %4762 = vmatpush1.msra.mxu0 0.0
        %4763 = vmatprep.subr.mxu0 0.0
        %4764 = vmatpush1.msra.mxu0 0.0
        %4765 = vmatprep.subr.mxu0 0.0
        %4766 = vmatpush1.msra.mxu0 0.0
        %4767 = vmatprep.subr.mxu0 0.0
        %4768 = vmatpush1.msra.mxu0 0.0
        %4769 = vmatprep.subr.mxu0 0.0
        %4770 = vmatpush1.msra.mxu0 0.0
        %4771 = vmatprep.subr.mxu0 0.0
        %4772 = vmatpush1.msra.mxu0 0.0
        %4773 = vmatprep.subr.mxu0 0.0
        %4774 = vmatpush1.msra.mxu0 0.0
        %4775 = vmatprep.subr.mxu0 0.0
        %4776 = vmatpush1.msra.mxu0 0.0
        %4777 = vmatprep.subr.mxu0 0.0
        %4778 = vmatpush1.msra.mxu0 0.0
        %4779 = vmatprep.subr.mxu0 0.0
        %4780 = vmatpush1.msra.mxu0 0.0
        %4781 = vmatprep.subr.mxu0 0.0
        %4782 = vmatpush1.msra.mxu0 0.0
        %4783 = vmatprep.subr.mxu0 0.0
        %4784 = vmatpush1.msra.mxu0 0.0
        %4785 = vmatprep.mubr.f32.mxu0 0.0
        %4786 = vmatmul.mubr.f32.gmra.mrb[0].mxu0 %v4716
        %v4787 = vpop.f32.mrb[0].mxu0
        %v4788 = vadd.f32 0.0, %v4787
        %v4789 = vpop.f32.mrb[0].mxu0
        %4790 = vmatprep.mubr.f32.mxu0 0.0
        %4791 = vmatmul.mubr.f32.gmra.mrb[0].mxu0 %v4719
        %v4792 = vpop.f32.mrb[0].mxu0
        %v4793 = vadd.f32 0.0, %v4792
        %v4794 = vpop.f32.mrb[0].mxu0
        %4795 = vdwg.mxu0
        %4796 = vmatprep.subr.mxu0 0.0
        %4797 = vmatpush1.msra.mxu0 %v4709
        %4798 = vmatprep.subr.mxu0 0.0
        %4799 = vmatpush1.msra.mxu0 %v4710
        %4800 = vmatprep.subr.mxu0 0.0
        %4801 = vmatpush1.msra.mxu0 0.0
        %4802 = vmatprep.subr.mxu0 0.0
        %4803 = vmatpush1.msra.mxu0 0.0
        %4804 = vmatprep.subr.mxu0 0.0
        %4805 = vmatpush1.msra.mxu0 0.0
        %4806 = vmatprep.subr.mxu0 0.0
        %4807 = vmatpush1.msra.mxu0 0.0
        %4808 = vmatprep.subr.mxu0 0.0
        %4809 = vmatpush1.msra.mxu0 0.0
        %4810 = vmatprep.subr.mxu0 0.0
        %4811 = vmatpush1.msra.mxu0 0.0
        %4812 = vmatprep.subr.mxu0 0.0
        %4813 = vmatpush1.msra.mxu0 0.0
        %4814 = vmatprep.subr.mxu0 0.0
        %4815 = vmatpush1.msra.mxu0 0.0
        %4816 = vmatprep.subr.mxu0 0.0
        %4817 = vmatpush1.msra.mxu0 0.0
        %4818 = vmatprep.subr.mxu0 0.0
        %4819 = vmatpush1.msra.mxu0 0.0
        %4820 = vmatprep.subr.mxu0 0.0
        %4821 = vmatpush1.msra.mxu0 0.0
        %4822 = vmatprep.subr.mxu0 0.0
        %4823 = vmatpush1.msra.mxu0 0.0
        %4824 = vmatprep.subr.mxu0 0.0
        %4825 = vmatpush1.msra.mxu0 0.0
        %4826 = vmatprep.subr.mxu0 0.0
        %4827 = vmatpush1.msra.mxu0 0.0
        %4828 = vmatprep.subr.mxu0 0.0
        %4829 = vmatpush1.msra.mxu0 0.0
        %4830 = vmatprep.subr.mxu0 0.0
        %4831 = vmatpush1.msra.mxu0 0.0
        %4832 = vmatprep.subr.mxu0 0.0
        %4833 = vmatpush1.msra.mxu0 0.0
        %4834 = vmatprep.subr.mxu0 0.0
        %4835 = vmatpush1.msra.mxu0 0.0
        %4836 = vmatprep.subr.mxu0 0.0
        %4837 = vmatpush1.msra.mxu0 0.0
        %4838 = vmatprep.subr.mxu0 0.0
        %4839 = vmatpush1.msra.mxu0 0.0
        %4840 = vmatprep.subr.mxu0 0.0
        %4841 = vmatpush1.msra.mxu0 0.0
        %4842 = vmatprep.subr.mxu0 0.0
        %4843 = vmatpush1.msra.mxu0 0.0
        %4844 = vmatprep.subr.mxu0 0.0
        %4845 = vmatpush1.msra.mxu0 0.0
        %4846 = vmatprep.subr.mxu0 0.0
        %4847 = vmatpush1.msra.mxu0 0.0
        %4848 = vmatprep.subr.mxu0 0.0
        %4849 = vmatpush1.msra.mxu0 0.0
        %4850 = vmatprep.subr.mxu0 0.0
        %4851 = vmatpush1.msra.mxu0 0.0
        %4852 = vmatprep.subr.mxu0 0.0
        %4853 = vmatpush1.msra.mxu0 0.0
        %4854 = vmatprep.subr.mxu0 0.0
        %4855 = vmatpush1.msra.mxu0 0.0
        %4856 = vmatprep.subr.mxu0 0.0
        %4857 = vmatpush1.msra.mxu0 0.0
        %4858 = vmatprep.subr.mxu0 0.0
        %4859 = vmatpush1.msra.mxu0 0.0
        %4860 = vmatprep.mubr.f32.mxu0 0.0
        %4861 = vmatmul.mubr.f32.gmra.mrb[0].mxu0 %v4716
        %v4862 = vpop.f32.mrb[0].mxu0
        %v4863 = vadd.f32 0.0, %v4862
        %v4864 = vpop.f32.mrb[0].mxu0
        %4865 = vmatprep.mubr.f32.mxu0 0.0
        %4866 = vmatmul.mubr.f32.gmra.mrb[0].mxu0 %v4719
        %v4867 = vpop.f32.mrb[0].mxu0
        %v4868 = vadd.f32 0.0, %v4867
        %v4869 = vpop.f32.mrb[0].mxu0
        %4870 = vdwg.mxu0
        %4871 = vmatprep.subr.mxu0 0.0
        %4872 = vmatpush1.msra.mxu0 %v4711
        %4873 = vmatprep.subr.mxu0 0.0
        %4874 = vmatpush1.msra.mxu0 %v4712
        %4875 = vmatprep.subr.mxu0 0.0
        %4876 = vmatpush1.msra.mxu0 0.0
        %4877 = vmatprep.subr.mxu0 0.0
        %4878 = vmatpush1.msra.mxu0 0.0
        %4879 = vmatprep.subr.mxu0 0.0
        %4880 = vmatpush1.msra.mxu0 0.0
        %4881 = vmatprep.subr.mxu0 0.0
        %4882 = vmatpush1.msra.mxu0 0.0
        %4883 = vmatprep.subr.mxu0 0.0
        %4884 = vmatpush1.msra.mxu0 0.0
        %4885 = vmatprep.subr.mxu0 0.0
        %4886 = vmatpush1.msra.mxu0 0.0
        %4887 = vmatprep.subr.mxu0 0.0
        %4888 = vmatpush1.msra.mxu0 0.0
        %4889 = vmatprep.subr.mxu0 0.0
        %4890 = vmatpush1.msra.mxu0 0.0
        %4891 = vmatprep.subr.mxu0 0.0
        %4892 = vmatpush1.msra.mxu0 0.0
        %4893 = vmatprep.subr.mxu0 0.0
        %4894 = vmatpush1.msra.mxu0 0.0
        %4895 = vmatprep.subr.mxu0 0.0
        %4896 = vmatpush1.msra.mxu0 0.0
        %4897 = vmatprep.subr.mxu0 0.0
        %4898 = vmatpush1.msra.mxu0 0.0
        %4899 = vmatprep.subr.mxu0 0.0
        %4900 = vmatpush1.msra.mxu0 0.0
        %4901 = vmatprep.subr.mxu0 0.0
        %4902 = vmatpush1.msra.mxu0 0.0
        %4903 = vmatprep.subr.mxu0 0.0
        %4904 = vmatpush1.msra.mxu0 0.0
        %4905 = vmatprep.subr.mxu0 0.0
        %4906 = vmatpush1.msra.mxu0 0.0
        %4907 = vmatprep.subr.mxu0 0.0
        %4908 = vmatpush1.msra.mxu0 0.0
        %4909 = vmatprep.subr.mxu0 0.0
        %4910 = vmatpush1.msra.mxu0 0.0
        %4911 = vmatprep.subr.mxu0 0.0
        %4912 = vmatpush1.msra.mxu0 0.0
        %4913 = vmatprep.subr.mxu0 0.0
        %4914 = vmatpush1.msra.mxu0 0.0
        %4915 = vmatprep.subr.mxu0 0.0
        %4916 = vmatpush1.msra.mxu0 0.0
        %4917 = vmatprep.subr.mxu0 0.0
        %4918 = vmatpush1.msra.mxu0 0.0
        %4919 = vmatprep.subr.mxu0 0.0
        %4920 = vmatpush1.msra.mxu0 0.0
        %4921 = vmatprep.subr.mxu0 0.0
        %4922 = vmatpush1.msra.mxu0 0.0
        %4923 = vmatprep.subr.mxu0 0.0
        %4924 = vmatpush1.msra.mxu0 0.0
        %4925 = vmatprep.subr.mxu0 0.0
        %4926 = vmatpush1.msra.mxu0 0.0
        %4927 = vmatprep.subr.mxu0 0.0
        %4928 = vmatpush1.msra.mxu0 0.0
        %4929 = vmatprep.subr.mxu0 0.0
        %4930 = vmatpush1.msra.mxu0 0.0
        %4931 = vmatprep.subr.mxu0 0.0
        %4932 = vmatpush1.msra.mxu0 0.0
        %4933 = vmatprep.subr.mxu0 0.0
        %4934 = vmatpush1.msra.mxu0 0.0
        %4935 = vmatprep.mubr.f32.mxu0 0.0
        %4936 = vmatmul.mubr.f32.gmra.mrb[0].mxu0 %v4716
        %v4937 = vpop.f32.mrb[0].mxu0
        %v4938 = vadd.f32 0.0, %v4937
        %v4939 = vpop.f32.mrb[0].mxu0
        %4940 = vmatprep.mubr.f32.mxu0 0.0
        %4941 = vmatmul.mubr.f32.gmra.mrb[0].mxu0 %v4719
        %v4942 = vpop.f32.mrb[0].mxu0
        %v4943 = vadd.f32 0.0, %v4942
        %v4944 = vpop.f32.mrb[0].mxu0
        %4945 = vdwg.mxu0
        %4946 = vmatprep.subr.mxu0 0.0
        %4947 = vmatpush1.msra.mxu0 %v4713
        %4948 = vmatprep.subr.mxu0 0.0
        %4949 = vmatpush1.msra.mxu0 %v4714
        %4950 = vmatprep.subr.mxu0 0.0
        %4951 = vmatpush1.msra.mxu0 0.0
        %4952 = vmatprep.subr.mxu0 0.0
        %4953 = vmatpush1.msra.mxu0 0.0
        %4954 = vmatprep.subr.mxu0 0.0
        %4955 = vmatpush1.msra.mxu0 0.0
        %4956 = vmatprep.subr.mxu0 0.0
        %4957 = vmatpush1.msra.mxu0 0.0
        %4958 = vmatprep.subr.mxu0 0.0
        %4959 = vmatpush1.msra.mxu0 0.0
        %4960 = vmatprep.subr.mxu0 0.0
        %4961 = vmatpush1.msra.mxu0 0.0
        %4962 = vmatprep.subr.mxu0 0.0
        %4963 = vmatpush1.msra.mxu0 0.0
        %4964 = vmatprep.subr.mxu0 0.0
        %4965 = vmatpush1.msra.mxu0 0.0
        %4966 = vmatprep.subr.mxu0 0.0
        %4967 = vmatpush1.msra.mxu0 0.0
        %4968 = vmatprep.subr.mxu0 0.0
        %4969 = vmatpush1.msra.mxu0 0.0
        %4970 = vmatprep.subr.mxu0 0.0
        %4971 = vmatpush1.msra.mxu0 0.0
        %4972 = vmatprep.subr.mxu0 0.0
        %4973 = vmatpush1.msra.mxu0 0.0
        %4974 = vmatprep.subr.mxu0 0.0
        %4975 = vmatpush1.msra.mxu0 0.0
        %4976 = vmatprep.subr.mxu0 0.0
        %4977 = vmatpush1.msra.mxu0 0.0
        %4978 = vmatprep.subr.mxu0 0.0
        %4979 = vmatpush1.msra.mxu0 0.0
        %4980 = vmatprep.subr.mxu0 0.0
        %4981 = vmatpush1.msra.mxu0 0.0
        %4982 = vmatprep.subr.mxu0 0.0
        %4983 = vmatpush1.msra.mxu0 0.0
        %4984 = vmatprep.subr.mxu0 0.0
        %4985 = vmatpush1.msra.mxu0 0.0
        %4986 = vmatprep.subr.mxu0 0.0
        %4987 = vmatpush1.msra.mxu0 0.0
        %4988 = vmatprep.subr.mxu0 0.0
        %4989 = vmatpush1.msra.mxu0 0.0
        %4990 = vmatprep.subr.mxu0 0.0
        %4991 = vmatpush1.msra.mxu0 0.0
        %4992 = vmatprep.subr.mxu0 0.0
        %4993 = vmatpush1.msra.mxu0 0.0
        %4994 = vmatprep.subr.mxu0 0.0
        %4995 = vmatpush1.msra.mxu0 0.0
        %4996 = vmatprep.subr.mxu0 0.0
        %4997 = vmatpush1.msra.mxu0 0.0
        %4998 = vmatprep.subr.mxu0 0.0
        %4999 = vmatpush1.msra.mxu0 0.0
        %5000 = vmatprep.subr.mxu0 0.0
        %5001 = vmatpush1.msra.mxu0 0.0
        %5002 = vmatprep.subr.mxu0 0.0
        %5003 = vmatpush1.msra.mxu0 0.0
        %5004 = vmatprep.subr.mxu0 0.0
        %5005 = vmatpush1.msra.mxu0 0.0
        %5006 = vmatprep.subr.mxu0 0.0
        %5007 = vmatpush1.msra.mxu0 0.0
        %5008 = vmatprep.subr.mxu0 0.0
        %5009 = vmatpush1.msra.mxu0 0.0
        %5010 = vmatprep.mubr.f32.mxu0 0.0
        %5011 = vmatmul.mubr.f32.gmra.mrb[0].mxu0 %v4716
        %v5012 = vpop.f32.mrb[0].mxu0
        %v5013 = vadd.f32 0.0, %v5012
        %v5014 = vpop.f32.mrb[0].mxu0
        %5015 = vmatprep.mubr.f32.mxu0 0.0
        %5016 = vmatmul.mubr.f32.gmra.mrb[0].mxu0 %v4719
        %v5017 = vpop.f32.mrb[0].mxu0
        %v5018 = vadd.f32 0.0, %v5017
        %v5019 = vpop.f32.mrb[0].mxu0
        %5020 = vdwg.mxu0
        %v5021 = vsub.f32 %v4160, %v4788
        %v5022 = vsub.f32 %v4165, %v4793
        %v5023 = vsub.f32 %v4235, %v4863
        %v5024 = vsub.f32 %v4240, %v4868
        %v5025 = vsub.f32 %v4310, %v4938
        %v5026 = vsub.f32 %v4315, %v4943
        %v5027 = vsub.f32 %v4385, %v5013
        %v5028 = vsub.f32 %v4390, %v5018
        %v5029 = vadd.f32 %v4160, %v4474
        %v5030 = vadd.f32 %v4165, %v4479
        %v5031 = vadd.f32 %v4235, %v4549
        %v5032 = vadd.f32 %v4240, %v4554
        %v5033 = vadd.f32 %v4310, %v4624
        %v5034 = vadd.f32 %v4315, %v4629
        %v5035 = vadd.f32 %v4385, %v4699
        %v5036 = vadd.f32 %v4390, %v4704
        %v5037 = vmul.f32 %v5021, %v3612
        %v5038 = vmul.f32 %v5022, %v3613
        %v5039 = vmul.f32 %v5023, %v3612
        %v5040 = vmul.f32 %v5024, %v3613
        %v5041 = vmul.f32 %v5025, %v3612
        %v5042 = vmul.f32 %v5026, %v3613
        %v5043 = vmul.f32 %v5027, %v3612
        %v5044 = vmul.f32 %v5028, %v3613
        %v5045 = vmul.f32 %v5029, %v3612
        %v5046 = vmul.f32 %v5030, %v3613
        %v5047 = vmul.f32 %v5031, %v3612
        %v5048 = vmul.f32 %v5032, %v3613
        %v5049 = vmul.f32 %v5033, %v3612
        %v5050 = vmul.f32 %v5034, %v3613
        %v5051 = vmul.f32 %v5035, %v3612
        %v5052 = vmul.f32 %v5036, %v3613
        %v5053 = vsub.f32 0.0, %v3620
        %v5054 = vsub.f32 0.0, %v3621
        %v5055 = vadd.f32 %v5037, %v5045
        %v5056 = vadd.f32 %v5038, %v5046
        %v5057 = vadd.f32 %v5039, %v5047
        %v5058 = vadd.f32 %v5040, %v5048
        %v5059 = vadd.f32 %v5041, %v5049
        %v5060 = vadd.f32 %v5042, %v5050
        %v5061 = vadd.f32 %v5043, %v5051
        %v5062 = vadd.f32 %v5044, %v5052
        %v5064 = vsel %vm950, %v5055, 0
        %v5067 = vsel %vm950, %v5056, 0
        %v5070 = vsel %vm950, %v5057, 0
        %v5073 = vsel %vm950, %v5058, 0
        %v5076 = vsel %vm950, %v5059, 0
        %v5079 = vsel %vm950, %v5060, 0
        %v5082 = vsel %vm950, %v5061, 0
        %v5085 = vsel %vm950, %v5062, 0
        %5087 = vmatprep.subr.mxu0 0.0
        %5088 = vmatpush1.msra.mxu0 %v3618
        %5089 = vmatprep.subr.mxu0 0.0
        %5090 = vmatpush1.msra.mxu0 %v3619
        %5091 = vmatprep.subr.mxu0 0.0
        %5092 = vmatpush1.msra.mxu0 0.0
        %5093 = vmatprep.subr.mxu0 0.0
        %5094 = vmatpush1.msra.mxu0 0.0
        %5095 = vmatprep.subr.mxu0 0.0
        %5096 = vmatpush1.msra.mxu0 0.0
        %5097 = vmatprep.subr.mxu0 0.0
        %5098 = vmatpush1.msra.mxu0 0.0
        %5099 = vmatprep.subr.mxu0 0.0
        %5100 = vmatpush1.msra.mxu0 0.0
        %5101 = vmatprep.subr.mxu0 0.0
        %5102 = vmatpush1.msra.mxu0 0.0
        %5103 = vmatprep.subr.mxu0 0.0
        %5104 = vmatpush1.msra.mxu0 0.0
        %5105 = vmatprep.subr.mxu0 0.0
        %5106 = vmatpush1.msra.mxu0 0.0
        %5107 = vmatprep.subr.mxu0 0.0
        %5108 = vmatpush1.msra.mxu0 0.0
        %5109 = vmatprep.subr.mxu0 0.0
        %5110 = vmatpush1.msra.mxu0 0.0
        %5111 = vmatprep.subr.mxu0 0.0
        %5112 = vmatpush1.msra.mxu0 0.0
        %5113 = vmatprep.subr.mxu0 0.0
        %5114 = vmatpush1.msra.mxu0 0.0
        %5115 = vmatprep.subr.mxu0 0.0
        %5116 = vmatpush1.msra.mxu0 0.0
        %5117 = vmatprep.subr.mxu0 0.0
        %5118 = vmatpush1.msra.mxu0 0.0
        %5119 = vmatprep.subr.mxu0 0.0
        %5120 = vmatpush1.msra.mxu0 0.0
        %5121 = vmatprep.subr.mxu0 0.0
        %5122 = vmatpush1.msra.mxu0 0.0
        %5123 = vmatprep.subr.mxu0 0.0
        %5124 = vmatpush1.msra.mxu0 0.0
        %5125 = vmatprep.subr.mxu0 0.0
        %5126 = vmatpush1.msra.mxu0 0.0
        %5127 = vmatprep.subr.mxu0 0.0
        %5128 = vmatpush1.msra.mxu0 0.0
        %5129 = vmatprep.subr.mxu0 0.0
        %5130 = vmatpush1.msra.mxu0 0.0
        %5131 = vmatprep.subr.mxu0 0.0
        %5132 = vmatpush1.msra.mxu0 0.0
        %5133 = vmatprep.subr.mxu0 0.0
        %5134 = vmatpush1.msra.mxu0 0.0
        %5135 = vmatprep.subr.mxu0 0.0
        %5136 = vmatpush1.msra.mxu0 0.0
        %5137 = vmatprep.subr.mxu0 0.0
        %5138 = vmatpush1.msra.mxu0 0.0
        %5139 = vmatprep.subr.mxu0 0.0
        %5140 = vmatpush1.msra.mxu0 0.0
        %5141 = vmatprep.subr.mxu0 0.0
        %5142 = vmatpush1.msra.mxu0 0.0
        %5143 = vmatprep.subr.mxu0 0.0
        %5144 = vmatpush1.msra.mxu0 0.0
        %5145 = vmatprep.subr.mxu0 0.0
        %5146 = vmatpush1.msra.mxu0 0.0
        %5147 = vmatprep.subr.mxu0 0.0
        %5148 = vmatpush1.msra.mxu0 0.0
        %5149 = vmatprep.subr.mxu0 0.0
        %5150 = vmatpush1.msra.mxu0 0.0
        %5151 = vmatprep.mubr.f32.mxu0 0.0
        %5152 = vmatmul.mubr.f32.gmra.mrb[0].mxu0 %v5064
        %v5153 = vpop.f32.mrb[0].mxu0
        %v5154 = vadd.f32 0.0, %v5153
        %v5155 = vpop.f32.mrb[0].mxu0
        %5156 = vmatprep.mubr.f32.mxu0 0.0
        %5157 = vmatmul.mubr.f32.gmra.mrb[0].mxu0 %v5067
        %v5158 = vpop.f32.mrb[0].mxu0
        %v5159 = vadd.f32 0.0, %v5158
        %v5160 = vpop.f32.mrb[0].mxu0
        %5161 = vmatprep.mubr.f32.mxu0 0.0
        %5162 = vmatmul.mubr.f32.gmra.mrb[0].mxu0 %v5070
        %v5163 = vpop.f32.mrb[0].mxu0
        %v5164 = vadd.f32 0.0, %v5163
        %v5165 = vpop.f32.mrb[0].mxu0
        %5166 = vmatprep.mubr.f32.mxu0 0.0
        %5167 = vmatmul.mubr.f32.gmra.mrb[0].mxu0 %v5073
        %v5168 = vpop.f32.mrb[0].mxu0
        %v5169 = vadd.f32 0.0, %v5168
        %v5170 = vpop.f32.mrb[0].mxu0
        %5171 = vmatprep.mubr.f32.mxu0 0.0
        %5172 = vmatmul.mubr.f32.gmra.mrb[0].mxu0 %v5076
        %v5173 = vpop.f32.mrb[0].mxu0
        %v5174 = vadd.f32 0.0, %v5173
        %v5175 = vpop.f32.mrb[0].mxu0
        %5176 = vmatprep.mubr.f32.mxu0 0.0
        %5177 = vmatmul.mubr.f32.gmra.mrb[0].mxu0 %v5079
        %v5178 = vpop.f32.mrb[0].mxu0
        %v5179 = vadd.f32 0.0, %v5178
        %v5180 = vpop.f32.mrb[0].mxu0
        %5181 = vmatprep.mubr.f32.mxu0 0.0
        %5182 = vmatmul.mubr.f32.gmra.mrb[0].mxu0 %v5082
        %v5183 = vpop.f32.mrb[0].mxu0
        %v5184 = vadd.f32 0.0, %v5183
        %v5185 = vpop.f32.mrb[0].mxu0
        %5186 = vmatprep.mubr.f32.mxu0 0.0
        %5187 = vmatmul.mubr.f32.gmra.mrb[0].mxu0 %v5085
        %v5188 = vpop.f32.mrb[0].mxu0
        %v5189 = vadd.f32 0.0, %v5188
        %v5190 = vpop.f32.mrb[0].mxu0
        %5191 = vdwg.mxu0
        %v5192 = vsub.f32 %v5053, %v3618
        %v5193 = vsub.f32 %v5054, %v3619
        %v5195 = vsel %vm950, %v5037, 0
        %v5198 = vsel %vm950, %v5038, 0
        %v5201 = vsel %vm950, %v5039, 0
        %v5204 = vsel %vm950, %v5040, 0
        %v5207 = vsel %vm950, %v5041, 0
        %v5210 = vsel %vm950, %v5042, 0
        %v5213 = vsel %vm950, %v5043, 0
        %v5216 = vsel %vm950, %v5044, 0
        %5218 = vmatprep.subr.mxu0 0.0
        %5219 = vmatpush1.msra.mxu0 %v5192
        %5220 = vmatprep.subr.mxu0 0.0
        %5221 = vmatpush1.msra.mxu0 %v5193
        %5222 = vmatprep.subr.mxu0 0.0
        %5223 = vmatpush1.msra.mxu0 0.0
        %5224 = vmatprep.subr.mxu0 0.0
        %5225 = vmatpush1.msra.mxu0 0.0
        %5226 = vmatprep.subr.mxu0 0.0
        %5227 = vmatpush1.msra.mxu0 0.0
        %5228 = vmatprep.subr.mxu0 0.0
        %5229 = vmatpush1.msra.mxu0 0.0
        %5230 = vmatprep.subr.mxu0 0.0
        %5231 = vmatpush1.msra.mxu0 0.0
        %5232 = vmatprep.subr.mxu0 0.0
        %5233 = vmatpush1.msra.mxu0 0.0
        %5234 = vmatprep.subr.mxu0 0.0
        %5235 = vmatpush1.msra.mxu0 0.0
        %5236 = vmatprep.subr.mxu0 0.0
        %5237 = vmatpush1.msra.mxu0 0.0
        %5238 = vmatprep.subr.mxu0 0.0
        %5239 = vmatpush1.msra.mxu0 0.0
        %5240 = vmatprep.subr.mxu0 0.0
        %5241 = vmatpush1.msra.mxu0 0.0
        %5242 = vmatprep.subr.mxu0 0.0
        %5243 = vmatpush1.msra.mxu0 0.0
        %5244 = vmatprep.subr.mxu0 0.0
        %5245 = vmatpush1.msra.mxu0 0.0
        %5246 = vmatprep.subr.mxu0 0.0
        %5247 = vmatpush1.msra.mxu0 0.0
        %5248 = vmatprep.subr.mxu0 0.0
        %5249 = vmatpush1.msra.mxu0 0.0
        %5250 = vmatprep.subr.mxu0 0.0
        %5251 = vmatpush1.msra.mxu0 0.0
        %5252 = vmatprep.subr.mxu0 0.0
        %5253 = vmatpush1.msra.mxu0 0.0
        %5254 = vmatprep.subr.mxu0 0.0
        %5255 = vmatpush1.msra.mxu0 0.0
        %5256 = vmatprep.subr.mxu0 0.0
        %5257 = vmatpush1.msra.mxu0 0.0
        %5258 = vmatprep.subr.mxu0 0.0
        %5259 = vmatpush1.msra.mxu0 0.0
        %5260 = vmatprep.subr.mxu0 0.0
        %5261 = vmatpush1.msra.mxu0 0.0
        %5262 = vmatprep.subr.mxu0 0.0
        %5263 = vmatpush1.msra.mxu0 0.0
        %5264 = vmatprep.subr.mxu0 0.0
        %5265 = vmatpush1.msra.mxu0 0.0
        %5266 = vmatprep.subr.mxu0 0.0
        %5267 = vmatpush1.msra.mxu0 0.0
        %5268 = vmatprep.subr.mxu0 0.0
        %5269 = vmatpush1.msra.mxu0 0.0
        %5270 = vmatprep.subr.mxu0 0.0
        %5271 = vmatpush1.msra.mxu0 0.0
        %5272 = vmatprep.subr.mxu0 0.0
        %5273 = vmatpush1.msra.mxu0 0.0
        %5274 = vmatprep.subr.mxu0 0.0
        %5275 = vmatpush1.msra.mxu0 0.0
        %5276 = vmatprep.subr.mxu0 0.0
        %5277 = vmatpush1.msra.mxu0 0.0
        %5278 = vmatprep.subr.mxu0 0.0
        %5279 = vmatpush1.msra.mxu0 0.0
        %5280 = vmatprep.subr.mxu0 0.0
        %5281 = vmatpush1.msra.mxu0 0.0
        %5282 = vmatprep.mubr.f32.mxu0 0.0
        %5283 = vmatmul.mubr.f32.gmra.mrb[0].mxu0 %v5195
        %v5284 = vpop.f32.mrb[0].mxu0
        %v5285 = vadd.f32 0.0, %v5284
        %v5286 = vpop.f32.mrb[0].mxu0
        %5287 = vmatprep.mubr.f32.mxu0 0.0
        %5288 = vmatmul.mubr.f32.gmra.mrb[0].mxu0 %v5198
        %v5289 = vpop.f32.mrb[0].mxu0
        %v5290 = vadd.f32 0.0, %v5289
        %v5291 = vpop.f32.mrb[0].mxu0
        %5292 = vmatprep.mubr.f32.mxu0 0.0
        %5293 = vmatmul.mubr.f32.gmra.mrb[0].mxu0 %v5201
        %v5294 = vpop.f32.mrb[0].mxu0
        %v5295 = vadd.f32 0.0, %v5294
        %v5296 = vpop.f32.mrb[0].mxu0
        %5297 = vmatprep.mubr.f32.mxu0 0.0
        %5298 = vmatmul.mubr.f32.gmra.mrb[0].mxu0 %v5204
        %v5299 = vpop.f32.mrb[0].mxu0
        %v5300 = vadd.f32 0.0, %v5299
        %v5301 = vpop.f32.mrb[0].mxu0
        %5302 = vmatprep.mubr.f32.mxu0 0.0
        %5303 = vmatmul.mubr.f32.gmra.mrb[0].mxu0 %v5207
        %v5304 = vpop.f32.mrb[0].mxu0
        %v5305 = vadd.f32 0.0, %v5304
        %v5306 = vpop.f32.mrb[0].mxu0
        %5307 = vmatprep.mubr.f32.mxu0 0.0
        %5308 = vmatmul.mubr.f32.gmra.mrb[0].mxu0 %v5210
        %v5309 = vpop.f32.mrb[0].mxu0
        %v5310 = vadd.f32 0.0, %v5309
        %v5311 = vpop.f32.mrb[0].mxu0
        %5312 = vmatprep.mubr.f32.mxu0 0.0
        %5313 = vmatmul.mubr.f32.gmra.mrb[0].mxu0 %v5213
        %v5314 = vpop.f32.mrb[0].mxu0
        %v5315 = vadd.f32 0.0, %v5314
        %v5316 = vpop.f32.mrb[0].mxu0
        %5317 = vmatprep.mubr.f32.mxu0 0.0
        %5318 = vmatmul.mubr.f32.gmra.mrb[0].mxu0 %v5216
        %v5319 = vpop.f32.mrb[0].mxu0
        %v5320 = vadd.f32 0.0, %v5319
        %v5321 = vpop.f32.mrb[0].mxu0
        %5322 = vdwg.mxu0
        %v5323 = vadd.f32 %v3618, %v5053
        %v5324 = vadd.f32 %v3619, %v5054
        %v5326 = vsel %vm950, %v5045, 0
        %v5329 = vsel %vm950, %v5046, 0
        %v5332 = vsel %vm950, %v5047, 0
        %v5335 = vsel %vm950, %v5048, 0
        %v5338 = vsel %vm950, %v5049, 0
        %v5341 = vsel %vm950, %v5050, 0
        %v5344 = vsel %vm950, %v5051, 0
        %v5347 = vsel %vm950, %v5052, 0
        %5349 = vmatprep.subr.mxu0 0.0
        %5350 = vmatpush1.msra.mxu0 %v5323
        %5351 = vmatprep.subr.mxu0 0.0
        %5352 = vmatpush1.msra.mxu0 %v5324
        %5353 = vmatprep.subr.mxu0 0.0
        %5354 = vmatpush1.msra.mxu0 0.0
        %5355 = vmatprep.subr.mxu0 0.0
        %5356 = vmatpush1.msra.mxu0 0.0
        %5357 = vmatprep.subr.mxu0 0.0
        %5358 = vmatpush1.msra.mxu0 0.0
        %5359 = vmatprep.subr.mxu0 0.0
        %5360 = vmatpush1.msra.mxu0 0.0
        %5361 = vmatprep.subr.mxu0 0.0
        %5362 = vmatpush1.msra.mxu0 0.0
        %5363 = vmatprep.subr.mxu0 0.0
        %5364 = vmatpush1.msra.mxu0 0.0
        %5365 = vmatprep.subr.mxu0 0.0
        %5366 = vmatpush1.msra.mxu0 0.0
        %5367 = vmatprep.subr.mxu0 0.0
        %5368 = vmatpush1.msra.mxu0 0.0
        %5369 = vmatprep.subr.mxu0 0.0
        %5370 = vmatpush1.msra.mxu0 0.0
        %5371 = vmatprep.subr.mxu0 0.0
        %5372 = vmatpush1.msra.mxu0 0.0
        %5373 = vmatprep.subr.mxu0 0.0
        %5374 = vmatpush1.msra.mxu0 0.0
        %5375 = vmatprep.subr.mxu0 0.0
        %5376 = vmatpush1.msra.mxu0 0.0
        %5377 = vmatprep.subr.mxu0 0.0
        %5378 = vmatpush1.msra.mxu0 0.0
        %5379 = vmatprep.subr.mxu0 0.0
        %5380 = vmatpush1.msra.mxu0 0.0
        %5381 = vmatprep.subr.mxu0 0.0
        %5382 = vmatpush1.msra.mxu0 0.0
        %5383 = vmatprep.subr.mxu0 0.0
        %5384 = vmatpush1.msra.mxu0 0.0
        %5385 = vmatprep.subr.mxu0 0.0
        %5386 = vmatpush1.msra.mxu0 0.0
        %5387 = vmatprep.subr.mxu0 0.0
        %5388 = vmatpush1.msra.mxu0 0.0
        %5389 = vmatprep.subr.mxu0 0.0
        %5390 = vmatpush1.msra.mxu0 0.0
        %5391 = vmatprep.subr.mxu0 0.0
        %5392 = vmatpush1.msra.mxu0 0.0
        %5393 = vmatprep.subr.mxu0 0.0
        %5394 = vmatpush1.msra.mxu0 0.0
        %5395 = vmatprep.subr.mxu0 0.0
        %5396 = vmatpush1.msra.mxu0 0.0
        %5397 = vmatprep.subr.mxu0 0.0
        %5398 = vmatpush1.msra.mxu0 0.0
        %5399 = vmatprep.subr.mxu0 0.0
        %5400 = vmatpush1.msra.mxu0 0.0
        %5401 = vmatprep.subr.mxu0 0.0
        %5402 = vmatpush1.msra.mxu0 0.0
        %5403 = vmatprep.subr.mxu0 0.0
        %5404 = vmatpush1.msra.mxu0 0.0
        %5405 = vmatprep.subr.mxu0 0.0
        %5406 = vmatpush1.msra.mxu0 0.0
        %5407 = vmatprep.subr.mxu0 0.0
        %5408 = vmatpush1.msra.mxu0 0.0
        %5409 = vmatprep.subr.mxu0 0.0
        %5410 = vmatpush1.msra.mxu0 0.0
        %5411 = vmatprep.subr.mxu0 0.0
        %5412 = vmatpush1.msra.mxu0 0.0
        %5413 = vmatprep.mubr.f32.mxu0 0.0
        %5414 = vmatmul.mubr.f32.gmra.mrb[0].mxu0 %v5326
        %v5415 = vpop.f32.mrb[0].mxu0
        %v5416 = vadd.f32 0.0, %v5415
        %v5417 = vpop.f32.mrb[0].mxu0
        %5418 = vmatprep.mubr.f32.mxu0 0.0
        %5419 = vmatmul.mubr.f32.gmra.mrb[0].mxu0 %v5329
        %v5420 = vpop.f32.mrb[0].mxu0
        %v5421 = vadd.f32 0.0, %v5420
        %v5422 = vpop.f32.mrb[0].mxu0
        %5423 = vmatprep.mubr.f32.mxu0 0.0
        %5424 = vmatmul.mubr.f32.gmra.mrb[0].mxu0 %v5332
        %v5425 = vpop.f32.mrb[0].mxu0
        %v5426 = vadd.f32 0.0, %v5425
        %v5427 = vpop.f32.mrb[0].mxu0
        %5428 = vmatprep.mubr.f32.mxu0 0.0
        %5429 = vmatmul.mubr.f32.gmra.mrb[0].mxu0 %v5335
        %v5430 = vpop.f32.mrb[0].mxu0
        %v5431 = vadd.f32 0.0, %v5430
        %v5432 = vpop.f32.mrb[0].mxu0
        %5433 = vmatprep.mubr.f32.mxu0 0.0
        %5434 = vmatmul.mubr.f32.gmra.mrb[0].mxu0 %v5338
        %v5435 = vpop.f32.mrb[0].mxu0
        %v5436 = vadd.f32 0.0, %v5435
        %v5437 = vpop.f32.mrb[0].mxu0
        %5438 = vmatprep.mubr.f32.mxu0 0.0
        %5439 = vmatmul.mubr.f32.gmra.mrb[0].mxu0 %v5341
        %v5440 = vpop.f32.mrb[0].mxu0
        %v5441 = vadd.f32 0.0, %v5440
        %v5442 = vpop.f32.mrb[0].mxu0
        %5443 = vmatprep.mubr.f32.mxu0 0.0
        %5444 = vmatmul.mubr.f32.gmra.mrb[0].mxu0 %v5344
        %v5445 = vpop.f32.mrb[0].mxu0
        %v5446 = vadd.f32 0.0, %v5445
        %v5447 = vpop.f32.mrb[0].mxu0
        %5448 = vmatprep.mubr.f32.mxu0 0.0
        %5449 = vmatmul.mubr.f32.gmra.mrb[0].mxu0 %v5347
        %v5450 = vpop.f32.mrb[0].mxu0
        %v5451 = vadd.f32 0.0, %v5450
        %v5452 = vpop.f32.mrb[0].mxu0
        %5453 = vdwg.mxu0
        %v5454 = vsub.f32 %v5154, %v5416
        %v5455 = vsub.f32 %v5159, %v5421
        %v5456 = vsub.f32 %v5164, %v5426
        %v5457 = vsub.f32 %v5169, %v5431
        %v5458 = vsub.f32 %v5174, %v5436
        %v5459 = vsub.f32 %v5179, %v5441
        %v5460 = vsub.f32 %v5184, %v5446
        %v5461 = vsub.f32 %v5189, %v5451
        %v5462 = vadd.f32 %v5154, %v5285
        %v5463 = vadd.f32 %v5159, %v5290
        %v5464 = vadd.f32 %v5164, %v5295
        %v5465 = vadd.f32 %v5169, %v5300
        %v5466 = vadd.f32 %v5174, %v5305
        %v5467 = vadd.f32 %v5179, %v5310
        %v5468 = vadd.f32 %v5184, %v5315
        %v5469 = vadd.f32 %v5189, %v5320
        %v5470 = vsub.f32 0.0, %v3616
        %v5471 = vsub.f32 0.0, %v3617
        %v5472 = vadd.f32 %v3614, %v5470
        %v5473 = vadd.f32 %v3615, %v5471
        %v5475 = vsel %vm950, %v5472, 0
        %v5478 = vsel %vm950, %v5473, 0
        %5480 = vmatprep.subr.mxu0 0.0
        %5481 = vmatpush1.msra.mxu0 %v5454
        %5482 = vmatprep.subr.mxu0 0.0
        %5483 = vmatpush1.msra.mxu0 %v5455
        %5484 = vmatprep.subr.mxu0 0.0
        %5485 = vmatpush1.msra.mxu0 0.0
        %5486 = vmatprep.subr.mxu0 0.0
        %5487 = vmatpush1.msra.mxu0 0.0
        %5488 = vmatprep.subr.mxu0 0.0
        %5489 = vmatpush1.msra.mxu0 0.0
        %5490 = vmatprep.subr.mxu0 0.0
        %5491 = vmatpush1.msra.mxu0 0.0
        %5492 = vmatprep.subr.mxu0 0.0
        %5493 = vmatpush1.msra.mxu0 0.0
        %5494 = vmatprep.subr.mxu0 0.0
        %5495 = vmatpush1.msra.mxu0 0.0
        %5496 = vmatprep.subr.mxu0 0.0
        %5497 = vmatpush1.msra.mxu0 0.0
        %5498 = vmatprep.subr.mxu0 0.0
        %5499 = vmatpush1.msra.mxu0 0.0
        %5500 = vmatprep.subr.mxu0 0.0
        %5501 = vmatpush1.msra.mxu0 0.0
        %5502 = vmatprep.subr.mxu0 0.0
        %5503 = vmatpush1.msra.mxu0 0.0
        %5504 = vmatprep.subr.mxu0 0.0
        %5505 = vmatpush1.msra.mxu0 0.0
        %5506 = vmatprep.subr.mxu0 0.0
        %5507 = vmatpush1.msra.mxu0 0.0
        %5508 = vmatprep.subr.mxu0 0.0
        %5509 = vmatpush1.msra.mxu0 0.0
        %5510 = vmatprep.subr.mxu0 0.0
        %5511 = vmatpush1.msra.mxu0 0.0
        %5512 = vmatprep.subr.mxu0 0.0
        %5513 = vmatpush1.msra.mxu0 0.0
        %5514 = vmatprep.subr.mxu0 0.0
        %5515 = vmatpush1.msra.mxu0 0.0
        %5516 = vmatprep.subr.mxu0 0.0
        %5517 = vmatpush1.msra.mxu0 0.0
        %5518 = vmatprep.subr.mxu0 0.0
        %5519 = vmatpush1.msra.mxu0 0.0
        %5520 = vmatprep.subr.mxu0 0.0
        %5521 = vmatpush1.msra.mxu0 0.0
        %5522 = vmatprep.subr.mxu0 0.0
        %5523 = vmatpush1.msra.mxu0 0.0
        %5524 = vmatprep.subr.mxu0 0.0
        %5525 = vmatpush1.msra.mxu0 0.0
        %5526 = vmatprep.subr.mxu0 0.0
        %5527 = vmatpush1.msra.mxu0 0.0
        %5528 = vmatprep.subr.mxu0 0.0
        %5529 = vmatpush1.msra.mxu0 0.0
        %5530 = vmatprep.subr.mxu0 0.0
        %5531 = vmatpush1.msra.mxu0 0.0
        %5532 = vmatprep.subr.mxu0 0.0
        %5533 = vmatpush1.msra.mxu0 0.0
        %5534 = vmatprep.subr.mxu0 0.0
        %5535 = vmatpush1.msra.mxu0 0.0
        %5536 = vmatprep.subr.mxu0 0.0
        %5537 = vmatpush1.msra.mxu0 0.0
        %5538 = vmatprep.subr.mxu0 0.0
        %5539 = vmatpush1.msra.mxu0 0.0
        %5540 = vmatprep.subr.mxu0 0.0
        %5541 = vmatpush1.msra.mxu0 0.0
        %5542 = vmatprep.subr.mxu0 0.0
        %5543 = vmatpush1.msra.mxu0 0.0
        %5544 = vmatprep.mubr.f32.mxu0 0.0
        %5545 = vmatmul.mubr.f32.gmra.mrb[0].mxu0 %v5475
        %v5546 = vpop.f32.mrb[0].mxu0
        %v5547 = vadd.f32 0.0, %v5546
        %v5548 = vpop.f32.mrb[0].mxu0
        %5549 = vmatprep.mubr.f32.mxu0 0.0
        %5550 = vmatmul.mubr.f32.gmra.mrb[0].mxu0 %v5478
        %v5551 = vpop.f32.mrb[0].mxu0
        %v5552 = vadd.f32 0.0, %v5551
        %v5553 = vpop.f32.mrb[0].mxu0
        %5554 = vdwg.mxu0
        %5555 = vmatprep.subr.mxu0 0.0
        %5556 = vmatpush1.msra.mxu0 %v5456
        %5557 = vmatprep.subr.mxu0 0.0
        %5558 = vmatpush1.msra.mxu0 %v5457
        %5559 = vmatprep.subr.mxu0 0.0
        %5560 = vmatpush1.msra.mxu0 0.0
        %5561 = vmatprep.subr.mxu0 0.0
        %5562 = vmatpush1.msra.mxu0 0.0
        %5563 = vmatprep.subr.mxu0 0.0
        %5564 = vmatpush1.msra.mxu0 0.0
        %5565 = vmatprep.subr.mxu0 0.0
        %5566 = vmatpush1.msra.mxu0 0.0
        %5567 = vmatprep.subr.mxu0 0.0
        %5568 = vmatpush1.msra.mxu0 0.0
        %5569 = vmatprep.subr.mxu0 0.0
        %5570 = vmatpush1.msra.mxu0 0.0
        %5571 = vmatprep.subr.mxu0 0.0
        %5572 = vmatpush1.msra.mxu0 0.0
        %5573 = vmatprep.subr.mxu0 0.0
        %5574 = vmatpush1.msra.mxu0 0.0
        %5575 = vmatprep.subr.mxu0 0.0
        %5576 = vmatpush1.msra.mxu0 0.0
        %5577 = vmatprep.subr.mxu0 0.0
        %5578 = vmatpush1.msra.mxu0 0.0
        %5579 = vmatprep.subr.mxu0 0.0
        %5580 = vmatpush1.msra.mxu0 0.0
        %5581 = vmatprep.subr.mxu0 0.0
        %5582 = vmatpush1.msra.mxu0 0.0
        %5583 = vmatprep.subr.mxu0 0.0
        %5584 = vmatpush1.msra.mxu0 0.0
        %5585 = vmatprep.subr.mxu0 0.0
        %5586 = vmatpush1.msra.mxu0 0.0
        %5587 = vmatprep.subr.mxu0 0.0
        %5588 = vmatpush1.msra.mxu0 0.0
        %5589 = vmatprep.subr.mxu0 0.0
        %5590 = vmatpush1.msra.mxu0 0.0
        %5591 = vmatprep.subr.mxu0 0.0
        %5592 = vmatpush1.msra.mxu0 0.0
        %5593 = vmatprep.subr.mxu0 0.0
        %5594 = vmatpush1.msra.mxu0 0.0
        %5595 = vmatprep.subr.mxu0 0.0
        %5596 = vmatpush1.msra.mxu0 0.0
        %5597 = vmatprep.subr.mxu0 0.0
        %5598 = vmatpush1.msra.mxu0 0.0
        %5599 = vmatprep.subr.mxu0 0.0
        %5600 = vmatpush1.msra.mxu0 0.0
        %5601 = vmatprep.subr.mxu0 0.0
        %5602 = vmatpush1.msra.mxu0 0.0
        %5603 = vmatprep.subr.mxu0 0.0
        %5604 = vmatpush1.msra.mxu0 0.0
        %5605 = vmatprep.subr.mxu0 0.0
        %5606 = vmatpush1.msra.mxu0 0.0
        %5607 = vmatprep.subr.mxu0 0.0
        %5608 = vmatpush1.msra.mxu0 0.0
        %5609 = vmatprep.subr.mxu0 0.0
        %5610 = vmatpush1.msra.mxu0 0.0
        %5611 = vmatprep.subr.mxu0 0.0
        %5612 = vmatpush1.msra.mxu0 0.0
        %5613 = vmatprep.subr.mxu0 0.0
        %5614 = vmatpush1.msra.mxu0 0.0
        %5615 = vmatprep.subr.mxu0 0.0
        %5616 = vmatpush1.msra.mxu0 0.0
        %5617 = vmatprep.subr.mxu0 0.0
        %5618 = vmatpush1.msra.mxu0 0.0
        %5619 = vmatprep.mubr.f32.mxu0 0.0
        %5620 = vmatmul.mubr.f32.gmra.mrb[0].mxu0 %v5475
        %v5621 = vpop.f32.mrb[0].mxu0
        %v5622 = vadd.f32 0.0, %v5621
        %v5623 = vpop.f32.mrb[0].mxu0
        %5624 = vmatprep.mubr.f32.mxu0 0.0
        %5625 = vmatmul.mubr.f32.gmra.mrb[0].mxu0 %v5478
        %v5626 = vpop.f32.mrb[0].mxu0
        %v5627 = vadd.f32 0.0, %v5626
        %v5628 = vpop.f32.mrb[0].mxu0
        %5629 = vdwg.mxu0
        %5630 = vmatprep.subr.mxu0 0.0
        %5631 = vmatpush1.msra.mxu0 %v5458
        %5632 = vmatprep.subr.mxu0 0.0
        %5633 = vmatpush1.msra.mxu0 %v5459
        %5634 = vmatprep.subr.mxu0 0.0
        %5635 = vmatpush1.msra.mxu0 0.0
        %5636 = vmatprep.subr.mxu0 0.0
        %5637 = vmatpush1.msra.mxu0 0.0
        %5638 = vmatprep.subr.mxu0 0.0
        %5639 = vmatpush1.msra.mxu0 0.0
        %5640 = vmatprep.subr.mxu0 0.0
        %5641 = vmatpush1.msra.mxu0 0.0
        %5642 = vmatprep.subr.mxu0 0.0
        %5643 = vmatpush1.msra.mxu0 0.0
        %5644 = vmatprep.subr.mxu0 0.0
        %5645 = vmatpush1.msra.mxu0 0.0
        %5646 = vmatprep.subr.mxu0 0.0
        %5647 = vmatpush1.msra.mxu0 0.0
        %5648 = vmatprep.subr.mxu0 0.0
        %5649 = vmatpush1.msra.mxu0 0.0
        %5650 = vmatprep.subr.mxu0 0.0
        %5651 = vmatpush1.msra.mxu0 0.0
        %5652 = vmatprep.subr.mxu0 0.0
        %5653 = vmatpush1.msra.mxu0 0.0
        %5654 = vmatprep.subr.mxu0 0.0
        %5655 = vmatpush1.msra.mxu0 0.0
        %5656 = vmatprep.subr.mxu0 0.0
        %5657 = vmatpush1.msra.mxu0 0.0
        %5658 = vmatprep.subr.mxu0 0.0
        %5659 = vmatpush1.msra.mxu0 0.0
        %5660 = vmatprep.subr.mxu0 0.0
        %5661 = vmatpush1.msra.mxu0 0.0
        %5662 = vmatprep.subr.mxu0 0.0
        %5663 = vmatpush1.msra.mxu0 0.0
        %5664 = vmatprep.subr.mxu0 0.0
        %5665 = vmatpush1.msra.mxu0 0.0
        %5666 = vmatprep.subr.mxu0 0.0
        %5667 = vmatpush1.msra.mxu0 0.0
        %5668 = vmatprep.subr.mxu0 0.0
        %5669 = vmatpush1.msra.mxu0 0.0
        %5670 = vmatprep.subr.mxu0 0.0
        %5671 = vmatpush1.msra.mxu0 0.0
        %5672 = vmatprep.subr.mxu0 0.0
        %5673 = vmatpush1.msra.mxu0 0.0
        %5674 = vmatprep.subr.mxu0 0.0
        %5675 = vmatpush1.msra.mxu0 0.0
        %5676 = vmatprep.subr.mxu0 0.0
        %5677 = vmatpush1.msra.mxu0 0.0
        %5678 = vmatprep.subr.mxu0 0.0
        %5679 = vmatpush1.msra.mxu0 0.0
        %5680 = vmatprep.subr.mxu0 0.0
        %5681 = vmatpush1.msra.mxu0 0.0
        %5682 = vmatprep.subr.mxu0 0.0
        %5683 = vmatpush1.msra.mxu0 0.0
        %5684 = vmatprep.subr.mxu0 0.0
        %5685 = vmatpush1.msra.mxu0 0.0
        %5686 = vmatprep.subr.mxu0 0.0
        %5687 = vmatpush1.msra.mxu0 0.0
        %5688 = vmatprep.subr.mxu0 0.0
        %5689 = vmatpush1.msra.mxu0 0.0
        %5690 = vmatprep.subr.mxu0 0.0
        %5691 = vmatpush1.msra.mxu0 0.0
        %5692 = vmatprep.subr.mxu0 0.0
        %5693 = vmatpush1.msra.mxu0 0.0
        %5694 = vmatprep.mubr.f32.mxu0 0.0
        %5695 = vmatmul.mubr.f32.gmra.mrb[0].mxu0 %v5475
        %v5696 = vpop.f32.mrb[0].mxu0
        %v5697 = vadd.f32 0.0, %v5696
        %v5698 = vpop.f32.mrb[0].mxu0
        %5699 = vmatprep.mubr.f32.mxu0 0.0
        %5700 = vmatmul.mubr.f32.gmra.mrb[0].mxu0 %v5478
        %v5701 = vpop.f32.mrb[0].mxu0
        %v5702 = vadd.f32 0.0, %v5701
        %v5703 = vpop.f32.mrb[0].mxu0
        %5704 = vdwg.mxu0
        %5705 = vmatprep.subr.mxu0 0.0
        %5706 = vmatpush1.msra.mxu0 %v5460
        %5707 = vmatprep.subr.mxu0 0.0
        %5708 = vmatpush1.msra.mxu0 %v5461
        %5709 = vmatprep.subr.mxu0 0.0
        %5710 = vmatpush1.msra.mxu0 0.0
        %5711 = vmatprep.subr.mxu0 0.0
        %5712 = vmatpush1.msra.mxu0 0.0
        %5713 = vmatprep.subr.mxu0 0.0
        %5714 = vmatpush1.msra.mxu0 0.0
        %5715 = vmatprep.subr.mxu0 0.0
        %5716 = vmatpush1.msra.mxu0 0.0
        %5717 = vmatprep.subr.mxu0 0.0
        %5718 = vmatpush1.msra.mxu0 0.0
        %5719 = vmatprep.subr.mxu0 0.0
        %5720 = vmatpush1.msra.mxu0 0.0
        %5721 = vmatprep.subr.mxu0 0.0
        %5722 = vmatpush1.msra.mxu0 0.0
        %5723 = vmatprep.subr.mxu0 0.0
        %5724 = vmatpush1.msra.mxu0 0.0
        %5725 = vmatprep.subr.mxu0 0.0
        %5726 = vmatpush1.msra.mxu0 0.0
        %5727 = vmatprep.subr.mxu0 0.0
        %5728 = vmatpush1.msra.mxu0 0.0
        %5729 = vmatprep.subr.mxu0 0.0
        %5730 = vmatpush1.msra.mxu0 0.0
        %5731 = vmatprep.subr.mxu0 0.0
        %5732 = vmatpush1.msra.mxu0 0.0
        %5733 = vmatprep.subr.mxu0 0.0
        %5734 = vmatpush1.msra.mxu0 0.0
        %5735 = vmatprep.subr.mxu0 0.0
        %5736 = vmatpush1.msra.mxu0 0.0
        %5737 = vmatprep.subr.mxu0 0.0
        %5738 = vmatpush1.msra.mxu0 0.0
        %5739 = vmatprep.subr.mxu0 0.0
        %5740 = vmatpush1.msra.mxu0 0.0
        %5741 = vmatprep.subr.mxu0 0.0
        %5742 = vmatpush1.msra.mxu0 0.0
        %5743 = vmatprep.subr.mxu0 0.0
        %5744 = vmatpush1.msra.mxu0 0.0
        %5745 = vmatprep.subr.mxu0 0.0
        %5746 = vmatpush1.msra.mxu0 0.0
        %5747 = vmatprep.subr.mxu0 0.0
        %5748 = vmatpush1.msra.mxu0 0.0
        %5749 = vmatprep.subr.mxu0 0.0
        %5750 = vmatpush1.msra.mxu0 0.0
        %5751 = vmatprep.subr.mxu0 0.0
        %5752 = vmatpush1.msra.mxu0 0.0
        %5753 = vmatprep.subr.mxu0 0.0
        %5754 = vmatpush1.msra.mxu0 0.0
        %5755 = vmatprep.subr.mxu0 0.0
        %5756 = vmatpush1.msra.mxu0 0.0
        %5757 = vmatprep.subr.mxu0 0.0
        %5758 = vmatpush1.msra.mxu0 0.0
        %5759 = vmatprep.subr.mxu0 0.0
        %5760 = vmatpush1.msra.mxu0 0.0
        %5761 = vmatprep.subr.mxu0 0.0
        %5762 = vmatpush1.msra.mxu0 0.0
        %5763 = vmatprep.subr.mxu0 0.0
        %5764 = vmatpush1.msra.mxu0 0.0
        %5765 = vmatprep.subr.mxu0 0.0
        %5766 = vmatpush1.msra.mxu0 0.0
        %5767 = vmatprep.subr.mxu0 0.0
        %5768 = vmatpush1.msra.mxu0 0.0
        %5769 = vmatprep.mubr.f32.mxu0 0.0
        %5770 = vmatmul.mubr.f32.gmra.mrb[0].mxu0 %v5475
        %v5771 = vpop.f32.mrb[0].mxu0
        %v5772 = vadd.f32 0.0, %v5771
        %v5773 = vpop.f32.mrb[0].mxu0
        %5774 = vmatprep.mubr.f32.mxu0 0.0
        %5775 = vmatmul.mubr.f32.gmra.mrb[0].mxu0 %v5478
        %v5776 = vpop.f32.mrb[0].mxu0
        %v5777 = vadd.f32 0.0, %v5776
        %v5778 = vpop.f32.mrb[0].mxu0
        %5779 = vdwg.mxu0
        %v5780 = vsub.f32 %v5462, %v5454
        %v5781 = vsub.f32 %v5463, %v5455
        %v5782 = vsub.f32 %v5464, %v5456
        %v5783 = vsub.f32 %v5465, %v5457
        %v5784 = vsub.f32 %v5466, %v5458
        %v5785 = vsub.f32 %v5467, %v5459
        %v5786 = vsub.f32 %v5468, %v5460
        %v5787 = vsub.f32 %v5469, %v5461
        %5788 = vmatprep.subr.mxu0 0.0
        %5789 = vmatpush1.msra.mxu0 %v5780
        %5790 = vmatprep.subr.mxu0 0.0
        %5791 = vmatpush1.msra.mxu0 %v5781
        %5792 = vmatprep.subr.mxu0 0.0
        %5793 = vmatpush1.msra.mxu0 0.0
        %5794 = vmatprep.subr.mxu0 0.0
        %5795 = vmatpush1.msra.mxu0 0.0
        %5796 = vmatprep.subr.mxu0 0.0
        %5797 = vmatpush1.msra.mxu0 0.0
        %5798 = vmatprep.subr.mxu0 0.0
        %5799 = vmatpush1.msra.mxu0 0.0
        %5800 = vmatprep.subr.mxu0 0.0
        %5801 = vmatpush1.msra.mxu0 0.0
        %5802 = vmatprep.subr.mxu0 0.0
        %5803 = vmatpush1.msra.mxu0 0.0
        %5804 = vmatprep.subr.mxu0 0.0
        %5805 = vmatpush1.msra.mxu0 0.0
        %5806 = vmatprep.subr.mxu0 0.0
        %5807 = vmatpush1.msra.mxu0 0.0
        %5808 = vmatprep.subr.mxu0 0.0
        %5809 = vmatpush1.msra.mxu0 0.0
        %5810 = vmatprep.subr.mxu0 0.0
        %5811 = vmatpush1.msra.mxu0 0.0
        %5812 = vmatprep.subr.mxu0 0.0
        %5813 = vmatpush1.msra.mxu0 0.0
        %5814 = vmatprep.subr.mxu0 0.0
        %5815 = vmatpush1.msra.mxu0 0.0
        %5816 = vmatprep.subr.mxu0 0.0
        %5817 = vmatpush1.msra.mxu0 0.0
        %5818 = vmatprep.subr.mxu0 0.0
        %5819 = vmatpush1.msra.mxu0 0.0
        %5820 = vmatprep.subr.mxu0 0.0
        %5821 = vmatpush1.msra.mxu0 0.0
        %5822 = vmatprep.subr.mxu0 0.0
        %5823 = vmatpush1.msra.mxu0 0.0
        %5824 = vmatprep.subr.mxu0 0.0
        %5825 = vmatpush1.msra.mxu0 0.0
        %5826 = vmatprep.subr.mxu0 0.0
        %5827 = vmatpush1.msra.mxu0 0.0
        %5828 = vmatprep.subr.mxu0 0.0
        %5829 = vmatpush1.msra.mxu0 0.0
        %5830 = vmatprep.subr.mxu0 0.0
        %5831 = vmatpush1.msra.mxu0 0.0
        %5832 = vmatprep.subr.mxu0 0.0
        %5833 = vmatpush1.msra.mxu0 0.0
        %5834 = vmatprep.subr.mxu0 0.0
        %5835 = vmatpush1.msra.mxu0 0.0
        %5836 = vmatprep.subr.mxu0 0.0
        %5837 = vmatpush1.msra.mxu0 0.0
        %5838 = vmatprep.subr.mxu0 0.0
        %5839 = vmatpush1.msra.mxu0 0.0
        %5840 = vmatprep.subr.mxu0 0.0
        %5841 = vmatpush1.msra.mxu0 0.0
        %5842 = vmatprep.subr.mxu0 0.0
        %5843 = vmatpush1.msra.mxu0 0.0
        %5844 = vmatprep.subr.mxu0 0.0
        %5845 = vmatpush1.msra.mxu0 0.0
        %5846 = vmatprep.subr.mxu0 0.0
        %5847 = vmatpush1.msra.mxu0 0.0
        %5848 = vmatprep.subr.mxu0 0.0
        %5849 = vmatpush1.msra.mxu0 0.0
        %5850 = vmatprep.subr.mxu0 0.0
        %5851 = vmatpush1.msra.mxu0 0.0
        %5852 = vmatprep.mubr.f32.mxu0 0.0
        %5853 = vmatmul.mubr.f32.gmra.mrb[0].mxu0 %v4402
        %v5854 = vpop.f32.mrb[0].mxu0
        %v5855 = vadd.f32 0.0, %v5854
        %v5856 = vpop.f32.mrb[0].mxu0
        %5857 = vmatprep.mubr.f32.mxu0 0.0
        %5858 = vmatmul.mubr.f32.gmra.mrb[0].mxu0 %v4405
        %v5859 = vpop.f32.mrb[0].mxu0
        %v5860 = vadd.f32 0.0, %v5859
        %v5861 = vpop.f32.mrb[0].mxu0
        %5862 = vdwg.mxu0
        %5863 = vmatprep.subr.mxu0 0.0
        %5864 = vmatpush1.msra.mxu0 %v5782
        %5865 = vmatprep.subr.mxu0 0.0
        %5866 = vmatpush1.msra.mxu0 %v5783
        %5867 = vmatprep.subr.mxu0 0.0
        %5868 = vmatpush1.msra.mxu0 0.0
        %5869 = vmatprep.subr.mxu0 0.0
        %5870 = vmatpush1.msra.mxu0 0.0
        %5871 = vmatprep.subr.mxu0 0.0
        %5872 = vmatpush1.msra.mxu0 0.0
        %5873 = vmatprep.subr.mxu0 0.0
        %5874 = vmatpush1.msra.mxu0 0.0
        %5875 = vmatprep.subr.mxu0 0.0
        %5876 = vmatpush1.msra.mxu0 0.0
        %5877 = vmatprep.subr.mxu0 0.0
        %5878 = vmatpush1.msra.mxu0 0.0
        %5879 = vmatprep.subr.mxu0 0.0
        %5880 = vmatpush1.msra.mxu0 0.0
        %5881 = vmatprep.subr.mxu0 0.0
        %5882 = vmatpush1.msra.mxu0 0.0
        %5883 = vmatprep.subr.mxu0 0.0
        %5884 = vmatpush1.msra.mxu0 0.0
        %5885 = vmatprep.subr.mxu0 0.0
        %5886 = vmatpush1.msra.mxu0 0.0
        %5887 = vmatprep.subr.mxu0 0.0
        %5888 = vmatpush1.msra.mxu0 0.0
        %5889 = vmatprep.subr.mxu0 0.0
        %5890 = vmatpush1.msra.mxu0 0.0
        %5891 = vmatprep.subr.mxu0 0.0
        %5892 = vmatpush1.msra.mxu0 0.0
        %5893 = vmatprep.subr.mxu0 0.0
        %5894 = vmatpush1.msra.mxu0 0.0
        %5895 = vmatprep.subr.mxu0 0.0
        %5896 = vmatpush1.msra.mxu0 0.0
        %5897 = vmatprep.subr.mxu0 0.0
        %5898 = vmatpush1.msra.mxu0 0.0
        %5899 = vmatprep.subr.mxu0 0.0
        %5900 = vmatpush1.msra.mxu0 0.0
        %5901 = vmatprep.subr.mxu0 0.0
        %5902 = vmatpush1.msra.mxu0 0.0
        %5903 = vmatprep.subr.mxu0 0.0
        %5904 = vmatpush1.msra.mxu0 0.0
        %5905 = vmatprep.subr.mxu0 0.0
        %5906 = vmatpush1.msra.mxu0 0.0
        %5907 = vmatprep.subr.mxu0 0.0
        %5908 = vmatpush1.msra.mxu0 0.0
        %5909 = vmatprep.subr.mxu0 0.0
        %5910 = vmatpush1.msra.mxu0 0.0
        %5911 = vmatprep.subr.mxu0 0.0
        %5912 = vmatpush1.msra.mxu0 0.0
        %5913 = vmatprep.subr.mxu0 0.0
        %5914 = vmatpush1.msra.mxu0 0.0
        %5915 = vmatprep.subr.mxu0 0.0
        %5916 = vmatpush1.msra.mxu0 0.0
        %5917 = vmatprep.subr.mxu0 0.0
        %5918 = vmatpush1.msra.mxu0 0.0
        %5919 = vmatprep.subr.mxu0 0.0
        %5920 = vmatpush1.msra.mxu0 0.0
        %5921 = vmatprep.subr.mxu0 0.0
        %5922 = vmatpush1.msra.mxu0 0.0
        %5923 = vmatprep.subr.mxu0 0.0
        %5924 = vmatpush1.msra.mxu0 0.0
        %5925 = vmatprep.subr.mxu0 0.0
        %5926 = vmatpush1.msra.mxu0 0.0
        %5927 = vmatprep.mubr.f32.mxu0 0.0
        %5928 = vmatmul.mubr.f32.gmra.mrb[0].mxu0 %v4402
        %v5929 = vpop.f32.mrb[0].mxu0
        %v5930 = vadd.f32 0.0, %v5929
        %v5931 = vpop.f32.mrb[0].mxu0
        %5932 = vmatprep.mubr.f32.mxu0 0.0
        %5933 = vmatmul.mubr.f32.gmra.mrb[0].mxu0 %v4405
        %v5934 = vpop.f32.mrb[0].mxu0
        %v5935 = vadd.f32 0.0, %v5934
        %v5936 = vpop.f32.mrb[0].mxu0
        %5937 = vdwg.mxu0
        %5938 = vmatprep.subr.mxu0 0.0
        %5939 = vmatpush1.msra.mxu0 %v5784
        %5940 = vmatprep.subr.mxu0 0.0
        %5941 = vmatpush1.msra.mxu0 %v5785
        %5942 = vmatprep.subr.mxu0 0.0
        %5943 = vmatpush1.msra.mxu0 0.0
        %5944 = vmatprep.subr.mxu0 0.0
        %5945 = vmatpush1.msra.mxu0 0.0
        %5946 = vmatprep.subr.mxu0 0.0
        %5947 = vmatpush1.msra.mxu0 0.0
        %5948 = vmatprep.subr.mxu0 0.0
        %5949 = vmatpush1.msra.mxu0 0.0
        %5950 = vmatprep.subr.mxu0 0.0
        %5951 = vmatpush1.msra.mxu0 0.0
        %5952 = vmatprep.subr.mxu0 0.0
        %5953 = vmatpush1.msra.mxu0 0.0
        %5954 = vmatprep.subr.mxu0 0.0
        %5955 = vmatpush1.msra.mxu0 0.0
        %5956 = vmatprep.subr.mxu0 0.0
        %5957 = vmatpush1.msra.mxu0 0.0
        %5958 = vmatprep.subr.mxu0 0.0
        %5959 = vmatpush1.msra.mxu0 0.0
        %5960 = vmatprep.subr.mxu0 0.0
        %5961 = vmatpush1.msra.mxu0 0.0
        %5962 = vmatprep.subr.mxu0 0.0
        %5963 = vmatpush1.msra.mxu0 0.0
        %5964 = vmatprep.subr.mxu0 0.0
        %5965 = vmatpush1.msra.mxu0 0.0
        %5966 = vmatprep.subr.mxu0 0.0
        %5967 = vmatpush1.msra.mxu0 0.0
        %5968 = vmatprep.subr.mxu0 0.0
        %5969 = vmatpush1.msra.mxu0 0.0
        %5970 = vmatprep.subr.mxu0 0.0
        %5971 = vmatpush1.msra.mxu0 0.0
        %5972 = vmatprep.subr.mxu0 0.0
        %5973 = vmatpush1.msra.mxu0 0.0
        %5974 = vmatprep.subr.mxu0 0.0
        %5975 = vmatpush1.msra.mxu0 0.0
        %5976 = vmatprep.subr.mxu0 0.0
        %5977 = vmatpush1.msra.mxu0 0.0
        %5978 = vmatprep.subr.mxu0 0.0
        %5979 = vmatpush1.msra.mxu0 0.0
        %5980 = vmatprep.subr.mxu0 0.0
        %5981 = vmatpush1.msra.mxu0 0.0
        %5982 = vmatprep.subr.mxu0 0.0
        %5983 = vmatpush1.msra.mxu0 0.0
        %5984 = vmatprep.subr.mxu0 0.0
        %5985 = vmatpush1.msra.mxu0 0.0
        %5986 = vmatprep.subr.mxu0 0.0
        %5987 = vmatpush1.msra.mxu0 0.0
        %5988 = vmatprep.subr.mxu0 0.0
        %5989 = vmatpush1.msra.mxu0 0.0
        %5990 = vmatprep.subr.mxu0 0.0
        %5991 = vmatpush1.msra.mxu0 0.0
        %5992 = vmatprep.subr.mxu0 0.0
        %5993 = vmatpush1.msra.mxu0 0.0
        %5994 = vmatprep.subr.mxu0 0.0
        %5995 = vmatpush1.msra.mxu0 0.0
        %5996 = vmatprep.subr.mxu0 0.0
        %5997 = vmatpush1.msra.mxu0 0.0
        %5998 = vmatprep.subr.mxu0 0.0
        %5999 = vmatpush1.msra.mxu0 0.0
        %6000 = vmatprep.subr.mxu0 0.0
        %6001 = vmatpush1.msra.mxu0 0.0
        %6002 = vmatprep.mubr.f32.mxu0 0.0
        %6003 = vmatmul.mubr.f32.gmra.mrb[0].mxu0 %v4402
        %v6004 = vpop.f32.mrb[0].mxu0
        %v6005 = vadd.f32 0.0, %v6004
        %v6006 = vpop.f32.mrb[0].mxu0
        %6007 = vmatprep.mubr.f32.mxu0 0.0
        %6008 = vmatmul.mubr.f32.gmra.mrb[0].mxu0 %v4405
        %v6009 = vpop.f32.mrb[0].mxu0
        %v6010 = vadd.f32 0.0, %v6009
        %v6011 = vpop.f32.mrb[0].mxu0
        %6012 = vdwg.mxu0
        %6013 = vmatprep.subr.mxu0 0.0
        %6014 = vmatpush1.msra.mxu0 %v5786
        %6015 = vmatprep.subr.mxu0 0.0
        %6016 = vmatpush1.msra.mxu0 %v5787
        %6017 = vmatprep.subr.mxu0 0.0
        %6018 = vmatpush1.msra.mxu0 0.0
        %6019 = vmatprep.subr.mxu0 0.0
        %6020 = vmatpush1.msra.mxu0 0.0
        %6021 = vmatprep.subr.mxu0 0.0
        %6022 = vmatpush1.msra.mxu0 0.0
        %6023 = vmatprep.subr.mxu0 0.0
        %6024 = vmatpush1.msra.mxu0 0.0
        %6025 = vmatprep.subr.mxu0 0.0
        %6026 = vmatpush1.msra.mxu0 0.0
        %6027 = vmatprep.subr.mxu0 0.0
        %6028 = vmatpush1.msra.mxu0 0.0
        %6029 = vmatprep.subr.mxu0 0.0
        %6030 = vmatpush1.msra.mxu0 0.0
        %6031 = vmatprep.subr.mxu0 0.0
        %6032 = vmatpush1.msra.mxu0 0.0
        %6033 = vmatprep.subr.mxu0 0.0
        %6034 = vmatpush1.msra.mxu0 0.0
        %6035 = vmatprep.subr.mxu0 0.0
        %6036 = vmatpush1.msra.mxu0 0.0
        %6037 = vmatprep.subr.mxu0 0.0
        %6038 = vmatpush1.msra.mxu0 0.0
        %6039 = vmatprep.subr.mxu0 0.0
        %6040 = vmatpush1.msra.mxu0 0.0
        %6041 = vmatprep.subr.mxu0 0.0
        %6042 = vmatpush1.msra.mxu0 0.0
        %6043 = vmatprep.subr.mxu0 0.0
        %6044 = vmatpush1.msra.mxu0 0.0
        %6045 = vmatprep.subr.mxu0 0.0
        %6046 = vmatpush1.msra.mxu0 0.0
        %6047 = vmatprep.subr.mxu0 0.0
        %6048 = vmatpush1.msra.mxu0 0.0
        %6049 = vmatprep.subr.mxu0 0.0
        %6050 = vmatpush1.msra.mxu0 0.0
        %6051 = vmatprep.subr.mxu0 0.0
        %6052 = vmatpush1.msra.mxu0 0.0
        %6053 = vmatprep.subr.mxu0 0.0
        %6054 = vmatpush1.msra.mxu0 0.0
        %6055 = vmatprep.subr.mxu0 0.0
        %6056 = vmatpush1.msra.mxu0 0.0
        %6057 = vmatprep.subr.mxu0 0.0
        %6058 = vmatpush1.msra.mxu0 0.0
        %6059 = vmatprep.subr.mxu0 0.0
        %6060 = vmatpush1.msra.mxu0 0.0
        %6061 = vmatprep.subr.mxu0 0.0
        %6062 = vmatpush1.msra.mxu0 0.0
        %6063 = vmatprep.subr.mxu0 0.0
        %6064 = vmatpush1.msra.mxu0 0.0
        %6065 = vmatprep.subr.mxu0 0.0
        %6066 = vmatpush1.msra.mxu0 0.0
        %6067 = vmatprep.subr.mxu0 0.0
        %6068 = vmatpush1.msra.mxu0 0.0
        %6069 = vmatprep.subr.mxu0 0.0
        %6070 = vmatpush1.msra.mxu0 0.0
        %6071 = vmatprep.subr.mxu0 0.0
        %6072 = vmatpush1.msra.mxu0 0.0
        %6073 = vmatprep.subr.mxu0 0.0
        %6074 = vmatpush1.msra.mxu0 0.0
        %6075 = vmatprep.subr.mxu0 0.0
        %6076 = vmatpush1.msra.mxu0 0.0
        %6077 = vmatprep.mubr.f32.mxu0 0.0
        %6078 = vmatmul.mubr.f32.gmra.mrb[0].mxu0 %v4402
        %v6079 = vpop.f32.mrb[0].mxu0
        %v6080 = vadd.f32 0.0, %v6079
        %v6081 = vpop.f32.mrb[0].mxu0
        %6082 = vmatprep.mubr.f32.mxu0 0.0
        %6083 = vmatmul.mubr.f32.gmra.mrb[0].mxu0 %v4405
        %v6084 = vpop.f32.mrb[0].mxu0
        %v6085 = vadd.f32 0.0, %v6084
        %v6086 = vpop.f32.mrb[0].mxu0
        %6087 = vdwg.mxu0
        %v6088 = vadd.f32 %v5454, %v5462
        %v6089 = vadd.f32 %v5455, %v5463
        %v6090 = vadd.f32 %v5456, %v5464
        %v6091 = vadd.f32 %v5457, %v5465
        %v6092 = vadd.f32 %v5458, %v5466
        %v6093 = vadd.f32 %v5459, %v5467
        %v6094 = vadd.f32 %v5460, %v5468
        %v6095 = vadd.f32 %v5461, %v5469
        %v6097 = vsel %vm950, %v5470, 0
        %v6100 = vsel %vm950, %v5471, 0
        %6102 = vmatprep.subr.mxu0 0.0
        %6103 = vmatpush1.msra.mxu0 %v6088
        %6104 = vmatprep.subr.mxu0 0.0
        %6105 = vmatpush1.msra.mxu0 %v6089
        %6106 = vmatprep.subr.mxu0 0.0
        %6107 = vmatpush1.msra.mxu0 0.0
        %6108 = vmatprep.subr.mxu0 0.0
        %6109 = vmatpush1.msra.mxu0 0.0
        %6110 = vmatprep.subr.mxu0 0.0
        %6111 = vmatpush1.msra.mxu0 0.0
        %6112 = vmatprep.subr.mxu0 0.0
        %6113 = vmatpush1.msra.mxu0 0.0
        %6114 = vmatprep.subr.mxu0 0.0
        %6115 = vmatpush1.msra.mxu0 0.0
        %6116 = vmatprep.subr.mxu0 0.0
        %6117 = vmatpush1.msra.mxu0 0.0
        %6118 = vmatprep.subr.mxu0 0.0
        %6119 = vmatpush1.msra.mxu0 0.0
        %6120 = vmatprep.subr.mxu0 0.0
        %6121 = vmatpush1.msra.mxu0 0.0
        %6122 = vmatprep.subr.mxu0 0.0
        %6123 = vmatpush1.msra.mxu0 0.0
        %6124 = vmatprep.subr.mxu0 0.0
        %6125 = vmatpush1.msra.mxu0 0.0
        %6126 = vmatprep.subr.mxu0 0.0
        %6127 = vmatpush1.msra.mxu0 0.0
        %6128 = vmatprep.subr.mxu0 0.0
        %6129 = vmatpush1.msra.mxu0 0.0
        %6130 = vmatprep.subr.mxu0 0.0
        %6131 = vmatpush1.msra.mxu0 0.0
        %6132 = vmatprep.subr.mxu0 0.0
        %6133 = vmatpush1.msra.mxu0 0.0
        %6134 = vmatprep.subr.mxu0 0.0
        %6135 = vmatpush1.msra.mxu0 0.0
        %6136 = vmatprep.subr.mxu0 0.0
        %6137 = vmatpush1.msra.mxu0 0.0
        %6138 = vmatprep.subr.mxu0 0.0
        %6139 = vmatpush1.msra.mxu0 0.0
        %6140 = vmatprep.subr.mxu0 0.0
        %6141 = vmatpush1.msra.mxu0 0.0
        %6142 = vmatprep.subr.mxu0 0.0
        %6143 = vmatpush1.msra.mxu0 0.0
        %6144 = vmatprep.subr.mxu0 0.0
        %6145 = vmatpush1.msra.mxu0 0.0
        %6146 = vmatprep.subr.mxu0 0.0
        %6147 = vmatpush1.msra.mxu0 0.0
        %6148 = vmatprep.subr.mxu0 0.0
        %6149 = vmatpush1.msra.mxu0 0.0
        %6150 = vmatprep.subr.mxu0 0.0
        %6151 = vmatpush1.msra.mxu0 0.0
        %6152 = vmatprep.subr.mxu0 0.0
        %6153 = vmatpush1.msra.mxu0 0.0
        %6154 = vmatprep.subr.mxu0 0.0
        %6155 = vmatpush1.msra.mxu0 0.0
        %6156 = vmatprep.subr.mxu0 0.0
        %6157 = vmatpush1.msra.mxu0 0.0
        %6158 = vmatprep.subr.mxu0 0.0
        %6159 = vmatpush1.msra.mxu0 0.0
        %6160 = vmatprep.subr.mxu0 0.0
        %6161 = vmatpush1.msra.mxu0 0.0
        %6162 = vmatprep.subr.mxu0 0.0
        %6163 = vmatpush1.msra.mxu0 0.0
        %6164 = vmatprep.subr.mxu0 0.0
        %6165 = vmatpush1.msra.mxu0 0.0
        %6166 = vmatprep.mubr.f32.mxu0 0.0
        %6167 = vmatmul.mubr.f32.gmra.mrb[0].mxu0 %v6097
        %v6168 = vpop.f32.mrb[0].mxu0
        %v6169 = vadd.f32 0.0, %v6168
        %v6170 = vpop.f32.mrb[0].mxu0
        %6171 = vmatprep.mubr.f32.mxu0 0.0
        %6172 = vmatmul.mubr.f32.gmra.mrb[0].mxu0 %v6100
        %v6173 = vpop.f32.mrb[0].mxu0
        %v6174 = vadd.f32 0.0, %v6173
        %v6175 = vpop.f32.mrb[0].mxu0
        %6176 = vdwg.mxu0
        %6177 = vmatprep.subr.mxu0 0.0
        %6178 = vmatpush1.msra.mxu0 %v6090
        %6179 = vmatprep.subr.mxu0 0.0
        %6180 = vmatpush1.msra.mxu0 %v6091
        %6181 = vmatprep.subr.mxu0 0.0
        %6182 = vmatpush1.msra.mxu0 0.0
        %6183 = vmatprep.subr.mxu0 0.0
        %6184 = vmatpush1.msra.mxu0 0.0
        %6185 = vmatprep.subr.mxu0 0.0
        %6186 = vmatpush1.msra.mxu0 0.0
        %6187 = vmatprep.subr.mxu0 0.0
        %6188 = vmatpush1.msra.mxu0 0.0
        %6189 = vmatprep.subr.mxu0 0.0
        %6190 = vmatpush1.msra.mxu0 0.0
        %6191 = vmatprep.subr.mxu0 0.0
        %6192 = vmatpush1.msra.mxu0 0.0
        %6193 = vmatprep.subr.mxu0 0.0
        %6194 = vmatpush1.msra.mxu0 0.0
        %6195 = vmatprep.subr.mxu0 0.0
        %6196 = vmatpush1.msra.mxu0 0.0
        %6197 = vmatprep.subr.mxu0 0.0
        %6198 = vmatpush1.msra.mxu0 0.0
        %6199 = vmatprep.subr.mxu0 0.0
        %6200 = vmatpush1.msra.mxu0 0.0
        %6201 = vmatprep.subr.mxu0 0.0
        %6202 = vmatpush1.msra.mxu0 0.0
        %6203 = vmatprep.subr.mxu0 0.0
        %6204 = vmatpush1.msra.mxu0 0.0
        %6205 = vmatprep.subr.mxu0 0.0
        %6206 = vmatpush1.msra.mxu0 0.0
        %6207 = vmatprep.subr.mxu0 0.0
        %6208 = vmatpush1.msra.mxu0 0.0
        %6209 = vmatprep.subr.mxu0 0.0
        %6210 = vmatpush1.msra.mxu0 0.0
        %6211 = vmatprep.subr.mxu0 0.0
        %6212 = vmatpush1.msra.mxu0 0.0
        %6213 = vmatprep.subr.mxu0 0.0
        %6214 = vmatpush1.msra.mxu0 0.0
        %6215 = vmatprep.subr.mxu0 0.0
        %6216 = vmatpush1.msra.mxu0 0.0
        %6217 = vmatprep.subr.mxu0 0.0
        %6218 = vmatpush1.msra.mxu0 0.0
        %6219 = vmatprep.subr.mxu0 0.0
        %6220 = vmatpush1.msra.mxu0 0.0
        %6221 = vmatprep.subr.mxu0 0.0
        %6222 = vmatpush1.msra.mxu0 0.0
        %6223 = vmatprep.subr.mxu0 0.0
        %6224 = vmatpush1.msra.mxu0 0.0
        %6225 = vmatprep.subr.mxu0 0.0
        %6226 = vmatpush1.msra.mxu0 0.0
        %6227 = vmatprep.subr.mxu0 0.0
        %6228 = vmatpush1.msra.mxu0 0.0
        %6229 = vmatprep.subr.mxu0 0.0
        %6230 = vmatpush1.msra.mxu0 0.0
        %6231 = vmatprep.subr.mxu0 0.0
        %6232 = vmatpush1.msra.mxu0 0.0
        %6233 = vmatprep.subr.mxu0 0.0
        %6234 = vmatpush1.msra.mxu0 0.0
        %6235 = vmatprep.subr.mxu0 0.0
        %6236 = vmatpush1.msra.mxu0 0.0
        %6237 = vmatprep.subr.mxu0 0.0
        %6238 = vmatpush1.msra.mxu0 0.0
        %6239 = vmatprep.subr.mxu0 0.0
        %6240 = vmatpush1.msra.mxu0 0.0
        %6241 = vmatprep.mubr.f32.mxu0 0.0
        %6242 = vmatmul.mubr.f32.gmra.mrb[0].mxu0 %v6097
        %v6243 = vpop.f32.mrb[0].mxu0
        %v6244 = vadd.f32 0.0, %v6243
        %v6245 = vpop.f32.mrb[0].mxu0
        %6246 = vmatprep.mubr.f32.mxu0 0.0
        %6247 = vmatmul.mubr.f32.gmra.mrb[0].mxu0 %v6100
        %v6248 = vpop.f32.mrb[0].mxu0
        %v6249 = vadd.f32 0.0, %v6248
        %v6250 = vpop.f32.mrb[0].mxu0
        %6251 = vdwg.mxu0
        %6252 = vmatprep.subr.mxu0 0.0
        %6253 = vmatpush1.msra.mxu0 %v6092
        %6254 = vmatprep.subr.mxu0 0.0
        %6255 = vmatpush1.msra.mxu0 %v6093
        %6256 = vmatprep.subr.mxu0 0.0
        %6257 = vmatpush1.msra.mxu0 0.0
        %6258 = vmatprep.subr.mxu0 0.0
        %6259 = vmatpush1.msra.mxu0 0.0
        %6260 = vmatprep.subr.mxu0 0.0
        %6261 = vmatpush1.msra.mxu0 0.0
        %6262 = vmatprep.subr.mxu0 0.0
        %6263 = vmatpush1.msra.mxu0 0.0
        %6264 = vmatprep.subr.mxu0 0.0
        %6265 = vmatpush1.msra.mxu0 0.0
        %6266 = vmatprep.subr.mxu0 0.0
        %6267 = vmatpush1.msra.mxu0 0.0
        %6268 = vmatprep.subr.mxu0 0.0
        %6269 = vmatpush1.msra.mxu0 0.0
        %6270 = vmatprep.subr.mxu0 0.0
        %6271 = vmatpush1.msra.mxu0 0.0
        %6272 = vmatprep.subr.mxu0 0.0
        %6273 = vmatpush1.msra.mxu0 0.0
        %6274 = vmatprep.subr.mxu0 0.0
        %6275 = vmatpush1.msra.mxu0 0.0
        %6276 = vmatprep.subr.mxu0 0.0
        %6277 = vmatpush1.msra.mxu0 0.0
        %6278 = vmatprep.subr.mxu0 0.0
        %6279 = vmatpush1.msra.mxu0 0.0
        %6280 = vmatprep.subr.mxu0 0.0
        %6281 = vmatpush1.msra.mxu0 0.0
        %6282 = vmatprep.subr.mxu0 0.0
        %6283 = vmatpush1.msra.mxu0 0.0
        %6284 = vmatprep.subr.mxu0 0.0
        %6285 = vmatpush1.msra.mxu0 0.0
        %6286 = vmatprep.subr.mxu0 0.0
        %6287 = vmatpush1.msra.mxu0 0.0
        %6288 = vmatprep.subr.mxu0 0.0
        %6289 = vmatpush1.msra.mxu0 0.0
        %6290 = vmatprep.subr.mxu0 0.0
        %6291 = vmatpush1.msra.mxu0 0.0
        %6292 = vmatprep.subr.mxu0 0.0
        %6293 = vmatpush1.msra.mxu0 0.0
        %6294 = vmatprep.subr.mxu0 0.0
        %6295 = vmatpush1.msra.mxu0 0.0
        %6296 = vmatprep.subr.mxu0 0.0
        %6297 = vmatpush1.msra.mxu0 0.0
        %6298 = vmatprep.subr.mxu0 0.0
        %6299 = vmatpush1.msra.mxu0 0.0
        %6300 = vmatprep.subr.mxu0 0.0
        %6301 = vmatpush1.msra.mxu0 0.0
        %6302 = vmatprep.subr.mxu0 0.0
        %6303 = vmatpush1.msra.mxu0 0.0
        %6304 = vmatprep.subr.mxu0 0.0
        %6305 = vmatpush1.msra.mxu0 0.0
        %6306 = vmatprep.subr.mxu0 0.0
        %6307 = vmatpush1.msra.mxu0 0.0
        %6308 = vmatprep.subr.mxu0 0.0
        %6309 = vmatpush1.msra.mxu0 0.0
        %6310 = vmatprep.subr.mxu0 0.0
        %6311 = vmatpush1.msra.mxu0 0.0
        %6312 = vmatprep.subr.mxu0 0.0
        %6313 = vmatpush1.msra.mxu0 0.0
        %6314 = vmatprep.subr.mxu0 0.0
        %6315 = vmatpush1.msra.mxu0 0.0
        %6316 = vmatprep.mubr.f32.mxu0 0.0
        %6317 = vmatmul.mubr.f32.gmra.mrb[0].mxu0 %v6097
        %v6318 = vpop.f32.mrb[0].mxu0
        %v6319 = vadd.f32 0.0, %v6318
        %v6320 = vpop.f32.mrb[0].mxu0
        %6321 = vmatprep.mubr.f32.mxu0 0.0
        %6322 = vmatmul.mubr.f32.gmra.mrb[0].mxu0 %v6100
        %v6323 = vpop.f32.mrb[0].mxu0
        %v6324 = vadd.f32 0.0, %v6323
        %v6325 = vpop.f32.mrb[0].mxu0
        %6326 = vdwg.mxu0
        %6327 = vmatprep.subr.mxu0 0.0
        %6328 = vmatpush1.msra.mxu0 %v6094
        %6329 = vmatprep.subr.mxu0 0.0
        %6330 = vmatpush1.msra.mxu0 %v6095
        %6331 = vmatprep.subr.mxu0 0.0
        %6332 = vmatpush1.msra.mxu0 0.0
        %6333 = vmatprep.subr.mxu0 0.0
        %6334 = vmatpush1.msra.mxu0 0.0
        %6335 = vmatprep.subr.mxu0 0.0
        %6336 = vmatpush1.msra.mxu0 0.0
        %6337 = vmatprep.subr.mxu0 0.0
        %6338 = vmatpush1.msra.mxu0 0.0
        %6339 = vmatprep.subr.mxu0 0.0
        %6340 = vmatpush1.msra.mxu0 0.0
        %6341 = vmatprep.subr.mxu0 0.0
        %6342 = vmatpush1.msra.mxu0 0.0
        %6343 = vmatprep.subr.mxu0 0.0
        %6344 = vmatpush1.msra.mxu0 0.0
        %6345 = vmatprep.subr.mxu0 0.0
        %6346 = vmatpush1.msra.mxu0 0.0
        %6347 = vmatprep.subr.mxu0 0.0
        %6348 = vmatpush1.msra.mxu0 0.0
        %6349 = vmatprep.subr.mxu0 0.0
        %6350 = vmatpush1.msra.mxu0 0.0
        %6351 = vmatprep.subr.mxu0 0.0
        %6352 = vmatpush1.msra.mxu0 0.0
        %6353 = vmatprep.subr.mxu0 0.0
        %6354 = vmatpush1.msra.mxu0 0.0
        %6355 = vmatprep.subr.mxu0 0.0
        %6356 = vmatpush1.msra.mxu0 0.0
        %6357 = vmatprep.subr.mxu0 0.0
        %6358 = vmatpush1.msra.mxu0 0.0
        %6359 = vmatprep.subr.mxu0 0.0
        %6360 = vmatpush1.msra.mxu0 0.0
        %6361 = vmatprep.subr.mxu0 0.0
        %6362 = vmatpush1.msra.mxu0 0.0
        %6363 = vmatprep.subr.mxu0 0.0
        %6364 = vmatpush1.msra.mxu0 0.0
        %6365 = vmatprep.subr.mxu0 0.0
        %6366 = vmatpush1.msra.mxu0 0.0
        %6367 = vmatprep.subr.mxu0 0.0
        %6368 = vmatpush1.msra.mxu0 0.0
        %6369 = vmatprep.subr.mxu0 0.0
        %6370 = vmatpush1.msra.mxu0 0.0
        %6371 = vmatprep.subr.mxu0 0.0
        %6372 = vmatpush1.msra.mxu0 0.0
        %6373 = vmatprep.subr.mxu0 0.0
        %6374 = vmatpush1.msra.mxu0 0.0
        %6375 = vmatprep.subr.mxu0 0.0
        %6376 = vmatpush1.msra.mxu0 0.0
        %6377 = vmatprep.subr.mxu0 0.0
        %6378 = vmatpush1.msra.mxu0 0.0
        %6379 = vmatprep.subr.mxu0 0.0
        %6380 = vmatpush1.msra.mxu0 0.0
        %6381 = vmatprep.subr.mxu0 0.0
        %6382 = vmatpush1.msra.mxu0 0.0
        %6383 = vmatprep.subr.mxu0 0.0
        %6384 = vmatpush1.msra.mxu0 0.0
        %6385 = vmatprep.subr.mxu0 0.0
        %6386 = vmatpush1.msra.mxu0 0.0
        %6387 = vmatprep.subr.mxu0 0.0
        %6388 = vmatpush1.msra.mxu0 0.0
        %6389 = vmatprep.subr.mxu0 0.0
        %6390 = vmatpush1.msra.mxu0 0.0
        %6391 = vmatprep.mubr.f32.mxu0 0.0
        %6392 = vmatmul.mubr.f32.gmra.mrb[0].mxu0 %v6097
        %v6393 = vpop.f32.mrb[0].mxu0
        %v6394 = vadd.f32 0.0, %v6393
        %v6395 = vpop.f32.mrb[0].mxu0
        %6396 = vmatprep.mubr.f32.mxu0 0.0
        %6397 = vmatmul.mubr.f32.gmra.mrb[0].mxu0 %v6100
        %v6398 = vpop.f32.mrb[0].mxu0
        %v6399 = vadd.f32 0.0, %v6398
        %v6400 = vpop.f32.mrb[0].mxu0
        %6401 = vdwg.mxu0
        %v6402 = vsub.f32 %v5547, %v6169
        %v6403 = vsub.f32 %v5552, %v6174
        %v6404 = vsub.f32 %v5622, %v6244
        %v6405 = vsub.f32 %v5627, %v6249
        %v6406 = vsub.f32 %v5697, %v6319
        %v6407 = vsub.f32 %v5702, %v6324
        %v6408 = vsub.f32 %v5772, %v6394
        %v6409 = vsub.f32 %v5777, %v6399
        %v6410 = vadd.f32 %v5547, %v5855
        %v6411 = vadd.f32 %v5552, %v5860
        %v6412 = vadd.f32 %v5622, %v5930
        %v6413 = vadd.f32 %v5627, %v5935
        %v6414 = vadd.f32 %v5697, %v6005
        %v6415 = vadd.f32 %v5702, %v6010
        %v6416 = vadd.f32 %v5772, %v6080
        %v6417 = vadd.f32 %v5777, %v6085
        %v6418 = vmul.f32 %v3596, %v6402
        %v6419 = vmul.f32 %v3597, %v6403
        %v6420 = vmul.f32 %v3598, %v6404
        %v6421 = vmul.f32 %v3599, %v6405
        %v6422 = vmul.f32 %v3600, %v6406
        %v6423 = vmul.f32 %v3601, %v6407
        %v6424 = vmul.f32 %v3602, %v6408
        %v6425 = vmul.f32 %v3603, %v6409
        %v6426 = vmul.f32 %v3604, %v6410
        %v6427 = vmul.f32 %v3605, %v6411
        %v6428 = vmul.f32 %v3606, %v6412
        %v6429 = vmul.f32 %v3607, %v6413
        %v6430 = vmul.f32 %v3608, %v6414
        %v6431 = vmul.f32 %v3609, %v6415
        %v6432 = vmul.f32 %v3610, %v6416
        %v6433 = vmul.f32 %v3611, %v6417
        %v6434 = vadd.f32 %v6418, %v6426
        %v6435 = vadd.f32 %v6419, %v6427
        %v6436 = vadd.f32 %v6420, %v6428
        %v6437 = vadd.f32 %v6421, %v6429
        %v6438 = vadd.f32 %v6422, %v6430
        %v6439 = vadd.f32 %v6423, %v6431
        %v6440 = vadd.f32 %v6424, %v6432
        %v6441 = vadd.f32 %v6425, %v6433
        %v6442 = vsel %vm950, %v6434, 0.0
        %v6443 = vsel %vm950, %v6436, 0.0
        %v6444 = vadd.f32 %v6442, %v6443
        %v6445 = vsel %vm950, %v6438, 0.0
        %v6446 = vadd.f32 %v6444, %v6445
        %v6447 = vsel %vm950, %v6440, 0.0
        %v6448 = vadd.f32 %v6446, %v6447
        %v6449 = vsel %vm950, %v6435, 0.0
        %v6450 = vsel %vm950, %v6437, 0.0
        %v6451 = vadd.f32 %v6449, %v6450
        %v6452 = vsel %vm950, %v6439, 0.0
        %v6453 = vadd.f32 %v6451, %v6452
        %v6454 = vsel %vm950, %v6441, 0.0
        %v6455 = vadd.f32 %v6453, %v6454
        %v6456 = vmul.f32 %v3596, %v6410
        %v6457 = vmul.f32 %v3597, %v6411
        %v6458 = vmul.f32 %v3598, %v6412
        %v6459 = vmul.f32 %v3599, %v6413
        %v6460 = vmul.f32 %v3600, %v6414
        %v6461 = vmul.f32 %v3601, %v6415
        %v6462 = vmul.f32 %v3602, %v6416
        %v6463 = vmul.f32 %v3603, %v6417
        %v6464 = vmul.f32 %v3604, %v6402
        %v6465 = vmul.f32 %v3605, %v6403
        %v6466 = vmul.f32 %v3606, %v6404
        %v6467 = vmul.f32 %v3607, %v6405
        %v6468 = vmul.f32 %v3608, %v6406
        %v6469 = vmul.f32 %v3609, %v6407
        %v6470 = vmul.f32 %v3610, %v6408
        %v6471 = vmul.f32 %v3611, %v6409
        %v6472 = vsub.f32 %v6456, %v6464
        %v6473 = vsub.f32 %v6457, %v6465
        %v6474 = vsub.f32 %v6458, %v6466
        %v6475 = vsub.f32 %v6459, %v6467
        %v6476 = vsub.f32 %v6460, %v6468
        %v6477 = vsub.f32 %v6461, %v6469
        %v6478 = vsub.f32 %v6462, %v6470
        %v6479 = vsub.f32 %v6463, %v6471
        %v6480 = vsel %vm950, %v6472, 0.0
        %v6481 = vsel %vm950, %v6474, 0.0
        %v6482 = vadd.f32 %v6480, %v6481
        %v6483 = vsel %vm950, %v6476, 0.0
        %v6484 = vadd.f32 %v6482, %v6483
        %v6485 = vsel %vm950, %v6478, 0.0
        %v6486 = vadd.f32 %v6484, %v6485
        %v6487 = vsel %vm950, %v6473, 0.0
        %v6488 = vsel %vm950, %v6475, 0.0
        %v6489 = vadd.f32 %v6487, %v6488
        %v6490 = vsel %vm950, %v6477, 0.0
        %v6491 = vadd.f32 %v6489, %v6490
        %v6492 = vsel %vm950, %v6479, 0.0
        %v6493 = vadd.f32 %v6491, %v6492
        %s6494 = sld [smem:[#allocation2]]
        %v6495 = vld [vmem:[%s657] sm:$0xff]
        %v6496 = vld [vmem:[%s657 + $0x8] sm:$0xff]
        %v6497 = vsub.f32 %v6448, %v6495
        %v6498 = vsub.f32 %v6455, %v6496
        %v6499 = vstv %s6494
        %v6500 = vmul.f32 %v6499, %v6497
        %v6501 = vmul.f32 %v6499, %v6498
        %v6502 = vsub.f32 %v3544, %v6500
        %v6503 = vsub.f32 %v3594, %v6501
        %s6504 = scalar_lea.vmem %s657, 16 [#allocation8]
        %v6505 = vld [vmem:[%s6504] sm:$0xff]
        %v6506 = vld [vmem:[%s6504 + $0x8] sm:$0xff]
        %v6507 = vsub.f32 %v6486, %v6505
        %v6508 = vsub.f32 %v6493, %v6506
        %v6509 = vmul.f32 %v6499, %v6507
        %v6510 = vmul.f32 %v6499, %v6508
        %v6511 = vsub.f32 %v3545, %v6509
        %v6512 = vsub.f32 %v3595, %v6510
        %6513 = vst.msk [vmem:[%s747] sm:$0xff] %vm950, %v6502
        %6514 = vst.msk [vmem:[%s747 + $0x8] sm:$0xff] %vm950, %v6503
        %s6515 = scalar_lea.vmem %s747, 16 [#allocation17]
        %6516 = vst.msk [vmem:[%s6515] sm:$0xff] %vm950, %v6511
        %6517 = vst.msk [vmem:[%s6515 + $0x8] sm:$0xff] %vm950, %v6512
        %s6518 = sand.u32 %s431, 1
        %s6519 = scalar_lea.sflag [#allocation5], %s6518
        %s6520 = sand.u32 %s431, 1
        %s6521 = smul.addr %s6520, 32
        %s6522 = scalar_lea.vmem [#allocation17], %s6521
        // Predicated region
        $region121: #{tpu_custom_call.1} parent=87 // pred_check
          %p6523 = pneg %p441
        $region122: #{tpu_custom_call.1} parent=87 // pred_check_branch
          %6525 = sbr.rel (%p6523) target = $region124
        $region123: #{tpu_custom_call.1} parent=87 // pred_region
          %s6527 = ssub.s32 512, 512
          %6528 = vsyncadd %s6519, %s6527
          %s6529 = smul.addr %s41, 4
          %s6530 = smul.addr %s6529, 128
          %s6531 = scalar_lea.hbm %s17, %s6530
          %s6532 = sshll.u32 %s6522, 4
          %s6533 = int_to_ptr.vmem [resolvable:$true] %s6532
          %6538 = dma.vmem_to_hbm [thread:$0]  %s6533, 512, %s6531, %s6519, 128, 128, 8
        $region124: #{tpu_custom_call.1} parent=87 // pred_fallthru
          _
      $region88: #{tpu_custom_call.1} parent=5 // pred_fallthru
        _
      %p6539 = scmp.le.s32.totalorder 2, %s36
      // Predicated region
      $region125: #{tpu_custom_call.1} parent=5 // pred_check
        %p6540 = pneg %p6539
      $region126: #{tpu_custom_call.1} parent=5 // pred_check_branch
        %6542 = sbr.rel (%p6540) target = $region128
      $region127: #{tpu_custom_call.1} parent=5 // pred_region
        %s6543 = ssub.s32 %s36, 2
        // Predicated region
        $region129: #{tpu_custom_call.1} parent=127 // pred_check
          %p6544 = pneg %p447
        $region130: #{tpu_custom_call.1} parent=127 // pred_check_branch
          %6546 = sbr.rel (%p6544) target = $region132
        $region131: #{tpu_custom_call.1} parent=127 // pred_region
          %s6547 = sand.u32 %s432, 1
          %s6548 = scalar_lea.sflag [#allocation5], %s6547
          %s6549 = sand.u32 %s432, 1
          %s6550 = smul.addr %s6549, 32
          %s6551 = scalar_lea.vmem [#allocation17], %s6550
          %6552 = dma.done %s6548, 512
        $region132: #{tpu_custom_call.1} parent=127 // pred_fallthru
          _
      $region128: #{tpu_custom_call.1} parent=5 // pred_fallthru
        _
    $region6: #{tpu_custom_call.1} parent=1 // loop_footer
      %s40 = sadd.s32 1, %s36
    $region7: #{tpu_custom_call.1} parent=1 // loop_footer_branch
      %35 = sbr.rel target = $region3
    $region8: #{tpu_custom_call.1} parent=1 // loop_exit
      _
    %6553 = vsyncpa [#allocation4], 1
    %s6554 = scalar_lea.sflag [#allocation4], 1
    %6555 = vsyncpa %s6554, 1
    %6556 = vsyncpa [#allocation7], 1
    %s6557 = scalar_lea.sflag [#allocation7], 1
    %6558 = vsyncpa %s6557, 1
    %6559 = vsyncpa [#allocation10], 1
    %6560 = vsyncpa [#allocation13], 1
    %6561 = vsyncpa [#allocation16], 1
    %6562 = vsyncpa [#allocation5], 1
    %s6563 = scalar_lea.sflag [#allocation5], 1
    %6564 = vsyncpa %s6563, 1

</llo_original>
